<compile_context>
chip_gen: v7x
topology: tpu7x:2x2x1
jax: 0.10.0
libtpu: 0.0.40
codegen_flags: <defaults>
</compile_context>

<pallas_src>
import functools

import jax
import jax.numpy as jnp
from jax import lax
from jax.experimental import pallas as pl
from jax.experimental.pallas import tpu as pltpu

_VMEM_LIMIT = 32 * 1024 * 1024  # comfortable on v5e/v6e (128 MiB) and v7x (64 MiB)


def _pick_tile(dim, target, quantum):
    """Largest tile <= target that divides dim and is a multiple of quantum.

    Falls back to the full dimension (always a legal block) when dim is small
    or not a multiple of the quantum.
    """
    if dim <= target or dim % quantum != 0:
        return dim
    t = (target // quantum) * quantum
    while t >= quantum:
        if dim % t == 0:
            return t
        t -= quantum
    return dim


# --------------------------- fused matmul kernel ----------------------------

def _mm_kernel(a_ref, b_ref, bias_ref, o_ref, *, activation):
    acc = jnp.dot(a_ref[...], b_ref[...], preferred_element_type=jnp.float32)
    acc = acc + bias_ref[...]
    if activation == "tanh":
        acc = jnp.tanh(acc)
    o_ref[...] = acc.astype(o_ref.dtype)


def matmul_bias(a, b, bias, *, out_dtype=jnp.float32, activation="none",
                tile_m=256, tile_n=512):
    """o = act(a @ b + bias); a:(M,K), b:(K,N), bias:(N,). bf16 in, f32 accum."""
    M, K = a.shape
    K2, N = b.shape
    assert K == K2
    tm = _pick_tile(M, tile_m, 16)
    tn = _pick_tile(N, tile_n, 128)
    kern = functools.partial(_mm_kernel, activation=activation)
    return pl.pallas_call(
        kern,
        out_shape=jax.ShapeDtypeStruct((M, N), out_dtype),
        grid=(M // tm, N // tn),
        in_specs=[pl.BlockSpec((tm, K), lambda i, j: (i, 0)),
                  pl.BlockSpec((K, tn), lambda i, j: (0, j)),
                  pl.BlockSpec((1, tn), lambda i, j: (0, j))],
        out_specs=pl.BlockSpec((tm, tn), lambda i, j: (i, j)),
        compiler_params=pltpu.CompilerParams(
            dimension_semantics=("parallel", "parallel"),
            vmem_limit_bytes=_VMEM_LIMIT),
    )(a.astype(jnp.bfloat16), b.astype(jnp.bfloat16),
      bias.reshape(1, N).astype(jnp.float32))


# ---------------------- BatchNorm: stats + fused apply ----------------------

def _stats_kernel(x_ref, s_ref, q_ref):
    @pl.when(pl.program_id(0) == 0)
    def _():
        s_ref[...] = jnp.zeros_like(s_ref)
        q_ref[...] = jnp.zeros_like(q_ref)
    x = x_ref[...]
    s_ref[...] += jnp.sum(x, axis=0, keepdims=True)          # sum(x)
    q_ref[...] += jnp.sum(x * x, axis=0, keepdims=True)      # sum(x*x), single pass


def channel_stats(x):
    """x:(M,C) f32 -> (sum, sumsq), each (1,C) f32, one pass over row tiles."""
    M, C = x.shape
    tm = _pick_tile(M, 512, 16)
    return pl.pallas_call(
        _stats_kernel,
        out_shape=(jax.ShapeDtypeStruct((1, C), jnp.float32),
                   jax.ShapeDtypeStruct((1, C), jnp.float32)),
        grid=(M // tm,),
        in_specs=[pl.BlockSpec((tm, C), lambda i: (i, 0))],
        out_specs=(pl.BlockSpec((1, C), lambda i: (0, 0)),
                   pl.BlockSpec((1, C), lambda i: (0, 0))),
        compiler_params=pltpu.CompilerParams(
            dimension_semantics=("arbitrary",),   # resident accumulator outputs
            vmem_limit_bytes=_VMEM_LIMIT),
    )(x)


def _scale_shift_relu_kernel(x_ref, s_ref, t_ref, o_ref):
    y = x_ref[...] * s_ref[...] + t_ref[...]
    o_ref[...] = jnp.maximum(y, 0.0).astype(o_ref.dtype)


def bn_relu_apply(x, scale, shift, out_dtype=jnp.bfloat16):
    """Fused per-channel affine + ReLU, emits bf16 for the next layer."""
    M, C = x.shape
    tm = _pick_tile(M, 512, 16)
    return pl.pallas_call(
        _scale_shift_relu_kernel,
        out_shape=jax.ShapeDtypeStruct((M, C), out_dtype),
        grid=(M // tm,),
        in_specs=[pl.BlockSpec((tm, C), lambda i: (i, 0)),
                  pl.BlockSpec((1, C), lambda i: (0, 0)),
                  pl.BlockSpec((1, C), lambda i: (0, 0))],
        out_specs=pl.BlockSpec((tm, C), lambda i: (i, 0)),
        compiler_params=pltpu.CompilerParams(
            dimension_semantics=("parallel",),
            vmem_limit_bytes=_VMEM_LIMIT),
    )(x, scale.reshape(1, C).astype(jnp.float32),
      shift.reshape(1, C).astype(jnp.float32))


def batchnorm_relu(y, gamma, beta, eps=1e-5):
    """Train-mode BatchNorm2d (batch stats, biased variance) + ReLU on NHWC."""
    N, H, W, C = y.shape
    y2 = y.reshape(N * H * W, C)
    s, q = channel_stats(y2)
    m = float(N * H * W)
    mean = s / m
    var = q / m - mean * mean            # E[x^2] - mean^2 (single-pass, biased)
    inv = lax.rsqrt(var + eps)
    scale = gamma.reshape(1, C) * inv
    shift = beta.reshape(1, C) - mean * scale
    out = bn_relu_apply(y2, scale, shift)
    return out.reshape(N, H, W, C)


# -------------- ConvTranspose2d(4,2,1) as ONE fused parity matmul -----------
#
# Sub-pixel decomposition: output pixel (2a+r, 2b+c) needs padded-input pixels
# (a+r+t, b+c+u), t,u in {0,1}, with kernel taps (kh,kw) = (3-2t-r, 3-2u-c).
# The 2x2 patch matrix P[(n,a',b'), (t,u,ci)] is SHARED by all four parities,
# so all parities become extra output columns of a single matmul against the
# pre-packed weight (4*Cin, 4*Cout).

def deconv4x4_s2_p1(h, w_cat, b_cat, *, activation="none", out_dtype=jnp.float32):
    """h:(N,H,W,Cin) -> (N,2H,2W,Cout). w_cat:(4*Cin,4*Cout) bf16, b_cat:(4*Cout,)."""
    N, H, W, Cin = h.shape
    Cout = w_cat.shape[1] // 4
    hp = jnp.pad(h, ((0, 0), (1, 1), (1, 1), (0, 0)))
    taps = [hp[:, t:t + H + 1, u:u + W + 1, :] for t in (0, 1) for u in (0, 1)]
    patches = jnp.concatenate(taps, axis=-1)                       # (N,H+1,W+1,4*Cin)
    P = patches.reshape(N * (H + 1) * (W + 1), 4 * Cin)
    y = matmul_bias(P, w_cat, b_cat, out_dtype=out_dtype, activation=activation)
    # De-interleave the 4 parity planes into the 2x-upsampled output.
    # TODO(synk): fold this XLA interleave into the next layer's tap gather (or
    # a strided out_spec) to remove one full activation copy per layer.
    y = y.reshape(N, H + 1, W + 1, 2, 2, Cout)
    rows = []
    for r in (0, 1):
        cols = [y[:, r:r + H, c:c + W, r, c, :] for c in (0, 1)]
        rows.append(jnp.stack(cols, axis=3))                       # (N,H,W,2,Cout)
    out = jnp.stack(rows, axis=2)                                  # (N,H,2,W,2,Cout)
    return out.reshape(N, 2 * H, 2 * W, Cout)


# ------------------------------ parameters ----------------------------------

def init_raw_params(key, n_classes, latent_dim, img_size, channels):
    """Raw params in PyTorch layouts (Embedding / Linear / ConvTranspose2d / BN)."""
    init_size = img_size // 16
    ks = jax.random.split(key, 20)

    def nrm(k, shape, scale=0.05):
        return (scale * jax.random.normal(k, shape)).astype(jnp.float32)

    p = {'emb': nrm(ks[0], (n_classes, n_classes))}
    fc_out = 512 * init_size * init_size
    p['fc_w'] = nrm(ks[1], (fc_out, latent_dim + n_classes))       # torch (out, in)
    p['fc_b'] = nrm(ks[2], (fc_out,))
    chans = [512, 256, 128, 64, channels]
    for i in range(4):
        p[f'dc{i}_w'] = nrm(ks[3 + 2 * i], (chans[i], chans[i + 1], 4, 4))
        p[f'dc{i}_b'] = nrm(ks[4 + 2 * i], (chans[i + 1],))
    for i in range(3):
        p[f'bn{i}_g'] = 1.0 + nrm(ks[11 + i], (chans[i + 1],), 0.01)
        p[f'bn{i}_b'] = nrm(ks[14 + i], (chans[i + 1],), 0.01)
    return p, init_size


def pack_deconv_weight(w):
    """(Cin,Cout,4,4) torch layout -> (4*Cin, 4*Cout) bf16; rows (t,u,ci), cols (r,c,co)."""
    rows = []
    for t in (0, 1):
        for u in (0, 1):
            cols = [w[:, :, 3 - 2 * t - r, 3 - 2 * u - c]
                    for r in (0, 1) for c in (0, 1)]               # each (Cin,Cout)
            rows.append(jnp.concatenate(cols, axis=1))             # (Cin, 4*Cout)
    return jnp.concatenate(rows, axis=0).astype(jnp.bfloat16)


def pack_params(p, init_size):
    """One-time weight packing: bf16 casts, parity packing, NHWC fc permutation."""
    s = init_size
    in_dim = p['fc_w'].shape[1]
    q = {'emb': p['emb']}
    # (out,in) -> (in,out) and permute output features (co,i,j) -> (i,j,co) so the
    # fc result is already NHWC-ordered (no activation transpose each forward).
    w = p['fc_w'].T.reshape(in_dim, 512, s, s).transpose(0, 2, 3, 1)
    q['fc_w'] = w.reshape(in_dim, s * s * 512).astype(jnp.bfloat16)
    q['fc_b'] = p['fc_b'].reshape(512, s, s).transpose(1, 2, 0).reshape(-1)
    for i in range(4):
        q[f'dc{i}_w'] = pack_deconv_weight(p[f'dc{i}_w'])
        q[f'dc{i}_b'] = jnp.tile(p[f'dc{i}_b'], 4)                 # parity-major bias
    for i in range(3):
        q[f'bn{i}_g'] = p[f'bn{i}_g']
        q[f'bn{i}_b'] = p[f'bn{i}_b']
    return q


# -------------------------------- forward -----------------------------------

def generator_forward(params, noise, labels, init_size):
    Nb = noise.shape[0]
    labels = labels.reshape(Nb)
    # TODO(synk): embedding lookup is a tiny gather; done as XLA glue (no flops).
    emb = jnp.take(params['emb'], labels, axis=0)                  # (Nb, n_classes)
    x = jnp.concatenate([noise, emb], axis=1)
    h = matmul_bias(x, params['fc_w'], params['fc_b'],
                    out_dtype=jnp.bfloat16)                        # (Nb, s*s*512) NHWC-ordered
    h = h.reshape(Nb, init_size, init_size, 512)
    for i in range(3):
        y = deconv4x4_s2_p1(h, params[f'dc{i}_w'], params[f'dc{i}_b'])
        h = batchnorm_relu(y, params[f'bn{i}_g'], params[f'bn{i}_b'])   # bf16 NHWC
    # Final layer: tanh fused into the matmul epilogue (avoids a separate
    # lane-starved (M,3) elementwise pass; output columns are 4*channels wide).
    img = deconv4x4_s2_p1(h, params['dc3_w'], params['dc3_b'],
                          activation="tanh", out_dtype=jnp.float32)
    return jnp.transpose(img, (0, 3, 1, 2))                        # NHWC -> NCHW


if __name__ == "__main__":
    n_classes, latent_dim, img_size, channels = 4, 16, 32, 3
    batch = 2
    key = jax.random.PRNGKey(0)
    kp, kn, kl = jax.random.split(key, 3)
    raw, init_size = init_raw_params(kp, n_classes, latent_dim, img_size, channels)
    params = pack_params(raw, init_size)            # one-time packing, outside jit
    noise = jax.random.normal(kn, (batch, latent_dim), dtype=jnp.float32)
    labels = jax.random.randint(kl, (batch, 1), 0, n_classes, dtype=jnp.int32)

    fwd = jax.jit(functools.partial(generator_forward, init_size=init_size))
    img = fwd(params, noise, labels)
    jax.block_until_ready(img)
    assert img.shape == (batch, channels, img_size, img_size)
    assert img.dtype == jnp.float32
    assert bool(jnp.all(jnp.isfinite(img)))
    assert bool(jnp.all(jnp.abs(img) <= 1.0))       # tanh-bounded output
    print("KERNEL_OK")
</pallas_src>

<mosaic_0001>
module attributes {stable_mosaic.version = 11 : i64} {
  func.func @_mm_kernel(%arg0: i32, %arg1: i32, %arg2: memref<2x20xbf16, #tpu.memory_space<vmem>>, %arg3: memref<20x512xbf16, #tpu.memory_space<vmem>>, %arg4: memref<1x512xf32, #tpu.memory_space<vmem>>, %arg5: memref<2x512xbf16, #tpu.memory_space<vmem>>) attributes {dimension_semantics = [#tpu.dimension_semantics<parallel>, #tpu.dimension_semantics<parallel>], iteration_bounds = array<i64: 1, 4>, scalar_prefetch = 0 : i64, scratch_operands = 0 : i64, tpu.core_type = #tpu.core_type<tc>, window_params = [{transform_indices = @transform_0, window_bounds = array<i64: 2, 20>}, {transform_indices = @transform_1, window_bounds = array<i64: 20, 512>}, {transform_indices = @transform_2, window_bounds = array<i64: 1, 512>}, {transform_indices = @transform_3, window_bounds = array<i64: 2, 512>}]} {
    %c0 = arith.constant 0 : index
    %c0_0 = arith.constant 0 : index
    %0 = vector.load %arg2[%c0, %c0_0] : memref<2x20xbf16, #tpu.memory_space<vmem>>, vector<2x20xbf16>
    %c0_1 = arith.constant 0 : index
    %c0_2 = arith.constant 0 : index
    %1 = vector.load %arg3[%c0_1, %c0_2] : memref<20x512xbf16, #tpu.memory_space<vmem>>, vector<20x512xbf16>
    %cst = arith.constant dense<0.000000e+00> : vector<2x512xf32>
    %2 = tpu.matmul %0, %1, %cst {dimension_numbers = #tpu.dot_dimension_numbers<[1], [0], [0], [1], [0, 0, 1, 1], [], []>} : vector<2x20xbf16>, vector<20x512xbf16>, vector<2x512xf32> -> vector<2x512xf32>
    %c0_3 = arith.constant 0 : index
    %c0_4 = arith.constant 0 : index
    %3 = vector.load %arg4[%c0_3, %c0_4] : memref<1x512xf32, #tpu.memory_space<vmem>>, vector<1x512xf32>
    %4 = vector.broadcast %3 : vector<1x512xf32> to vector<2x512xf32>
    %5 = arith.addf %2, %4 : vector<2x512xf32>
    %6 = arith.truncf %5 : vector<2x512xf32> to vector<2x512xbf16>
    %c0_5 = arith.constant 0 : index
    %c0_6 = arith.constant 0 : index
    %7 = vector.load %arg5[%c0_5, %c0_6] : memref<2x512xbf16, #tpu.memory_space<vmem>>, vector<2x512xbf16>
    tpu.vector_store %arg5[%c0_5, %c0_6], %6 {strides = array<i32>} : memref<2x512xbf16, #tpu.memory_space<vmem>>, vector<2x512xbf16>,
    return
  }
  func.func @transform_0(%arg0: i32, %arg1: i32) -> (i32, i32) {
    %c0_i32 = arith.constant 0 : i32
    %c0_i32_0 = arith.constant 0 : i32
    return %arg0, %c0_i32 : i32, i32
  }
  func.func @transform_1(%arg0: i32, %arg1: i32) -> (i32, i32) {
    %c0_i32 = arith.constant 0 : i32
    %c0_i32_0 = arith.constant 0 : i32
    return %c0_i32, %arg1 : i32, i32
  }
  func.func @transform_2(%arg0: i32, %arg1: i32) -> (i32, i32) {
    %c0_i32 = arith.constant 0 : i32
    %c0_i32_0 = arith.constant 0 : i32
    return %c0_i32, %arg1 : i32, i32
  }
  func.func @transform_3(%arg0: i32, %arg1: i32) -> (i32, i32) {
    %c0_i32 = arith.constant 0 : i32
    return %arg0, %arg1 : i32, i32
  }
}

module attributes {stable_mosaic.version = 11 : i64} {
  func.func @_mm_kernel(%arg0: i32, %arg1: i32, %arg2: memref<18x2048xbf16, #tpu.memory_space<vmem>>, %arg3: memref<2048x512xbf16, #tpu.memory_space<vmem>>, %arg4: memref<1x512xf32, #tpu.memory_space<vmem>>, %arg5: memref<18x512xf32, #tpu.memory_space<vmem>>) attributes {dimension_semantics = [#tpu.dimension_semantics<parallel>, #tpu.dimension_semantics<parallel>], iteration_bounds = array<i64: 1, 2>, scalar_prefetch = 0 : i64, scratch_operands = 0 : i64, tpu.core_type = #tpu.core_type<tc>, window_params = [{transform_indices = @transform_0, window_bounds = array<i64: 18, 2048>}, {transform_indices = @transform_1, window_bounds = array<i64: 2048, 512>}, {transform_indices = @transform_2, window_bounds = array<i64: 1, 512>}, {transform_indices = @transform_3, window_bounds = array<i64: 18, 512>}]} {
    %c0 = arith.constant 0 : index
    %c0_0 = arith.constant 0 : index
    %0 = vector.load %arg2[%c0, %c0_0] : memref<18x2048xbf16, #tpu.memory_space<vmem>>, vector<18x2048xbf16>
    %c0_1 = arith.constant 0 : index
    %c0_2 = arith.constant 0 : index
    %1 = vector.load %arg3[%c0_1, %c0_2] : memref<2048x512xbf16, #tpu.memory_space<vmem>>, vector<2048x512xbf16>
    %cst = arith.constant dense<0.000000e+00> : vector<18x512xf32>
    %2 = tpu.matmul %0, %1, %cst {dimension_numbers = #tpu.dot_dimension_numbers<[1], [0], [0], [1], [0, 0, 1, 1], [], []>} : vector<18x2048xbf16>, vector<2048x512xbf16>, vector<18x512xf32> -> vector<18x512xf32>
    %c0_3 = arith.constant 0 : index
    %c0_4 = arith.constant 0 : index
    %3 = vector.load %arg4[%c0_3, %c0_4] : memref<1x512xf32, #tpu.memory_space<vmem>>, vector<1x512xf32>
    %4 = vector.broadcast %3 : vector<1x512xf32> to vector<18x512xf32>
    %5 = arith.addf %2, %4 : vector<18x512xf32>
    %c0_5 = arith.constant 0 : index
    %c0_6 = arith.constant 0 : index
    %6 = vector.load %arg5[%c0_5, %c0_6] : memref<18x512xf32, #tpu.memory_space<vmem>>, vector<18x512xf32>
    tpu.vector_store %arg5[%c0_5, %c0_6], %5 {strides = array<i32>} : memref<18x512xf32, #tpu.memory_space<vmem>>, vector<18x512xf32>,
    return
  }
  func.func @transform_0(%arg0: i32, %arg1: i32) -> (i32, i32) {
    %c0_i32 = arith.constant 0 : i32
    %c0_i32_0 = arith.constant 0 : i32
    return %arg0, %c0_i32 : i32, i32
  }
  func.func @transform_1(%arg0: i32, %arg1: i32) -> (i32, i32) {
    %c0_i32 = arith.constant 0 : i32
    %c0_i32_0 = arith.constant 0 : i32
    return %c0_i32, %arg1 : i32, i32
  }
  func.func @transform_2(%arg0: i32, %arg1: i32) -> (i32, i32) {
    %c0_i32 = arith.constant 0 : i32
    %c0_i32_0 = arith.constant 0 : i32
    return %c0_i32, %arg1 : i32, i32
  }
  func.func @transform_3(%arg0: i32, %arg1: i32) -> (i32, i32) {
    %c0_i32 = arith.constant 0 : i32
    return %arg0, %arg1 : i32, i32
  }
}

module attributes {stable_mosaic.version = 11 : i64} {
  func.func @_stats_kernel(%arg0: i32, %arg1: memref<32x256xf32, #tpu.memory_space<vmem>>, %arg2: memref<1x256xf32, #tpu.memory_space<vmem>>, %arg3: memref<1x256xf32, #tpu.memory_space<vmem>>) attributes {dimension_semantics = [#tpu.dimension_semantics<arbitrary>], iteration_bounds = array<i64: 1>, scalar_prefetch = 0 : i64, scratch_operands = 0 : i64, tpu.core_type = #tpu.core_type<tc>, window_params = [{transform_indices = @transform_0, window_bounds = array<i64: 32, 256>}, {pipeline_mode = #tpu.pipeline_mode<synchronous>, transform_indices = @transform_1, window_bounds = array<i64: 1, 256>}, {pipeline_mode = #tpu.pipeline_mode<synchronous>, transform_indices = @transform_2, window_bounds = array<i64: 1, 256>}]} {
    %c0_i32 = arith.constant 0 : i32
    %0 = arith.cmpi eq, %arg0, %c0_i32 : i32
    %1 = arith.extui %0 : i1 to i32
    %c0_i32_0 = arith.constant 0 : i32
    %2 = arith.cmpi ne, %1, %c0_i32_0 : i32
    scf.if %2 {
      %cst_11 = arith.constant 0.000000e+00 : f32
      %15 = vector.broadcast %cst_11 : f32 to vector<1x256xf32>
      %c0_12 = arith.constant 0 : index
      %c0_13 = arith.constant 0 : index
      %16 = vector.load %arg2[%c0_12, %c0_13] : memref<1x256xf32, #tpu.memory_space<vmem>>, vector<1x256xf32>
      tpu.vector_store %arg2[%c0_12, %c0_13], %15 {strides = array<i32>} : memref<1x256xf32, #tpu.memory_space<vmem>>, vector<1x256xf32>,
      %cst_14 = arith.constant 0.000000e+00 : f32
      %17 = vector.broadcast %cst_14 : f32 to vector<1x256xf32>
      %c0_15 = arith.constant 0 : index
      %c0_16 = arith.constant 0 : index
      %18 = vector.load %arg3[%c0_15, %c0_16] : memref<1x256xf32, #tpu.memory_space<vmem>>, vector<1x256xf32>
      tpu.vector_store %arg3[%c0_15, %c0_16], %17 {strides = array<i32>} : memref<1x256xf32, #tpu.memory_space<vmem>>, vector<1x256xf32>,
    } else {
    }
    %c0 = arith.constant 0 : index
    %c0_1 = arith.constant 0 : index
    %3 = vector.load %arg1[%c0, %c0_1] : memref<32x256xf32, #tpu.memory_space<vmem>>, vector<32x256xf32>
    %c0_2 = arith.constant 0 : index
    %c0_3 = arith.constant 0 : index
    %4 = vector.load %arg2[%c0_2, %c0_3] : memref<1x256xf32, #tpu.memory_space<vmem>>, vector<1x256xf32>
    %cst = arith.constant dense<0.000000e+00> : vector<256xf32>
    %5 = vector.multi_reduction <add>, %3, %cst [0] : vector<32x256xf32> to vector<256xf32>
    %6 = vector.shape_cast %5 : vector<256xf32> to vector<1x256xf32>
    %7 = arith.addf %4, %6 : vector<1x256xf32>
    %c0_4 = arith.constant 0 : index
    %c0_5 = arith.constant 0 : index
    %8 = vector.load %arg2[%c0_4, %c0_5] : memref<1x256xf32, #tpu.memory_space<vmem>>, vector<1x256xf32>
    tpu.vector_store %arg2[%c0_4, %c0_5], %7 {strides = array<i32>} : memref<1x256xf32, #tpu.memory_space<vmem>>, vector<1x256xf32>,
    %c0_6 = arith.constant 0 : index
    %c0_7 = arith.constant 0 : index
    %9 = vector.load %arg3[%c0_6, %c0_7] : memref<1x256xf32, #tpu.memory_space<vmem>>, vector<1x256xf32>
    %10 = arith.mulf %3, %3 : vector<32x256xf32>
    %cst_8 = arith.constant dense<0.000000e+00> : vector<256xf32>
    %11 = vector.multi_reduction <add>, %10, %cst_8 [0] : vector<32x256xf32> to vector<256xf32>
    %12 = vector.shape_cast %11 : vector<256xf32> to vector<1x256xf32>
    %13 = arith.addf %9, %12 : vector<1x256xf32>
    %c0_9 = arith.constant 0 : index
    %c0_10 = arith.constant 0 : index
    %14 = vector.load %arg3[%c0_9, %c0_10] : memref<1x256xf32, #tpu.memory_space<vmem>>, vector<1x256xf32>
    tpu.vector_store %arg3[%c0_9, %c0_10], %13 {strides = array<i32>} : memref<1x256xf32, #tpu.memory_space<vmem>>, vector<1x256xf32>,
    return
  }
  func.func @transform_0(%arg0: i32) -> (i32, i32) {
    %c0_i32 = arith.constant 0 : i32
    %c0_i32_0 = arith.constant 0 : i32
    return %arg0, %c0_i32 : i32, i32
  }
  func.func @transform_1(%arg0: i32) -> (i32, i32) {
    %c0_i32 = arith.constant 0 : i32
    %c0_i32_0 = arith.constant 0 : i32
    %c0_i32_1 = arith.constant 0 : i32
    return %c0_i32, %c0_i32_0 : i32, i32
  }
  func.func @transform_2(%arg0: i32) -> (i32, i32) {
    %c0_i32 = arith.constant 0 : i32
    %c0_i32_0 = arith.constant 0 : i32
    %c0_i32_1 = arith.constant 0 : i32
    return %c0_i32, %c0_i32_0 : i32, i32
  }
}

module attributes {stable_mosaic.version = 11 : i64} {
  func.func @_scale_shift_relu_kernel(%arg0: i32, %arg1: memref<32x256xf32, #tpu.memory_space<vmem>>, %arg2: memref<1x256xf32, #tpu.memory_space<vmem>>, %arg3: memref<1x256xf32, #tpu.memory_space<vmem>>, %arg4: memref<32x256xbf16, #tpu.memory_space<vmem>>) attributes {dimension_semantics = [#tpu.dimension_semantics<parallel>], iteration_bounds = array<i64: 1>, scalar_prefetch = 0 : i64, scratch_operands = 0 : i64, tpu.core_type = #tpu.core_type<tc>, window_params = [{transform_indices = @transform_0, window_bounds = array<i64: 32, 256>}, {pipeline_mode = #tpu.pipeline_mode<synchronous>, transform_indices = @transform_1, window_bounds = array<i64: 1, 256>}, {pipeline_mode = #tpu.pipeline_mode<synchronous>, transform_indices = @transform_2, window_bounds = array<i64: 1, 256>}, {transform_indices = @transform_3, window_bounds = array<i64: 32, 256>}]} {
    %c0 = arith.constant 0 : index
    %c0_0 = arith.constant 0 : index
    %0 = vector.load %arg1[%c0, %c0_0] : memref<32x256xf32, #tpu.memory_space<vmem>>, vector<32x256xf32>
    %c0_1 = arith.constant 0 : index
    %c0_2 = arith.constant 0 : index
    %1 = vector.load %arg2[%c0_1, %c0_2] : memref<1x256xf32, #tpu.memory_space<vmem>>, vector<1x256xf32>
    %2 = vector.broadcast %1 : vector<1x256xf32> to vector<32x256xf32>
    %3 = arith.mulf %0, %2 : vector<32x256xf32>
    %c0_3 = arith.constant 0 : index
    %c0_4 = arith.constant 0 : index
    %4 = vector.load %arg3[%c0_3, %c0_4] : memref<1x256xf32, #tpu.memory_space<vmem>>, vector<1x256xf32>
    %5 = vector.broadcast %4 : vector<1x256xf32> to vector<32x256xf32>
    %6 = arith.addf %3, %5 : vector<32x256xf32>
    %cst = arith.constant 0.000000e+00 : f32
    %7 = vector.broadcast %cst : f32 to vector<32x256xf32>
    %8 = arith.maximumf %6, %7 : vector<32x256xf32>
    %9 = arith.truncf %8 : vector<32x256xf32> to vector<32x256xbf16>
    %c0_5 = arith.constant 0 : index
    %c0_6 = arith.constant 0 : index
    %10 = vector.load %arg4[%c0_5, %c0_6] : memref<32x256xbf16, #tpu.memory_space<vmem>>, vector<32x256xbf16>
    tpu.vector_store %arg4[%c0_5, %c0_6], %9 {strides = array<i32>} : memref<32x256xbf16, #tpu.memory_space<vmem>>, vector<32x256xbf16>,
    return
  }
  func.func @transform_0(%arg0: i32) -> (i32, i32) {
    %c0_i32 = arith.constant 0 : i32
    %c0_i32_0 = arith.constant 0 : i32
    return %arg0, %c0_i32 : i32, i32
  }
  func.func @transform_1(%arg0: i32) -> (i32, i32) {
    %c0_i32 = arith.constant 0 : i32
    %c0_i32_0 = arith.constant 0 : i32
    %c0_i32_1 = arith.constant 0 : i32
    return %c0_i32, %c0_i32_0 : i32, i32
  }
  func.func @transform_2(%arg0: i32) -> (i32, i32) {
    %c0_i32 = arith.constant 0 : i32
    %c0_i32_0 = arith.constant 0 : i32
    %c0_i32_1 = arith.constant 0 : i32
    return %c0_i32, %c0_i32_0 : i32, i32
  }
  func.func @transform_3(%arg0: i32) -> (i32, i32) {
    %c0_i32 = arith.constant 0 : i32
    %c0_i32_0 = arith.constant 0 : i32
    return %arg0, %c0_i32 : i32, i32
  }
}

module attributes {stable_mosaic.version = 11 : i64} {
  func.func @_mm_kernel(%arg0: i32, %arg1: i32, %arg2: memref<50x1024xbf16, #tpu.memory_space<vmem>>, %arg3: memref<1024x512xbf16, #tpu.memory_space<vmem>>, %arg4: memref<1x512xf32, #tpu.memory_space<vmem>>, %arg5: memref<50x512xf32, #tpu.memory_space<vmem>>) attributes {dimension_semantics = [#tpu.dimension_semantics<parallel>, #tpu.dimension_semantics<parallel>], iteration_bounds = array<i64: 1, 1>, scalar_prefetch = 0 : i64, scratch_operands = 0 : i64, tpu.core_type = #tpu.core_type<tc>, window_params = [{transform_indices = @transform_0, window_bounds = array<i64: 50, 1024>}, {transform_indices = @transform_1, window_bounds = array<i64: 1024, 512>}, {transform_indices = @transform_2, window_bounds = array<i64: 1, 512>}, {transform_indices = @transform_3, window_bounds = array<i64: 50, 512>}]} {
    %c0 = arith.constant 0 : index
    %c0_0 = arith.constant 0 : index
    %0 = vector.load %arg2[%c0, %c0_0] : memref<50x1024xbf16, #tpu.memory_space<vmem>>, vector<50x1024xbf16>
    %c0_1 = arith.constant 0 : index
    %c0_2 = arith.constant 0 : index
    %1 = vector.load %arg3[%c0_1, %c0_2] : memref<1024x512xbf16, #tpu.memory_space<vmem>>, vector<1024x512xbf16>
    %cst = arith.constant dense<0.000000e+00> : vector<50x512xf32>
    %2 = tpu.matmul %0, %1, %cst {dimension_numbers = #tpu.dot_dimension_numbers<[1], [0], [0], [1], [0, 0, 1, 1], [], []>} : vector<50x1024xbf16>, vector<1024x512xbf16>, vector<50x512xf32> -> vector<50x512xf32>
    %c0_3 = arith.constant 0 : index
    %c0_4 = arith.constant 0 : index
    %3 = vector.load %arg4[%c0_3, %c0_4] : memref<1x512xf32, #tpu.memory_space<vmem>>, vector<1x512xf32>
    %4 = vector.broadcast %3 : vector<1x512xf32> to vector<50x512xf32>
    %5 = arith.addf %2, %4 : vector<50x512xf32>
    %c0_5 = arith.constant 0 : index
    %c0_6 = arith.constant 0 : index
    %6 = vector.load %arg5[%c0_5, %c0_6] : memref<50x512xf32, #tpu.memory_space<vmem>>, vector<50x512xf32>
    tpu.vector_store %arg5[%c0_5, %c0_6], %5 {strides = array<i32>} : memref<50x512xf32, #tpu.memory_space<vmem>>, vector<50x512xf32>,
    return
  }
  func.func @transform_0(%arg0: i32, %arg1: i32) -> (i32, i32) {
    %c0_i32 = arith.constant 0 : i32
    %c0_i32_0 = arith.constant 0 : i32
    return %arg0, %c0_i32 : i32, i32
  }
  func.func @transform_1(%arg0: i32, %arg1: i32) -> (i32, i32) {
    %c0_i32 = arith.constant 0 : i32
    %c0_i32_0 = arith.constant 0 : i32
    return %c0_i32, %arg1 : i32, i32
  }
  func.func @transform_2(%arg0: i32, %arg1: i32) -> (i32, i32) {
    %c0_i32 = arith.constant 0 : i32
    %c0_i32_0 = arith.constant 0 : i32
    return %c0_i32, %arg1 : i32, i32
  }
  func.func @transform_3(%arg0: i32, %arg1: i32) -> (i32, i32) {
    %c0_i32 = arith.constant 0 : i32
    return %arg0, %arg1 : i32, i32
  }
}

module attributes {stable_mosaic.version = 11 : i64} {
  func.func @_stats_kernel(%arg0: i32, %arg1: memref<128x128xf32, #tpu.memory_space<vmem>>, %arg2: memref<1x128xf32, #tpu.memory_space<vmem>>, %arg3: memref<1x128xf32, #tpu.memory_space<vmem>>) attributes {dimension_semantics = [#tpu.dimension_semantics<arbitrary>], iteration_bounds = array<i64: 1>, scalar_prefetch = 0 : i64, scratch_operands = 0 : i64, tpu.core_type = #tpu.core_type<tc>, window_params = [{transform_indices = @transform_0, window_bounds = array<i64: 128, 128>}, {pipeline_mode = #tpu.pipeline_mode<synchronous>, transform_indices = @transform_1, window_bounds = array<i64: 1, 128>}, {pipeline_mode = #tpu.pipeline_mode<synchronous>, transform_indices = @transform_2, window_bounds = array<i64: 1, 128>}]} {
    %c0_i32 = arith.constant 0 : i32
    %0 = arith.cmpi eq, %arg0, %c0_i32 : i32
    %1 = arith.extui %0 : i1 to i32
    %c0_i32_0 = arith.constant 0 : i32
    %2 = arith.cmpi ne, %1, %c0_i32_0 : i32
    scf.if %2 {
      %cst_11 = arith.constant 0.000000e+00 : f32
      %15 = vector.broadcast %cst_11 : f32 to vector<1x128xf32>
      %c0_12 = arith.constant 0 : index
      %c0_13 = arith.constant 0 : index
      %16 = vector.load %arg2[%c0_12, %c0_13] : memref<1x128xf32, #tpu.memory_space<vmem>>, vector<1x128xf32>
      tpu.vector_store %arg2[%c0_12, %c0_13], %15 {strides = array<i32>} : memref<1x128xf32, #tpu.memory_space<vmem>>, vector<1x128xf32>,
      %cst_14 = arith.constant 0.000000e+00 : f32
      %17 = vector.broadcast %cst_14 : f32 to vector<1x128xf32>
      %c0_15 = arith.constant 0 : index
      %c0_16 = arith.constant 0 : index
      %18 = vector.load %arg3[%c0_15, %c0_16] : memref<1x128xf32, #tpu.memory_space<vmem>>, vector<1x128xf32>
      tpu.vector_store %arg3[%c0_15, %c0_16], %17 {strides = array<i32>} : memref<1x128xf32, #tpu.memory_space<vmem>>, vector<1x128xf32>,
    } else {
    }
    %c0 = arith.constant 0 : index
    %c0_1 = arith.constant 0 : index
    %3 = vector.load %arg1[%c0, %c0_1] : memref<128x128xf32, #tpu.memory_space<vmem>>, vector<128x128xf32>
    %c0_2 = arith.constant 0 : index
    %c0_3 = arith.constant 0 : index
    %4 = vector.load %arg2[%c0_2, %c0_3] : memref<1x128xf32, #tpu.memory_space<vmem>>, vector<1x128xf32>
    %cst = arith.constant dense<0.000000e+00> : vector<128xf32>
    %5 = vector.multi_reduction <add>, %3, %cst [0] : vector<128x128xf32> to vector<128xf32>
    %6 = vector.shape_cast %5 : vector<128xf32> to vector<1x128xf32>
    %7 = arith.addf %4, %6 : vector<1x128xf32>
    %c0_4 = arith.constant 0 : index
    %c0_5 = arith.constant 0 : index
    %8 = vector.load %arg2[%c0_4, %c0_5] : memref<1x128xf32, #tpu.memory_space<vmem>>, vector<1x128xf32>
    tpu.vector_store %arg2[%c0_4, %c0_5], %7 {strides = array<i32>} : memref<1x128xf32, #tpu.memory_space<vmem>>, vector<1x128xf32>,
    %c0_6 = arith.constant 0 : index
    %c0_7 = arith.constant 0 : index
    %9 = vector.load %arg3[%c0_6, %c0_7] : memref<1x128xf32, #tpu.memory_space<vmem>>, vector<1x128xf32>
    %10 = arith.mulf %3, %3 : vector<128x128xf32>
    %cst_8 = arith.constant dense<0.000000e+00> : vector<128xf32>
    %11 = vector.multi_reduction <add>, %10, %cst_8 [0] : vector<128x128xf32> to vector<128xf32>
    %12 = vector.shape_cast %11 : vector<128xf32> to vector<1x128xf32>
    %13 = arith.addf %9, %12 : vector<1x128xf32>
    %c0_9 = arith.constant 0 : index
    %c0_10 = arith.constant 0 : index
    %14 = vector.load %arg3[%c0_9, %c0_10] : memref<1x128xf32, #tpu.memory_space<vmem>>, vector<1x128xf32>
    tpu.vector_store %arg3[%c0_9, %c0_10], %13 {strides = array<i32>} : memref<1x128xf32, #tpu.memory_space<vmem>>, vector<1x128xf32>,
    return
  }
  func.func @transform_0(%arg0: i32) -> (i32, i32) {
    %c0_i32 = arith.constant 0 : i32
    %c0_i32_0 = arith.constant 0 : i32
    return %arg0, %c0_i32 : i32, i32
  }
  func.func @transform_1(%arg0: i32) -> (i32, i32) {
    %c0_i32 = arith.constant 0 : i32
    %c0_i32_0 = arith.constant 0 : i32
    %c0_i32_1 = arith.constant 0 : i32
    return %c0_i32, %c0_i32_0 : i32, i32
  }
  func.func @transform_2(%arg0: i32) -> (i32, i32) {
    %c0_i32 = arith.constant 0 : i32
    %c0_i32_0 = arith.constant 0 : i32
    %c0_i32_1 = arith.constant 0 : i32
    return %c0_i32, %c0_i32_0 : i32, i32
  }
}

module attributes {stable_mosaic.version = 11 : i64} {
  func.func @_scale_shift_relu_kernel(%arg0: i32, %arg1: memref<128x128xf32, #tpu.memory_space<vmem>>, %arg2: memref<1x128xf32, #tpu.memory_space<vmem>>, %arg3: memref<1x128xf32, #tpu.memory_space<vmem>>, %arg4: memref<128x128xbf16, #tpu.memory_space<vmem>>) attributes {dimension_semantics = [#tpu.dimension_semantics<parallel>], iteration_bounds = array<i64: 1>, scalar_prefetch = 0 : i64, scratch_operands = 0 : i64, tpu.core_type = #tpu.core_type<tc>, window_params = [{transform_indices = @transform_0, window_bounds = array<i64: 128, 128>}, {pipeline_mode = #tpu.pipeline_mode<synchronous>, transform_indices = @transform_1, window_bounds = array<i64: 1, 128>}, {pipeline_mode = #tpu.pipeline_mode<synchronous>, transform_indices = @transform_2, window_bounds = array<i64: 1, 128>}, {transform_indices = @transform_3, window_bounds = array<i64: 128, 128>}]} {
    %c0 = arith.constant 0 : index
    %c0_0 = arith.constant 0 : index
    %0 = vector.load %arg1[%c0, %c0_0] : memref<128x128xf32, #tpu.memory_space<vmem>>, vector<128x128xf32>
    %c0_1 = arith.constant 0 : index
    %c0_2 = arith.constant 0 : index
    %1 = vector.load %arg2[%c0_1, %c0_2] : memref<1x128xf32, #tpu.memory_space<vmem>>, vector<1x128xf32>
    %2 = vector.broadcast %1 : vector<1x128xf32> to vector<128x128xf32>
    %3 = arith.mulf %0, %2 : vector<128x128xf32>
    %c0_3 = arith.constant 0 : index
    %c0_4 = arith.constant 0 : index
    %4 = vector.load %arg3[%c0_3, %c0_4] : memref<1x128xf32, #tpu.memory_space<vmem>>, vector<1x128xf32>
    %5 = vector.broadcast %4 : vector<1x128xf32> to vector<128x128xf32>
    %6 = arith.addf %3, %5 : vector<128x128xf32>
    %cst = arith.constant 0.000000e+00 : f32
    %7 = vector.broadcast %cst : f32 to vector<128x128xf32>
    %8 = arith.maximumf %6, %7 : vector<128x128xf32>
    %9 = arith.truncf %8 : vector<128x128xf32> to vector<128x128xbf16>
    %c0_5 = arith.constant 0 : index
    %c0_6 = arith.constant 0 : index
    %10 = vector.load %arg4[%c0_5, %c0_6] : memref<128x128xbf16, #tpu.memory_space<vmem>>, vector<128x128xbf16>
    tpu.vector_store %arg4[%c0_5, %c0_6], %9 {strides = array<i32>} : memref<128x128xbf16, #tpu.memory_space<vmem>>, vector<128x128xbf16>,
    return
  }
  func.func @transform_0(%arg0: i32) -> (i32, i32) {
    %c0_i32 = arith.constant 0 : i32
    %c0_i32_0 = arith.constant 0 : i32
    return %arg0, %c0_i32 : i32, i32
  }
  func.func @transform_1(%arg0: i32) -> (i32, i32) {
    %c0_i32 = arith.constant 0 : i32
    %c0_i32_0 = arith.constant 0 : i32
    %c0_i32_1 = arith.constant 0 : i32
    return %c0_i32, %c0_i32_0 : i32, i32
  }
  func.func @transform_2(%arg0: i32) -> (i32, i32) {
    %c0_i32 = arith.constant 0 : i32
    %c0_i32_0 = arith.constant 0 : i32
    %c0_i32_1 = arith.constant 0 : i32
    return %c0_i32, %c0_i32_0 : i32, i32
  }
  func.func @transform_3(%arg0: i32) -> (i32, i32) {
    %c0_i32 = arith.constant 0 : i32
    %c0_i32_0 = arith.constant 0 : i32
    return %arg0, %c0_i32 : i32, i32
  }
}

module attributes {stable_mosaic.version = 11 : i64} {
  func.func @_mm_kernel(%arg0: i32, %arg1: i32, %arg2: memref<162x512xbf16, #tpu.memory_space<vmem>>, %arg3: memref<512x256xbf16, #tpu.memory_space<vmem>>, %arg4: memref<1x256xf32, #tpu.memory_space<vmem>>, %arg5: memref<162x256xf32, #tpu.memory_space<vmem>>) attributes {dimension_semantics = [#tpu.dimension_semantics<parallel>, #tpu.dimension_semantics<parallel>], iteration_bounds = array<i64: 1, 1>, scalar_prefetch = 0 : i64, scratch_operands = 0 : i64, tpu.core_type = #tpu.core_type<tc>, window_params = [{transform_indices = @transform_0, window_bounds = array<i64: 162, 512>}, {transform_indices = @transform_1, window_bounds = array<i64: 512, 256>}, {transform_indices = @transform_2, window_bounds = array<i64: 1, 256>}, {transform_indices = @transform_3, window_bounds = array<i64: 162, 256>}]} {
    %c0 = arith.constant 0 : index
    %c0_0 = arith.constant 0 : index
    %0 = vector.load %arg2[%c0, %c0_0] : memref<162x512xbf16, #tpu.memory_space<vmem>>, vector<162x512xbf16>
    %c0_1 = arith.constant 0 : index
    %c0_2 = arith.constant 0 : index
    %1 = vector.load %arg3[%c0_1, %c0_2] : memref<512x256xbf16, #tpu.memory_space<vmem>>, vector<512x256xbf16>
    %cst = arith.constant dense<0.000000e+00> : vector<162x256xf32>
    %2 = tpu.matmul %0, %1, %cst {dimension_numbers = #tpu.dot_dimension_numbers<[1], [0], [0], [1], [0, 0, 1, 1], [], []>} : vector<162x512xbf16>, vector<512x256xbf16>, vector<162x256xf32> -> vector<162x256xf32>
    %c0_3 = arith.constant 0 : index
    %c0_4 = arith.constant 0 : index
    %3 = vector.load %arg4[%c0_3, %c0_4] : memref<1x256xf32, #tpu.memory_space<vmem>>, vector<1x256xf32>
    %4 = vector.broadcast %3 : vector<1x256xf32> to vector<162x256xf32>
    %5 = arith.addf %2, %4 : vector<162x256xf32>
    %c0_5 = arith.constant 0 : index
    %c0_6 = arith.constant 0 : index
    %6 = vector.load %arg5[%c0_5, %c0_6] : memref<162x256xf32, #tpu.memory_space<vmem>>, vector<162x256xf32>
    tpu.vector_store %arg5[%c0_5, %c0_6], %5 {strides = array<i32>} : memref<162x256xf32, #tpu.memory_space<vmem>>, vector<162x256xf32>,
    return
  }
  func.func @transform_0(%arg0: i32, %arg1: i32) -> (i32, i32) {
    %c0_i32 = arith.constant 0 : i32
    %c0_i32_0 = arith.constant 0 : i32
    return %arg0, %c0_i32 : i32, i32
  }
  func.func @transform_1(%arg0: i32, %arg1: i32) -> (i32, i32) {
    %c0_i32 = arith.constant 0 : i32
    %c0_i32_0 = arith.constant 0 : i32
    return %c0_i32, %arg1 : i32, i32
  }
  func.func @transform_2(%arg0: i32, %arg1: i32) -> (i32, i32) {
    %c0_i32 = arith.constant 0 : i32
    %c0_i32_0 = arith.constant 0 : i32
    return %c0_i32, %arg1 : i32, i32
  }
  func.func @transform_3(%arg0: i32, %arg1: i32) -> (i32, i32) {
    %c0_i32 = arith.constant 0 : i32
    return %arg0, %arg1 : i32, i32
  }
}

module attributes {stable_mosaic.version = 11 : i64} {
  func.func @_stats_kernel(%arg0: i32, %arg1: memref<512x64xf32, #tpu.memory_space<vmem>>, %arg2: memref<1x64xf32, #tpu.memory_space<vmem>>, %arg3: memref<1x64xf32, #tpu.memory_space<vmem>>) attributes {dimension_semantics = [#tpu.dimension_semantics<arbitrary>], iteration_bounds = array<i64: 1>, scalar_prefetch = 0 : i64, scratch_operands = 0 : i64, tpu.core_type = #tpu.core_type<tc>, window_params = [{transform_indices = @transform_0, window_bounds = array<i64: 512, 64>}, {pipeline_mode = #tpu.pipeline_mode<synchronous>, transform_indices = @transform_1, window_bounds = array<i64: 1, 64>}, {pipeline_mode = #tpu.pipeline_mode<synchronous>, transform_indices = @transform_2, window_bounds = array<i64: 1, 64>}]} {
    %c0_i32 = arith.constant 0 : i32
    %0 = arith.cmpi eq, %arg0, %c0_i32 : i32
    %1 = arith.extui %0 : i1 to i32
    %c0_i32_0 = arith.constant 0 : i32
    %2 = arith.cmpi ne, %1, %c0_i32_0 : i32
    scf.if %2 {
      %cst_11 = arith.constant 0.000000e+00 : f32
      %15 = vector.broadcast %cst_11 : f32 to vector<1x64xf32>
      %c0_12 = arith.constant 0 : index
      %c0_13 = arith.constant 0 : index
      %16 = vector.load %arg2[%c0_12, %c0_13] : memref<1x64xf32, #tpu.memory_space<vmem>>, vector<1x64xf32>
      tpu.vector_store %arg2[%c0_12, %c0_13], %15 {strides = array<i32>} : memref<1x64xf32, #tpu.memory_space<vmem>>, vector<1x64xf32>,
      %cst_14 = arith.constant 0.000000e+00 : f32
      %17 = vector.broadcast %cst_14 : f32 to vector<1x64xf32>
      %c0_15 = arith.constant 0 : index
      %c0_16 = arith.constant 0 : index
      %18 = vector.load %arg3[%c0_15, %c0_16] : memref<1x64xf32, #tpu.memory_space<vmem>>, vector<1x64xf32>
      tpu.vector_store %arg3[%c0_15, %c0_16], %17 {strides = array<i32>} : memref<1x64xf32, #tpu.memory_space<vmem>>, vector<1x64xf32>,
    } else {
    }
    %c0 = arith.constant 0 : index
    %c0_1 = arith.constant 0 : index
    %3 = vector.load %arg1[%c0, %c0_1] : memref<512x64xf32, #tpu.memory_space<vmem>>, vector<512x64xf32>
    %c0_2 = arith.constant 0 : index
    %c0_3 = arith.constant 0 : index
    %4 = vector.load %arg2[%c0_2, %c0_3] : memref<1x64xf32, #tpu.memory_space<vmem>>, vector<1x64xf32>
    %cst = arith.constant dense<0.000000e+00> : vector<64xf32>
    %5 = vector.multi_reduction <add>, %3, %cst [0] : vector<512x64xf32> to vector<64xf32>
    %6 = vector.shape_cast %5 : vector<64xf32> to vector<1x64xf32>
    %7 = arith.addf %4, %6 : vector<1x64xf32>
    %c0_4 = arith.constant 0 : index
    %c0_5 = arith.constant 0 : index
    %8 = vector.load %arg2[%c0_4, %c0_5] : memref<1x64xf32, #tpu.memory_space<vmem>>, vector<1x64xf32>
    tpu.vector_store %arg2[%c0_4, %c0_5], %7 {strides = array<i32>} : memref<1x64xf32, #tpu.memory_space<vmem>>, vector<1x64xf32>,
    %c0_6 = arith.constant 0 : index
    %c0_7 = arith.constant 0 : index
    %9 = vector.load %arg3[%c0_6, %c0_7] : memref<1x64xf32, #tpu.memory_space<vmem>>, vector<1x64xf32>
    %10 = arith.mulf %3, %3 : vector<512x64xf32>
    %cst_8 = arith.constant dense<0.000000e+00> : vector<64xf32>
    %11 = vector.multi_reduction <add>, %10, %cst_8 [0] : vector<512x64xf32> to vector<64xf32>
    %12 = vector.shape_cast %11 : vector<64xf32> to vector<1x64xf32>
    %13 = arith.addf %9, %12 : vector<1x64xf32>
    %c0_9 = arith.constant 0 : index
    %c0_10 = arith.constant 0 : index
    %14 = vector.load %arg3[%c0_9, %c0_10] : memref<1x64xf32, #tpu.memory_space<vmem>>, vector<1x64xf32>
    tpu.vector_store %arg3[%c0_9, %c0_10], %13 {strides = array<i32>} : memref<1x64xf32, #tpu.memory_space<vmem>>, vector<1x64xf32>,
    return
  }
  func.func @transform_0(%arg0: i32) -> (i32, i32) {
    %c0_i32 = arith.constant 0 : i32
    %c0_i32_0 = arith.constant 0 : i32
    return %arg0, %c0_i32 : i32, i32
  }
  func.func @transform_1(%arg0: i32) -> (i32, i32) {
    %c0_i32 = arith.constant 0 : i32
    %c0_i32_0 = arith.constant 0 : i32
    %c0_i32_1 = arith.constant 0 : i32
    return %c0_i32, %c0_i32_0 : i32, i32
  }
  func.func @transform_2(%arg0: i32) -> (i32, i32) {
    %c0_i32 = arith.constant 0 : i32
    %c0_i32_0 = arith.constant 0 : i32
    %c0_i32_1 = arith.constant 0 : i32
    return %c0_i32, %c0_i32_0 : i32, i32
  }
}

module attributes {stable_mosaic.version = 11 : i64} {
  func.func @_scale_shift_relu_kernel(%arg0: i32, %arg1: memref<512x64xf32, #tpu.memory_space<vmem>>, %arg2: memref<1x64xf32, #tpu.memory_space<vmem>>, %arg3: memref<1x64xf32, #tpu.memory_space<vmem>>, %arg4: memref<512x64xbf16, #tpu.memory_space<vmem>>) attributes {dimension_semantics = [#tpu.dimension_semantics<parallel>], iteration_bounds = array<i64: 1>, scalar_prefetch = 0 : i64, scratch_operands = 0 : i64, tpu.core_type = #tpu.core_type<tc>, window_params = [{transform_indices = @transform_0, window_bounds = array<i64: 512, 64>}, {pipeline_mode = #tpu.pipeline_mode<synchronous>, transform_indices = @transform_1, window_bounds = array<i64: 1, 64>}, {pipeline_mode = #tpu.pipeline_mode<synchronous>, transform_indices = @transform_2, window_bounds = array<i64: 1, 64>}, {transform_indices = @transform_3, window_bounds = array<i64: 512, 64>}]} {
    %c0 = arith.constant 0 : index
    %c0_0 = arith.constant 0 : index
    %0 = vector.load %arg1[%c0, %c0_0] : memref<512x64xf32, #tpu.memory_space<vmem>>, vector<512x64xf32>
    %c0_1 = arith.constant 0 : index
    %c0_2 = arith.constant 0 : index
    %1 = vector.load %arg2[%c0_1, %c0_2] : memref<1x64xf32, #tpu.memory_space<vmem>>, vector<1x64xf32>
    %2 = vector.broadcast %1 : vector<1x64xf32> to vector<512x64xf32>
    %3 = arith.mulf %0, %2 : vector<512x64xf32>
    %c0_3 = arith.constant 0 : index
    %c0_4 = arith.constant 0 : index
    %4 = vector.load %arg3[%c0_3, %c0_4] : memref<1x64xf32, #tpu.memory_space<vmem>>, vector<1x64xf32>
    %5 = vector.broadcast %4 : vector<1x64xf32> to vector<512x64xf32>
    %6 = arith.addf %3, %5 : vector<512x64xf32>
    %cst = arith.constant 0.000000e+00 : f32
    %7 = vector.broadcast %cst : f32 to vector<512x64xf32>
    %8 = arith.maximumf %6, %7 : vector<512x64xf32>
    %9 = arith.truncf %8 : vector<512x64xf32> to vector<512x64xbf16>
    %c0_5 = arith.constant 0 : index
    %c0_6 = arith.constant 0 : index
    %10 = vector.load %arg4[%c0_5, %c0_6] : memref<512x64xbf16, #tpu.memory_space<vmem>>, vector<512x64xbf16>
    tpu.vector_store %arg4[%c0_5, %c0_6], %9 {strides = array<i32>} : memref<512x64xbf16, #tpu.memory_space<vmem>>, vector<512x64xbf16>,
    return
  }
  func.func @transform_0(%arg0: i32) -> (i32, i32) {
    %c0_i32 = arith.constant 0 : i32
    %c0_i32_0 = arith.constant 0 : i32
    return %arg0, %c0_i32 : i32, i32
  }
  func.func @transform_1(%arg0: i32) -> (i32, i32) {
    %c0_i32 = arith.constant 0 : i32
    %c0_i32_0 = arith.constant 0 : i32
    %c0_i32_1 = arith.constant 0 : i32
    return %c0_i32, %c0_i32_0 : i32, i32
  }
  func.func @transform_2(%arg0: i32) -> (i32, i32) {
    %c0_i32 = arith.constant 0 : i32
    %c0_i32_0 = arith.constant 0 : i32
    %c0_i32_1 = arith.constant 0 : i32
    return %c0_i32, %c0_i32_0 : i32, i32
  }
  func.func @transform_3(%arg0: i32) -> (i32, i32) {
    %c0_i32 = arith.constant 0 : i32
    %c0_i32_0 = arith.constant 0 : i32
    return %arg0, %c0_i32 : i32, i32
  }
}

module attributes {stable_mosaic.version = 11 : i64} {
  func.func @_mm_kernel(%arg0: i32, %arg1: i32, %arg2: memref<578x256xbf16, #tpu.memory_space<vmem>>, %arg3: memref<256x12xbf16, #tpu.memory_space<vmem>>, %arg4: memref<1x12xf32, #tpu.memory_space<vmem>>, %arg5: memref<578x12xf32, #tpu.memory_space<vmem>>) attributes {dimension_semantics = [#tpu.dimension_semantics<parallel>, #tpu.dimension_semantics<parallel>], iteration_bounds = array<i64: 1, 1>, scalar_prefetch = 0 : i64, scratch_operands = 0 : i64, tpu.core_type = #tpu.core_type<tc>, window_params = [{transform_indices = @transform_0, window_bounds = array<i64: 578, 256>}, {transform_indices = @transform_1, window_bounds = array<i64: 256, 12>}, {transform_indices = @transform_2, window_bounds = array<i64: 1, 12>}, {transform_indices = @transform_3, window_bounds = array<i64: 578, 12>}]} {
    %c0 = arith.constant 0 : index
    %c0_0 = arith.constant 0 : index
    %0 = vector.load %arg2[%c0, %c0_0] : memref<578x256xbf16, #tpu.memory_space<vmem>>, vector<578x256xbf16>
    %c0_1 = arith.constant 0 : index
    %c0_2 = arith.constant 0 : index
    %1 = vector.load %arg3[%c0_1, %c0_2] : memref<256x12xbf16, #tpu.memory_space<vmem>>, vector<256x12xbf16>
    %cst = arith.constant dense<0.000000e+00> : vector<578x12xf32>
    %2 = tpu.matmul %0, %1, %cst {dimension_numbers = #tpu.dot_dimension_numbers<[1], [0], [0], [1], [0, 0, 1, 1], [], []>} : vector<578x256xbf16>, vector<256x12xbf16>, vector<578x12xf32> -> vector<578x12xf32>
    %c0_3 = arith.constant 0 : index
    %c0_4 = arith.constant 0 : index
    %3 = vector.load %arg4[%c0_3, %c0_4] : memref<1x12xf32, #tpu.memory_space<vmem>>, vector<1x12xf32>
    %4 = vector.broadcast %3 : vector<1x12xf32> to vector<578x12xf32>
    %5 = arith.addf %2, %4 : vector<578x12xf32>
    %6 = math.tanh %5 : vector<578x12xf32>
    %c0_5 = arith.constant 0 : index
    %c0_6 = arith.constant 0 : index
    %7 = vector.load %arg5[%c0_5, %c0_6] : memref<578x12xf32, #tpu.memory_space<vmem>>, vector<578x12xf32>
    tpu.vector_store %arg5[%c0_5, %c0_6], %6 {strides = array<i32>} : memref<578x12xf32, #tpu.memory_space<vmem>>, vector<578x12xf32>,
    return
  }
  func.func @transform_0(%arg0: i32, %arg1: i32) -> (i32, i32) {
    %c0_i32 = arith.constant 0 : i32
    %c0_i32_0 = arith.constant 0 : i32
    return %arg0, %c0_i32 : i32, i32
  }
  func.func @transform_1(%arg0: i32, %arg1: i32) -> (i32, i32) {
    %c0_i32 = arith.constant 0 : i32
    %c0_i32_0 = arith.constant 0 : i32
    return %c0_i32, %arg1 : i32, i32
  }
  func.func @transform_2(%arg0: i32, %arg1: i32) -> (i32, i32) {
    %c0_i32 = arith.constant 0 : i32
    %c0_i32_0 = arith.constant 0 : i32
    return %c0_i32, %arg1 : i32, i32
  }
  func.func @transform_3(%arg0: i32, %arg1: i32) -> (i32, i32) {
    %c0_i32 = arith.constant 0 : i32
    return %arg0, %arg1 : i32, i32
  }
}

</mosaic_0001>

<llo_original>
// kernel: generator_forward.11
$region0: #{generator_forward.11}
  #allocation0 [shape = 'u32[]', space=smem, size = 0x4, offset = 0x4, fixed_abs, tag = 'smem constant byte address 0x4 - core index']
  #allocation1 [shape = 'u32[144,128]{1,0:T(1,128)}', space=vmem, size = 0x12000, scoped, tag = 'internal scratch']
  %s0 = inlined_call_operand.vmem [shape: bf16[2,20], index: 0, kind: input, shape index: {}]
  %s1 = inlined_call_operand.hbm [shape: bf16[20,2048], index: 1, kind: input, shape index: {}]
  %s2 = inlined_call_operand.hbm [shape: f32[1,2048], index: 2, kind: input, shape index: {}]
  %s3 = inlined_call_operand.vmem [shape: bf16[2,2048], index: 3, kind: output, shape index: {}]
  %s4 = sld [smem:[#allocation0]]
  $region53: #{generator_forward.11} parent=0
    _
  %s6 = ssub.s32 1, %s4
  %s7 = scalar_select 0, %s6, %s4
  $region1: #{generator_forward.11} parent=0
    #allocation2 [shape = 'u8[49152]{0}', space=vmem, size = 0xc000, scoped, tag = 'input window, operand 1']
    #allocation3 [shape = 's32[2]{0}', space=sflag, size = 0x8, scoped, tag = 'scoped memory for generator_forward.11']
    #allocation4 [shape = 'u8[4096]{0}', space=vmem, size = 0x1000, scoped, tag = 'input window, operand 2']
    #allocation5 [shape = 's32[2]{0}', space=sflag, size = 0x8, scoped, tag = 'scoped memory for generator_forward.11']
    %8 = vsyncpa [#allocation3], 0
    %s9 = scalar_lea.sflag [#allocation3], 1
    %10 = vsyncpa %s9, 0
    %11 = vsyncpa [#allocation5], 0
    %s12 = scalar_lea.sflag [#allocation5], 1
    %13 = vsyncpa %s12, 0
    loop: start=0, step=1, limit=6
    $region2: #{generator_forward.11} parent=1 // loop_pre_header
      _
    $region3: #{generator_forward.11} parent=1 // loop_header
      %s15 = sphi 0, %s19
      %p16 = scmp.ge.s32.totalorder %s15, 6
      %s22 = sphi 0, %s34
      %s23 = sphi 0, %s30
      %s24 = sphi 0, %s22
      %s25 = sphi 0, %s23
      %s26 = sphi 0, %s24
      %s27 = sphi 0, %s25
      %s37 = sphi 0, %s39
      %s40 = sphi 0, %s37
      %s41 = sphi 0, %s40
      %s57 = sphi 0, %s41
      %s63 = sphi 0, %s65
      %s66 = sphi 0, %s63
      %s67 = sphi 0, %s66
      %s83 = sphi 0, %s67
      %s89 = sphi 0, %s91
      %s92 = sphi 0, %s89
      %s93 = sphi 0, %s92
      %s109 = sphi 0, %s93
      %s117 = sphi 0, %s119
      %s120 = sphi 0, %s117
      %s121 = sphi 0, %s120
      %s137 = sphi 0, %s121
    $region4: #{generator_forward.11} parent=1 // loop_header_branch
      %18 = sbr.rel (%p16) target = $region8
    $region5: #{generator_forward.11} parent=1 // loop_body
      %s20 = ssub.s32 %s15, 1
      %s21 = ssub.s32 %s15, 2
      %s28 = sadd.s32 1, %s23
      %p29 = scmp.ge.s32.totalorder %s28, 4
      %s30 = scalar_select %p29, 0, %s28
      %s31 = sadd.s32 1, %s22
      %s32 = scalar_select %p29, %s31, %s22
      %p33 = scmp.ge.s32.totalorder %s32, 1
      %s34 = scalar_select %p33, 0, %s32
      %s35 = ssub.s32 %s22, %s34
      %p36 = scmp.eq.s32.totalorder %s35, 0
      %s38 = sadd.s32 %s37, 1
      %s39 = scalar_select %p36, %s37, %s38
      %p42 = pneg %p36
      %p43 = scmp.eq.s32.totalorder %s15, 3
      %p44 = por %p42, %p43
      %p45 = scmp.ne.s32.totalorder %s37, %s40
      %p46 = scmp.eq.s32.totalorder %s15, 0
      %p47 = por %p45, %p46
      %p48 = scmp.ne.s32.totalorder %s37, %s40
      %p49 = scmp.eq.s32.totalorder %s20, 3
      %p50 = por %p48, %p49
      %p51 = scmp.ne.s32.totalorder %s40, %s41
      %p52 = scmp.eq.s32.totalorder %s20, 0
      %p53 = por %p51, %p52
      %p54 = scmp.ne.s32.totalorder %s40, %s41
      %p55 = scmp.eq.s32.totalorder %s21, 3
      %p56 = por %p54, %p55
      %p58 = scmp.ne.s32.totalorder %s41, %s57
      %p59 = scmp.eq.s32.totalorder %s21, 0
      %p60 = por %p58, %p59
      %s61 = ssub.s32 %s23, %s30
      %p62 = scmp.eq.s32.totalorder %s61, 0
      %s64 = sadd.s32 %s63, 1
      %s65 = scalar_select %p62, %s63, %s64
      %p68 = pneg %p62
      %p69 = scmp.eq.s32.totalorder %s15, 3
      %p70 = por %p68, %p69
      %p71 = scmp.ne.s32.totalorder %s63, %s66
      %p72 = scmp.eq.s32.totalorder %s15, 0
      %p73 = por %p71, %p72
      %p74 = scmp.ne.s32.totalorder %s63, %s66
      %p75 = scmp.eq.s32.totalorder %s20, 3
      %p76 = por %p74, %p75
      %p77 = scmp.ne.s32.totalorder %s66, %s67
      %p78 = scmp.eq.s32.totalorder %s20, 0
      %p79 = por %p77, %p78
      %p80 = scmp.ne.s32.totalorder %s66, %s67
      %p81 = scmp.eq.s32.totalorder %s21, 3
      %p82 = por %p80, %p81
      %p84 = scmp.ne.s32.totalorder %s67, %s83
      %p85 = scmp.eq.s32.totalorder %s21, 0
      %p86 = por %p84, %p85
      %s87 = ssub.s32 %s23, %s30
      %p88 = scmp.eq.s32.totalorder %s87, 0
      %s90 = sadd.s32 %s89, 1
      %s91 = scalar_select %p88, %s89, %s90
      %p94 = pneg %p88
      %p95 = scmp.eq.s32.totalorder %s15, 3
      %p96 = por %p94, %p95
      %p97 = scmp.ne.s32.totalorder %s89, %s92
      %p98 = scmp.eq.s32.totalorder %s15, 0
      %p99 = por %p97, %p98
      %p100 = scmp.ne.s32.totalorder %s89, %s92
      %p101 = scmp.eq.s32.totalorder %s20, 3
      %p102 = por %p100, %p101
      %p103 = scmp.ne.s32.totalorder %s92, %s93
      %p104 = scmp.eq.s32.totalorder %s20, 0
      %p105 = por %p103, %p104
      %p106 = scmp.ne.s32.totalorder %s92, %s93
      %p107 = scmp.eq.s32.totalorder %s21, 3
      %p108 = por %p106, %p107
      %p110 = scmp.ne.s32.totalorder %s93, %s109
      %p111 = scmp.eq.s32.totalorder %s21, 0
      %p112 = por %p110, %p111
      %s113 = ssub.s32 %s22, %s34
      %s114 = ssub.s32 %s23, %s30
      %s115 = sor.u32 %s113, %s114
      %p116 = scmp.eq.s32.totalorder %s115, 0
      %s118 = sadd.s32 %s117, 1
      %s119 = scalar_select %p116, %s117, %s118
      %p122 = pneg %p116
      %p123 = scmp.eq.s32.totalorder %s15, 3
      %p124 = por %p122, %p123
      %p125 = scmp.ne.s32.totalorder %s117, %s120
      %p126 = scmp.eq.s32.totalorder %s15, 0
      %p127 = por %p125, %p126
      %p128 = scmp.ne.s32.totalorder %s117, %s120
      %p129 = scmp.eq.s32.totalorder %s20, 3
      %p130 = por %p128, %p129
      %p131 = scmp.ne.s32.totalorder %s120, %s121
      %p132 = scmp.eq.s32.totalorder %s20, 0
      %p133 = por %p131, %p132
      %p134 = scmp.ne.s32.totalorder %s120, %s121
      %p135 = scmp.eq.s32.totalorder %s21, 3
      %p136 = por %p134, %p135
      %p138 = scmp.ne.s32.totalorder %s121, %s137
      %p139 = scmp.eq.s32.totalorder %s21, 0
      %p140 = por %p138, %p139
      %p141 = scmp.le.s32.totalorder 1, %s15
      %p142 = scmp.lt.s32.totalorder %s15, 5
      %p143 = pnand %p141, %p142
      %p144 = pneg %p143
      // Predicated region
      $region9: #{generator_forward.11} parent=5 // pred_check
        _
      $region10: #{generator_forward.11} parent=5 // pred_check_branch
        %146 = sbr.rel (%p143) target = $region12
      $region11: #{generator_forward.11} parent=5 // pred_region
        %s147 = ssub.s32 %s15, 1
        // Predicated region
        $region13: #{generator_forward.11} parent=11 // pred_check
          %p148 = pneg %p53
        $region14: #{generator_forward.11} parent=11 // pred_check_branch
          %150 = sbr.rel (%p148) target = $region16
        $region15: #{generator_forward.11} parent=11 // pred_region
          %p151 = scmp.lt.s32.totalorder %s24, 0
          %s152 = scalar_select %p151, %s24, 0
          %s153 = scalar_lea.vmem %s0, %s152
        $region16: #{generator_forward.11} parent=11 // pred_fallthru
          _
      $region12: #{generator_forward.11} parent=5 // pred_fallthru
        _
      %p154 = scmp.lt.s32.totalorder %s15, 4
      // Predicated region
      $region17: #{generator_forward.11} parent=5 // pred_check
        %p155 = pneg %p154
      $region18: #{generator_forward.11} parent=5 // pred_check_branch
        %157 = sbr.rel (%p155) target = $region20
      $region19: #{generator_forward.11} parent=5 // pred_region
        // Predicated region
        $region21: #{generator_forward.11} parent=19 // pred_check
          %p158 = pneg %p73
        $region22: #{generator_forward.11} parent=19 // pred_check_branch
          %160 = sbr.rel (%p158) target = $region24
        $region23: #{generator_forward.11} parent=19 // pred_region
          %s161 = sand.u32 %s63, 1
          %s162 = scalar_lea.sflag [#allocation3], %s161
          %s163 = sand.u32 %s63, 1
          %s164 = smul.addr %s163, 48
          %s165 = scalar_lea.vmem [#allocation2], %s164
          %s166 = smul.u32 4, %s23
          %s168 = ssub.s32 768, 768
          %169 = vsyncadd %s162, %s168
          %s170 = smul.addr %s166, 64
          %s171 = scalar_lea.hbm %s1, %s170
          %s172 = sshll.u32 %s165, 4
          %s173 = int_to_ptr.vmem [resolvable:$true] %s172
          %178 = dma.hbm_to_vmem [thread:$0]  %s171, 768, %s173, %s162, 1024, 256, 16
        $region24: #{generator_forward.11} parent=19 // pred_fallthru
          _
        // Predicated region
        $region25: #{generator_forward.11} parent=19 // pred_check
          %p179 = pneg %p99
        $region26: #{generator_forward.11} parent=19 // pred_check_branch
          %181 = sbr.rel (%p179) target = $region28
        $region27: #{generator_forward.11} parent=19 // pred_region
          %s182 = sand.u32 %s89, 1
          %s183 = scalar_lea.sflag [#allocation5], %s182
          %s184 = sand.u32 %s89, 1
          %s185 = smul.addr %s184, 4
          %s186 = scalar_lea.vmem [#allocation4], %s185
          %s187 = smul.u32 4, %s23
          %s189 = ssub.s32 64, 64
          %190 = vsyncadd %s183, %s189
          %s191 = smul.addr %s187, 16
          %s192 = scalar_lea.hbm %s2, %s191
          %s194 = sshll.u32 %s186, 4
          %s195 = int_to_ptr.vmem [resolvable:$true] %s194
          %197 = dma.hbm_to_vmem [thread:$0]  %s192, 64, %s195, %s183
        $region28: #{generator_forward.11} parent=19 // pred_fallthru
          _
      $region20: #{generator_forward.11} parent=5 // pred_fallthru
        _
      %p198 = scmp.le.s32.totalorder 1, %s15
      %p199 = scmp.lt.s32.totalorder %s15, 5
      %p200 = pnand %p198, %p199
      %p201 = pneg %p200
      // Predicated region
      $region29: #{generator_forward.11} parent=5 // pred_check
        _
      $region30: #{generator_forward.11} parent=5 // pred_check_branch
        %203 = sbr.rel (%p200) target = $region32
      $region31: #{generator_forward.11} parent=5 // pred_region
        %s204 = ssub.s32 %s15, 1
        %s205 = sand.u32 %s66, 1
        %s206 = scalar_lea.sflag [#allocation3], %s205
        %s207 = sand.u32 %s66, 1
        %s208 = smul.addr %s207, 48
        %s209 = scalar_lea.vmem [#allocation2], %s208
        // Predicated region
        $region33: #{generator_forward.11} parent=31 // pred_check
          %p210 = pneg %p79
        $region34: #{generator_forward.11} parent=31 // pred_check_branch
          %212 = sbr.rel (%p210) target = $region36
        $region35: #{generator_forward.11} parent=31 // pred_region
          %213 = dma.done %s206, 768
        $region36: #{generator_forward.11} parent=31 // pred_fallthru
          _
        %s214 = sand.u32 %s92, 1
        %s215 = scalar_lea.sflag [#allocation5], %s214
        %s216 = sand.u32 %s92, 1
        %s217 = smul.addr %s216, 4
        %s218 = scalar_lea.vmem [#allocation4], %s217
        // Predicated region
        $region37: #{generator_forward.11} parent=31 // pred_check
          %p219 = pneg %p105
        $region38: #{generator_forward.11} parent=31 // pred_check_branch
          %221 = sbr.rel (%p219) target = $region40
        $region39: #{generator_forward.11} parent=31 // pred_region
          %222 = dma.done %s215, 64
        $region40: #{generator_forward.11} parent=31 // pred_fallthru
          _
        %p223 = scmp.lt.s32.totalorder %s24, 0
        %s224 = scalar_select %p223, %s24, 0
        %s225 = scalar_lea.vmem %s0, %s224
        %p226 = pneg %p53
        %p227 = pneg %p50
        %s228 = sand.u32 %s66, 1
        %s229 = scalar_lea.sflag [#allocation3], %s228
        %s230 = sand.u32 %s66, 1
        %s231 = smul.addr %s230, 48
        %s232 = scalar_lea.vmem [#allocation2], %s231
        %p233 = pneg %p79
        %p234 = pneg %p76
        %s235 = sand.u32 %s92, 1
        %s236 = scalar_lea.sflag [#allocation5], %s235
        %s237 = sand.u32 %s92, 1
        %s238 = smul.addr %s237, 4
        %s239 = scalar_lea.vmem [#allocation4], %s238
        %p240 = pneg %p105
        %p241 = pneg %p102
        %p242 = pneg %p133
        %p243 = pneg %p130
        %s244 = smul.u32 4, %s25
        %p245 = scmp.lt.s32.totalorder %s24, 0
        %s246 = scalar_select %p245, %s24, 0
        %p247 = scmp.lt.s32.totalorder %s244, 15
        %s248 = scalar_select %p247, %s244, 15
        %s249 = smul.addr %s246, 16
        %s250 = sadd.s32 %s248, %s249
        %s251 = scalar_lea.vmem %s3, %s250
        %p252 = scmp.lt.s32.totalorder %s24, 0
        %s253 = scalar_select %p252, %s24, 0
        %s254 = scalar_lea.vmem %s0, %s253
        %s255 = smul.u32 4, %s25
        %s256 = smul.u32 4, %s25
        %s257 = smul.u32 4, %s25
        %p258 = scmp.lt.s32.totalorder %s24, 0
        %s259 = scalar_select %p258, %s24, 0
        %p260 = scmp.lt.s32.totalorder %s257, 15
        %s261 = scalar_select %p260, %s257, 15
        %s262 = smul.addr %s259, 16
        %s263 = sadd.s32 %s261, %s262
        %s264 = scalar_lea.vmem %s3, %s263
        %s265 = smul.u32 4, %s25
        %v267 = vld [vmem:[%s254] sm:$0x1]
        %v268 = vld [vmem:[%s209] sm:$0xff]
        %v269 = vld [vmem:[%s209 + $0x8] sm:$0xff]
        %v270 = vld [vmem:[%s209 + $0x10] sm:$0xff]
        %v271 = vld [vmem:[%s209 + $0x18] sm:$0xff]
        %v272 = vld [vmem:[%s209 + $0x20] sm:$0x33]
        %v273 = vld [vmem:[%s209 + $0x28] sm:$0x33]
        %v274 = vld [vmem:[%s218] sm:$0xf]
        %v276 = vlaneseq
        %v277 = vshrl.u32 %v276, 7
        %v278 = vsub.s32 0, %v277
        %v279 = vrot.slane %v274, %v278
        %v280 = vlaneseq
        %v281 = vshrl.u32 %v280, 7
        %v282 = vsub.s32 1, %v281
        %v283 = vrot.slane %v274, %v282
        %v284 = vlaneseq
        %v285 = vshrl.u32 %v284, 7
        %v286 = vsub.s32 2, %v285
        %v287 = vrot.slane %v274, %v286
        %v288 = vlaneseq
        %v289 = vshrl.u32 %v288, 7
        %v290 = vsub.s32 3, %v289
        %v291 = vrot.slane %v274, %v290
        %v302 = vunpack.c.l.b16 %v268
        %v303 = vunpack.c.h.b16 %v268
        %v304 = vunpack.c.l.b16 %v269
        %v305 = vunpack.c.h.b16 %v269
        %v306 = vunpack.c.l.b16 %v270
        %v307 = vunpack.c.h.b16 %v270
        %v308 = vunpack.c.l.b16 %v271
        %v309 = vunpack.c.h.b16 %v271
        %v310 = vunpack.c.l.b16 %v272
        %v311 = vunpack.c.h.b16 %v272
        %v312 = vunpack.c.l.b16 %v273
        %v313 = vunpack.c.h.b16 %v273
        %v314 = vpack.c.b16 %v306, %v302
        %v315 = vpack.c.b16 %v307, %v303
        %v316 = vpack.c.b16 %v308, %v304
        %v317 = vpack.c.b16 %v309, %v305
        %v318 = vpack.c.b16 %v310, %v310
        %v319 = vpack.c.b16 %v311, %v311
        %v320 = vpack.c.b16 %v312, %v312
        %v321 = vpack.c.b16 %v313, %v313
        %vm326 = vcmask 162816
        %v328 = vsel %vm326, %v267, 0
        %vm330 = vcmask 1041408
        %v332 = vsel %vm330, %v318, 0
        %v335 = vsel %vm330, %v319, 0
        %v338 = vsel %vm330, %v320, 0
        %v341 = vsel %vm330, %v321, 0
        %343 = vmatprep.subr.bf16.mxu0 %v315
        %344 = vmatpush1.bf16.msra.mxu0 %v314
        %345 = vmatprep.subr.bf16.mxu0 %v335
        %346 = vmatpush1.bf16.msra.mxu0 %v332
        %347 = vmatprep.subr.bf16.mxu0 0
        %348 = vmatpush1.bf16.msra.mxu0 0
        %349 = vmatprep.subr.bf16.mxu0 0
        %350 = vmatpush1.bf16.msra.mxu0 0
        %351 = vmatprep.subr.bf16.mxu0 0
        %352 = vmatpush1.bf16.msra.mxu0 0
        %353 = vmatprep.subr.bf16.mxu0 0
        %354 = vmatpush1.bf16.msra.mxu0 0
        %355 = vmatprep.subr.bf16.mxu0 0
        %356 = vmatpush1.bf16.msra.mxu0 0
        %357 = vmatprep.subr.bf16.mxu0 0
        %358 = vmatpush1.bf16.msra.mxu0 0
        %359 = vmatprep.subr.bf16.mxu0 0
        %360 = vmatpush1.bf16.msra.mxu0 0
        %361 = vmatprep.subr.bf16.mxu0 0
        %362 = vmatpush1.bf16.msra.mxu0 0
        %363 = vmatprep.subr.bf16.mxu0 0
        %364 = vmatpush1.bf16.msra.mxu0 0
        %365 = vmatprep.subr.bf16.mxu0 0
        %366 = vmatpush1.bf16.msra.mxu0 0
        %367 = vmatprep.subr.bf16.mxu0 0
        %368 = vmatpush1.bf16.msra.mxu0 0
        %369 = vmatprep.subr.bf16.mxu0 0
        %370 = vmatpush1.bf16.msra.mxu0 0
        %371 = vmatprep.subr.bf16.mxu0 0
        %372 = vmatpush1.bf16.msra.mxu0 0
        %373 = vmatprep.subr.bf16.mxu0 0
        %374 = vmatpush1.bf16.msra.mxu0 0
        %375 = vmatprep.mubr.bf16.mxu0 0
        %376 = vmatmul.mubr.bf16.gmra.mrb[0].mxu0 %v328
        %v377 = vpop.f32.mrb[0].mxu0
        %v378 = vadd.f32 %v279, %v377
        %v379 = vpop.f32.mrb[0].mxu0
        %v380 = vadd.f32 %v283, %v379
        %v381 = vpop.f32.mrb[0].mxu0
        %v382 = vpop.f32.mrb[0].mxu0
        %383 = vdwg.mxu0
        %384 = vmatprep.subr.bf16.mxu0 %v317
        %385 = vmatpush1.bf16.msra.mxu0 %v316
        %386 = vmatprep.subr.bf16.mxu0 %v341
        %387 = vmatpush1.bf16.msra.mxu0 %v338
        %388 = vmatprep.subr.bf16.mxu0 0
        %389 = vmatpush1.bf16.msra.mxu0 0
        %390 = vmatprep.subr.bf16.mxu0 0
        %391 = vmatpush1.bf16.msra.mxu0 0
        %392 = vmatprep.subr.bf16.mxu0 0
        %393 = vmatpush1.bf16.msra.mxu0 0
        %394 = vmatprep.subr.bf16.mxu0 0
        %395 = vmatpush1.bf16.msra.mxu0 0
        %396 = vmatprep.subr.bf16.mxu0 0
        %397 = vmatpush1.bf16.msra.mxu0 0
        %398 = vmatprep.subr.bf16.mxu0 0
        %399 = vmatpush1.bf16.msra.mxu0 0
        %400 = vmatprep.subr.bf16.mxu0 0
        %401 = vmatpush1.bf16.msra.mxu0 0
        %402 = vmatprep.subr.bf16.mxu0 0
        %403 = vmatpush1.bf16.msra.mxu0 0
        %404 = vmatprep.subr.bf16.mxu0 0
        %405 = vmatpush1.bf16.msra.mxu0 0
        %406 = vmatprep.subr.bf16.mxu0 0
        %407 = vmatpush1.bf16.msra.mxu0 0
        %408 = vmatprep.subr.bf16.mxu0 0
        %409 = vmatpush1.bf16.msra.mxu0 0
        %410 = vmatprep.subr.bf16.mxu0 0
        %411 = vmatpush1.bf16.msra.mxu0 0
        %412 = vmatprep.subr.bf16.mxu0 0
        %413 = vmatpush1.bf16.msra.mxu0 0
        %414 = vmatprep.subr.bf16.mxu0 0
        %415 = vmatpush1.bf16.msra.mxu0 0
        %416 = vmatprep.mubr.bf16.mxu0 0
        %417 = vmatmul.mubr.bf16.gmra.mrb[0].mxu0 %v328
        %v418 = vpop.f32.mrb[0].mxu0
        %v419 = vadd.f32 %v287, %v418
        %v420 = vpop.f32.mrb[0].mxu0
        %v421 = vadd.f32 %v291, %v420
        %v422 = vpop.f32.mrb[0].mxu0
        %v423 = vpop.f32.mrb[0].mxu0
        %424 = vdwg.mxu0
        %v425 = vpack.c.bf16 %v378, %v378
        %v426 = vpack.c.bf16 %v380, %v380
        %v427 = vpack.c.bf16 %v419, %v419
        %v428 = vpack.c.bf16 %v421, %v421
        %v433 = vcombine.low %v425, %v426
        %v434 = vcombine.low %v427, %v428
        %v436 = vunpack.c.l.s4 1966171168
        %v437 = vunpack.c.0.s8 %v436
        %v438 = vlaneseq
        %v439 = vshrl.u32 %v438, 7
        %v440 = vsub.s32 %v437, %v439
        %v441 = vrot.slane %v433, %v440
        %v443 = vunpack.c.l.s4 1966171168
        %v444 = vunpack.c.0.s8 %v443
        %v445 = vlaneseq
        %v446 = vshrl.u32 %v445, 7
        %v447 = vsub.s32 %v444, %v446
        %v448 = vrot.slane %v434, %v447
        %v449 = vcombine.low %v441, %v448
        %v451 = vunpack.c.l.s4 1966171168
        %v452 = vunpack.c.0.s8 %v451
        %v453 = vlaneseq
        %v454 = vshrl.u32 %v453, 7
        %v455 = vsub.s32 %v452, %v454
        %v456 = vrot.slane %v449, %v455
        %458 = vst [vmem:[%s264] sm:$0xf] %v456
        %s459 = smul.u32 4, %s25
        %p460 = scmp.lt.s32.totalorder %s24, 0
        %s461 = scalar_select %p460, %s24, 0
        %p462 = scmp.lt.s32.totalorder %s459, 15
        %s463 = scalar_select %p462, %s459, 15
        %s464 = smul.addr %s461, 16
        %s465 = sadd.s32 %s463, %s464
        %s466 = scalar_lea.vmem %s3, %s465
        // Predicated region
        $region41: #{generator_forward.11} parent=31 // pred_check
          %p467 = pneg %p130
        $region42: #{generator_forward.11} parent=31 // pred_check_branch
          %469 = sbr.rel (%p467) target = $region44
        $region43: #{generator_forward.11} parent=31 // pred_region
          %s470 = smul.u32 4, %s25
        $region44: #{generator_forward.11} parent=31 // pred_fallthru
          _
      $region32: #{generator_forward.11} parent=5 // pred_fallthru
        _
      %p471 = scmp.le.s32.totalorder 2, %s15
      // Predicated region
      $region45: #{generator_forward.11} parent=5 // pred_check
        %p472 = pneg %p471
      $region46: #{generator_forward.11} parent=5 // pred_check_branch
        %474 = sbr.rel (%p472) target = $region48
      $region47: #{generator_forward.11} parent=5 // pred_region
        %s475 = ssub.s32 %s15, 2
        // Predicated region
        $region49: #{generator_forward.11} parent=47 // pred_check
          %p476 = pneg %p136
        $region50: #{generator_forward.11} parent=47 // pred_check_branch
          %478 = sbr.rel (%p476) target = $region52
        $region51: #{generator_forward.11} parent=47 // pred_region
          %s479 = smul.u32 4, %s27
          %p480 = scmp.lt.s32.totalorder %s26, 0
          %s481 = scalar_select %p480, %s26, 0
          %p482 = scmp.lt.s32.totalorder %s479, 15
          %s483 = scalar_select %p482, %s479, 15
          %s484 = smul.addr %s481, 16
          %s485 = sadd.s32 %s483, %s484
          %s486 = scalar_lea.vmem %s3, %s485
        $region52: #{generator_forward.11} parent=47 // pred_fallthru
          _
      $region48: #{generator_forward.11} parent=5 // pred_fallthru
        _
    $region6: #{generator_forward.11} parent=1 // loop_footer
      %s19 = sadd.s32 1, %s15
    $region7: #{generator_forward.11} parent=1 // loop_footer_branch
      %14 = sbr.rel target = $region3
    $region8: #{generator_forward.11} parent=1 // loop_exit
      _
    %487 = vsyncpa [#allocation3], 1
    %s488 = scalar_lea.sflag [#allocation3], 1
    %489 = vsyncpa %s488, 1
    %490 = vsyncpa [#allocation5], 1
    %s491 = scalar_lea.sflag [#allocation5], 1
    %492 = vsyncpa %s491, 1

// kernel: generator_forward.13
$region0: #{generator_forward.13}
  #allocation0 [shape = 'u32[]', space=smem, size = 0x4, offset = 0x4, fixed_abs, tag = 'smem constant byte address 0x4 - core index']
  #allocation1 [shape = 'u32[144,128]{1,0:T(1,128)}', space=vmem, size = 0x12000, scoped, tag = 'internal scratch']
  %s0 = inlined_call_operand.vmem [shape: f32[32,256], index: 0, kind: input, shape index: {}]
  %s1 = inlined_call_operand.vmem [shape: f32[1,256], index: 1, kind: output, shape index: {0}]
  %s2 = inlined_call_operand.vmem [shape: f32[1,256], index: 2, kind: output, shape index: {1}]
  %3 = xla_tuple %s1, %s2
  %s4 = sld [smem:[#allocation0]]
  $region26: #{generator_forward.13} parent=0
    _
  %s6 = ssub.s32 1, %s4
  %s7 = scalar_select 0, %s6, %s4
  // Predicated region
  $region2: #{generator_forward.13} parent=0 // pred_check
    _
  $region3: #{generator_forward.13} parent=0 // pred_check_branch
    %9 = sbr.rel (0) target = $region5
  $region4: #{generator_forward.13} parent=0 // pred_region
    _
  $region5: #{generator_forward.13} parent=0 // pred_fallthru
    _
  %p10 = scmp.eq.s32.totalorder 0, 0
  // Predicated region
  $region6: #{generator_forward.13} parent=0 // pred_check
    %p11 = pneg %p10
  $region7: #{generator_forward.13} parent=0 // pred_check_branch
    %13 = sbr.rel (%p11) target = $region9
  $region8: #{generator_forward.13} parent=0 // pred_region
    %v14 = vlaneseq
    %vm15 = vcmp.ge.s32.totalorder %v14, 0
    %vm16 = vcmp.lt.s32.totalorder %v14, 256
    %vm17 = vmand %vm15, %vm16
    %18 = vst.msk [vmem:[%s1] sm:$0x3] %vm17, 0.0
    %19 = vst.msk [vmem:[%s2] sm:$0x3] %vm17, 0.0
  $region9: #{generator_forward.13} parent=0 // pred_fallthru
    _
  %v20 = vld [vmem:[%s0] sm:$0xff]
  %v21 = vld [vmem:[%s0 + $0x8] sm:$0xff]
  %v22 = vld [vmem:[%s0 + $0x10] sm:$0xff]
  %v23 = vld [vmem:[%s0 + $0x18] sm:$0xff]
  %v24 = vld [vmem:[%s0 + $0x20] sm:$0xff]
  %v25 = vld [vmem:[%s0 + $0x28] sm:$0xff]
  %v26 = vld [vmem:[%s0 + $0x30] sm:$0xff]
  %v27 = vld [vmem:[%s0 + $0x38] sm:$0xff]
  %v28 = vld [vmem:[%s1] sm:$0x3]
  %v29 = vadd.f32 %v20, %v22
  %v30 = vadd.f32 %v29, %v24
  %v31 = vadd.f32 %v30, %v26
  %v32 = vrot.slane %v31, 4
  %v33 = vadd.f32 %v31, %v32
  %v34 = vrot.slane %v33, 2
  %v35 = vadd.f32 %v33, %v34
  %v36 = vrot.slane %v35, 1
  %v37 = vadd.f32 %v35, %v36
  %v38 = vadd.f32 %v21, %v23
  %v39 = vadd.f32 %v38, %v25
  %v40 = vadd.f32 %v39, %v27
  %v41 = vrot.slane %v40, 4
  %v42 = vadd.f32 %v40, %v41
  %v43 = vrot.slane %v42, 2
  %v44 = vadd.f32 %v42, %v43
  %v45 = vrot.slane %v44, 1
  %v46 = vadd.f32 %v44, %v45
  %v49 = vcombine.low %v37, %v46
  %v51 = vunpack.c.l.s4 1966171168
  %v52 = vunpack.c.0.s8 %v51
  %v53 = vlaneseq
  %v54 = vshrl.u32 %v53, 7
  %v55 = vsub.s32 %v52, %v54
  %v56 = vrot.slane %v49, %v55
  %v58 = vunpack.c.l.s4 1966171168
  %v59 = vunpack.c.0.s8 %v58
  %v60 = vlaneseq
  %v61 = vshrl.u32 %v60, 7
  %v62 = vsub.s32 %v59, %v61
  %v63 = vrot.slane %v56, %v62
  %v65 = vadd.f32 %v28, %v63
  %v66 = vlaneseq
  %vm67 = vcmp.ge.s32.totalorder %v66, 0
  %vm68 = vcmp.lt.s32.totalorder %v66, 256
  %vm69 = vmand %vm67, %vm68
  %70 = vst.msk [vmem:[%s1] sm:$0x3] %vm69, %v65
  %v71 = vld [vmem:[%s2] sm:$0x3]
  %v72 = vmul.f32 %v20, %v20
  %v73 = vmul.f32 %v21, %v21
  %v74 = vmul.f32 %v22, %v22
  %v75 = vmul.f32 %v23, %v23
  %v76 = vmul.f32 %v24, %v24
  %v77 = vmul.f32 %v25, %v25
  %v78 = vmul.f32 %v26, %v26
  %v79 = vmul.f32 %v27, %v27
  %v80 = vadd.f32 %v72, %v74
  %v81 = vadd.f32 %v80, %v76
  %v82 = vadd.f32 %v81, %v78
  %v83 = vrot.slane %v82, 4
  %v84 = vadd.f32 %v82, %v83
  %v85 = vrot.slane %v84, 2
  %v86 = vadd.f32 %v84, %v85
  %v87 = vrot.slane %v86, 1
  %v88 = vadd.f32 %v86, %v87
  %v89 = vadd.f32 %v73, %v75
  %v90 = vadd.f32 %v89, %v77
  %v91 = vadd.f32 %v90, %v79
  %v92 = vrot.slane %v91, 4
  %v93 = vadd.f32 %v91, %v92
  %v94 = vrot.slane %v93, 2
  %v95 = vadd.f32 %v93, %v94
  %v96 = vrot.slane %v95, 1
  %v97 = vadd.f32 %v95, %v96
  %v100 = vcombine.low %v88, %v97
  %v102 = vunpack.c.l.s4 1966171168
  %v103 = vunpack.c.0.s8 %v102
  %v104 = vlaneseq
  %v105 = vshrl.u32 %v104, 7
  %v106 = vsub.s32 %v103, %v105
  %v107 = vrot.slane %v100, %v106
  %v109 = vunpack.c.l.s4 1966171168
  %v110 = vunpack.c.0.s8 %v109
  %v111 = vlaneseq
  %v112 = vshrl.u32 %v111, 7
  %v113 = vsub.s32 %v110, %v112
  %v114 = vrot.slane %v107, %v113
  %v116 = vadd.f32 %v71, %v114
  %117 = vst.msk [vmem:[%s2] sm:$0x3] %vm69, %v116
  // Predicated region
  $region10: #{generator_forward.13} parent=0 // pred_check
    _
  $region11: #{generator_forward.13} parent=0 // pred_check_branch
    %119 = sbr.rel (0) target = $region13
  $region12: #{generator_forward.13} parent=0 // pred_region
    _
  $region13: #{generator_forward.13} parent=0 // pred_fallthru
    _
  // Predicated region
  $region14: #{generator_forward.13} parent=0 // pred_check
    _
  $region15: #{generator_forward.13} parent=0 // pred_check_branch
    %121 = sbr.rel (0) target = $region17
  $region16: #{generator_forward.13} parent=0 // pred_region
    _
  $region17: #{generator_forward.13} parent=0 // pred_fallthru
    _
  // Predicated region
  $region18: #{generator_forward.13} parent=0 // pred_check
    _
  $region19: #{generator_forward.13} parent=0 // pred_check_branch
    %123 = sbr.rel (0) target = $region21
  $region20: #{generator_forward.13} parent=0 // pred_region
    _
  $region21: #{generator_forward.13} parent=0 // pred_fallthru
    _
  // Predicated region
  $region22: #{generator_forward.13} parent=0 // pred_check
    _
  $region23: #{generator_forward.13} parent=0 // pred_check_branch
    %125 = sbr.rel (0) target = $region25
  $region24: #{generator_forward.13} parent=0 // pred_region
    _
  $region25: #{generator_forward.13} parent=0 // pred_fallthru
    _

// kernel: generator_forward.14
$region0: #{generator_forward.14}
  #allocation0 [shape = 'u32[]', space=smem, size = 0x4, offset = 0x4, fixed_abs, tag = 'smem constant byte address 0x4 - core index']
  #allocation1 [shape = 'u32[144,128]{1,0:T(1,128)}', space=vmem, size = 0x12000, scoped, tag = 'internal scratch']
  %s0 = inlined_call_operand.vmem [shape: f32[32,256], index: 0, kind: input, shape index: {}]
  %s1 = inlined_call_operand.vmem [shape: f32[1,256], index: 1, kind: input, shape index: {}]
  %s2 = inlined_call_operand.vmem [shape: f32[1,256], index: 2, kind: input, shape index: {}]
  %s3 = inlined_call_operand.vmem [shape: bf16[32,256], index: 3, kind: output, shape index: {}]
  %s4 = sld [smem:[#allocation0]]
  $region22: #{generator_forward.14} parent=0
    _
  %s6 = ssub.s32 1, %s4
  %s7 = scalar_select 0, %s6, %s4
  // Predicated region
  $region2: #{generator_forward.14} parent=0 // pred_check
    _
  $region3: #{generator_forward.14} parent=0 // pred_check_branch
    %9 = sbr.rel (0) target = $region5
  $region4: #{generator_forward.14} parent=0 // pred_region
    _
  $region5: #{generator_forward.14} parent=0 // pred_fallthru
    _
  // Predicated region
  $region6: #{generator_forward.14} parent=0 // pred_check
    _
  $region7: #{generator_forward.14} parent=0 // pred_check_branch
    %11 = sbr.rel (0) target = $region9
  $region8: #{generator_forward.14} parent=0 // pred_region
    _
  $region9: #{generator_forward.14} parent=0 // pred_fallthru
    _
  // Predicated region
  $region10: #{generator_forward.14} parent=0 // pred_check
    _
  $region11: #{generator_forward.14} parent=0 // pred_check_branch
    %13 = sbr.rel (0) target = $region13
  $region12: #{generator_forward.14} parent=0 // pred_region
    _
  $region13: #{generator_forward.14} parent=0 // pred_fallthru
    _
  %v14 = vld [vmem:[%s0] sm:$0xff]
  %v15 = vld [vmem:[%s0 + $0x8] sm:$0xff]
  %v16 = vld [vmem:[%s0 + $0x10] sm:$0xff]
  %v17 = vld [vmem:[%s0 + $0x18] sm:$0xff]
  %v18 = vld [vmem:[%s0 + $0x20] sm:$0xff]
  %v19 = vld [vmem:[%s0 + $0x28] sm:$0xff]
  %v20 = vld [vmem:[%s0 + $0x30] sm:$0xff]
  %v21 = vld [vmem:[%s0 + $0x38] sm:$0xff]
  %v22 = vld [vmem:[%s1] sm:$0x3]
  %v24 = vlaneseq
  %v25 = vshrl.u32 %v24, 7
  %v26 = vsub.s32 0, %v25
  %v27 = vrot.slane %v22, %v26
  %v28 = vlaneseq
  %v29 = vshrl.u32 %v28, 7
  %v30 = vsub.s32 1, %v29
  %v31 = vrot.slane %v22, %v30
  %v34 = vmul.f32 %v14, %v27
  %v35 = vmul.f32 %v15, %v31
  %v36 = vmul.f32 %v16, %v27
  %v37 = vmul.f32 %v17, %v31
  %v38 = vmul.f32 %v18, %v27
  %v39 = vmul.f32 %v19, %v31
  %v40 = vmul.f32 %v20, %v27
  %v41 = vmul.f32 %v21, %v31
  %v42 = vld [vmem:[%s2] sm:$0x3]
  %v44 = vlaneseq
  %v45 = vshrl.u32 %v44, 7
  %v46 = vsub.s32 0, %v45
  %v47 = vrot.slane %v42, %v46
  %v48 = vlaneseq
  %v49 = vshrl.u32 %v48, 7
  %v50 = vsub.s32 1, %v49
  %v51 = vrot.slane %v42, %v50
  %v54 = vadd.f32 %v34, %v47
  %v55 = vadd.f32 %v35, %v51
  %v56 = vadd.f32 %v36, %v47
  %v57 = vadd.f32 %v37, %v51
  %v58 = vadd.f32 %v38, %v47
  %v59 = vadd.f32 %v39, %v51
  %v60 = vadd.f32 %v40, %v47
  %v61 = vadd.f32 %v41, %v51
  %v62 = vmax.f32 %v54, 0.0
  %v63 = vmax.f32 %v55, 0.0
  %v64 = vmax.f32 %v56, 0.0
  %v65 = vmax.f32 %v57, 0.0
  %v66 = vmax.f32 %v58, 0.0
  %v67 = vmax.f32 %v59, 0.0
  %v68 = vmax.f32 %v60, 0.0
  %v69 = vmax.f32 %v61, 0.0
  %v70 = vpack.c.bf16 %v64, %v62
  %v71 = vpack.c.bf16 %v65, %v63
  %v72 = vpack.c.bf16 %v68, %v66
  %v73 = vpack.c.bf16 %v69, %v67
  %v78 = vunpack.c.l.b16 %v70
  %v79 = vunpack.c.l.b16 %v71
  %v80 = vunpack.c.h.b16 %v70
  %v81 = vunpack.c.h.b16 %v71
  %v82 = vunpack.c.l.b16 %v72
  %v83 = vunpack.c.l.b16 %v73
  %v84 = vunpack.c.h.b16 %v72
  %v85 = vunpack.c.h.b16 %v73
  %v86 = vpack.c.b16 %v79, %v78
  %v87 = vpack.c.b16 %v81, %v80
  %v88 = vpack.c.b16 %v83, %v82
  %v89 = vpack.c.b16 %v85, %v84
  %94 = vst [vmem:[%s3] sm:$0xff] %v86
  %95 = vst [vmem:[%s3 + $0x8] sm:$0xff] %v87
  %96 = vst [vmem:[%s3 + $0x10] sm:$0xff] %v88
  %97 = vst [vmem:[%s3 + $0x18] sm:$0xff] %v89
  // Predicated region
  $region14: #{generator_forward.14} parent=0 // pred_check
    _
  $region15: #{generator_forward.14} parent=0 // pred_check_branch
    %99 = sbr.rel (0) target = $region17
  $region16: #{generator_forward.14} parent=0 // pred_region
    _
  $region17: #{generator_forward.14} parent=0 // pred_fallthru
    _
  // Predicated region
  $region18: #{generator_forward.14} parent=0 // pred_check
    _
  $region19: #{generator_forward.14} parent=0 // pred_check_branch
    %101 = sbr.rel (0) target = $region21
  $region20: #{generator_forward.14} parent=0 // pred_region
    _
  $region21: #{generator_forward.14} parent=0 // pred_fallthru
    _

// kernel: generator_forward.12
$region0: #{generator_forward.12}
  #allocation0 [shape = 'u32[]', space=smem, size = 0x4, offset = 0x4, fixed_abs, tag = 'smem constant byte address 0x4 - core index']
  #allocation1 [shape = 'u32[144,128]{1,0:T(1,128)}', space=vmem, size = 0x12000, scoped, tag = 'internal scratch']
  %s0 = inlined_call_operand.vmem [shape: bf16[18,2048], index: 0, kind: input, shape index: {}]
  %s1 = inlined_call_operand.hbm [shape: bf16[2048,1024], index: 1, kind: input, shape index: {}]
  %s2 = inlined_call_operand.hbm [shape: f32[1,1024], index: 2, kind: input, shape index: {}]
  %s3 = inlined_call_operand.vmem [shape: f32[18,1024], index: 3, kind: output, shape index: {}]
  %s4 = sld [smem:[#allocation0]]
  $region72: #{generator_forward.12} parent=0
    _
  %s6 = ssub.s32 1, %s4
  %s7 = scalar_select 0, %s6, %s4
  $region1: #{generator_forward.12} parent=0
    #allocation2 [shape = 'u8[4194304]{0}', space=vmem, size = 0x400000, scoped, tag = 'input window, operand 1']
    #allocation3 [shape = 's32[2]{0}', space=sflag, size = 0x8, scoped, tag = 'scoped memory for generator_forward.12']
    #allocation4 [shape = 'u8[4096]{0}', space=vmem, size = 0x1000, scoped, tag = 'input window, operand 2']
    #allocation5 [shape = 's32[2]{0}', space=sflag, size = 0x8, scoped, tag = 'scoped memory for generator_forward.12']
    #allocation6 [shape = 'u8[98304]{0}', space=vmem, size = 0x18000, scoped, tag = 'output window, operand 0']
    %8 = vsyncpa [#allocation3], 0
    %s9 = scalar_lea.sflag [#allocation3], 1
    %10 = vsyncpa %s9, 0
    %11 = vsyncpa [#allocation5], 0
    %s12 = scalar_lea.sflag [#allocation5], 1
    %13 = vsyncpa %s12, 0
    loop: start=0, step=1, limit=4
    $region2: #{generator_forward.12} parent=1 // loop_pre_header
      _
    $region3: #{generator_forward.12} parent=1 // loop_header
      %s15 = sphi 0, %s19
      %p16 = scmp.ge.s32.totalorder %s15, 4
      %s22 = sphi 0, %s34
      %s23 = sphi 0, %s30
      %s24 = sphi 0, %s22
      %s25 = sphi 0, %s23
      %s26 = sphi 0, %s24
      %s27 = sphi 0, %s25
      %s37 = sphi 0, %s39
      %s40 = sphi 0, %s37
      %s41 = sphi 0, %s40
      %s57 = sphi 0, %s41
      %s63 = sphi 0, %s65
      %s66 = sphi 0, %s63
      %s67 = sphi 0, %s66
      %s83 = sphi 0, %s67
      %s89 = sphi 0, %s91
      %s92 = sphi 0, %s89
      %s93 = sphi 0, %s92
      %s109 = sphi 0, %s93
      %s117 = sphi 0, %s119
      %s120 = sphi 0, %s117
      %s121 = sphi 0, %s120
      %s137 = sphi 0, %s121
    $region4: #{generator_forward.12} parent=1 // loop_header_branch
      %18 = sbr.rel (%p16) target = $region8
    $region5: #{generator_forward.12} parent=1 // loop_body
      %s20 = ssub.s32 %s15, 1
      %s21 = ssub.s32 %s15, 2
      %s28 = sadd.s32 1, %s23
      %p29 = scmp.ge.s32.totalorder %s28, 2
      %s30 = scalar_select %p29, 0, %s28
      %s31 = sadd.s32 1, %s22
      %s32 = scalar_select %p29, %s31, %s22
      %p33 = scmp.ge.s32.totalorder %s32, 1
      %s34 = scalar_select %p33, 0, %s32
      %s35 = ssub.s32 %s22, %s34
      %p36 = scmp.eq.s32.totalorder %s35, 0
      %s38 = sadd.s32 %s37, 1
      %s39 = scalar_select %p36, %s37, %s38
      %p42 = pneg %p36
      %p43 = scmp.eq.s32.totalorder %s15, 1
      %p44 = por %p42, %p43
      %p45 = scmp.ne.s32.totalorder %s37, %s40
      %p46 = scmp.eq.s32.totalorder %s15, 0
      %p47 = por %p45, %p46
      %p48 = scmp.ne.s32.totalorder %s37, %s40
      %p49 = scmp.eq.s32.totalorder %s20, 1
      %p50 = por %p48, %p49
      %p51 = scmp.ne.s32.totalorder %s40, %s41
      %p52 = scmp.eq.s32.totalorder %s20, 0
      %p53 = por %p51, %p52
      %p54 = scmp.ne.s32.totalorder %s40, %s41
      %p55 = scmp.eq.s32.totalorder %s21, 1
      %p56 = por %p54, %p55
      %p58 = scmp.ne.s32.totalorder %s41, %s57
      %p59 = scmp.eq.s32.totalorder %s21, 0
      %p60 = por %p58, %p59
      %s61 = ssub.s32 %s23, %s30
      %p62 = scmp.eq.s32.totalorder %s61, 0
      %s64 = sadd.s32 %s63, 1
      %s65 = scalar_select %p62, %s63, %s64
      %p68 = pneg %p62
      %p69 = scmp.eq.s32.totalorder %s15, 1
      %p70 = por %p68, %p69
      %p71 = scmp.ne.s32.totalorder %s63, %s66
      %p72 = scmp.eq.s32.totalorder %s15, 0
      %p73 = por %p71, %p72
      %p74 = scmp.ne.s32.totalorder %s63, %s66
      %p75 = scmp.eq.s32.totalorder %s20, 1
      %p76 = por %p74, %p75
      %p77 = scmp.ne.s32.totalorder %s66, %s67
      %p78 = scmp.eq.s32.totalorder %s20, 0
      %p79 = por %p77, %p78
      %p80 = scmp.ne.s32.totalorder %s66, %s67
      %p81 = scmp.eq.s32.totalorder %s21, 1
      %p82 = por %p80, %p81
      %p84 = scmp.ne.s32.totalorder %s67, %s83
      %p85 = scmp.eq.s32.totalorder %s21, 0
      %p86 = por %p84, %p85
      %s87 = ssub.s32 %s23, %s30
      %p88 = scmp.eq.s32.totalorder %s87, 0
      %s90 = sadd.s32 %s89, 1
      %s91 = scalar_select %p88, %s89, %s90
      %p94 = pneg %p88
      %p95 = scmp.eq.s32.totalorder %s15, 1
      %p96 = por %p94, %p95
      %p97 = scmp.ne.s32.totalorder %s89, %s92
      %p98 = scmp.eq.s32.totalorder %s15, 0
      %p99 = por %p97, %p98
      %p100 = scmp.ne.s32.totalorder %s89, %s92
      %p101 = scmp.eq.s32.totalorder %s20, 1
      %p102 = por %p100, %p101
      %p103 = scmp.ne.s32.totalorder %s92, %s93
      %p104 = scmp.eq.s32.totalorder %s20, 0
      %p105 = por %p103, %p104
      %p106 = scmp.ne.s32.totalorder %s92, %s93
      %p107 = scmp.eq.s32.totalorder %s21, 1
      %p108 = por %p106, %p107
      %p110 = scmp.ne.s32.totalorder %s93, %s109
      %p111 = scmp.eq.s32.totalorder %s21, 0
      %p112 = por %p110, %p111
      %s113 = ssub.s32 %s22, %s34
      %s114 = ssub.s32 %s23, %s30
      %s115 = sor.u32 %s113, %s114
      %p116 = scmp.eq.s32.totalorder %s115, 0
      %s118 = sadd.s32 %s117, 1
      %s119 = scalar_select %p116, %s117, %s118
      %p122 = pneg %p116
      %p123 = scmp.eq.s32.totalorder %s15, 1
      %p124 = por %p122, %p123
      %p125 = scmp.ne.s32.totalorder %s117, %s120
      %p126 = scmp.eq.s32.totalorder %s15, 0
      %p127 = por %p125, %p126
      %p128 = scmp.ne.s32.totalorder %s117, %s120
      %p129 = scmp.eq.s32.totalorder %s20, 1
      %p130 = por %p128, %p129
      %p131 = scmp.ne.s32.totalorder %s120, %s121
      %p132 = scmp.eq.s32.totalorder %s20, 0
      %p133 = por %p131, %p132
      %p134 = scmp.ne.s32.totalorder %s120, %s121
      %p135 = scmp.eq.s32.totalorder %s21, 1
      %p136 = por %p134, %p135
      %p138 = scmp.ne.s32.totalorder %s121, %s137
      %p139 = scmp.eq.s32.totalorder %s21, 0
      %p140 = por %p138, %p139
      %p141 = scmp.le.s32.totalorder 1, %s15
      %p142 = scmp.lt.s32.totalorder %s15, 3
      %p143 = pnand %p141, %p142
      %p144 = pneg %p143
      // Predicated region
      $region9: #{generator_forward.12} parent=5 // pred_check
        _
      $region10: #{generator_forward.12} parent=5 // pred_check_branch
        %146 = sbr.rel (%p143) target = $region12
      $region11: #{generator_forward.12} parent=5 // pred_region
        %s147 = ssub.s32 %s15, 1
        // Predicated region
        $region13: #{generator_forward.12} parent=11 // pred_check
          %p148 = pneg %p53
        $region14: #{generator_forward.12} parent=11 // pred_check_branch
          %150 = sbr.rel (%p148) target = $region16
        $region15: #{generator_forward.12} parent=11 // pred_region
          %s151 = smul.u32 3, %s24
          %p152 = scmp.lt.s32.totalorder %s151, 2
          %s153 = scalar_select %p152, %s151, 2
          %s154 = smul.addr %s153, 16
          %s155 = smul.addr %s154, 4
          %s156 = scalar_lea.vmem %s0, %s155
          %s157 = smul.u32 3, %s24
        $region16: #{generator_forward.12} parent=11 // pred_fallthru
          _
      $region12: #{generator_forward.12} parent=5 // pred_fallthru
        _
      %p158 = scmp.lt.s32.totalorder %s15, 2
      // Predicated region
      $region17: #{generator_forward.12} parent=5 // pred_check
        %p159 = pneg %p158
      $region18: #{generator_forward.12} parent=5 // pred_check_branch
        %161 = sbr.rel (%p159) target = $region20
      $region19: #{generator_forward.12} parent=5 // pred_region
        // Predicated region
        $region21: #{generator_forward.12} parent=19 // pred_check
          %p162 = pneg %p73
        $region22: #{generator_forward.12} parent=19 // pred_check_branch
          %164 = sbr.rel (%p162) target = $region24
        $region23: #{generator_forward.12} parent=19 // pred_region
          %s165 = sand.u32 %s63, 1
          %s166 = scalar_lea.sflag [#allocation3], %s165
          %s167 = sand.u32 %s63, 1
          %s168 = smul.addr %s167, 4096
          %s169 = scalar_lea.vmem [#allocation2], %s168
          %s170 = smul.u32 4, %s23
          %s172 = ssub.s32 65536, 65536
          %173 = vsyncadd %s166, %s172
          %s174 = smul.addr %s170, 64
          %s175 = scalar_lea.hbm %s1, %s174
          %s176 = sshll.u32 %s169, 4
          %s177 = int_to_ptr.vmem [resolvable:$true] %s176
          %182 = dma.hbm_to_vmem [thread:$0]  %s175, 65536, %s177, %s166, 512, 256, 16
        $region24: #{generator_forward.12} parent=19 // pred_fallthru
          _
        // Predicated region
        $region25: #{generator_forward.12} parent=19 // pred_check
          %p183 = pneg %p99
        $region26: #{generator_forward.12} parent=19 // pred_check_branch
          %185 = sbr.rel (%p183) target = $region28
        $region27: #{generator_forward.12} parent=19 // pred_region
          %s186 = sand.u32 %s89, 1
          %s187 = scalar_lea.sflag [#allocation5], %s186
          %s188 = sand.u32 %s89, 1
          %s189 = smul.addr %s188, 4
          %s190 = scalar_lea.vmem [#allocation4], %s189
          %s191 = smul.u32 4, %s23
          %s193 = ssub.s32 64, 64
          %194 = vsyncadd %s187, %s193
          %s195 = smul.addr %s191, 16
          %s196 = scalar_lea.hbm %s2, %s195
          %s198 = sshll.u32 %s190, 4
          %s199 = int_to_ptr.vmem [resolvable:$true] %s198
          %201 = dma.hbm_to_vmem [thread:$0]  %s196, 64, %s199, %s187
        $region28: #{generator_forward.12} parent=19 // pred_fallthru
          _
      $region20: #{generator_forward.12} parent=5 // pred_fallthru
        _
      %p202 = scmp.le.s32.totalorder 1, %s15
      %p203 = scmp.lt.s32.totalorder %s15, 3
      %p204 = pnand %p202, %p203
      %p205 = pneg %p204
      // Predicated region
      $region29: #{generator_forward.12} parent=5 // pred_check
        _
      $region30: #{generator_forward.12} parent=5 // pred_check_branch
        %207 = sbr.rel (%p204) target = $region32
      $region31: #{generator_forward.12} parent=5 // pred_region
        %s208 = ssub.s32 %s15, 1
        %s209 = sand.u32 %s66, 1
        %s210 = scalar_lea.sflag [#allocation3], %s209
        %s211 = sand.u32 %s66, 1
        %s212 = smul.addr %s211, 4096
        %s213 = scalar_lea.vmem [#allocation2], %s212
        // Predicated region
        $region33: #{generator_forward.12} parent=31 // pred_check
          %p214 = pneg %p79
        $region34: #{generator_forward.12} parent=31 // pred_check_branch
          %216 = sbr.rel (%p214) target = $region36
        $region35: #{generator_forward.12} parent=31 // pred_region
          %217 = dma.done %s210, 65536
        $region36: #{generator_forward.12} parent=31 // pred_fallthru
          _
        %s218 = sand.u32 %s92, 1
        %s219 = scalar_lea.sflag [#allocation5], %s218
        %s220 = sand.u32 %s92, 1
        %s221 = smul.addr %s220, 4
        %s222 = scalar_lea.vmem [#allocation4], %s221
        // Predicated region
        $region37: #{generator_forward.12} parent=31 // pred_check
          %p223 = pneg %p105
        $region38: #{generator_forward.12} parent=31 // pred_check_branch
          %225 = sbr.rel (%p223) target = $region40
        $region39: #{generator_forward.12} parent=31 // pred_region
          %226 = dma.done %s219, 64
        $region40: #{generator_forward.12} parent=31 // pred_fallthru
          _
        %s227 = smul.u32 3, %s24
        %p228 = scmp.lt.s32.totalorder %s227, 2
        %s229 = scalar_select %p228, %s227, 2
        %s230 = smul.addr %s229, 16
        %s231 = smul.addr %s230, 4
        %s232 = scalar_lea.vmem %s0, %s231
        %p233 = pneg %p53
        %p234 = pneg %p50
        %s235 = sand.u32 %s66, 1
        %s236 = scalar_lea.sflag [#allocation3], %s235
        %s237 = sand.u32 %s66, 1
        %s238 = smul.addr %s237, 4096
        %s239 = scalar_lea.vmem [#allocation2], %s238
        %p240 = pneg %p79
        %p241 = pneg %p76
        %s242 = sand.u32 %s92, 1
        %s243 = scalar_lea.sflag [#allocation5], %s242
        %s244 = sand.u32 %s92, 1
        %s245 = smul.addr %s244, 4
        %s246 = scalar_lea.vmem [#allocation4], %s245
        %p247 = pneg %p105
        %p248 = pneg %p102
        %p249 = pneg %p133
        %p250 = pneg %p130
        %s251 = sand.u32 %s120, 1
        %s252 = sand.u32 %s120, 1
        %s253 = smul.addr %s252, 96
        %s254 = scalar_lea.vmem [#allocation6], %s253
        %s255 = smul.u32 3, %s24
        %p256 = scmp.lt.s32.totalorder %s255, 2
        %s257 = scalar_select %p256, %s255, 2
        %s258 = smul.addr %s257, 16
        %s259 = smul.addr %s258, 4
        %s260 = scalar_lea.vmem %s0, %s259
        %s261 = smul.u32 3, %s24
        %s262 = smul.u32 4, %s25
        %s263 = smul.u32 4, %s25
        %s264 = smul.u32 3, %s24
        %s265 = smul.u32 4, %s25
        %v266 = vld [vmem:[%s260] sm:$0xff]
        %v267 = vld [vmem:[%s260 + $0x8] sm:$0xff]
        %v268 = vld [vmem:[%s260 + $0x10] sm:$0xff]
        %v269 = vld [vmem:[%s260 + $0x18] sm:$0xff]
        %v270 = vld [vmem:[%s260 + $0x20] sm:$0xff]
        %v271 = vld [vmem:[%s260 + $0x28] sm:$0xff]
        %v272 = vld [vmem:[%s260 + $0x30] sm:$0xff]
        %v273 = vld [vmem:[%s260 + $0x38] sm:$0xff]
        %v274 = vld [vmem:[%s260 + $0x40] sm:$0xff]
        %v275 = vld [vmem:[%s260 + $0x48] sm:$0xff]
        %v276 = vld [vmem:[%s260 + $0x50] sm:$0xff]
        %v277 = vld [vmem:[%s260 + $0x58] sm:$0xff]
        %v278 = vld [vmem:[%s260 + $0x60] sm:$0xff]
        %v279 = vld [vmem:[%s260 + $0x68] sm:$0xff]
        %v280 = vld [vmem:[%s260 + $0x70] sm:$0xff]
        %v281 = vld [vmem:[%s260 + $0x78] sm:$0xff]
        %v282 = vld [vmem:[%s260 + $0x80] sm:$0x11]
        %v283 = vld [vmem:[%s260 + $0x88] sm:$0x11]
        %v284 = vld [vmem:[%s260 + $0x90] sm:$0x11]
        %v285 = vld [vmem:[%s260 + $0x98] sm:$0x11]
        %v286 = vld [vmem:[%s260 + $0xa0] sm:$0x11]
        %v287 = vld [vmem:[%s260 + $0xa8] sm:$0x11]
        %v288 = vld [vmem:[%s260 + $0xb0] sm:$0x11]
        %v289 = vld [vmem:[%s260 + $0xb8] sm:$0x11]
        %v290 = vld [vmem:[%s213] sm:$0xff]
        %v291 = vld [vmem:[%s213 + $0x8] sm:$0xff]
        %v292 = vld [vmem:[%s213 + $0x10] sm:$0xff]
        %v293 = vld [vmem:[%s213 + $0x18] sm:$0xff]
        %v294 = vld [vmem:[%s213 + $0x20] sm:$0xff]
        %v295 = vld [vmem:[%s213 + $0x28] sm:$0xff]
        %v296 = vld [vmem:[%s213 + $0x30] sm:$0xff]
        %v297 = vld [vmem:[%s213 + $0x38] sm:$0xff]
        %v298 = vld [vmem:[%s213 + $0x40] sm:$0xff]
        %v299 = vld [vmem:[%s213 + $0x48] sm:$0xff]
        %v300 = vld [vmem:[%s213 + $0x50] sm:$0xff]
        %v301 = vld [vmem:[%s213 + $0x58] sm:$0xff]
        %v302 = vld [vmem:[%s213 + $0x60] sm:$0xff]
        %v303 = vld [vmem:[%s213 + $0x68] sm:$0xff]
        %v304 = vld [vmem:[%s213 + $0x70] sm:$0xff]
        %v305 = vld [vmem:[%s213 + $0x78] sm:$0xff]
        %v306 = vld [vmem:[%s213 + $0x80] sm:$0xff]
        %v307 = vld [vmem:[%s213 + $0x88] sm:$0xff]
        %v308 = vld [vmem:[%s213 + $0x90] sm:$0xff]
        %v309 = vld [vmem:[%s213 + $0x98] sm:$0xff]
        %v310 = vld [vmem:[%s213 + $0xa0] sm:$0xff]
        %v311 = vld [vmem:[%s213 + $0xa8] sm:$0xff]
        %v312 = vld [vmem:[%s213 + $0xb0] sm:$0xff]
        %v313 = vld [vmem:[%s213 + $0xb8] sm:$0xff]
        %v314 = vld [vmem:[%s213 + $0xc0] sm:$0xff]
        %v315 = vld [vmem:[%s213 + $0xc8] sm:$0xff]
        %v316 = vld [vmem:[%s213 + $0xd0] sm:$0xff]
        %v317 = vld [vmem:[%s213 + $0xd8] sm:$0xff]
        %v318 = vld [vmem:[%s213 + $0xe0] sm:$0xff]
        %v319 = vld [vmem:[%s213 + $0xe8] sm:$0xff]
        %v320 = vld [vmem:[%s213 + $0xf0] sm:$0xff]
        %v321 = vld [vmem:[%s213 + $0xf8] sm:$0xff]
        %v322 = vld [vmem:[%s213 + $0x100] sm:$0xff]
        %v323 = vld [vmem:[%s213 + $0x108] sm:$0xff]
        %v324 = vld [vmem:[%s213 + $0x110] sm:$0xff]
        %v325 = vld [vmem:[%s213 + $0x118] sm:$0xff]
        %v326 = vld [vmem:[%s213 + $0x120] sm:$0xff]
        %v327 = vld [vmem:[%s213 + $0x128] sm:$0xff]
        %v328 = vld [vmem:[%s213 + $0x130] sm:$0xff]
        %v329 = vld [vmem:[%s213 + $0x138] sm:$0xff]
        %v330 = vld [vmem:[%s213 + $0x140] sm:$0xff]
        %v331 = vld [vmem:[%s213 + $0x148] sm:$0xff]
        %v332 = vld [vmem:[%s213 + $0x150] sm:$0xff]
        %v333 = vld [vmem:[%s213 + $0x158] sm:$0xff]
        %v334 = vld [vmem:[%s213 + $0x160] sm:$0xff]
        %v335 = vld [vmem:[%s213 + $0x168] sm:$0xff]
        %v336 = vld [vmem:[%s213 + $0x170] sm:$0xff]
        %v337 = vld [vmem:[%s213 + $0x178] sm:$0xff]
        %v338 = vld [vmem:[%s213 + $0x180] sm:$0xff]
        %v339 = vld [vmem:[%s213 + $0x188] sm:$0xff]
        %v340 = vld [vmem:[%s213 + $0x190] sm:$0xff]
        %v341 = vld [vmem:[%s213 + $0x198] sm:$0xff]
        %v342 = vld [vmem:[%s213 + $0x1a0] sm:$0xff]
        %v343 = vld [vmem:[%s213 + $0x1a8] sm:$0xff]
        %v344 = vld [vmem:[%s213 + $0x1b0] sm:$0xff]
        %v345 = vld [vmem:[%s213 + $0x1b8] sm:$0xff]
        %v346 = vld [vmem:[%s213 + $0x1c0] sm:$0xff]
        %v347 = vld [vmem:[%s213 + $0x1c8] sm:$0xff]
        %v348 = vld [vmem:[%s213 + $0x1d0] sm:$0xff]
        %v349 = vld [vmem:[%s213 + $0x1d8] sm:$0xff]
        %v350 = vld [vmem:[%s213 + $0x1e0] sm:$0xff]
        %v351 = vld [vmem:[%s213 + $0x1e8] sm:$0xff]
        %v352 = vld [vmem:[%s213 + $0x1f0] sm:$0xff]
        %v353 = vld [vmem:[%s213 + $0x1f8] sm:$0xff]
        %v354 = vld [vmem:[%s213 + $0x200] sm:$0xff]
        %v355 = vld [vmem:[%s213 + $0x208] sm:$0xff]
        %v356 = vld [vmem:[%s213 + $0x210] sm:$0xff]
        %v357 = vld [vmem:[%s213 + $0x218] sm:$0xff]
        %v358 = vld [vmem:[%s213 + $0x220] sm:$0xff]
        %v359 = vld [vmem:[%s213 + $0x228] sm:$0xff]
        %v360 = vld [vmem:[%s213 + $0x230] sm:$0xff]
        %v361 = vld [vmem:[%s213 + $0x238] sm:$0xff]
        %v362 = vld [vmem:[%s213 + $0x240] sm:$0xff]
        %v363 = vld [vmem:[%s213 + $0x248] sm:$0xff]
        %v364 = vld [vmem:[%s213 + $0x250] sm:$0xff]
        %v365 = vld [vmem:[%s213 + $0x258] sm:$0xff]
        %v366 = vld [vmem:[%s213 + $0x260] sm:$0xff]
        %v367 = vld [vmem:[%s213 + $0x268] sm:$0xff]
        %v368 = vld [vmem:[%s213 + $0x270] sm:$0xff]
        %v369 = vld [vmem:[%s213 + $0x278] sm:$0xff]
        %v370 = vld [vmem:[%s213 + $0x280] sm:$0xff]
        %v371 = vld [vmem:[%s213 + $0x288] sm:$0xff]
        %v372 = vld [vmem:[%s213 + $0x290] sm:$0xff]
        %v373 = vld [vmem:[%s213 + $0x298] sm:$0xff]
        %v374 = vld [vmem:[%s213 + $0x2a0] sm:$0xff]
        %v375 = vld [vmem:[%s213 + $0x2a8] sm:$0xff]
        %v376 = vld [vmem:[%s213 + $0x2b0] sm:$0xff]
        %v377 = vld [vmem:[%s213 + $0x2b8] sm:$0xff]
        %v378 = vld [vmem:[%s213 + $0x2c0] sm:$0xff]
        %v379 = vld [vmem:[%s213 + $0x2c8] sm:$0xff]
        %v380 = vld [vmem:[%s213 + $0x2d0] sm:$0xff]
        %v381 = vld [vmem:[%s213 + $0x2d8] sm:$0xff]
        %v382 = vld [vmem:[%s213 + $0x2e0] sm:$0xff]
        %v383 = vld [vmem:[%s213 + $0x2e8] sm:$0xff]
        %v384 = vld [vmem:[%s213 + $0x2f0] sm:$0xff]
        %v385 = vld [vmem:[%s213 + $0x2f8] sm:$0xff]
        %v386 = vld [vmem:[%s213 + $0x300] sm:$0xff]
        %v387 = vld [vmem:[%s213 + $0x308] sm:$0xff]
        %v388 = vld [vmem:[%s213 + $0x310] sm:$0xff]
        %v389 = vld [vmem:[%s213 + $0x318] sm:$0xff]
        %v390 = vld [vmem:[%s213 + $0x320] sm:$0xff]
        %v391 = vld [vmem:[%s213 + $0x328] sm:$0xff]
        %v392 = vld [vmem:[%s213 + $0x330] sm:$0xff]
        %v393 = vld [vmem:[%s213 + $0x338] sm:$0xff]
        %v394 = vld [vmem:[%s213 + $0x340] sm:$0xff]
        %v395 = vld [vmem:[%s213 + $0x348] sm:$0xff]
        %v396 = vld [vmem:[%s213 + $0x350] sm:$0xff]
        %v397 = vld [vmem:[%s213 + $0x358] sm:$0xff]
        %v398 = vld [vmem:[%s213 + $0x360] sm:$0xff]
        %v399 = vld [vmem:[%s213 + $0x368] sm:$0xff]
        %v400 = vld [vmem:[%s213 + $0x370] sm:$0xff]
        %v401 = vld [vmem:[%s213 + $0x378] sm:$0xff]
        %v402 = vld [vmem:[%s213 + $0x380] sm:$0xff]
        %v403 = vld [vmem:[%s213 + $0x388] sm:$0xff]
        %v404 = vld [vmem:[%s213 + $0x390] sm:$0xff]
        %v405 = vld [vmem:[%s213 + $0x398] sm:$0xff]
        %v406 = vld [vmem:[%s213 + $0x3a0] sm:$0xff]
        %v407 = vld [vmem:[%s213 + $0x3a8] sm:$0xff]
        %v408 = vld [vmem:[%s213 + $0x3b0] sm:$0xff]
        %v409 = vld [vmem:[%s213 + $0x3b8] sm:$0xff]
        %v410 = vld [vmem:[%s213 + $0x3c0] sm:$0xff]
        %v411 = vld [vmem:[%s213 + $0x3c8] sm:$0xff]
        %v412 = vld [vmem:[%s213 + $0x3d0] sm:$0xff]
        %v413 = vld [vmem:[%s213 + $0x3d8] sm:$0xff]
        %v414 = vld [vmem:[%s213 + $0x3e0] sm:$0xff]
        %v415 = vld [vmem:[%s213 + $0x3e8] sm:$0xff]
        %v416 = vld [vmem:[%s213 + $0x3f0] sm:$0xff]
        %v417 = vld [vmem:[%s213 + $0x3f8] sm:$0xff]
        %v418 = vld [vmem:[%s213 + $0x400] sm:$0xff]
        %v419 = vld [vmem:[%s213 + $0x408] sm:$0xff]
        %v420 = vld [vmem:[%s213 + $0x410] sm:$0xff]
        %v421 = vld [vmem:[%s213 + $0x418] sm:$0xff]
        %v422 = vld [vmem:[%s213 + $0x420] sm:$0xff]
        %v423 = vld [vmem:[%s213 + $0x428] sm:$0xff]
        %v424 = vld [vmem:[%s213 + $0x430] sm:$0xff]
        %v425 = vld [vmem:[%s213 + $0x438] sm:$0xff]
        %v426 = vld [vmem:[%s213 + $0x440] sm:$0xff]
        %v427 = vld [vmem:[%s213 + $0x448] sm:$0xff]
        %v428 = vld [vmem:[%s213 + $0x450] sm:$0xff]
        %v429 = vld [vmem:[%s213 + $0x458] sm:$0xff]
        %v430 = vld [vmem:[%s213 + $0x460] sm:$0xff]
        %v431 = vld [vmem:[%s213 + $0x468] sm:$0xff]
        %v432 = vld [vmem:[%s213 + $0x470] sm:$0xff]
        %v433 = vld [vmem:[%s213 + $0x478] sm:$0xff]
        %v434 = vld [vmem:[%s213 + $0x480] sm:$0xff]
        %v435 = vld [vmem:[%s213 + $0x488] sm:$0xff]
        %v436 = vld [vmem:[%s213 + $0x490] sm:$0xff]
        %v437 = vld [vmem:[%s213 + $0x498] sm:$0xff]
        %v438 = vld [vmem:[%s213 + $0x4a0] sm:$0xff]
        %v439 = vld [vmem:[%s213 + $0x4a8] sm:$0xff]
        %v440 = vld [vmem:[%s213 + $0x4b0] sm:$0xff]
        %v441 = vld [vmem:[%s213 + $0x4b8] sm:$0xff]
        %v442 = vld [vmem:[%s213 + $0x4c0] sm:$0xff]
        %v443 = vld [vmem:[%s213 + $0x4c8] sm:$0xff]
        %v444 = vld [vmem:[%s213 + $0x4d0] sm:$0xff]
        %v445 = vld [vmem:[%s213 + $0x4d8] sm:$0xff]
        %v446 = vld [vmem:[%s213 + $0x4e0] sm:$0xff]
        %v447 = vld [vmem:[%s213 + $0x4e8] sm:$0xff]
        %v448 = vld [vmem:[%s213 + $0x4f0] sm:$0xff]
        %v449 = vld [vmem:[%s213 + $0x4f8] sm:$0xff]
        %v450 = vld [vmem:[%s213 + $0x500] sm:$0xff]
        %v451 = vld [vmem:[%s213 + $0x508] sm:$0xff]
        %v452 = vld [vmem:[%s213 + $0x510] sm:$0xff]
        %v453 = vld [vmem:[%s213 + $0x518] sm:$0xff]
        %v454 = vld [vmem:[%s213 + $0x520] sm:$0xff]
        %v455 = vld [vmem:[%s213 + $0x528] sm:$0xff]
        %v456 = vld [vmem:[%s213 + $0x530] sm:$0xff]
        %v457 = vld [vmem:[%s213 + $0x538] sm:$0xff]
        %v458 = vld [vmem:[%s213 + $0x540] sm:$0xff]
        %v459 = vld [vmem:[%s213 + $0x548] sm:$0xff]
        %v460 = vld [vmem:[%s213 + $0x550] sm:$0xff]
        %v461 = vld [vmem:[%s213 + $0x558] sm:$0xff]
        %v462 = vld [vmem:[%s213 + $0x560] sm:$0xff]
        %v463 = vld [vmem:[%s213 + $0x568] sm:$0xff]
        %v464 = vld [vmem:[%s213 + $0x570] sm:$0xff]
        %v465 = vld [vmem:[%s213 + $0x578] sm:$0xff]
        %v466 = vld [vmem:[%s213 + $0x580] sm:$0xff]
        %v467 = vld [vmem:[%s213 + $0x588] sm:$0xff]
        %v468 = vld [vmem:[%s213 + $0x590] sm:$0xff]
        %v469 = vld [vmem:[%s213 + $0x598] sm:$0xff]
        %v470 = vld [vmem:[%s213 + $0x5a0] sm:$0xff]
        %v471 = vld [vmem:[%s213 + $0x5a8] sm:$0xff]
        %v472 = vld [vmem:[%s213 + $0x5b0] sm:$0xff]
        %v473 = vld [vmem:[%s213 + $0x5b8] sm:$0xff]
        %v474 = vld [vmem:[%s213 + $0x5c0] sm:$0xff]
        %v475 = vld [vmem:[%s213 + $0x5c8] sm:$0xff]
        %v476 = vld [vmem:[%s213 + $0x5d0] sm:$0xff]
        %v477 = vld [vmem:[%s213 + $0x5d8] sm:$0xff]
        %v478 = vld [vmem:[%s213 + $0x5e0] sm:$0xff]
        %v479 = vld [vmem:[%s213 + $0x5e8] sm:$0xff]
        %v480 = vld [vmem:[%s213 + $0x5f0] sm:$0xff]
        %v481 = vld [vmem:[%s213 + $0x5f8] sm:$0xff]
        %v482 = vld [vmem:[%s213 + $0x600] sm:$0xff]
        %v483 = vld [vmem:[%s213 + $0x608] sm:$0xff]
        %v484 = vld [vmem:[%s213 + $0x610] sm:$0xff]
        %v485 = vld [vmem:[%s213 + $0x618] sm:$0xff]
        %v486 = vld [vmem:[%s213 + $0x620] sm:$0xff]
        %v487 = vld [vmem:[%s213 + $0x628] sm:$0xff]
        %v488 = vld [vmem:[%s213 + $0x630] sm:$0xff]
        %v489 = vld [vmem:[%s213 + $0x638] sm:$0xff]
        %v490 = vld [vmem:[%s213 + $0x640] sm:$0xff]
        %v491 = vld [vmem:[%s213 + $0x648] sm:$0xff]
        %v492 = vld [vmem:[%s213 + $0x650] sm:$0xff]
        %v493 = vld [vmem:[%s213 + $0x658] sm:$0xff]
        %v494 = vld [vmem:[%s213 + $0x660] sm:$0xff]
        %v495 = vld [vmem:[%s213 + $0x668] sm:$0xff]
        %v496 = vld [vmem:[%s213 + $0x670] sm:$0xff]
        %v497 = vld [vmem:[%s213 + $0x678] sm:$0xff]
        %v498 = vld [vmem:[%s213 + $0x680] sm:$0xff]
        %v499 = vld [vmem:[%s213 + $0x688] sm:$0xff]
        %v500 = vld [vmem:[%s213 + $0x690] sm:$0xff]
        %v501 = vld [vmem:[%s213 + $0x698] sm:$0xff]
        %v502 = vld [vmem:[%s213 + $0x6a0] sm:$0xff]
        %v503 = vld [vmem:[%s213 + $0x6a8] sm:$0xff]
        %v504 = vld [vmem:[%s213 + $0x6b0] sm:$0xff]
        %v505 = vld [vmem:[%s213 + $0x6b8] sm:$0xff]
        %v506 = vld [vmem:[%s213 + $0x6c0] sm:$0xff]
        %v507 = vld [vmem:[%s213 + $0x6c8] sm:$0xff]
        %v508 = vld [vmem:[%s213 + $0x6d0] sm:$0xff]
        %v509 = vld [vmem:[%s213 + $0x6d8] sm:$0xff]
        %v510 = vld [vmem:[%s213 + $0x6e0] sm:$0xff]
        %v511 = vld [vmem:[%s213 + $0x6e8] sm:$0xff]
        %v512 = vld [vmem:[%s213 + $0x6f0] sm:$0xff]
        %v513 = vld [vmem:[%s213 + $0x6f8] sm:$0xff]
        %v514 = vld [vmem:[%s213 + $0x700] sm:$0xff]
        %v515 = vld [vmem:[%s213 + $0x708] sm:$0xff]
        %v516 = vld [vmem:[%s213 + $0x710] sm:$0xff]
        %v517 = vld [vmem:[%s213 + $0x718] sm:$0xff]
        %v518 = vld [vmem:[%s213 + $0x720] sm:$0xff]
        %v519 = vld [vmem:[%s213 + $0x728] sm:$0xff]
        %v520 = vld [vmem:[%s213 + $0x730] sm:$0xff]
        %v521 = vld [vmem:[%s213 + $0x738] sm:$0xff]
        %v522 = vld [vmem:[%s213 + $0x740] sm:$0xff]
        %v523 = vld [vmem:[%s213 + $0x748] sm:$0xff]
        %v524 = vld [vmem:[%s213 + $0x750] sm:$0xff]
        %v525 = vld [vmem:[%s213 + $0x758] sm:$0xff]
        %v526 = vld [vmem:[%s213 + $0x760] sm:$0xff]
        %v527 = vld [vmem:[%s213 + $0x768] sm:$0xff]
        %v528 = vld [vmem:[%s213 + $0x770] sm:$0xff]
        %v529 = vld [vmem:[%s213 + $0x778] sm:$0xff]
        %v530 = vld [vmem:[%s213 + $0x780] sm:$0xff]
        %v531 = vld [vmem:[%s213 + $0x788] sm:$0xff]
        %v532 = vld [vmem:[%s213 + $0x790] sm:$0xff]
        %v533 = vld [vmem:[%s213 + $0x798] sm:$0xff]
        %v534 = vld [vmem:[%s213 + $0x7a0] sm:$0xff]
        %v535 = vld [vmem:[%s213 + $0x7a8] sm:$0xff]
        %v536 = vld [vmem:[%s213 + $0x7b0] sm:$0xff]
        %v537 = vld [vmem:[%s213 + $0x7b8] sm:$0xff]
        %v538 = vld [vmem:[%s213 + $0x7c0] sm:$0xff]
        %v539 = vld [vmem:[%s213 + $0x7c8] sm:$0xff]
        %v540 = vld [vmem:[%s213 + $0x7d0] sm:$0xff]
        %v541 = vld [vmem:[%s213 + $0x7d8] sm:$0xff]
        %v542 = vld [vmem:[%s213 + $0x7e0] sm:$0xff]
        %v543 = vld [vmem:[%s213 + $0x7e8] sm:$0xff]
        %v544 = vld [vmem:[%s213 + $0x7f0] sm:$0xff]
        %v545 = vld [vmem:[%s213 + $0x7f8] sm:$0xff]
        %v546 = vld [vmem:[%s213 + $0x800] sm:$0xff]
        %v547 = vld [vmem:[%s213 + $0x808] sm:$0xff]
        %v548 = vld [vmem:[%s213 + $0x810] sm:$0xff]
        %v549 = vld [vmem:[%s213 + $0x818] sm:$0xff]
        %v550 = vld [vmem:[%s213 + $0x820] sm:$0xff]
        %v551 = vld [vmem:[%s213 + $0x828] sm:$0xff]
        %v552 = vld [vmem:[%s213 + $0x830] sm:$0xff]
        %v553 = vld [vmem:[%s213 + $0x838] sm:$0xff]
        %v554 = vld [vmem:[%s213 + $0x840] sm:$0xff]
        %v555 = vld [vmem:[%s213 + $0x848] sm:$0xff]
        %v556 = vld [vmem:[%s213 + $0x850] sm:$0xff]
        %v557 = vld [vmem:[%s213 + $0x858] sm:$0xff]
        %v558 = vld [vmem:[%s213 + $0x860] sm:$0xff]
        %v559 = vld [vmem:[%s213 + $0x868] sm:$0xff]
        %v560 = vld [vmem:[%s213 + $0x870] sm:$0xff]
        %v561 = vld [vmem:[%s213 + $0x878] sm:$0xff]
        %v562 = vld [vmem:[%s213 + $0x880] sm:$0xff]
        %v563 = vld [vmem:[%s213 + $0x888] sm:$0xff]
        %v564 = vld [vmem:[%s213 + $0x890] sm:$0xff]
        %v565 = vld [vmem:[%s213 + $0x898] sm:$0xff]
        %v566 = vld [vmem:[%s213 + $0x8a0] sm:$0xff]
        %v567 = vld [vmem:[%s213 + $0x8a8] sm:$0xff]
        %v568 = vld [vmem:[%s213 + $0x8b0] sm:$0xff]
        %v569 = vld [vmem:[%s213 + $0x8b8] sm:$0xff]
        %v570 = vld [vmem:[%s213 + $0x8c0] sm:$0xff]
        %v571 = vld [vmem:[%s213 + $0x8c8] sm:$0xff]
        %v572 = vld [vmem:[%s213 + $0x8d0] sm:$0xff]
        %v573 = vld [vmem:[%s213 + $0x8d8] sm:$0xff]
        %v574 = vld [vmem:[%s213 + $0x8e0] sm:$0xff]
        %v575 = vld [vmem:[%s213 + $0x8e8] sm:$0xff]
        %v576 = vld [vmem:[%s213 + $0x8f0] sm:$0xff]
        %v577 = vld [vmem:[%s213 + $0x8f8] sm:$0xff]
        %v578 = vld [vmem:[%s213 + $0x900] sm:$0xff]
        %v579 = vld [vmem:[%s213 + $0x908] sm:$0xff]
        %v580 = vld [vmem:[%s213 + $0x910] sm:$0xff]
        %v581 = vld [vmem:[%s213 + $0x918] sm:$0xff]
        %v582 = vld [vmem:[%s213 + $0x920] sm:$0xff]
        %v583 = vld [vmem:[%s213 + $0x928] sm:$0xff]
        %v584 = vld [vmem:[%s213 + $0x930] sm:$0xff]
        %v585 = vld [vmem:[%s213 + $0x938] sm:$0xff]
        %v586 = vld [vmem:[%s213 + $0x940] sm:$0xff]
        %v587 = vld [vmem:[%s213 + $0x948] sm:$0xff]
        %v588 = vld [vmem:[%s213 + $0x950] sm:$0xff]
        %v589 = vld [vmem:[%s213 + $0x958] sm:$0xff]
        %v590 = vld [vmem:[%s213 + $0x960] sm:$0xff]
        %v591 = vld [vmem:[%s213 + $0x968] sm:$0xff]
        %v592 = vld [vmem:[%s213 + $0x970] sm:$0xff]
        %v593 = vld [vmem:[%s213 + $0x978] sm:$0xff]
        %v594 = vld [vmem:[%s213 + $0x980] sm:$0xff]
        %v595 = vld [vmem:[%s213 + $0x988] sm:$0xff]
        %v596 = vld [vmem:[%s213 + $0x990] sm:$0xff]
        %v597 = vld [vmem:[%s213 + $0x998] sm:$0xff]
        %v598 = vld [vmem:[%s213 + $0x9a0] sm:$0xff]
        %v599 = vld [vmem:[%s213 + $0x9a8] sm:$0xff]
        %v600 = vld [vmem:[%s213 + $0x9b0] sm:$0xff]
        %v601 = vld [vmem:[%s213 + $0x9b8] sm:$0xff]
        %v602 = vld [vmem:[%s213 + $0x9c0] sm:$0xff]
        %v603 = vld [vmem:[%s213 + $0x9c8] sm:$0xff]
        %v604 = vld [vmem:[%s213 + $0x9d0] sm:$0xff]
        %v605 = vld [vmem:[%s213 + $0x9d8] sm:$0xff]
        %v606 = vld [vmem:[%s213 + $0x9e0] sm:$0xff]
        %v607 = vld [vmem:[%s213 + $0x9e8] sm:$0xff]
        %v608 = vld [vmem:[%s213 + $0x9f0] sm:$0xff]
        %v609 = vld [vmem:[%s213 + $0x9f8] sm:$0xff]
        %v610 = vld [vmem:[%s213 + $0xa00] sm:$0xff]
        %v611 = vld [vmem:[%s213 + $0xa08] sm:$0xff]
        %v612 = vld [vmem:[%s213 + $0xa10] sm:$0xff]
        %v613 = vld [vmem:[%s213 + $0xa18] sm:$0xff]
        %v614 = vld [vmem:[%s213 + $0xa20] sm:$0xff]
        %v615 = vld [vmem:[%s213 + $0xa28] sm:$0xff]
        %v616 = vld [vmem:[%s213 + $0xa30] sm:$0xff]
        %v617 = vld [vmem:[%s213 + $0xa38] sm:$0xff]
        %v618 = vld [vmem:[%s213 + $0xa40] sm:$0xff]
        %v619 = vld [vmem:[%s213 + $0xa48] sm:$0xff]
        %v620 = vld [vmem:[%s213 + $0xa50] sm:$0xff]
        %v621 = vld [vmem:[%s213 + $0xa58] sm:$0xff]
        %v622 = vld [vmem:[%s213 + $0xa60] sm:$0xff]
        %v623 = vld [vmem:[%s213 + $0xa68] sm:$0xff]
        %v624 = vld [vmem:[%s213 + $0xa70] sm:$0xff]
        %v625 = vld [vmem:[%s213 + $0xa78] sm:$0xff]
        %v626 = vld [vmem:[%s213 + $0xa80] sm:$0xff]
        %v627 = vld [vmem:[%s213 + $0xa88] sm:$0xff]
        %v628 = vld [vmem:[%s213 + $0xa90] sm:$0xff]
        %v629 = vld [vmem:[%s213 + $0xa98] sm:$0xff]
        %v630 = vld [vmem:[%s213 + $0xaa0] sm:$0xff]
        %v631 = vld [vmem:[%s213 + $0xaa8] sm:$0xff]
        %v632 = vld [vmem:[%s213 + $0xab0] sm:$0xff]
        %v633 = vld [vmem:[%s213 + $0xab8] sm:$0xff]
        %v634 = vld [vmem:[%s213 + $0xac0] sm:$0xff]
        %v635 = vld [vmem:[%s213 + $0xac8] sm:$0xff]
        %v636 = vld [vmem:[%s213 + $0xad0] sm:$0xff]
        %v637 = vld [vmem:[%s213 + $0xad8] sm:$0xff]
        %v638 = vld [vmem:[%s213 + $0xae0] sm:$0xff]
        %v639 = vld [vmem:[%s213 + $0xae8] sm:$0xff]
        %v640 = vld [vmem:[%s213 + $0xaf0] sm:$0xff]
        %v641 = vld [vmem:[%s213 + $0xaf8] sm:$0xff]
        %v642 = vld [vmem:[%s213 + $0xb00] sm:$0xff]
        %v643 = vld [vmem:[%s213 + $0xb08] sm:$0xff]
        %v644 = vld [vmem:[%s213 + $0xb10] sm:$0xff]
        %v645 = vld [vmem:[%s213 + $0xb18] sm:$0xff]
        %v646 = vld [vmem:[%s213 + $0xb20] sm:$0xff]
        %v647 = vld [vmem:[%s213 + $0xb28] sm:$0xff]
        %v648 = vld [vmem:[%s213 + $0xb30] sm:$0xff]
        %v649 = vld [vmem:[%s213 + $0xb38] sm:$0xff]
        %v650 = vld [vmem:[%s213 + $0xb40] sm:$0xff]
        %v651 = vld [vmem:[%s213 + $0xb48] sm:$0xff]
        %v652 = vld [vmem:[%s213 + $0xb50] sm:$0xff]
        %v653 = vld [vmem:[%s213 + $0xb58] sm:$0xff]
        %v654 = vld [vmem:[%s213 + $0xb60] sm:$0xff]
        %v655 = vld [vmem:[%s213 + $0xb68] sm:$0xff]
        %v656 = vld [vmem:[%s213 + $0xb70] sm:$0xff]
        %v657 = vld [vmem:[%s213 + $0xb78] sm:$0xff]
        %v658 = vld [vmem:[%s213 + $0xb80] sm:$0xff]
        %v659 = vld [vmem:[%s213 + $0xb88] sm:$0xff]
        %v660 = vld [vmem:[%s213 + $0xb90] sm:$0xff]
        %v661 = vld [vmem:[%s213 + $0xb98] sm:$0xff]
        %v662 = vld [vmem:[%s213 + $0xba0] sm:$0xff]
        %v663 = vld [vmem:[%s213 + $0xba8] sm:$0xff]
        %v664 = vld [vmem:[%s213 + $0xbb0] sm:$0xff]
        %v665 = vld [vmem:[%s213 + $0xbb8] sm:$0xff]
        %v666 = vld [vmem:[%s213 + $0xbc0] sm:$0xff]
        %v667 = vld [vmem:[%s213 + $0xbc8] sm:$0xff]
        %v668 = vld [vmem:[%s213 + $0xbd0] sm:$0xff]
        %v669 = vld [vmem:[%s213 + $0xbd8] sm:$0xff]
        %v670 = vld [vmem:[%s213 + $0xbe0] sm:$0xff]
        %v671 = vld [vmem:[%s213 + $0xbe8] sm:$0xff]
        %v672 = vld [vmem:[%s213 + $0xbf0] sm:$0xff]
        %v673 = vld [vmem:[%s213 + $0xbf8] sm:$0xff]
        %v674 = vld [vmem:[%s213 + $0xc00] sm:$0xff]
        %v675 = vld [vmem:[%s213 + $0xc08] sm:$0xff]
        %v676 = vld [vmem:[%s213 + $0xc10] sm:$0xff]
        %v677 = vld [vmem:[%s213 + $0xc18] sm:$0xff]
        %v678 = vld [vmem:[%s213 + $0xc20] sm:$0xff]
        %v679 = vld [vmem:[%s213 + $0xc28] sm:$0xff]
        %v680 = vld [vmem:[%s213 + $0xc30] sm:$0xff]
        %v681 = vld [vmem:[%s213 + $0xc38] sm:$0xff]
        %v682 = vld [vmem:[%s213 + $0xc40] sm:$0xff]
        %v683 = vld [vmem:[%s213 + $0xc48] sm:$0xff]
        %v684 = vld [vmem:[%s213 + $0xc50] sm:$0xff]
        %v685 = vld [vmem:[%s213 + $0xc58] sm:$0xff]
        %v686 = vld [vmem:[%s213 + $0xc60] sm:$0xff]
        %v687 = vld [vmem:[%s213 + $0xc68] sm:$0xff]
        %v688 = vld [vmem:[%s213 + $0xc70] sm:$0xff]
        %v689 = vld [vmem:[%s213 + $0xc78] sm:$0xff]
        %v690 = vld [vmem:[%s213 + $0xc80] sm:$0xff]
        %v691 = vld [vmem:[%s213 + $0xc88] sm:$0xff]
        %v692 = vld [vmem:[%s213 + $0xc90] sm:$0xff]
        %v693 = vld [vmem:[%s213 + $0xc98] sm:$0xff]
        %v694 = vld [vmem:[%s213 + $0xca0] sm:$0xff]
        %v695 = vld [vmem:[%s213 + $0xca8] sm:$0xff]
        %v696 = vld [vmem:[%s213 + $0xcb0] sm:$0xff]
        %v697 = vld [vmem:[%s213 + $0xcb8] sm:$0xff]
        %v698 = vld [vmem:[%s213 + $0xcc0] sm:$0xff]
        %v699 = vld [vmem:[%s213 + $0xcc8] sm:$0xff]
        %v700 = vld [vmem:[%s213 + $0xcd0] sm:$0xff]
        %v701 = vld [vmem:[%s213 + $0xcd8] sm:$0xff]
        %v702 = vld [vmem:[%s213 + $0xce0] sm:$0xff]
        %v703 = vld [vmem:[%s213 + $0xce8] sm:$0xff]
        %v704 = vld [vmem:[%s213 + $0xcf0] sm:$0xff]
        %v705 = vld [vmem:[%s213 + $0xcf8] sm:$0xff]
        %v706 = vld [vmem:[%s213 + $0xd00] sm:$0xff]
        %v707 = vld [vmem:[%s213 + $0xd08] sm:$0xff]
        %v708 = vld [vmem:[%s213 + $0xd10] sm:$0xff]
        %v709 = vld [vmem:[%s213 + $0xd18] sm:$0xff]
        %v710 = vld [vmem:[%s213 + $0xd20] sm:$0xff]
        %v711 = vld [vmem:[%s213 + $0xd28] sm:$0xff]
        %v712 = vld [vmem:[%s213 + $0xd30] sm:$0xff]
        %v713 = vld [vmem:[%s213 + $0xd38] sm:$0xff]
        %v714 = vld [vmem:[%s213 + $0xd40] sm:$0xff]
        %v715 = vld [vmem:[%s213 + $0xd48] sm:$0xff]
        %v716 = vld [vmem:[%s213 + $0xd50] sm:$0xff]
        %v717 = vld [vmem:[%s213 + $0xd58] sm:$0xff]
        %v718 = vld [vmem:[%s213 + $0xd60] sm:$0xff]
        %v719 = vld [vmem:[%s213 + $0xd68] sm:$0xff]
        %v720 = vld [vmem:[%s213 + $0xd70] sm:$0xff]
        %v721 = vld [vmem:[%s213 + $0xd78] sm:$0xff]
        %v722 = vld [vmem:[%s213 + $0xd80] sm:$0xff]
        %v723 = vld [vmem:[%s213 + $0xd88] sm:$0xff]
        %v724 = vld [vmem:[%s213 + $0xd90] sm:$0xff]
        %v725 = vld [vmem:[%s213 + $0xd98] sm:$0xff]
        %v726 = vld [vmem:[%s213 + $0xda0] sm:$0xff]
        %v727 = vld [vmem:[%s213 + $0xda8] sm:$0xff]
        %v728 = vld [vmem:[%s213 + $0xdb0] sm:$0xff]
        %v729 = vld [vmem:[%s213 + $0xdb8] sm:$0xff]
        %v730 = vld [vmem:[%s213 + $0xdc0] sm:$0xff]
        %v731 = vld [vmem:[%s213 + $0xdc8] sm:$0xff]
        %v732 = vld [vmem:[%s213 + $0xdd0] sm:$0xff]
        %v733 = vld [vmem:[%s213 + $0xdd8] sm:$0xff]
        %v734 = vld [vmem:[%s213 + $0xde0] sm:$0xff]
        %v735 = vld [vmem:[%s213 + $0xde8] sm:$0xff]
        %v736 = vld [vmem:[%s213 + $0xdf0] sm:$0xff]
        %v737 = vld [vmem:[%s213 + $0xdf8] sm:$0xff]
        %v738 = vld [vmem:[%s213 + $0xe00] sm:$0xff]
        %v739 = vld [vmem:[%s213 + $0xe08] sm:$0xff]
        %v740 = vld [vmem:[%s213 + $0xe10] sm:$0xff]
        %v741 = vld [vmem:[%s213 + $0xe18] sm:$0xff]
        %v742 = vld [vmem:[%s213 + $0xe20] sm:$0xff]
        %v743 = vld [vmem:[%s213 + $0xe28] sm:$0xff]
        %v744 = vld [vmem:[%s213 + $0xe30] sm:$0xff]
        %v745 = vld [vmem:[%s213 + $0xe38] sm:$0xff]
        %v746 = vld [vmem:[%s213 + $0xe40] sm:$0xff]
        %v747 = vld [vmem:[%s213 + $0xe48] sm:$0xff]
        %v748 = vld [vmem:[%s213 + $0xe50] sm:$0xff]
        %v749 = vld [vmem:[%s213 + $0xe58] sm:$0xff]
        %v750 = vld [vmem:[%s213 + $0xe60] sm:$0xff]
        %v751 = vld [vmem:[%s213 + $0xe68] sm:$0xff]
        %v752 = vld [vmem:[%s213 + $0xe70] sm:$0xff]
        %v753 = vld [vmem:[%s213 + $0xe78] sm:$0xff]
        %v754 = vld [vmem:[%s213 + $0xe80] sm:$0xff]
        %v755 = vld [vmem:[%s213 + $0xe88] sm:$0xff]
        %v756 = vld [vmem:[%s213 + $0xe90] sm:$0xff]
        %v757 = vld [vmem:[%s213 + $0xe98] sm:$0xff]
        %v758 = vld [vmem:[%s213 + $0xea0] sm:$0xff]
        %v759 = vld [vmem:[%s213 + $0xea8] sm:$0xff]
        %v760 = vld [vmem:[%s213 + $0xeb0] sm:$0xff]
        %v761 = vld [vmem:[%s213 + $0xeb8] sm:$0xff]
        %v762 = vld [vmem:[%s213 + $0xec0] sm:$0xff]
        %v763 = vld [vmem:[%s213 + $0xec8] sm:$0xff]
        %v764 = vld [vmem:[%s213 + $0xed0] sm:$0xff]
        %v765 = vld [vmem:[%s213 + $0xed8] sm:$0xff]
        %v766 = vld [vmem:[%s213 + $0xee0] sm:$0xff]
        %v767 = vld [vmem:[%s213 + $0xee8] sm:$0xff]
        %v768 = vld [vmem:[%s213 + $0xef0] sm:$0xff]
        %v769 = vld [vmem:[%s213 + $0xef8] sm:$0xff]
        %v770 = vld [vmem:[%s213 + $0xf00] sm:$0xff]
        %v771 = vld [vmem:[%s213 + $0xf08] sm:$0xff]
        %v772 = vld [vmem:[%s213 + $0xf10] sm:$0xff]
        %v773 = vld [vmem:[%s213 + $0xf18] sm:$0xff]
        %v774 = vld [vmem:[%s213 + $0xf20] sm:$0xff]
        %v775 = vld [vmem:[%s213 + $0xf28] sm:$0xff]
        %v776 = vld [vmem:[%s213 + $0xf30] sm:$0xff]
        %v777 = vld [vmem:[%s213 + $0xf38] sm:$0xff]
        %v778 = vld [vmem:[%s213 + $0xf40] sm:$0xff]
        %v779 = vld [vmem:[%s213 + $0xf48] sm:$0xff]
        %v780 = vld [vmem:[%s213 + $0xf50] sm:$0xff]
        %v781 = vld [vmem:[%s213 + $0xf58] sm:$0xff]
        %v782 = vld [vmem:[%s213 + $0xf60] sm:$0xff]
        %v783 = vld [vmem:[%s213 + $0xf68] sm:$0xff]
        %v784 = vld [vmem:[%s213 + $0xf70] sm:$0xff]
        %v785 = vld [vmem:[%s213 + $0xf78] sm:$0xff]
        %v786 = vld [vmem:[%s213 + $0xf80] sm:$0xff]
        %v787 = vld [vmem:[%s213 + $0xf88] sm:$0xff]
        %v788 = vld [vmem:[%s213 + $0xf90] sm:$0xff]
        %v789 = vld [vmem:[%s213 + $0xf98] sm:$0xff]
        %v790 = vld [vmem:[%s213 + $0xfa0] sm:$0xff]
        %v791 = vld [vmem:[%s213 + $0xfa8] sm:$0xff]
        %v792 = vld [vmem:[%s213 + $0xfb0] sm:$0xff]
        %v793 = vld [vmem:[%s213 + $0xfb8] sm:$0xff]
        %v794 = vld [vmem:[%s213 + $0xfc0] sm:$0xff]
        %v795 = vld [vmem:[%s213 + $0xfc8] sm:$0xff]
        %v796 = vld [vmem:[%s213 + $0xfd0] sm:$0xff]
        %v797 = vld [vmem:[%s213 + $0xfd8] sm:$0xff]
        %v798 = vld [vmem:[%s213 + $0xfe0] sm:$0xff]
        %v799 = vld [vmem:[%s213 + $0xfe8] sm:$0xff]
        %v800 = vld [vmem:[%s213 + $0xff0] sm:$0xff]
        %v801 = vld [vmem:[%s213 + $0xff8] sm:$0xff]
        %v802 = vld [vmem:[%s222] sm:$0xf]
        %v804 = vlaneseq
        %v805 = vshrl.u32 %v804, 7
        %v806 = vsub.s32 0, %v805
        %v807 = vrot.slane %v802, %v806
        %v808 = vlaneseq
        %v809 = vshrl.u32 %v808, 7
        %v810 = vsub.s32 1, %v809
        %v811 = vrot.slane %v802, %v810
        %v812 = vlaneseq
        %v813 = vshrl.u32 %v812, 7
        %v814 = vsub.s32 2, %v813
        %v815 = vrot.slane %v802, %v814
        %v816 = vlaneseq
        %v817 = vshrl.u32 %v816, 7
        %v818 = vsub.s32 3, %v817
        %v819 = vrot.slane %v802, %v818
        %v848 = vunpack.c.l.b16 %v266
        %v849 = vunpack.c.h.b16 %v266
        %v850 = vunpack.c.l.b16 %v267
        %v851 = vunpack.c.h.b16 %v267
        %v852 = vunpack.c.l.b16 %v268
        %v853 = vunpack.c.h.b16 %v268
        %v854 = vunpack.c.l.b16 %v269
        %v855 = vunpack.c.h.b16 %v269
        %v856 = vunpack.c.l.b16 %v270
        %v857 = vunpack.c.h.b16 %v270
        %v858 = vunpack.c.l.b16 %v271
        %v859 = vunpack.c.h.b16 %v271
        %v860 = vunpack.c.l.b16 %v272
        %v861 = vunpack.c.h.b16 %v272
        %v862 = vunpack.c.l.b16 %v273
        %v863 = vunpack.c.h.b16 %v273
        %v864 = vunpack.c.l.b16 %v274
        %v865 = vunpack.c.h.b16 %v274
        %v866 = vunpack.c.l.b16 %v275
        %v867 = vunpack.c.h.b16 %v275
        %v868 = vunpack.c.l.b16 %v276
        %v869 = vunpack.c.h.b16 %v276
        %v870 = vunpack.c.l.b16 %v277
        %v871 = vunpack.c.h.b16 %v277
        %v872 = vunpack.c.l.b16 %v278
        %v873 = vunpack.c.h.b16 %v278
        %v874 = vunpack.c.l.b16 %v279
        %v875 = vunpack.c.h.b16 %v279
        %v876 = vunpack.c.l.b16 %v280
        %v877 = vunpack.c.h.b16 %v280
        %v878 = vunpack.c.l.b16 %v281
        %v879 = vunpack.c.h.b16 %v281
        %v880 = vunpack.c.l.b16 %v282
        %v881 = vunpack.c.h.b16 %v282
        %v882 = vunpack.c.l.b16 %v283
        %v883 = vunpack.c.h.b16 %v283
        %v884 = vunpack.c.l.b16 %v284
        %v885 = vunpack.c.h.b16 %v284
        %v886 = vunpack.c.l.b16 %v285
        %v887 = vunpack.c.h.b16 %v285
        %v888 = vunpack.c.l.b16 %v286
        %v889 = vunpack.c.h.b16 %v286
        %v890 = vunpack.c.l.b16 %v287
        %v891 = vunpack.c.h.b16 %v287
        %v892 = vunpack.c.l.b16 %v288
        %v893 = vunpack.c.h.b16 %v288
        %v894 = vunpack.c.l.b16 %v289
        %v895 = vunpack.c.h.b16 %v289
        %v896 = vpack.c.b16 %v864, %v848
        %v897 = vpack.c.b16 %v865, %v849
        %v898 = vpack.c.b16 %v866, %v850
        %v899 = vpack.c.b16 %v867, %v851
        %v900 = vpack.c.b16 %v868, %v852
        %v901 = vpack.c.b16 %v869, %v853
        %v902 = vpack.c.b16 %v870, %v854
        %v903 = vpack.c.b16 %v871, %v855
        %v904 = vpack.c.b16 %v872, %v856
        %v905 = vpack.c.b16 %v873, %v857
        %v906 = vpack.c.b16 %v874, %v858
        %v907 = vpack.c.b16 %v875, %v859
        %v908 = vpack.c.b16 %v876, %v860
        %v909 = vpack.c.b16 %v877, %v861
        %v910 = vpack.c.b16 %v878, %v862
        %v911 = vpack.c.b16 %v879, %v863
        %v912 = vpack.c.b16 %v880, %v880
        %v913 = vpack.c.b16 %v881, %v881
        %v914 = vpack.c.b16 %v882, %v882
        %v915 = vpack.c.b16 %v883, %v883
        %v916 = vpack.c.b16 %v884, %v884
        %v917 = vpack.c.b16 %v885, %v885
        %v918 = vpack.c.b16 %v886, %v886
        %v919 = vpack.c.b16 %v887, %v887
        %v920 = vpack.c.b16 %v888, %v888
        %v921 = vpack.c.b16 %v889, %v889
        %v922 = vpack.c.b16 %v890, %v890
        %v923 = vpack.c.b16 %v891, %v891
        %v924 = vpack.c.b16 %v892, %v892
        %v925 = vpack.c.b16 %v893, %v893
        %v926 = vpack.c.b16 %v894, %v894
        %v927 = vpack.c.b16 %v895, %v895
        %v1472 = vunpack.c.l.b16 %v290
        %v1473 = vunpack.c.h.b16 %v290
        %v1474 = vunpack.c.l.b16 %v291
        %v1475 = vunpack.c.h.b16 %v291
        %v1476 = vunpack.c.l.b16 %v292
        %v1477 = vunpack.c.h.b16 %v292
        %v1478 = vunpack.c.l.b16 %v293
        %v1479 = vunpack.c.h.b16 %v293
        %v1480 = vunpack.c.l.b16 %v294
        %v1481 = vunpack.c.h.b16 %v294
        %v1482 = vunpack.c.l.b16 %v295
        %v1483 = vunpack.c.h.b16 %v295
        %v1484 = vunpack.c.l.b16 %v296
        %v1485 = vunpack.c.h.b16 %v296
        %v1486 = vunpack.c.l.b16 %v297
        %v1487 = vunpack.c.h.b16 %v297
        %v1488 = vunpack.c.l.b16 %v298
        %v1489 = vunpack.c.h.b16 %v298
        %v1490 = vunpack.c.l.b16 %v299
        %v1491 = vunpack.c.h.b16 %v299
        %v1492 = vunpack.c.l.b16 %v300
        %v1493 = vunpack.c.h.b16 %v300
        %v1494 = vunpack.c.l.b16 %v301
        %v1495 = vunpack.c.h.b16 %v301
        %v1496 = vunpack.c.l.b16 %v302
        %v1497 = vunpack.c.h.b16 %v302
        %v1498 = vunpack.c.l.b16 %v303
        %v1499 = vunpack.c.h.b16 %v303
        %v1500 = vunpack.c.l.b16 %v304
        %v1501 = vunpack.c.h.b16 %v304
        %v1502 = vunpack.c.l.b16 %v305
        %v1503 = vunpack.c.h.b16 %v305
        %v1504 = vunpack.c.l.b16 %v306
        %v1505 = vunpack.c.h.b16 %v306
        %v1506 = vunpack.c.l.b16 %v307
        %v1507 = vunpack.c.h.b16 %v307
        %v1508 = vunpack.c.l.b16 %v308
        %v1509 = vunpack.c.h.b16 %v308
        %v1510 = vunpack.c.l.b16 %v309
        %v1511 = vunpack.c.h.b16 %v309
        %v1512 = vunpack.c.l.b16 %v310
        %v1513 = vunpack.c.h.b16 %v310
        %v1514 = vunpack.c.l.b16 %v311
        %v1515 = vunpack.c.h.b16 %v311
        %v1516 = vunpack.c.l.b16 %v312
        %v1517 = vunpack.c.h.b16 %v312
        %v1518 = vunpack.c.l.b16 %v313
        %v1519 = vunpack.c.h.b16 %v313
        %v1520 = vunpack.c.l.b16 %v314
        %v1521 = vunpack.c.h.b16 %v314
        %v1522 = vunpack.c.l.b16 %v315
        %v1523 = vunpack.c.h.b16 %v315
        %v1524 = vunpack.c.l.b16 %v316
        %v1525 = vunpack.c.h.b16 %v316
        %v1526 = vunpack.c.l.b16 %v317
        %v1527 = vunpack.c.h.b16 %v317
        %v1528 = vunpack.c.l.b16 %v318
        %v1529 = vunpack.c.h.b16 %v318
        %v1530 = vunpack.c.l.b16 %v319
        %v1531 = vunpack.c.h.b16 %v319
        %v1532 = vunpack.c.l.b16 %v320
        %v1533 = vunpack.c.h.b16 %v320
        %v1534 = vunpack.c.l.b16 %v321
        %v1535 = vunpack.c.h.b16 %v321
        %v1536 = vunpack.c.l.b16 %v322
        %v1537 = vunpack.c.h.b16 %v322
        %v1538 = vunpack.c.l.b16 %v323
        %v1539 = vunpack.c.h.b16 %v323
        %v1540 = vunpack.c.l.b16 %v324
        %v1541 = vunpack.c.h.b16 %v324
        %v1542 = vunpack.c.l.b16 %v325
        %v1543 = vunpack.c.h.b16 %v325
        %v1544 = vunpack.c.l.b16 %v326
        %v1545 = vunpack.c.h.b16 %v326
        %v1546 = vunpack.c.l.b16 %v327
        %v1547 = vunpack.c.h.b16 %v327
        %v1548 = vunpack.c.l.b16 %v328
        %v1549 = vunpack.c.h.b16 %v328
        %v1550 = vunpack.c.l.b16 %v329
        %v1551 = vunpack.c.h.b16 %v329
        %v1552 = vunpack.c.l.b16 %v330
        %v1553 = vunpack.c.h.b16 %v330
        %v1554 = vunpack.c.l.b16 %v331
        %v1555 = vunpack.c.h.b16 %v331
        %v1556 = vunpack.c.l.b16 %v332
        %v1557 = vunpack.c.h.b16 %v332
        %v1558 = vunpack.c.l.b16 %v333
        %v1559 = vunpack.c.h.b16 %v333
        %v1560 = vunpack.c.l.b16 %v334
        %v1561 = vunpack.c.h.b16 %v334
        %v1562 = vunpack.c.l.b16 %v335
        %v1563 = vunpack.c.h.b16 %v335
        %v1564 = vunpack.c.l.b16 %v336
        %v1565 = vunpack.c.h.b16 %v336
        %v1566 = vunpack.c.l.b16 %v337
        %v1567 = vunpack.c.h.b16 %v337
        %v1568 = vunpack.c.l.b16 %v338
        %v1569 = vunpack.c.h.b16 %v338
        %v1570 = vunpack.c.l.b16 %v339
        %v1571 = vunpack.c.h.b16 %v339
        %v1572 = vunpack.c.l.b16 %v340
        %v1573 = vunpack.c.h.b16 %v340
        %v1574 = vunpack.c.l.b16 %v341
        %v1575 = vunpack.c.h.b16 %v341
        %v1576 = vunpack.c.l.b16 %v342
        %v1577 = vunpack.c.h.b16 %v342
        %v1578 = vunpack.c.l.b16 %v343
        %v1579 = vunpack.c.h.b16 %v343
        %v1580 = vunpack.c.l.b16 %v344
        %v1581 = vunpack.c.h.b16 %v344
        %v1582 = vunpack.c.l.b16 %v345
        %v1583 = vunpack.c.h.b16 %v345
        %v1584 = vunpack.c.l.b16 %v346
        %v1585 = vunpack.c.h.b16 %v346
        %v1586 = vunpack.c.l.b16 %v347
        %v1587 = vunpack.c.h.b16 %v347
        %v1588 = vunpack.c.l.b16 %v348
        %v1589 = vunpack.c.h.b16 %v348
        %v1590 = vunpack.c.l.b16 %v349
        %v1591 = vunpack.c.h.b16 %v349
        %v1592 = vunpack.c.l.b16 %v350
        %v1593 = vunpack.c.h.b16 %v350
        %v1594 = vunpack.c.l.b16 %v351
        %v1595 = vunpack.c.h.b16 %v351
        %v1596 = vunpack.c.l.b16 %v352
        %v1597 = vunpack.c.h.b16 %v352
        %v1598 = vunpack.c.l.b16 %v353
        %v1599 = vunpack.c.h.b16 %v353
        %v1600 = vunpack.c.l.b16 %v354
        %v1601 = vunpack.c.h.b16 %v354
        %v1602 = vunpack.c.l.b16 %v355
        %v1603 = vunpack.c.h.b16 %v355
        %v1604 = vunpack.c.l.b16 %v356
        %v1605 = vunpack.c.h.b16 %v356
        %v1606 = vunpack.c.l.b16 %v357
        %v1607 = vunpack.c.h.b16 %v357
        %v1608 = vunpack.c.l.b16 %v358
        %v1609 = vunpack.c.h.b16 %v358
        %v1610 = vunpack.c.l.b16 %v359
        %v1611 = vunpack.c.h.b16 %v359
        %v1612 = vunpack.c.l.b16 %v360
        %v1613 = vunpack.c.h.b16 %v360
        %v1614 = vunpack.c.l.b16 %v361
        %v1615 = vunpack.c.h.b16 %v361
        %v1616 = vunpack.c.l.b16 %v362
        %v1617 = vunpack.c.h.b16 %v362
        %v1618 = vunpack.c.l.b16 %v363
        %v1619 = vunpack.c.h.b16 %v363
        %v1620 = vunpack.c.l.b16 %v364
        %v1621 = vunpack.c.h.b16 %v364
        %v1622 = vunpack.c.l.b16 %v365
        %v1623 = vunpack.c.h.b16 %v365
        %v1624 = vunpack.c.l.b16 %v366
        %v1625 = vunpack.c.h.b16 %v366
        %v1626 = vunpack.c.l.b16 %v367
        %v1627 = vunpack.c.h.b16 %v367
        %v1628 = vunpack.c.l.b16 %v368
        %v1629 = vunpack.c.h.b16 %v368
        %v1630 = vunpack.c.l.b16 %v369
        %v1631 = vunpack.c.h.b16 %v369
        %v1632 = vunpack.c.l.b16 %v370
        %v1633 = vunpack.c.h.b16 %v370
        %v1634 = vunpack.c.l.b16 %v371
        %v1635 = vunpack.c.h.b16 %v371
        %v1636 = vunpack.c.l.b16 %v372
        %v1637 = vunpack.c.h.b16 %v372
        %v1638 = vunpack.c.l.b16 %v373
        %v1639 = vunpack.c.h.b16 %v373
        %v1640 = vunpack.c.l.b16 %v374
        %v1641 = vunpack.c.h.b16 %v374
        %v1642 = vunpack.c.l.b16 %v375
        %v1643 = vunpack.c.h.b16 %v375
        %v1644 = vunpack.c.l.b16 %v376
        %v1645 = vunpack.c.h.b16 %v376
        %v1646 = vunpack.c.l.b16 %v377
        %v1647 = vunpack.c.h.b16 %v377
        %v1648 = vunpack.c.l.b16 %v378
        %v1649 = vunpack.c.h.b16 %v378
        %v1650 = vunpack.c.l.b16 %v379
        %v1651 = vunpack.c.h.b16 %v379
        %v1652 = vunpack.c.l.b16 %v380
        %v1653 = vunpack.c.h.b16 %v380
        %v1654 = vunpack.c.l.b16 %v381
        %v1655 = vunpack.c.h.b16 %v381
        %v1656 = vunpack.c.l.b16 %v382
        %v1657 = vunpack.c.h.b16 %v382
        %v1658 = vunpack.c.l.b16 %v383
        %v1659 = vunpack.c.h.b16 %v383
        %v1660 = vunpack.c.l.b16 %v384
        %v1661 = vunpack.c.h.b16 %v384
        %v1662 = vunpack.c.l.b16 %v385
        %v1663 = vunpack.c.h.b16 %v385
        %v1664 = vunpack.c.l.b16 %v386
        %v1665 = vunpack.c.h.b16 %v386
        %v1666 = vunpack.c.l.b16 %v387
        %v1667 = vunpack.c.h.b16 %v387
        %v1668 = vunpack.c.l.b16 %v388
        %v1669 = vunpack.c.h.b16 %v388
        %v1670 = vunpack.c.l.b16 %v389
        %v1671 = vunpack.c.h.b16 %v389
        %v1672 = vunpack.c.l.b16 %v390
        %v1673 = vunpack.c.h.b16 %v390
        %v1674 = vunpack.c.l.b16 %v391
        %v1675 = vunpack.c.h.b16 %v391
        %v1676 = vunpack.c.l.b16 %v392
        %v1677 = vunpack.c.h.b16 %v392
        %v1678 = vunpack.c.l.b16 %v393
        %v1679 = vunpack.c.h.b16 %v393
        %v1680 = vunpack.c.l.b16 %v394
        %v1681 = vunpack.c.h.b16 %v394
        %v1682 = vunpack.c.l.b16 %v395
        %v1683 = vunpack.c.h.b16 %v395
        %v1684 = vunpack.c.l.b16 %v396
        %v1685 = vunpack.c.h.b16 %v396
        %v1686 = vunpack.c.l.b16 %v397
        %v1687 = vunpack.c.h.b16 %v397
        %v1688 = vunpack.c.l.b16 %v398
        %v1689 = vunpack.c.h.b16 %v398
        %v1690 = vunpack.c.l.b16 %v399
        %v1691 = vunpack.c.h.b16 %v399
        %v1692 = vunpack.c.l.b16 %v400
        %v1693 = vunpack.c.h.b16 %v400
        %v1694 = vunpack.c.l.b16 %v401
        %v1695 = vunpack.c.h.b16 %v401
        %v1696 = vunpack.c.l.b16 %v402
        %v1697 = vunpack.c.h.b16 %v402
        %v1698 = vunpack.c.l.b16 %v403
        %v1699 = vunpack.c.h.b16 %v403
        %v1700 = vunpack.c.l.b16 %v404
        %v1701 = vunpack.c.h.b16 %v404
        %v1702 = vunpack.c.l.b16 %v405
        %v1703 = vunpack.c.h.b16 %v405
        %v1704 = vunpack.c.l.b16 %v406
        %v1705 = vunpack.c.h.b16 %v406
        %v1706 = vunpack.c.l.b16 %v407
        %v1707 = vunpack.c.h.b16 %v407
        %v1708 = vunpack.c.l.b16 %v408
        %v1709 = vunpack.c.h.b16 %v408
        %v1710 = vunpack.c.l.b16 %v409
        %v1711 = vunpack.c.h.b16 %v409
        %v1712 = vunpack.c.l.b16 %v410
        %v1713 = vunpack.c.h.b16 %v410
        %v1714 = vunpack.c.l.b16 %v411
        %v1715 = vunpack.c.h.b16 %v411
        %v1716 = vunpack.c.l.b16 %v412
        %v1717 = vunpack.c.h.b16 %v412
        %v1718 = vunpack.c.l.b16 %v413
        %v1719 = vunpack.c.h.b16 %v413
        %v1720 = vunpack.c.l.b16 %v414
        %v1721 = vunpack.c.h.b16 %v414
        %v1722 = vunpack.c.l.b16 %v415
        %v1723 = vunpack.c.h.b16 %v415
        %v1724 = vunpack.c.l.b16 %v416
        %v1725 = vunpack.c.h.b16 %v416
        %v1726 = vunpack.c.l.b16 %v417
        %v1727 = vunpack.c.h.b16 %v417
        %v1728 = vunpack.c.l.b16 %v418
        %v1729 = vunpack.c.h.b16 %v418
        %v1730 = vunpack.c.l.b16 %v419
        %v1731 = vunpack.c.h.b16 %v419
        %v1732 = vunpack.c.l.b16 %v420
        %v1733 = vunpack.c.h.b16 %v420
        %v1734 = vunpack.c.l.b16 %v421
        %v1735 = vunpack.c.h.b16 %v421
        %v1736 = vunpack.c.l.b16 %v422
        %v1737 = vunpack.c.h.b16 %v422
        %v1738 = vunpack.c.l.b16 %v423
        %v1739 = vunpack.c.h.b16 %v423
        %v1740 = vunpack.c.l.b16 %v424
        %v1741 = vunpack.c.h.b16 %v424
        %v1742 = vunpack.c.l.b16 %v425
        %v1743 = vunpack.c.h.b16 %v425
        %v1744 = vunpack.c.l.b16 %v426
        %v1745 = vunpack.c.h.b16 %v426
        %v1746 = vunpack.c.l.b16 %v427
        %v1747 = vunpack.c.h.b16 %v427
        %v1748 = vunpack.c.l.b16 %v428
        %v1749 = vunpack.c.h.b16 %v428
        %v1750 = vunpack.c.l.b16 %v429
        %v1751 = vunpack.c.h.b16 %v429
        %v1752 = vunpack.c.l.b16 %v430
        %v1753 = vunpack.c.h.b16 %v430
        %v1754 = vunpack.c.l.b16 %v431
        %v1755 = vunpack.c.h.b16 %v431
        %v1756 = vunpack.c.l.b16 %v432
        %v1757 = vunpack.c.h.b16 %v432
        %v1758 = vunpack.c.l.b16 %v433
        %v1759 = vunpack.c.h.b16 %v433
        %v1760 = vunpack.c.l.b16 %v434
        %v1761 = vunpack.c.h.b16 %v434
        %v1762 = vunpack.c.l.b16 %v435
        %v1763 = vunpack.c.h.b16 %v435
        %v1764 = vunpack.c.l.b16 %v436
        %v1765 = vunpack.c.h.b16 %v436
        %v1766 = vunpack.c.l.b16 %v437
        %v1767 = vunpack.c.h.b16 %v437
        %v1768 = vunpack.c.l.b16 %v438
        %v1769 = vunpack.c.h.b16 %v438
        %v1770 = vunpack.c.l.b16 %v439
        %v1771 = vunpack.c.h.b16 %v439
        %v1772 = vunpack.c.l.b16 %v440
        %v1773 = vunpack.c.h.b16 %v440
        %v1774 = vunpack.c.l.b16 %v441
        %v1775 = vunpack.c.h.b16 %v441
        %v1776 = vunpack.c.l.b16 %v442
        %v1777 = vunpack.c.h.b16 %v442
        %v1778 = vunpack.c.l.b16 %v443
        %v1779 = vunpack.c.h.b16 %v443
        %v1780 = vunpack.c.l.b16 %v444
        %v1781 = vunpack.c.h.b16 %v444
        %v1782 = vunpack.c.l.b16 %v445
        %v1783 = vunpack.c.h.b16 %v445
        %v1784 = vunpack.c.l.b16 %v446
        %v1785 = vunpack.c.h.b16 %v446
        %v1786 = vunpack.c.l.b16 %v447
        %v1787 = vunpack.c.h.b16 %v447
        %v1788 = vunpack.c.l.b16 %v448
        %v1789 = vunpack.c.h.b16 %v448
        %v1790 = vunpack.c.l.b16 %v449
        %v1791 = vunpack.c.h.b16 %v449
        %v1792 = vunpack.c.l.b16 %v450
        %v1793 = vunpack.c.h.b16 %v450
        %v1794 = vunpack.c.l.b16 %v451
        %v1795 = vunpack.c.h.b16 %v451
        %v1796 = vunpack.c.l.b16 %v452
        %v1797 = vunpack.c.h.b16 %v452
        %v1798 = vunpack.c.l.b16 %v453
        %v1799 = vunpack.c.h.b16 %v453
        %v1800 = vunpack.c.l.b16 %v454
        %v1801 = vunpack.c.h.b16 %v454
        %v1802 = vunpack.c.l.b16 %v455
        %v1803 = vunpack.c.h.b16 %v455
        %v1804 = vunpack.c.l.b16 %v456
        %v1805 = vunpack.c.h.b16 %v456
        %v1806 = vunpack.c.l.b16 %v457
        %v1807 = vunpack.c.h.b16 %v457
        %v1808 = vunpack.c.l.b16 %v458
        %v1809 = vunpack.c.h.b16 %v458
        %v1810 = vunpack.c.l.b16 %v459
        %v1811 = vunpack.c.h.b16 %v459
        %v1812 = vunpack.c.l.b16 %v460
        %v1813 = vunpack.c.h.b16 %v460
        %v1814 = vunpack.c.l.b16 %v461
        %v1815 = vunpack.c.h.b16 %v461
        %v1816 = vunpack.c.l.b16 %v462
        %v1817 = vunpack.c.h.b16 %v462
        %v1818 = vunpack.c.l.b16 %v463
        %v1819 = vunpack.c.h.b16 %v463
        %v1820 = vunpack.c.l.b16 %v464
        %v1821 = vunpack.c.h.b16 %v464
        %v1822 = vunpack.c.l.b16 %v465
        %v1823 = vunpack.c.h.b16 %v465
        %v1824 = vunpack.c.l.b16 %v466
        %v1825 = vunpack.c.h.b16 %v466
        %v1826 = vunpack.c.l.b16 %v467
        %v1827 = vunpack.c.h.b16 %v467
        %v1828 = vunpack.c.l.b16 %v468
        %v1829 = vunpack.c.h.b16 %v468
        %v1830 = vunpack.c.l.b16 %v469
        %v1831 = vunpack.c.h.b16 %v469
        %v1832 = vunpack.c.l.b16 %v470
        %v1833 = vunpack.c.h.b16 %v470
        %v1834 = vunpack.c.l.b16 %v471
        %v1835 = vunpack.c.h.b16 %v471
        %v1836 = vunpack.c.l.b16 %v472
        %v1837 = vunpack.c.h.b16 %v472
        %v1838 = vunpack.c.l.b16 %v473
        %v1839 = vunpack.c.h.b16 %v473
        %v1840 = vunpack.c.l.b16 %v474
        %v1841 = vunpack.c.h.b16 %v474
        %v1842 = vunpack.c.l.b16 %v475
        %v1843 = vunpack.c.h.b16 %v475
        %v1844 = vunpack.c.l.b16 %v476
        %v1845 = vunpack.c.h.b16 %v476
        %v1846 = vunpack.c.l.b16 %v477
        %v1847 = vunpack.c.h.b16 %v477
        %v1848 = vunpack.c.l.b16 %v478
        %v1849 = vunpack.c.h.b16 %v478
        %v1850 = vunpack.c.l.b16 %v479
        %v1851 = vunpack.c.h.b16 %v479
        %v1852 = vunpack.c.l.b16 %v480
        %v1853 = vunpack.c.h.b16 %v480
        %v1854 = vunpack.c.l.b16 %v481
        %v1855 = vunpack.c.h.b16 %v481
        %v1856 = vunpack.c.l.b16 %v482
        %v1857 = vunpack.c.h.b16 %v482
        %v1858 = vunpack.c.l.b16 %v483
        %v1859 = vunpack.c.h.b16 %v483
        %v1860 = vunpack.c.l.b16 %v484
        %v1861 = vunpack.c.h.b16 %v484
        %v1862 = vunpack.c.l.b16 %v485
        %v1863 = vunpack.c.h.b16 %v485
        %v1864 = vunpack.c.l.b16 %v486
        %v1865 = vunpack.c.h.b16 %v486
        %v1866 = vunpack.c.l.b16 %v487
        %v1867 = vunpack.c.h.b16 %v487
        %v1868 = vunpack.c.l.b16 %v488
        %v1869 = vunpack.c.h.b16 %v488
        %v1870 = vunpack.c.l.b16 %v489
        %v1871 = vunpack.c.h.b16 %v489
        %v1872 = vunpack.c.l.b16 %v490
        %v1873 = vunpack.c.h.b16 %v490
        %v1874 = vunpack.c.l.b16 %v491
        %v1875 = vunpack.c.h.b16 %v491
        %v1876 = vunpack.c.l.b16 %v492
        %v1877 = vunpack.c.h.b16 %v492
        %v1878 = vunpack.c.l.b16 %v493
        %v1879 = vunpack.c.h.b16 %v493
        %v1880 = vunpack.c.l.b16 %v494
        %v1881 = vunpack.c.h.b16 %v494
        %v1882 = vunpack.c.l.b16 %v495
        %v1883 = vunpack.c.h.b16 %v495
        %v1884 = vunpack.c.l.b16 %v496
        %v1885 = vunpack.c.h.b16 %v496
        %v1886 = vunpack.c.l.b16 %v497
        %v1887 = vunpack.c.h.b16 %v497
        %v1888 = vunpack.c.l.b16 %v498
        %v1889 = vunpack.c.h.b16 %v498
        %v1890 = vunpack.c.l.b16 %v499
        %v1891 = vunpack.c.h.b16 %v499
        %v1892 = vunpack.c.l.b16 %v500
        %v1893 = vunpack.c.h.b16 %v500
        %v1894 = vunpack.c.l.b16 %v501
        %v1895 = vunpack.c.h.b16 %v501
        %v1896 = vunpack.c.l.b16 %v502
        %v1897 = vunpack.c.h.b16 %v502
        %v1898 = vunpack.c.l.b16 %v503
        %v1899 = vunpack.c.h.b16 %v503
        %v1900 = vunpack.c.l.b16 %v504
        %v1901 = vunpack.c.h.b16 %v504
        %v1902 = vunpack.c.l.b16 %v505
        %v1903 = vunpack.c.h.b16 %v505
        %v1904 = vunpack.c.l.b16 %v506
        %v1905 = vunpack.c.h.b16 %v506
        %v1906 = vunpack.c.l.b16 %v507
        %v1907 = vunpack.c.h.b16 %v507
        %v1908 = vunpack.c.l.b16 %v508
        %v1909 = vunpack.c.h.b16 %v508
        %v1910 = vunpack.c.l.b16 %v509
        %v1911 = vunpack.c.h.b16 %v509
        %v1912 = vunpack.c.l.b16 %v510
        %v1913 = vunpack.c.h.b16 %v510
        %v1914 = vunpack.c.l.b16 %v511
        %v1915 = vunpack.c.h.b16 %v511
        %v1916 = vunpack.c.l.b16 %v512
        %v1917 = vunpack.c.h.b16 %v512
        %v1918 = vunpack.c.l.b16 %v513
        %v1919 = vunpack.c.h.b16 %v513
        %v1920 = vunpack.c.l.b16 %v514
        %v1921 = vunpack.c.h.b16 %v514
        %v1922 = vunpack.c.l.b16 %v515
        %v1923 = vunpack.c.h.b16 %v515
        %v1924 = vunpack.c.l.b16 %v516
        %v1925 = vunpack.c.h.b16 %v516
        %v1926 = vunpack.c.l.b16 %v517
        %v1927 = vunpack.c.h.b16 %v517
        %v1928 = vunpack.c.l.b16 %v518
        %v1929 = vunpack.c.h.b16 %v518
        %v1930 = vunpack.c.l.b16 %v519
        %v1931 = vunpack.c.h.b16 %v519
        %v1932 = vunpack.c.l.b16 %v520
        %v1933 = vunpack.c.h.b16 %v520
        %v1934 = vunpack.c.l.b16 %v521
        %v1935 = vunpack.c.h.b16 %v521
        %v1936 = vunpack.c.l.b16 %v522
        %v1937 = vunpack.c.h.b16 %v522
        %v1938 = vunpack.c.l.b16 %v523
        %v1939 = vunpack.c.h.b16 %v523
        %v1940 = vunpack.c.l.b16 %v524
        %v1941 = vunpack.c.h.b16 %v524
        %v1942 = vunpack.c.l.b16 %v525
        %v1943 = vunpack.c.h.b16 %v525
        %v1944 = vunpack.c.l.b16 %v526
        %v1945 = vunpack.c.h.b16 %v526
        %v1946 = vunpack.c.l.b16 %v527
        %v1947 = vunpack.c.h.b16 %v527
        %v1948 = vunpack.c.l.b16 %v528
        %v1949 = vunpack.c.h.b16 %v528
        %v1950 = vunpack.c.l.b16 %v529
        %v1951 = vunpack.c.h.b16 %v529
        %v1952 = vunpack.c.l.b16 %v530
        %v1953 = vunpack.c.h.b16 %v530
        %v1954 = vunpack.c.l.b16 %v531
        %v1955 = vunpack.c.h.b16 %v531
        %v1956 = vunpack.c.l.b16 %v532
        %v1957 = vunpack.c.h.b16 %v532
        %v1958 = vunpack.c.l.b16 %v533
        %v1959 = vunpack.c.h.b16 %v533
        %v1960 = vunpack.c.l.b16 %v534
        %v1961 = vunpack.c.h.b16 %v534
        %v1962 = vunpack.c.l.b16 %v535
        %v1963 = vunpack.c.h.b16 %v535
        %v1964 = vunpack.c.l.b16 %v536
        %v1965 = vunpack.c.h.b16 %v536
        %v1966 = vunpack.c.l.b16 %v537
        %v1967 = vunpack.c.h.b16 %v537
        %v1968 = vunpack.c.l.b16 %v538
        %v1969 = vunpack.c.h.b16 %v538
        %v1970 = vunpack.c.l.b16 %v539
        %v1971 = vunpack.c.h.b16 %v539
        %v1972 = vunpack.c.l.b16 %v540
        %v1973 = vunpack.c.h.b16 %v540
        %v1974 = vunpack.c.l.b16 %v541
        %v1975 = vunpack.c.h.b16 %v541
        %v1976 = vunpack.c.l.b16 %v542
        %v1977 = vunpack.c.h.b16 %v542
        %v1978 = vunpack.c.l.b16 %v543
        %v1979 = vunpack.c.h.b16 %v543
        %v1980 = vunpack.c.l.b16 %v544
        %v1981 = vunpack.c.h.b16 %v544
        %v1982 = vunpack.c.l.b16 %v545
        %v1983 = vunpack.c.h.b16 %v545
        %v1984 = vunpack.c.l.b16 %v546
        %v1985 = vunpack.c.h.b16 %v546
        %v1986 = vunpack.c.l.b16 %v547
        %v1987 = vunpack.c.h.b16 %v547
        %v1988 = vunpack.c.l.b16 %v548
        %v1989 = vunpack.c.h.b16 %v548
        %v1990 = vunpack.c.l.b16 %v549
        %v1991 = vunpack.c.h.b16 %v549
        %v1992 = vunpack.c.l.b16 %v550
        %v1993 = vunpack.c.h.b16 %v550
        %v1994 = vunpack.c.l.b16 %v551
        %v1995 = vunpack.c.h.b16 %v551
        %v1996 = vunpack.c.l.b16 %v552
        %v1997 = vunpack.c.h.b16 %v552
        %v1998 = vunpack.c.l.b16 %v553
        %v1999 = vunpack.c.h.b16 %v553
        %v2000 = vunpack.c.l.b16 %v554
        %v2001 = vunpack.c.h.b16 %v554
        %v2002 = vunpack.c.l.b16 %v555
        %v2003 = vunpack.c.h.b16 %v555
        %v2004 = vunpack.c.l.b16 %v556
        %v2005 = vunpack.c.h.b16 %v556
        %v2006 = vunpack.c.l.b16 %v557
        %v2007 = vunpack.c.h.b16 %v557
        %v2008 = vunpack.c.l.b16 %v558
        %v2009 = vunpack.c.h.b16 %v558
        %v2010 = vunpack.c.l.b16 %v559
        %v2011 = vunpack.c.h.b16 %v559
        %v2012 = vunpack.c.l.b16 %v560
        %v2013 = vunpack.c.h.b16 %v560
        %v2014 = vunpack.c.l.b16 %v561
        %v2015 = vunpack.c.h.b16 %v561
        %v2016 = vunpack.c.l.b16 %v562
        %v2017 = vunpack.c.h.b16 %v562
        %v2018 = vunpack.c.l.b16 %v563
        %v2019 = vunpack.c.h.b16 %v563
        %v2020 = vunpack.c.l.b16 %v564
        %v2021 = vunpack.c.h.b16 %v564
        %v2022 = vunpack.c.l.b16 %v565
        %v2023 = vunpack.c.h.b16 %v565
        %v2024 = vunpack.c.l.b16 %v566
        %v2025 = vunpack.c.h.b16 %v566
        %v2026 = vunpack.c.l.b16 %v567
        %v2027 = vunpack.c.h.b16 %v567
        %v2028 = vunpack.c.l.b16 %v568
        %v2029 = vunpack.c.h.b16 %v568
        %v2030 = vunpack.c.l.b16 %v569
        %v2031 = vunpack.c.h.b16 %v569
        %v2032 = vunpack.c.l.b16 %v570
        %v2033 = vunpack.c.h.b16 %v570
        %v2034 = vunpack.c.l.b16 %v571
        %v2035 = vunpack.c.h.b16 %v571
        %v2036 = vunpack.c.l.b16 %v572
        %v2037 = vunpack.c.h.b16 %v572
        %v2038 = vunpack.c.l.b16 %v573
        %v2039 = vunpack.c.h.b16 %v573
        %v2040 = vunpack.c.l.b16 %v574
        %v2041 = vunpack.c.h.b16 %v574
        %v2042 = vunpack.c.l.b16 %v575
        %v2043 = vunpack.c.h.b16 %v575
        %v2044 = vunpack.c.l.b16 %v576
        %v2045 = vunpack.c.h.b16 %v576
        %v2046 = vunpack.c.l.b16 %v577
        %v2047 = vunpack.c.h.b16 %v577
        %v2048 = vunpack.c.l.b16 %v578
        %v2049 = vunpack.c.h.b16 %v578
        %v2050 = vunpack.c.l.b16 %v579
        %v2051 = vunpack.c.h.b16 %v579
        %v2052 = vunpack.c.l.b16 %v580
        %v2053 = vunpack.c.h.b16 %v580
        %v2054 = vunpack.c.l.b16 %v581
        %v2055 = vunpack.c.h.b16 %v581
        %v2056 = vunpack.c.l.b16 %v582
        %v2057 = vunpack.c.h.b16 %v582
        %v2058 = vunpack.c.l.b16 %v583
        %v2059 = vunpack.c.h.b16 %v583
        %v2060 = vunpack.c.l.b16 %v584
        %v2061 = vunpack.c.h.b16 %v584
        %v2062 = vunpack.c.l.b16 %v585
        %v2063 = vunpack.c.h.b16 %v585
        %v2064 = vunpack.c.l.b16 %v586
        %v2065 = vunpack.c.h.b16 %v586
        %v2066 = vunpack.c.l.b16 %v587
        %v2067 = vunpack.c.h.b16 %v587
        %v2068 = vunpack.c.l.b16 %v588
        %v2069 = vunpack.c.h.b16 %v588
        %v2070 = vunpack.c.l.b16 %v589
        %v2071 = vunpack.c.h.b16 %v589
        %v2072 = vunpack.c.l.b16 %v590
        %v2073 = vunpack.c.h.b16 %v590
        %v2074 = vunpack.c.l.b16 %v591
        %v2075 = vunpack.c.h.b16 %v591
        %v2076 = vunpack.c.l.b16 %v592
        %v2077 = vunpack.c.h.b16 %v592
        %v2078 = vunpack.c.l.b16 %v593
        %v2079 = vunpack.c.h.b16 %v593
        %v2080 = vunpack.c.l.b16 %v594
        %v2081 = vunpack.c.h.b16 %v594
        %v2082 = vunpack.c.l.b16 %v595
        %v2083 = vunpack.c.h.b16 %v595
        %v2084 = vunpack.c.l.b16 %v596
        %v2085 = vunpack.c.h.b16 %v596
        %v2086 = vunpack.c.l.b16 %v597
        %v2087 = vunpack.c.h.b16 %v597
        %v2088 = vunpack.c.l.b16 %v598
        %v2089 = vunpack.c.h.b16 %v598
        %v2090 = vunpack.c.l.b16 %v599
        %v2091 = vunpack.c.h.b16 %v599
        %v2092 = vunpack.c.l.b16 %v600
        %v2093 = vunpack.c.h.b16 %v600
        %v2094 = vunpack.c.l.b16 %v601
        %v2095 = vunpack.c.h.b16 %v601
        %v2096 = vunpack.c.l.b16 %v602
        %v2097 = vunpack.c.h.b16 %v602
        %v2098 = vunpack.c.l.b16 %v603
        %v2099 = vunpack.c.h.b16 %v603
        %v2100 = vunpack.c.l.b16 %v604
        %v2101 = vunpack.c.h.b16 %v604
        %v2102 = vunpack.c.l.b16 %v605
        %v2103 = vunpack.c.h.b16 %v605
        %v2104 = vunpack.c.l.b16 %v606
        %v2105 = vunpack.c.h.b16 %v606
        %v2106 = vunpack.c.l.b16 %v607
        %v2107 = vunpack.c.h.b16 %v607
        %v2108 = vunpack.c.l.b16 %v608
        %v2109 = vunpack.c.h.b16 %v608
        %v2110 = vunpack.c.l.b16 %v609
        %v2111 = vunpack.c.h.b16 %v609
        %v2112 = vunpack.c.l.b16 %v610
        %v2113 = vunpack.c.h.b16 %v610
        %v2114 = vunpack.c.l.b16 %v611
        %v2115 = vunpack.c.h.b16 %v611
        %v2116 = vunpack.c.l.b16 %v612
        %v2117 = vunpack.c.h.b16 %v612
        %v2118 = vunpack.c.l.b16 %v613
        %v2119 = vunpack.c.h.b16 %v613
        %v2120 = vunpack.c.l.b16 %v614
        %v2121 = vunpack.c.h.b16 %v614
        %v2122 = vunpack.c.l.b16 %v615
        %v2123 = vunpack.c.h.b16 %v615
        %v2124 = vunpack.c.l.b16 %v616
        %v2125 = vunpack.c.h.b16 %v616
        %v2126 = vunpack.c.l.b16 %v617
        %v2127 = vunpack.c.h.b16 %v617
        %v2128 = vunpack.c.l.b16 %v618
        %v2129 = vunpack.c.h.b16 %v618
        %v2130 = vunpack.c.l.b16 %v619
        %v2131 = vunpack.c.h.b16 %v619
        %v2132 = vunpack.c.l.b16 %v620
        %v2133 = vunpack.c.h.b16 %v620
        %v2134 = vunpack.c.l.b16 %v621
        %v2135 = vunpack.c.h.b16 %v621
        %v2136 = vunpack.c.l.b16 %v622
        %v2137 = vunpack.c.h.b16 %v622
        %v2138 = vunpack.c.l.b16 %v623
        %v2139 = vunpack.c.h.b16 %v623
        %v2140 = vunpack.c.l.b16 %v624
        %v2141 = vunpack.c.h.b16 %v624
        %v2142 = vunpack.c.l.b16 %v625
        %v2143 = vunpack.c.h.b16 %v625
        %v2144 = vunpack.c.l.b16 %v626
        %v2145 = vunpack.c.h.b16 %v626
        %v2146 = vunpack.c.l.b16 %v627
        %v2147 = vunpack.c.h.b16 %v627
        %v2148 = vunpack.c.l.b16 %v628
        %v2149 = vunpack.c.h.b16 %v628
        %v2150 = vunpack.c.l.b16 %v629
        %v2151 = vunpack.c.h.b16 %v629
        %v2152 = vunpack.c.l.b16 %v630
        %v2153 = vunpack.c.h.b16 %v630
        %v2154 = vunpack.c.l.b16 %v631
        %v2155 = vunpack.c.h.b16 %v631
        %v2156 = vunpack.c.l.b16 %v632
        %v2157 = vunpack.c.h.b16 %v632
        %v2158 = vunpack.c.l.b16 %v633
        %v2159 = vunpack.c.h.b16 %v633
        %v2160 = vunpack.c.l.b16 %v634
        %v2161 = vunpack.c.h.b16 %v634
        %v2162 = vunpack.c.l.b16 %v635
        %v2163 = vunpack.c.h.b16 %v635
        %v2164 = vunpack.c.l.b16 %v636
        %v2165 = vunpack.c.h.b16 %v636
        %v2166 = vunpack.c.l.b16 %v637
        %v2167 = vunpack.c.h.b16 %v637
        %v2168 = vunpack.c.l.b16 %v638
        %v2169 = vunpack.c.h.b16 %v638
        %v2170 = vunpack.c.l.b16 %v639
        %v2171 = vunpack.c.h.b16 %v639
        %v2172 = vunpack.c.l.b16 %v640
        %v2173 = vunpack.c.h.b16 %v640
        %v2174 = vunpack.c.l.b16 %v641
        %v2175 = vunpack.c.h.b16 %v641
        %v2176 = vunpack.c.l.b16 %v642
        %v2177 = vunpack.c.h.b16 %v642
        %v2178 = vunpack.c.l.b16 %v643
        %v2179 = vunpack.c.h.b16 %v643
        %v2180 = vunpack.c.l.b16 %v644
        %v2181 = vunpack.c.h.b16 %v644
        %v2182 = vunpack.c.l.b16 %v645
        %v2183 = vunpack.c.h.b16 %v645
        %v2184 = vunpack.c.l.b16 %v646
        %v2185 = vunpack.c.h.b16 %v646
        %v2186 = vunpack.c.l.b16 %v647
        %v2187 = vunpack.c.h.b16 %v647
        %v2188 = vunpack.c.l.b16 %v648
        %v2189 = vunpack.c.h.b16 %v648
        %v2190 = vunpack.c.l.b16 %v649
        %v2191 = vunpack.c.h.b16 %v649
        %v2192 = vunpack.c.l.b16 %v650
        %v2193 = vunpack.c.h.b16 %v650
        %v2194 = vunpack.c.l.b16 %v651
        %v2195 = vunpack.c.h.b16 %v651
        %v2196 = vunpack.c.l.b16 %v652
        %v2197 = vunpack.c.h.b16 %v652
        %v2198 = vunpack.c.l.b16 %v653
        %v2199 = vunpack.c.h.b16 %v653
        %v2200 = vunpack.c.l.b16 %v654
        %v2201 = vunpack.c.h.b16 %v654
        %v2202 = vunpack.c.l.b16 %v655
        %v2203 = vunpack.c.h.b16 %v655
        %v2204 = vunpack.c.l.b16 %v656
        %v2205 = vunpack.c.h.b16 %v656
        %v2206 = vunpack.c.l.b16 %v657
        %v2207 = vunpack.c.h.b16 %v657
        %v2208 = vunpack.c.l.b16 %v658
        %v2209 = vunpack.c.h.b16 %v658
        %v2210 = vunpack.c.l.b16 %v659
        %v2211 = vunpack.c.h.b16 %v659
        %v2212 = vunpack.c.l.b16 %v660
        %v2213 = vunpack.c.h.b16 %v660
        %v2214 = vunpack.c.l.b16 %v661
        %v2215 = vunpack.c.h.b16 %v661
        %v2216 = vunpack.c.l.b16 %v662
        %v2217 = vunpack.c.h.b16 %v662
        %v2218 = vunpack.c.l.b16 %v663
        %v2219 = vunpack.c.h.b16 %v663
        %v2220 = vunpack.c.l.b16 %v664
        %v2221 = vunpack.c.h.b16 %v664
        %v2222 = vunpack.c.l.b16 %v665
        %v2223 = vunpack.c.h.b16 %v665
        %v2224 = vunpack.c.l.b16 %v666
        %v2225 = vunpack.c.h.b16 %v666
        %v2226 = vunpack.c.l.b16 %v667
        %v2227 = vunpack.c.h.b16 %v667
        %v2228 = vunpack.c.l.b16 %v668
        %v2229 = vunpack.c.h.b16 %v668
        %v2230 = vunpack.c.l.b16 %v669
        %v2231 = vunpack.c.h.b16 %v669
        %v2232 = vunpack.c.l.b16 %v670
        %v2233 = vunpack.c.h.b16 %v670
        %v2234 = vunpack.c.l.b16 %v671
        %v2235 = vunpack.c.h.b16 %v671
        %v2236 = vunpack.c.l.b16 %v672
        %v2237 = vunpack.c.h.b16 %v672
        %v2238 = vunpack.c.l.b16 %v673
        %v2239 = vunpack.c.h.b16 %v673
        %v2240 = vunpack.c.l.b16 %v674
        %v2241 = vunpack.c.h.b16 %v674
        %v2242 = vunpack.c.l.b16 %v675
        %v2243 = vunpack.c.h.b16 %v675
        %v2244 = vunpack.c.l.b16 %v676
        %v2245 = vunpack.c.h.b16 %v676
        %v2246 = vunpack.c.l.b16 %v677
        %v2247 = vunpack.c.h.b16 %v677
        %v2248 = vunpack.c.l.b16 %v678
        %v2249 = vunpack.c.h.b16 %v678
        %v2250 = vunpack.c.l.b16 %v679
        %v2251 = vunpack.c.h.b16 %v679
        %v2252 = vunpack.c.l.b16 %v680
        %v2253 = vunpack.c.h.b16 %v680
        %v2254 = vunpack.c.l.b16 %v681
        %v2255 = vunpack.c.h.b16 %v681
        %v2256 = vunpack.c.l.b16 %v682
        %v2257 = vunpack.c.h.b16 %v682
        %v2258 = vunpack.c.l.b16 %v683
        %v2259 = vunpack.c.h.b16 %v683
        %v2260 = vunpack.c.l.b16 %v684
        %v2261 = vunpack.c.h.b16 %v684
        %v2262 = vunpack.c.l.b16 %v685
        %v2263 = vunpack.c.h.b16 %v685
        %v2264 = vunpack.c.l.b16 %v686
        %v2265 = vunpack.c.h.b16 %v686
        %v2266 = vunpack.c.l.b16 %v687
        %v2267 = vunpack.c.h.b16 %v687
        %v2268 = vunpack.c.l.b16 %v688
        %v2269 = vunpack.c.h.b16 %v688
        %v2270 = vunpack.c.l.b16 %v689
        %v2271 = vunpack.c.h.b16 %v689
        %v2272 = vunpack.c.l.b16 %v690
        %v2273 = vunpack.c.h.b16 %v690
        %v2274 = vunpack.c.l.b16 %v691
        %v2275 = vunpack.c.h.b16 %v691
        %v2276 = vunpack.c.l.b16 %v692
        %v2277 = vunpack.c.h.b16 %v692
        %v2278 = vunpack.c.l.b16 %v693
        %v2279 = vunpack.c.h.b16 %v693
        %v2280 = vunpack.c.l.b16 %v694
        %v2281 = vunpack.c.h.b16 %v694
        %v2282 = vunpack.c.l.b16 %v695
        %v2283 = vunpack.c.h.b16 %v695
        %v2284 = vunpack.c.l.b16 %v696
        %v2285 = vunpack.c.h.b16 %v696
        %v2286 = vunpack.c.l.b16 %v697
        %v2287 = vunpack.c.h.b16 %v697
        %v2288 = vunpack.c.l.b16 %v698
        %v2289 = vunpack.c.h.b16 %v698
        %v2290 = vunpack.c.l.b16 %v699
        %v2291 = vunpack.c.h.b16 %v699
        %v2292 = vunpack.c.l.b16 %v700
        %v2293 = vunpack.c.h.b16 %v700
        %v2294 = vunpack.c.l.b16 %v701
        %v2295 = vunpack.c.h.b16 %v701
        %v2296 = vunpack.c.l.b16 %v702
        %v2297 = vunpack.c.h.b16 %v702
        %v2298 = vunpack.c.l.b16 %v703
        %v2299 = vunpack.c.h.b16 %v703
        %v2300 = vunpack.c.l.b16 %v704
        %v2301 = vunpack.c.h.b16 %v704
        %v2302 = vunpack.c.l.b16 %v705
        %v2303 = vunpack.c.h.b16 %v705
        %v2304 = vunpack.c.l.b16 %v706
        %v2305 = vunpack.c.h.b16 %v706
        %v2306 = vunpack.c.l.b16 %v707
        %v2307 = vunpack.c.h.b16 %v707
        %v2308 = vunpack.c.l.b16 %v708
        %v2309 = vunpack.c.h.b16 %v708
        %v2310 = vunpack.c.l.b16 %v709
        %v2311 = vunpack.c.h.b16 %v709
        %v2312 = vunpack.c.l.b16 %v710
        %v2313 = vunpack.c.h.b16 %v710
        %v2314 = vunpack.c.l.b16 %v711
        %v2315 = vunpack.c.h.b16 %v711
        %v2316 = vunpack.c.l.b16 %v712
        %v2317 = vunpack.c.h.b16 %v712
        %v2318 = vunpack.c.l.b16 %v713
        %v2319 = vunpack.c.h.b16 %v713
        %v2320 = vunpack.c.l.b16 %v714
        %v2321 = vunpack.c.h.b16 %v714
        %v2322 = vunpack.c.l.b16 %v715
        %v2323 = vunpack.c.h.b16 %v715
        %v2324 = vunpack.c.l.b16 %v716
        %v2325 = vunpack.c.h.b16 %v716
        %v2326 = vunpack.c.l.b16 %v717
        %v2327 = vunpack.c.h.b16 %v717
        %v2328 = vunpack.c.l.b16 %v718
        %v2329 = vunpack.c.h.b16 %v718
        %v2330 = vunpack.c.l.b16 %v719
        %v2331 = vunpack.c.h.b16 %v719
        %v2332 = vunpack.c.l.b16 %v720
        %v2333 = vunpack.c.h.b16 %v720
        %v2334 = vunpack.c.l.b16 %v721
        %v2335 = vunpack.c.h.b16 %v721
        %v2336 = vunpack.c.l.b16 %v722
        %v2337 = vunpack.c.h.b16 %v722
        %v2338 = vunpack.c.l.b16 %v723
        %v2339 = vunpack.c.h.b16 %v723
        %v2340 = vunpack.c.l.b16 %v724
        %v2341 = vunpack.c.h.b16 %v724
        %v2342 = vunpack.c.l.b16 %v725
        %v2343 = vunpack.c.h.b16 %v725
        %v2344 = vunpack.c.l.b16 %v726
        %v2345 = vunpack.c.h.b16 %v726
        %v2346 = vunpack.c.l.b16 %v727
        %v2347 = vunpack.c.h.b16 %v727
        %v2348 = vunpack.c.l.b16 %v728
        %v2349 = vunpack.c.h.b16 %v728
        %v2350 = vunpack.c.l.b16 %v729
        %v2351 = vunpack.c.h.b16 %v729
        %v2352 = vunpack.c.l.b16 %v730
        %v2353 = vunpack.c.h.b16 %v730
        %v2354 = vunpack.c.l.b16 %v731
        %v2355 = vunpack.c.h.b16 %v731
        %v2356 = vunpack.c.l.b16 %v732
        %v2357 = vunpack.c.h.b16 %v732
        %v2358 = vunpack.c.l.b16 %v733
        %v2359 = vunpack.c.h.b16 %v733
        %v2360 = vunpack.c.l.b16 %v734
        %v2361 = vunpack.c.h.b16 %v734
        %v2362 = vunpack.c.l.b16 %v735
        %v2363 = vunpack.c.h.b16 %v735
        %v2364 = vunpack.c.l.b16 %v736
        %v2365 = vunpack.c.h.b16 %v736
        %v2366 = vunpack.c.l.b16 %v737
        %v2367 = vunpack.c.h.b16 %v737
        %v2368 = vunpack.c.l.b16 %v738
        %v2369 = vunpack.c.h.b16 %v738
        %v2370 = vunpack.c.l.b16 %v739
        %v2371 = vunpack.c.h.b16 %v739
        %v2372 = vunpack.c.l.b16 %v740
        %v2373 = vunpack.c.h.b16 %v740
        %v2374 = vunpack.c.l.b16 %v741
        %v2375 = vunpack.c.h.b16 %v741
        %v2376 = vunpack.c.l.b16 %v742
        %v2377 = vunpack.c.h.b16 %v742
        %v2378 = vunpack.c.l.b16 %v743
        %v2379 = vunpack.c.h.b16 %v743
        %v2380 = vunpack.c.l.b16 %v744
        %v2381 = vunpack.c.h.b16 %v744
        %v2382 = vunpack.c.l.b16 %v745
        %v2383 = vunpack.c.h.b16 %v745
        %v2384 = vunpack.c.l.b16 %v746
        %v2385 = vunpack.c.h.b16 %v746
        %v2386 = vunpack.c.l.b16 %v747
        %v2387 = vunpack.c.h.b16 %v747
        %v2388 = vunpack.c.l.b16 %v748
        %v2389 = vunpack.c.h.b16 %v748
        %v2390 = vunpack.c.l.b16 %v749
        %v2391 = vunpack.c.h.b16 %v749
        %v2392 = vunpack.c.l.b16 %v750
        %v2393 = vunpack.c.h.b16 %v750
        %v2394 = vunpack.c.l.b16 %v751
        %v2395 = vunpack.c.h.b16 %v751
        %v2396 = vunpack.c.l.b16 %v752
        %v2397 = vunpack.c.h.b16 %v752
        %v2398 = vunpack.c.l.b16 %v753
        %v2399 = vunpack.c.h.b16 %v753
        %v2400 = vunpack.c.l.b16 %v754
        %v2401 = vunpack.c.h.b16 %v754
        %v2402 = vunpack.c.l.b16 %v755
        %v2403 = vunpack.c.h.b16 %v755
        %v2404 = vunpack.c.l.b16 %v756
        %v2405 = vunpack.c.h.b16 %v756
        %v2406 = vunpack.c.l.b16 %v757
        %v2407 = vunpack.c.h.b16 %v757
        %v2408 = vunpack.c.l.b16 %v758
        %v2409 = vunpack.c.h.b16 %v758
        %v2410 = vunpack.c.l.b16 %v759
        %v2411 = vunpack.c.h.b16 %v759
        %v2412 = vunpack.c.l.b16 %v760
        %v2413 = vunpack.c.h.b16 %v760
        %v2414 = vunpack.c.l.b16 %v761
        %v2415 = vunpack.c.h.b16 %v761
        %v2416 = vunpack.c.l.b16 %v762
        %v2417 = vunpack.c.h.b16 %v762
        %v2418 = vunpack.c.l.b16 %v763
        %v2419 = vunpack.c.h.b16 %v763
        %v2420 = vunpack.c.l.b16 %v764
        %v2421 = vunpack.c.h.b16 %v764
        %v2422 = vunpack.c.l.b16 %v765
        %v2423 = vunpack.c.h.b16 %v765
        %v2424 = vunpack.c.l.b16 %v766
        %v2425 = vunpack.c.h.b16 %v766
        %v2426 = vunpack.c.l.b16 %v767
        %v2427 = vunpack.c.h.b16 %v767
        %v2428 = vunpack.c.l.b16 %v768
        %v2429 = vunpack.c.h.b16 %v768
        %v2430 = vunpack.c.l.b16 %v769
        %v2431 = vunpack.c.h.b16 %v769
        %v2432 = vunpack.c.l.b16 %v770
        %v2433 = vunpack.c.h.b16 %v770
        %v2434 = vunpack.c.l.b16 %v771
        %v2435 = vunpack.c.h.b16 %v771
        %v2436 = vunpack.c.l.b16 %v772
        %v2437 = vunpack.c.h.b16 %v772
        %v2438 = vunpack.c.l.b16 %v773
        %v2439 = vunpack.c.h.b16 %v773
        %v2440 = vunpack.c.l.b16 %v774
        %v2441 = vunpack.c.h.b16 %v774
        %v2442 = vunpack.c.l.b16 %v775
        %v2443 = vunpack.c.h.b16 %v775
        %v2444 = vunpack.c.l.b16 %v776
        %v2445 = vunpack.c.h.b16 %v776
        %v2446 = vunpack.c.l.b16 %v777
        %v2447 = vunpack.c.h.b16 %v777
        %v2448 = vunpack.c.l.b16 %v778
        %v2449 = vunpack.c.h.b16 %v778
        %v2450 = vunpack.c.l.b16 %v779
        %v2451 = vunpack.c.h.b16 %v779
        %v2452 = vunpack.c.l.b16 %v780
        %v2453 = vunpack.c.h.b16 %v780
        %v2454 = vunpack.c.l.b16 %v781
        %v2455 = vunpack.c.h.b16 %v781
        %v2456 = vunpack.c.l.b16 %v782
        %v2457 = vunpack.c.h.b16 %v782
        %v2458 = vunpack.c.l.b16 %v783
        %v2459 = vunpack.c.h.b16 %v783
        %v2460 = vunpack.c.l.b16 %v784
        %v2461 = vunpack.c.h.b16 %v784
        %v2462 = vunpack.c.l.b16 %v785
        %v2463 = vunpack.c.h.b16 %v785
        %v2464 = vunpack.c.l.b16 %v786
        %v2465 = vunpack.c.h.b16 %v786
        %v2466 = vunpack.c.l.b16 %v787
        %v2467 = vunpack.c.h.b16 %v787
        %v2468 = vunpack.c.l.b16 %v788
        %v2469 = vunpack.c.h.b16 %v788
        %v2470 = vunpack.c.l.b16 %v789
        %v2471 = vunpack.c.h.b16 %v789
        %v2472 = vunpack.c.l.b16 %v790
        %v2473 = vunpack.c.h.b16 %v790
        %v2474 = vunpack.c.l.b16 %v791
        %v2475 = vunpack.c.h.b16 %v791
        %v2476 = vunpack.c.l.b16 %v792
        %v2477 = vunpack.c.h.b16 %v792
        %v2478 = vunpack.c.l.b16 %v793
        %v2479 = vunpack.c.h.b16 %v793
        %v2480 = vunpack.c.l.b16 %v794
        %v2481 = vunpack.c.h.b16 %v794
        %v2482 = vunpack.c.l.b16 %v795
        %v2483 = vunpack.c.h.b16 %v795
        %v2484 = vunpack.c.l.b16 %v796
        %v2485 = vunpack.c.h.b16 %v796
        %v2486 = vunpack.c.l.b16 %v797
        %v2487 = vunpack.c.h.b16 %v797
        %v2488 = vunpack.c.l.b16 %v798
        %v2489 = vunpack.c.h.b16 %v798
        %v2490 = vunpack.c.l.b16 %v799
        %v2491 = vunpack.c.h.b16 %v799
        %v2492 = vunpack.c.l.b16 %v800
        %v2493 = vunpack.c.h.b16 %v800
        %v2494 = vunpack.c.l.b16 %v801
        %v2495 = vunpack.c.h.b16 %v801
        %v2496 = vpack.c.b16 %v1476, %v1472
        %v2497 = vpack.c.b16 %v1477, %v1473
        %v2498 = vpack.c.b16 %v1478, %v1474
        %v2499 = vpack.c.b16 %v1479, %v1475
        %v2500 = vpack.c.b16 %v1484, %v1480
        %v2501 = vpack.c.b16 %v1485, %v1481
        %v2502 = vpack.c.b16 %v1486, %v1482
        %v2503 = vpack.c.b16 %v1487, %v1483
        %v2504 = vpack.c.b16 %v1492, %v1488
        %v2505 = vpack.c.b16 %v1493, %v1489
        %v2506 = vpack.c.b16 %v1494, %v1490
        %v2507 = vpack.c.b16 %v1495, %v1491
        %v2508 = vpack.c.b16 %v1500, %v1496
        %v2509 = vpack.c.b16 %v1501, %v1497
        %v2510 = vpack.c.b16 %v1502, %v1498
        %v2511 = vpack.c.b16 %v1503, %v1499
        %v2512 = vpack.c.b16 %v1508, %v1504
        %v2513 = vpack.c.b16 %v1509, %v1505
        %v2514 = vpack.c.b16 %v1510, %v1506
        %v2515 = vpack.c.b16 %v1511, %v1507
        %v2516 = vpack.c.b16 %v1516, %v1512
        %v2517 = vpack.c.b16 %v1517, %v1513
        %v2518 = vpack.c.b16 %v1518, %v1514
        %v2519 = vpack.c.b16 %v1519, %v1515
        %v2520 = vpack.c.b16 %v1524, %v1520
        %v2521 = vpack.c.b16 %v1525, %v1521
        %v2522 = vpack.c.b16 %v1526, %v1522
        %v2523 = vpack.c.b16 %v1527, %v1523
        %v2524 = vpack.c.b16 %v1532, %v1528
        %v2525 = vpack.c.b16 %v1533, %v1529
        %v2526 = vpack.c.b16 %v1534, %v1530
        %v2527 = vpack.c.b16 %v1535, %v1531
        %v2528 = vpack.c.b16 %v1540, %v1536
        %v2529 = vpack.c.b16 %v1541, %v1537
        %v2530 = vpack.c.b16 %v1542, %v1538
        %v2531 = vpack.c.b16 %v1543, %v1539
        %v2532 = vpack.c.b16 %v1548, %v1544
        %v2533 = vpack.c.b16 %v1549, %v1545
        %v2534 = vpack.c.b16 %v1550, %v1546
        %v2535 = vpack.c.b16 %v1551, %v1547
        %v2536 = vpack.c.b16 %v1556, %v1552
        %v2537 = vpack.c.b16 %v1557, %v1553
        %v2538 = vpack.c.b16 %v1558, %v1554
        %v2539 = vpack.c.b16 %v1559, %v1555
        %v2540 = vpack.c.b16 %v1564, %v1560
        %v2541 = vpack.c.b16 %v1565, %v1561
        %v2542 = vpack.c.b16 %v1566, %v1562
        %v2543 = vpack.c.b16 %v1567, %v1563
        %v2544 = vpack.c.b16 %v1572, %v1568
        %v2545 = vpack.c.b16 %v1573, %v1569
        %v2546 = vpack.c.b16 %v1574, %v1570
        %v2547 = vpack.c.b16 %v1575, %v1571
        %v2548 = vpack.c.b16 %v1580, %v1576
        %v2549 = vpack.c.b16 %v1581, %v1577
        %v2550 = vpack.c.b16 %v1582, %v1578
        %v2551 = vpack.c.b16 %v1583, %v1579
        %v2552 = vpack.c.b16 %v1588, %v1584
        %v2553 = vpack.c.b16 %v1589, %v1585
        %v2554 = vpack.c.b16 %v1590, %v1586
        %v2555 = vpack.c.b16 %v1591, %v1587
        %v2556 = vpack.c.b16 %v1596, %v1592
        %v2557 = vpack.c.b16 %v1597, %v1593
        %v2558 = vpack.c.b16 %v1598, %v1594
        %v2559 = vpack.c.b16 %v1599, %v1595
        %v2560 = vpack.c.b16 %v1604, %v1600
        %v2561 = vpack.c.b16 %v1605, %v1601
        %v2562 = vpack.c.b16 %v1606, %v1602
        %v2563 = vpack.c.b16 %v1607, %v1603
        %v2564 = vpack.c.b16 %v1612, %v1608
        %v2565 = vpack.c.b16 %v1613, %v1609
        %v2566 = vpack.c.b16 %v1614, %v1610
        %v2567 = vpack.c.b16 %v1615, %v1611
        %v2568 = vpack.c.b16 %v1620, %v1616
        %v2569 = vpack.c.b16 %v1621, %v1617
        %v2570 = vpack.c.b16 %v1622, %v1618
        %v2571 = vpack.c.b16 %v1623, %v1619
        %v2572 = vpack.c.b16 %v1628, %v1624
        %v2573 = vpack.c.b16 %v1629, %v1625
        %v2574 = vpack.c.b16 %v1630, %v1626
        %v2575 = vpack.c.b16 %v1631, %v1627
        %v2576 = vpack.c.b16 %v1636, %v1632
        %v2577 = vpack.c.b16 %v1637, %v1633
        %v2578 = vpack.c.b16 %v1638, %v1634
        %v2579 = vpack.c.b16 %v1639, %v1635
        %v2580 = vpack.c.b16 %v1644, %v1640
        %v2581 = vpack.c.b16 %v1645, %v1641
        %v2582 = vpack.c.b16 %v1646, %v1642
        %v2583 = vpack.c.b16 %v1647, %v1643
        %v2584 = vpack.c.b16 %v1652, %v1648
        %v2585 = vpack.c.b16 %v1653, %v1649
        %v2586 = vpack.c.b16 %v1654, %v1650
        %v2587 = vpack.c.b16 %v1655, %v1651
        %v2588 = vpack.c.b16 %v1660, %v1656
        %v2589 = vpack.c.b16 %v1661, %v1657
        %v2590 = vpack.c.b16 %v1662, %v1658
        %v2591 = vpack.c.b16 %v1663, %v1659
        %v2592 = vpack.c.b16 %v1668, %v1664
        %v2593 = vpack.c.b16 %v1669, %v1665
        %v2594 = vpack.c.b16 %v1670, %v1666
        %v2595 = vpack.c.b16 %v1671, %v1667
        %v2596 = vpack.c.b16 %v1676, %v1672
        %v2597 = vpack.c.b16 %v1677, %v1673
        %v2598 = vpack.c.b16 %v1678, %v1674
        %v2599 = vpack.c.b16 %v1679, %v1675
        %v2600 = vpack.c.b16 %v1684, %v1680
        %v2601 = vpack.c.b16 %v1685, %v1681
        %v2602 = vpack.c.b16 %v1686, %v1682
        %v2603 = vpack.c.b16 %v1687, %v1683
        %v2604 = vpack.c.b16 %v1692, %v1688
        %v2605 = vpack.c.b16 %v1693, %v1689
        %v2606 = vpack.c.b16 %v1694, %v1690
        %v2607 = vpack.c.b16 %v1695, %v1691
        %v2608 = vpack.c.b16 %v1700, %v1696
        %v2609 = vpack.c.b16 %v1701, %v1697
        %v2610 = vpack.c.b16 %v1702, %v1698
        %v2611 = vpack.c.b16 %v1703, %v1699
        %v2612 = vpack.c.b16 %v1708, %v1704
        %v2613 = vpack.c.b16 %v1709, %v1705
        %v2614 = vpack.c.b16 %v1710, %v1706
        %v2615 = vpack.c.b16 %v1711, %v1707
        %v2616 = vpack.c.b16 %v1716, %v1712
        %v2617 = vpack.c.b16 %v1717, %v1713
        %v2618 = vpack.c.b16 %v1718, %v1714
        %v2619 = vpack.c.b16 %v1719, %v1715
        %v2620 = vpack.c.b16 %v1724, %v1720
        %v2621 = vpack.c.b16 %v1725, %v1721
        %v2622 = vpack.c.b16 %v1726, %v1722
        %v2623 = vpack.c.b16 %v1727, %v1723
        %v2624 = vpack.c.b16 %v1732, %v1728
        %v2625 = vpack.c.b16 %v1733, %v1729
        %v2626 = vpack.c.b16 %v1734, %v1730
        %v2627 = vpack.c.b16 %v1735, %v1731
        %v2628 = vpack.c.b16 %v1740, %v1736
        %v2629 = vpack.c.b16 %v1741, %v1737
        %v2630 = vpack.c.b16 %v1742, %v1738
        %v2631 = vpack.c.b16 %v1743, %v1739
        %v2632 = vpack.c.b16 %v1748, %v1744
        %v2633 = vpack.c.b16 %v1749, %v1745
        %v2634 = vpack.c.b16 %v1750, %v1746
        %v2635 = vpack.c.b16 %v1751, %v1747
        %v2636 = vpack.c.b16 %v1756, %v1752
        %v2637 = vpack.c.b16 %v1757, %v1753
        %v2638 = vpack.c.b16 %v1758, %v1754
        %v2639 = vpack.c.b16 %v1759, %v1755
        %v2640 = vpack.c.b16 %v1764, %v1760
        %v2641 = vpack.c.b16 %v1765, %v1761
        %v2642 = vpack.c.b16 %v1766, %v1762
        %v2643 = vpack.c.b16 %v1767, %v1763
        %v2644 = vpack.c.b16 %v1772, %v1768
        %v2645 = vpack.c.b16 %v1773, %v1769
        %v2646 = vpack.c.b16 %v1774, %v1770
        %v2647 = vpack.c.b16 %v1775, %v1771
        %v2648 = vpack.c.b16 %v1780, %v1776
        %v2649 = vpack.c.b16 %v1781, %v1777
        %v2650 = vpack.c.b16 %v1782, %v1778
        %v2651 = vpack.c.b16 %v1783, %v1779
        %v2652 = vpack.c.b16 %v1788, %v1784
        %v2653 = vpack.c.b16 %v1789, %v1785
        %v2654 = vpack.c.b16 %v1790, %v1786
        %v2655 = vpack.c.b16 %v1791, %v1787
        %v2656 = vpack.c.b16 %v1796, %v1792
        %v2657 = vpack.c.b16 %v1797, %v1793
        %v2658 = vpack.c.b16 %v1798, %v1794
        %v2659 = vpack.c.b16 %v1799, %v1795
        %v2660 = vpack.c.b16 %v1804, %v1800
        %v2661 = vpack.c.b16 %v1805, %v1801
        %v2662 = vpack.c.b16 %v1806, %v1802
        %v2663 = vpack.c.b16 %v1807, %v1803
        %v2664 = vpack.c.b16 %v1812, %v1808
        %v2665 = vpack.c.b16 %v1813, %v1809
        %v2666 = vpack.c.b16 %v1814, %v1810
        %v2667 = vpack.c.b16 %v1815, %v1811
        %v2668 = vpack.c.b16 %v1820, %v1816
        %v2669 = vpack.c.b16 %v1821, %v1817
        %v2670 = vpack.c.b16 %v1822, %v1818
        %v2671 = vpack.c.b16 %v1823, %v1819
        %v2672 = vpack.c.b16 %v1828, %v1824
        %v2673 = vpack.c.b16 %v1829, %v1825
        %v2674 = vpack.c.b16 %v1830, %v1826
        %v2675 = vpack.c.b16 %v1831, %v1827
        %v2676 = vpack.c.b16 %v1836, %v1832
        %v2677 = vpack.c.b16 %v1837, %v1833
        %v2678 = vpack.c.b16 %v1838, %v1834
        %v2679 = vpack.c.b16 %v1839, %v1835
        %v2680 = vpack.c.b16 %v1844, %v1840
        %v2681 = vpack.c.b16 %v1845, %v1841
        %v2682 = vpack.c.b16 %v1846, %v1842
        %v2683 = vpack.c.b16 %v1847, %v1843
        %v2684 = vpack.c.b16 %v1852, %v1848
        %v2685 = vpack.c.b16 %v1853, %v1849
        %v2686 = vpack.c.b16 %v1854, %v1850
        %v2687 = vpack.c.b16 %v1855, %v1851
        %v2688 = vpack.c.b16 %v1860, %v1856
        %v2689 = vpack.c.b16 %v1861, %v1857
        %v2690 = vpack.c.b16 %v1862, %v1858
        %v2691 = vpack.c.b16 %v1863, %v1859
        %v2692 = vpack.c.b16 %v1868, %v1864
        %v2693 = vpack.c.b16 %v1869, %v1865
        %v2694 = vpack.c.b16 %v1870, %v1866
        %v2695 = vpack.c.b16 %v1871, %v1867
        %v2696 = vpack.c.b16 %v1876, %v1872
        %v2697 = vpack.c.b16 %v1877, %v1873
        %v2698 = vpack.c.b16 %v1878, %v1874
        %v2699 = vpack.c.b16 %v1879, %v1875
        %v2700 = vpack.c.b16 %v1884, %v1880
        %v2701 = vpack.c.b16 %v1885, %v1881
        %v2702 = vpack.c.b16 %v1886, %v1882
        %v2703 = vpack.c.b16 %v1887, %v1883
        %v2704 = vpack.c.b16 %v1892, %v1888
        %v2705 = vpack.c.b16 %v1893, %v1889
        %v2706 = vpack.c.b16 %v1894, %v1890
        %v2707 = vpack.c.b16 %v1895, %v1891
        %v2708 = vpack.c.b16 %v1900, %v1896
        %v2709 = vpack.c.b16 %v1901, %v1897
        %v2710 = vpack.c.b16 %v1902, %v1898
        %v2711 = vpack.c.b16 %v1903, %v1899
        %v2712 = vpack.c.b16 %v1908, %v1904
        %v2713 = vpack.c.b16 %v1909, %v1905
        %v2714 = vpack.c.b16 %v1910, %v1906
        %v2715 = vpack.c.b16 %v1911, %v1907
        %v2716 = vpack.c.b16 %v1916, %v1912
        %v2717 = vpack.c.b16 %v1917, %v1913
        %v2718 = vpack.c.b16 %v1918, %v1914
        %v2719 = vpack.c.b16 %v1919, %v1915
        %v2720 = vpack.c.b16 %v1924, %v1920
        %v2721 = vpack.c.b16 %v1925, %v1921
        %v2722 = vpack.c.b16 %v1926, %v1922
        %v2723 = vpack.c.b16 %v1927, %v1923
        %v2724 = vpack.c.b16 %v1932, %v1928
        %v2725 = vpack.c.b16 %v1933, %v1929
        %v2726 = vpack.c.b16 %v1934, %v1930
        %v2727 = vpack.c.b16 %v1935, %v1931
        %v2728 = vpack.c.b16 %v1940, %v1936
        %v2729 = vpack.c.b16 %v1941, %v1937
        %v2730 = vpack.c.b16 %v1942, %v1938
        %v2731 = vpack.c.b16 %v1943, %v1939
        %v2732 = vpack.c.b16 %v1948, %v1944
        %v2733 = vpack.c.b16 %v1949, %v1945
        %v2734 = vpack.c.b16 %v1950, %v1946
        %v2735 = vpack.c.b16 %v1951, %v1947
        %v2736 = vpack.c.b16 %v1956, %v1952
        %v2737 = vpack.c.b16 %v1957, %v1953
        %v2738 = vpack.c.b16 %v1958, %v1954
        %v2739 = vpack.c.b16 %v1959, %v1955
        %v2740 = vpack.c.b16 %v1964, %v1960
        %v2741 = vpack.c.b16 %v1965, %v1961
        %v2742 = vpack.c.b16 %v1966, %v1962
        %v2743 = vpack.c.b16 %v1967, %v1963
        %v2744 = vpack.c.b16 %v1972, %v1968
        %v2745 = vpack.c.b16 %v1973, %v1969
        %v2746 = vpack.c.b16 %v1974, %v1970
        %v2747 = vpack.c.b16 %v1975, %v1971
        %v2748 = vpack.c.b16 %v1980, %v1976
        %v2749 = vpack.c.b16 %v1981, %v1977
        %v2750 = vpack.c.b16 %v1982, %v1978
        %v2751 = vpack.c.b16 %v1983, %v1979
        %v2752 = vpack.c.b16 %v1988, %v1984
        %v2753 = vpack.c.b16 %v1989, %v1985
        %v2754 = vpack.c.b16 %v1990, %v1986
        %v2755 = vpack.c.b16 %v1991, %v1987
        %v2756 = vpack.c.b16 %v1996, %v1992
        %v2757 = vpack.c.b16 %v1997, %v1993
        %v2758 = vpack.c.b16 %v1998, %v1994
        %v2759 = vpack.c.b16 %v1999, %v1995
        %v2760 = vpack.c.b16 %v2004, %v2000
        %v2761 = vpack.c.b16 %v2005, %v2001
        %v2762 = vpack.c.b16 %v2006, %v2002
        %v2763 = vpack.c.b16 %v2007, %v2003
        %v2764 = vpack.c.b16 %v2012, %v2008
        %v2765 = vpack.c.b16 %v2013, %v2009
        %v2766 = vpack.c.b16 %v2014, %v2010
        %v2767 = vpack.c.b16 %v2015, %v2011
        %v2768 = vpack.c.b16 %v2020, %v2016
        %v2769 = vpack.c.b16 %v2021, %v2017
        %v2770 = vpack.c.b16 %v2022, %v2018
        %v2771 = vpack.c.b16 %v2023, %v2019
        %v2772 = vpack.c.b16 %v2028, %v2024
        %v2773 = vpack.c.b16 %v2029, %v2025
        %v2774 = vpack.c.b16 %v2030, %v2026
        %v2775 = vpack.c.b16 %v2031, %v2027
        %v2776 = vpack.c.b16 %v2036, %v2032
        %v2777 = vpack.c.b16 %v2037, %v2033
        %v2778 = vpack.c.b16 %v2038, %v2034
        %v2779 = vpack.c.b16 %v2039, %v2035
        %v2780 = vpack.c.b16 %v2044, %v2040
        %v2781 = vpack.c.b16 %v2045, %v2041
        %v2782 = vpack.c.b16 %v2046, %v2042
        %v2783 = vpack.c.b16 %v2047, %v2043
        %v2784 = vpack.c.b16 %v2052, %v2048
        %v2785 = vpack.c.b16 %v2053, %v2049
        %v2786 = vpack.c.b16 %v2054, %v2050
        %v2787 = vpack.c.b16 %v2055, %v2051
        %v2788 = vpack.c.b16 %v2060, %v2056
        %v2789 = vpack.c.b16 %v2061, %v2057
        %v2790 = vpack.c.b16 %v2062, %v2058
        %v2791 = vpack.c.b16 %v2063, %v2059
        %v2792 = vpack.c.b16 %v2068, %v2064
        %v2793 = vpack.c.b16 %v2069, %v2065
        %v2794 = vpack.c.b16 %v2070, %v2066
        %v2795 = vpack.c.b16 %v2071, %v2067
        %v2796 = vpack.c.b16 %v2076, %v2072
        %v2797 = vpack.c.b16 %v2077, %v2073
        %v2798 = vpack.c.b16 %v2078, %v2074
        %v2799 = vpack.c.b16 %v2079, %v2075
        %v2800 = vpack.c.b16 %v2084, %v2080
        %v2801 = vpack.c.b16 %v2085, %v2081
        %v2802 = vpack.c.b16 %v2086, %v2082
        %v2803 = vpack.c.b16 %v2087, %v2083
        %v2804 = vpack.c.b16 %v2092, %v2088
        %v2805 = vpack.c.b16 %v2093, %v2089
        %v2806 = vpack.c.b16 %v2094, %v2090
        %v2807 = vpack.c.b16 %v2095, %v2091
        %v2808 = vpack.c.b16 %v2100, %v2096
        %v2809 = vpack.c.b16 %v2101, %v2097
        %v2810 = vpack.c.b16 %v2102, %v2098
        %v2811 = vpack.c.b16 %v2103, %v2099
        %v2812 = vpack.c.b16 %v2108, %v2104
        %v2813 = vpack.c.b16 %v2109, %v2105
        %v2814 = vpack.c.b16 %v2110, %v2106
        %v2815 = vpack.c.b16 %v2111, %v2107
        %v2816 = vpack.c.b16 %v2116, %v2112
        %v2817 = vpack.c.b16 %v2117, %v2113
        %v2818 = vpack.c.b16 %v2118, %v2114
        %v2819 = vpack.c.b16 %v2119, %v2115
        %v2820 = vpack.c.b16 %v2124, %v2120
        %v2821 = vpack.c.b16 %v2125, %v2121
        %v2822 = vpack.c.b16 %v2126, %v2122
        %v2823 = vpack.c.b16 %v2127, %v2123
        %v2824 = vpack.c.b16 %v2132, %v2128
        %v2825 = vpack.c.b16 %v2133, %v2129
        %v2826 = vpack.c.b16 %v2134, %v2130
        %v2827 = vpack.c.b16 %v2135, %v2131
        %v2828 = vpack.c.b16 %v2140, %v2136
        %v2829 = vpack.c.b16 %v2141, %v2137
        %v2830 = vpack.c.b16 %v2142, %v2138
        %v2831 = vpack.c.b16 %v2143, %v2139
        %v2832 = vpack.c.b16 %v2148, %v2144
        %v2833 = vpack.c.b16 %v2149, %v2145
        %v2834 = vpack.c.b16 %v2150, %v2146
        %v2835 = vpack.c.b16 %v2151, %v2147
        %v2836 = vpack.c.b16 %v2156, %v2152
        %v2837 = vpack.c.b16 %v2157, %v2153
        %v2838 = vpack.c.b16 %v2158, %v2154
        %v2839 = vpack.c.b16 %v2159, %v2155
        %v2840 = vpack.c.b16 %v2164, %v2160
        %v2841 = vpack.c.b16 %v2165, %v2161
        %v2842 = vpack.c.b16 %v2166, %v2162
        %v2843 = vpack.c.b16 %v2167, %v2163
        %v2844 = vpack.c.b16 %v2172, %v2168
        %v2845 = vpack.c.b16 %v2173, %v2169
        %v2846 = vpack.c.b16 %v2174, %v2170
        %v2847 = vpack.c.b16 %v2175, %v2171
        %v2848 = vpack.c.b16 %v2180, %v2176
        %v2849 = vpack.c.b16 %v2181, %v2177
        %v2850 = vpack.c.b16 %v2182, %v2178
        %v2851 = vpack.c.b16 %v2183, %v2179
        %v2852 = vpack.c.b16 %v2188, %v2184
        %v2853 = vpack.c.b16 %v2189, %v2185
        %v2854 = vpack.c.b16 %v2190, %v2186
        %v2855 = vpack.c.b16 %v2191, %v2187
        %v2856 = vpack.c.b16 %v2196, %v2192
        %v2857 = vpack.c.b16 %v2197, %v2193
        %v2858 = vpack.c.b16 %v2198, %v2194
        %v2859 = vpack.c.b16 %v2199, %v2195
        %v2860 = vpack.c.b16 %v2204, %v2200
        %v2861 = vpack.c.b16 %v2205, %v2201
        %v2862 = vpack.c.b16 %v2206, %v2202
        %v2863 = vpack.c.b16 %v2207, %v2203
        %v2864 = vpack.c.b16 %v2212, %v2208
        %v2865 = vpack.c.b16 %v2213, %v2209
        %v2866 = vpack.c.b16 %v2214, %v2210
        %v2867 = vpack.c.b16 %v2215, %v2211
        %v2868 = vpack.c.b16 %v2220, %v2216
        %v2869 = vpack.c.b16 %v2221, %v2217
        %v2870 = vpack.c.b16 %v2222, %v2218
        %v2871 = vpack.c.b16 %v2223, %v2219
        %v2872 = vpack.c.b16 %v2228, %v2224
        %v2873 = vpack.c.b16 %v2229, %v2225
        %v2874 = vpack.c.b16 %v2230, %v2226
        %v2875 = vpack.c.b16 %v2231, %v2227
        %v2876 = vpack.c.b16 %v2236, %v2232
        %v2877 = vpack.c.b16 %v2237, %v2233
        %v2878 = vpack.c.b16 %v2238, %v2234
        %v2879 = vpack.c.b16 %v2239, %v2235
        %v2880 = vpack.c.b16 %v2244, %v2240
        %v2881 = vpack.c.b16 %v2245, %v2241
        %v2882 = vpack.c.b16 %v2246, %v2242
        %v2883 = vpack.c.b16 %v2247, %v2243
        %v2884 = vpack.c.b16 %v2252, %v2248
        %v2885 = vpack.c.b16 %v2253, %v2249
        %v2886 = vpack.c.b16 %v2254, %v2250
        %v2887 = vpack.c.b16 %v2255, %v2251
        %v2888 = vpack.c.b16 %v2260, %v2256
        %v2889 = vpack.c.b16 %v2261, %v2257
        %v2890 = vpack.c.b16 %v2262, %v2258
        %v2891 = vpack.c.b16 %v2263, %v2259
        %v2892 = vpack.c.b16 %v2268, %v2264
        %v2893 = vpack.c.b16 %v2269, %v2265
        %v2894 = vpack.c.b16 %v2270, %v2266
        %v2895 = vpack.c.b16 %v2271, %v2267
        %v2896 = vpack.c.b16 %v2276, %v2272
        %v2897 = vpack.c.b16 %v2277, %v2273
        %v2898 = vpack.c.b16 %v2278, %v2274
        %v2899 = vpack.c.b16 %v2279, %v2275
        %v2900 = vpack.c.b16 %v2284, %v2280
        %v2901 = vpack.c.b16 %v2285, %v2281
        %v2902 = vpack.c.b16 %v2286, %v2282
        %v2903 = vpack.c.b16 %v2287, %v2283
        %v2904 = vpack.c.b16 %v2292, %v2288
        %v2905 = vpack.c.b16 %v2293, %v2289
        %v2906 = vpack.c.b16 %v2294, %v2290
        %v2907 = vpack.c.b16 %v2295, %v2291
        %v2908 = vpack.c.b16 %v2300, %v2296
        %v2909 = vpack.c.b16 %v2301, %v2297
        %v2910 = vpack.c.b16 %v2302, %v2298
        %v2911 = vpack.c.b16 %v2303, %v2299
        %v2912 = vpack.c.b16 %v2308, %v2304
        %v2913 = vpack.c.b16 %v2309, %v2305
        %v2914 = vpack.c.b16 %v2310, %v2306
        %v2915 = vpack.c.b16 %v2311, %v2307
        %v2916 = vpack.c.b16 %v2316, %v2312
        %v2917 = vpack.c.b16 %v2317, %v2313
        %v2918 = vpack.c.b16 %v2318, %v2314
        %v2919 = vpack.c.b16 %v2319, %v2315
        %v2920 = vpack.c.b16 %v2324, %v2320
        %v2921 = vpack.c.b16 %v2325, %v2321
        %v2922 = vpack.c.b16 %v2326, %v2322
        %v2923 = vpack.c.b16 %v2327, %v2323
        %v2924 = vpack.c.b16 %v2332, %v2328
        %v2925 = vpack.c.b16 %v2333, %v2329
        %v2926 = vpack.c.b16 %v2334, %v2330
        %v2927 = vpack.c.b16 %v2335, %v2331
        %v2928 = vpack.c.b16 %v2340, %v2336
        %v2929 = vpack.c.b16 %v2341, %v2337
        %v2930 = vpack.c.b16 %v2342, %v2338
        %v2931 = vpack.c.b16 %v2343, %v2339
        %v2932 = vpack.c.b16 %v2348, %v2344
        %v2933 = vpack.c.b16 %v2349, %v2345
        %v2934 = vpack.c.b16 %v2350, %v2346
        %v2935 = vpack.c.b16 %v2351, %v2347
        %v2936 = vpack.c.b16 %v2356, %v2352
        %v2937 = vpack.c.b16 %v2357, %v2353
        %v2938 = vpack.c.b16 %v2358, %v2354
        %v2939 = vpack.c.b16 %v2359, %v2355
        %v2940 = vpack.c.b16 %v2364, %v2360
        %v2941 = vpack.c.b16 %v2365, %v2361
        %v2942 = vpack.c.b16 %v2366, %v2362
        %v2943 = vpack.c.b16 %v2367, %v2363
        %v2944 = vpack.c.b16 %v2372, %v2368
        %v2945 = vpack.c.b16 %v2373, %v2369
        %v2946 = vpack.c.b16 %v2374, %v2370
        %v2947 = vpack.c.b16 %v2375, %v2371
        %v2948 = vpack.c.b16 %v2380, %v2376
        %v2949 = vpack.c.b16 %v2381, %v2377
        %v2950 = vpack.c.b16 %v2382, %v2378
        %v2951 = vpack.c.b16 %v2383, %v2379
        %v2952 = vpack.c.b16 %v2388, %v2384
        %v2953 = vpack.c.b16 %v2389, %v2385
        %v2954 = vpack.c.b16 %v2390, %v2386
        %v2955 = vpack.c.b16 %v2391, %v2387
        %v2956 = vpack.c.b16 %v2396, %v2392
        %v2957 = vpack.c.b16 %v2397, %v2393
        %v2958 = vpack.c.b16 %v2398, %v2394
        %v2959 = vpack.c.b16 %v2399, %v2395
        %v2960 = vpack.c.b16 %v2404, %v2400
        %v2961 = vpack.c.b16 %v2405, %v2401
        %v2962 = vpack.c.b16 %v2406, %v2402
        %v2963 = vpack.c.b16 %v2407, %v2403
        %v2964 = vpack.c.b16 %v2412, %v2408
        %v2965 = vpack.c.b16 %v2413, %v2409
        %v2966 = vpack.c.b16 %v2414, %v2410
        %v2967 = vpack.c.b16 %v2415, %v2411
        %v2968 = vpack.c.b16 %v2420, %v2416
        %v2969 = vpack.c.b16 %v2421, %v2417
        %v2970 = vpack.c.b16 %v2422, %v2418
        %v2971 = vpack.c.b16 %v2423, %v2419
        %v2972 = vpack.c.b16 %v2428, %v2424
        %v2973 = vpack.c.b16 %v2429, %v2425
        %v2974 = vpack.c.b16 %v2430, %v2426
        %v2975 = vpack.c.b16 %v2431, %v2427
        %v2976 = vpack.c.b16 %v2436, %v2432
        %v2977 = vpack.c.b16 %v2437, %v2433
        %v2978 = vpack.c.b16 %v2438, %v2434
        %v2979 = vpack.c.b16 %v2439, %v2435
        %v2980 = vpack.c.b16 %v2444, %v2440
        %v2981 = vpack.c.b16 %v2445, %v2441
        %v2982 = vpack.c.b16 %v2446, %v2442
        %v2983 = vpack.c.b16 %v2447, %v2443
        %v2984 = vpack.c.b16 %v2452, %v2448
        %v2985 = vpack.c.b16 %v2453, %v2449
        %v2986 = vpack.c.b16 %v2454, %v2450
        %v2987 = vpack.c.b16 %v2455, %v2451
        %v2988 = vpack.c.b16 %v2460, %v2456
        %v2989 = vpack.c.b16 %v2461, %v2457
        %v2990 = vpack.c.b16 %v2462, %v2458
        %v2991 = vpack.c.b16 %v2463, %v2459
        %v2992 = vpack.c.b16 %v2468, %v2464
        %v2993 = vpack.c.b16 %v2469, %v2465
        %v2994 = vpack.c.b16 %v2470, %v2466
        %v2995 = vpack.c.b16 %v2471, %v2467
        %v2996 = vpack.c.b16 %v2476, %v2472
        %v2997 = vpack.c.b16 %v2477, %v2473
        %v2998 = vpack.c.b16 %v2478, %v2474
        %v2999 = vpack.c.b16 %v2479, %v2475
        %v3000 = vpack.c.b16 %v2484, %v2480
        %v3001 = vpack.c.b16 %v2485, %v2481
        %v3002 = vpack.c.b16 %v2486, %v2482
        %v3003 = vpack.c.b16 %v2487, %v2483
        %v3004 = vpack.c.b16 %v2492, %v2488
        %v3005 = vpack.c.b16 %v2493, %v2489
        %v3006 = vpack.c.b16 %v2494, %v2490
        %v3007 = vpack.c.b16 %v2495, %v2491
        %3520 = vmatprep.subr.bf16.mxu0 %v2497
        %3521 = vmatpush1.bf16.msra.mxu0 %v2496
        %3522 = vmatprep.subr.bf16.mxu0 %v2501
        %3523 = vmatpush1.bf16.msra.mxu0 %v2500
        %3524 = vmatprep.subr.bf16.mxu0 %v2505
        %3525 = vmatpush1.bf16.msra.mxu0 %v2504
        %3526 = vmatprep.subr.bf16.mxu0 %v2509
        %3527 = vmatpush1.bf16.msra.mxu0 %v2508
        %3528 = vmatprep.subr.bf16.mxu0 %v2513
        %3529 = vmatpush1.bf16.msra.mxu0 %v2512
        %3530 = vmatprep.subr.bf16.mxu0 %v2517
        %3531 = vmatpush1.bf16.msra.mxu0 %v2516
        %3532 = vmatprep.subr.bf16.mxu0 %v2521
        %3533 = vmatpush1.bf16.msra.mxu0 %v2520
        %3534 = vmatprep.subr.bf16.mxu0 %v2525
        %3535 = vmatpush1.bf16.msra.mxu0 %v2524
        %3536 = vmatprep.subr.bf16.mxu0 %v2529
        %3537 = vmatpush1.bf16.msra.mxu0 %v2528
        %3538 = vmatprep.subr.bf16.mxu0 %v2533
        %3539 = vmatpush1.bf16.msra.mxu0 %v2532
        %3540 = vmatprep.subr.bf16.mxu0 %v2537
        %3541 = vmatpush1.bf16.msra.mxu0 %v2536
        %3542 = vmatprep.subr.bf16.mxu0 %v2541
        %3543 = vmatpush1.bf16.msra.mxu0 %v2540
        %3544 = vmatprep.subr.bf16.mxu0 %v2545
        %3545 = vmatpush1.bf16.msra.mxu0 %v2544
        %3546 = vmatprep.subr.bf16.mxu0 %v2549
        %3547 = vmatpush1.bf16.msra.mxu0 %v2548
        %3548 = vmatprep.subr.bf16.mxu0 %v2553
        %3549 = vmatpush1.bf16.msra.mxu0 %v2552
        %3550 = vmatprep.subr.bf16.mxu0 %v2557
        %3551 = vmatpush1.bf16.msra.mxu0 %v2556
        %3552 = vmatprep.mubr.bf16.mxu0 %v897
        %3553 = vmatmul.mubr.bf16.gmra.mrb[0].mxu0 %v896
        %v3554 = vpop.f32.mrb[0].mxu0
        %v3555 = vadd.f32 %v807, %v3554
        %v3556 = vpop.f32.mrb[0].mxu0
        %v3557 = vadd.f32 %v811, %v3556
        %v3558 = vpop.f32.mrb[0].mxu0
        %v3559 = vadd.f32 %v807, %v3558
        %v3560 = vpop.f32.mrb[0].mxu0
        %v3561 = vadd.f32 %v811, %v3560
        %3562 = vmatprep.mubr.bf16.mxu0 %v913
        %3563 = vmatmul.mubr.bf16.gmra.mrb[0].mxu0 %v912
        %v3564 = vpop.f32.mrb[0].mxu0
        %v3565 = vadd.f32 %v807, %v3564
        %v3566 = vpop.f32.mrb[0].mxu0
        %v3567 = vadd.f32 %v811, %v3566
        %v3568 = vpop.f32.mrb[0].mxu0
        %v3569 = vpop.f32.mrb[0].mxu0
        %3570 = vdwg.mxu0
        %3571 = vmatprep.subr.bf16.mxu0 %v2561
        %3572 = vmatpush1.bf16.msra.mxu0 %v2560
        %3573 = vmatprep.subr.bf16.mxu0 %v2565
        %3574 = vmatpush1.bf16.msra.mxu0 %v2564
        %3575 = vmatprep.subr.bf16.mxu0 %v2569
        %3576 = vmatpush1.bf16.msra.mxu0 %v2568
        %3577 = vmatprep.subr.bf16.mxu0 %v2573
        %3578 = vmatpush1.bf16.msra.mxu0 %v2572
        %3579 = vmatprep.subr.bf16.mxu0 %v2577
        %3580 = vmatpush1.bf16.msra.mxu0 %v2576
        %3581 = vmatprep.subr.bf16.mxu0 %v2581
        %3582 = vmatpush1.bf16.msra.mxu0 %v2580
        %3583 = vmatprep.subr.bf16.mxu0 %v2585
        %3584 = vmatpush1.bf16.msra.mxu0 %v2584
        %3585 = vmatprep.subr.bf16.mxu0 %v2589
        %3586 = vmatpush1.bf16.msra.mxu0 %v2588
        %3587 = vmatprep.subr.bf16.mxu0 %v2593
        %3588 = vmatpush1.bf16.msra.mxu0 %v2592
        %3589 = vmatprep.subr.bf16.mxu0 %v2597
        %3590 = vmatpush1.bf16.msra.mxu0 %v2596
        %3591 = vmatprep.subr.bf16.mxu0 %v2601
        %3592 = vmatpush1.bf16.msra.mxu0 %v2600
        %3593 = vmatprep.subr.bf16.mxu0 %v2605
        %3594 = vmatpush1.bf16.msra.mxu0 %v2604
        %3595 = vmatprep.subr.bf16.mxu0 %v2609
        %3596 = vmatpush1.bf16.msra.mxu0 %v2608
        %3597 = vmatprep.subr.bf16.mxu0 %v2613
        %3598 = vmatpush1.bf16.msra.mxu0 %v2612
        %3599 = vmatprep.subr.bf16.mxu0 %v2617
        %3600 = vmatpush1.bf16.msra.mxu0 %v2616
        %3601 = vmatprep.subr.bf16.mxu0 %v2621
        %3602 = vmatpush1.bf16.msra.mxu0 %v2620
        %3603 = vmatprep.mubr.bf16.mxu0 %v899
        %3604 = vmatmul.mubr.bf16.gmra.mrb[0].mxu0 %v898
        %v3605 = vpop.f32.mrb[0].mxu0
        %v3606 = vadd.f32 %v3555, %v3605
        %v3607 = vpop.f32.mrb[0].mxu0
        %v3608 = vadd.f32 %v3557, %v3607
        %v3609 = vpop.f32.mrb[0].mxu0
        %v3610 = vadd.f32 %v3559, %v3609
        %v3611 = vpop.f32.mrb[0].mxu0
        %v3612 = vadd.f32 %v3561, %v3611
        %3613 = vmatprep.mubr.bf16.mxu0 %v915
        %3614 = vmatmul.mubr.bf16.gmra.mrb[0].mxu0 %v914
        %v3615 = vpop.f32.mrb[0].mxu0
        %v3616 = vadd.f32 %v3565, %v3615
        %v3617 = vpop.f32.mrb[0].mxu0
        %v3618 = vadd.f32 %v3567, %v3617
        %v3619 = vpop.f32.mrb[0].mxu0
        %v3620 = vpop.f32.mrb[0].mxu0
        %3621 = vdwg.mxu0
        %3622 = vmatprep.subr.bf16.mxu0 %v2625
        %3623 = vmatpush1.bf16.msra.mxu0 %v2624
        %3624 = vmatprep.subr.bf16.mxu0 %v2629
        %3625 = vmatpush1.bf16.msra.mxu0 %v2628
        %3626 = vmatprep.subr.bf16.mxu0 %v2633
        %3627 = vmatpush1.bf16.msra.mxu0 %v2632
        %3628 = vmatprep.subr.bf16.mxu0 %v2637
        %3629 = vmatpush1.bf16.msra.mxu0 %v2636
        %3630 = vmatprep.subr.bf16.mxu0 %v2641
        %3631 = vmatpush1.bf16.msra.mxu0 %v2640
        %3632 = vmatprep.subr.bf16.mxu0 %v2645
        %3633 = vmatpush1.bf16.msra.mxu0 %v2644
        %3634 = vmatprep.subr.bf16.mxu0 %v2649
        %3635 = vmatpush1.bf16.msra.mxu0 %v2648
        %3636 = vmatprep.subr.bf16.mxu0 %v2653
        %3637 = vmatpush1.bf16.msra.mxu0 %v2652
        %3638 = vmatprep.subr.bf16.mxu0 %v2657
        %3639 = vmatpush1.bf16.msra.mxu0 %v2656
        %3640 = vmatprep.subr.bf16.mxu0 %v2661
        %3641 = vmatpush1.bf16.msra.mxu0 %v2660
        %3642 = vmatprep.subr.bf16.mxu0 %v2665
        %3643 = vmatpush1.bf16.msra.mxu0 %v2664
        %3644 = vmatprep.subr.bf16.mxu0 %v2669
        %3645 = vmatpush1.bf16.msra.mxu0 %v2668
        %3646 = vmatprep.subr.bf16.mxu0 %v2673
        %3647 = vmatpush1.bf16.msra.mxu0 %v2672
        %3648 = vmatprep.subr.bf16.mxu0 %v2677
        %3649 = vmatpush1.bf16.msra.mxu0 %v2676
        %3650 = vmatprep.subr.bf16.mxu0 %v2681
        %3651 = vmatpush1.bf16.msra.mxu0 %v2680
        %3652 = vmatprep.subr.bf16.mxu0 %v2685
        %3653 = vmatpush1.bf16.msra.mxu0 %v2684
        %3654 = vmatprep.mubr.bf16.mxu0 %v901
        %3655 = vmatmul.mubr.bf16.gmra.mrb[0].mxu0 %v900
        %v3656 = vpop.f32.mrb[0].mxu0
        %v3657 = vadd.f32 %v3606, %v3656
        %v3658 = vpop.f32.mrb[0].mxu0
        %v3659 = vadd.f32 %v3608, %v3658
        %v3660 = vpop.f32.mrb[0].mxu0
        %v3661 = vadd.f32 %v3610, %v3660
        %v3662 = vpop.f32.mrb[0].mxu0
        %v3663 = vadd.f32 %v3612, %v3662
        %3664 = vmatprep.mubr.bf16.mxu0 %v917
        %3665 = vmatmul.mubr.bf16.gmra.mrb[0].mxu0 %v916
        %v3666 = vpop.f32.mrb[0].mxu0
        %v3667 = vadd.f32 %v3616, %v3666
        %v3668 = vpop.f32.mrb[0].mxu0
        %v3669 = vadd.f32 %v3618, %v3668
        %v3670 = vpop.f32.mrb[0].mxu0
        %v3671 = vpop.f32.mrb[0].mxu0
        %3672 = vdwg.mxu0
        %3673 = vmatprep.subr.bf16.mxu0 %v2689
        %3674 = vmatpush1.bf16.msra.mxu0 %v2688
        %3675 = vmatprep.subr.bf16.mxu0 %v2693
        %3676 = vmatpush1.bf16.msra.mxu0 %v2692
        %3677 = vmatprep.subr.bf16.mxu0 %v2697
        %3678 = vmatpush1.bf16.msra.mxu0 %v2696
        %3679 = vmatprep.subr.bf16.mxu0 %v2701
        %3680 = vmatpush1.bf16.msra.mxu0 %v2700
        %3681 = vmatprep.subr.bf16.mxu0 %v2705
        %3682 = vmatpush1.bf16.msra.mxu0 %v2704
        %3683 = vmatprep.subr.bf16.mxu0 %v2709
        %3684 = vmatpush1.bf16.msra.mxu0 %v2708
        %3685 = vmatprep.subr.bf16.mxu0 %v2713
        %3686 = vmatpush1.bf16.msra.mxu0 %v2712
        %3687 = vmatprep.subr.bf16.mxu0 %v2717
        %3688 = vmatpush1.bf16.msra.mxu0 %v2716
        %3689 = vmatprep.subr.bf16.mxu0 %v2721
        %3690 = vmatpush1.bf16.msra.mxu0 %v2720
        %3691 = vmatprep.subr.bf16.mxu0 %v2725
        %3692 = vmatpush1.bf16.msra.mxu0 %v2724
        %3693 = vmatprep.subr.bf16.mxu0 %v2729
        %3694 = vmatpush1.bf16.msra.mxu0 %v2728
        %3695 = vmatprep.subr.bf16.mxu0 %v2733
        %3696 = vmatpush1.bf16.msra.mxu0 %v2732
        %3697 = vmatprep.subr.bf16.mxu0 %v2737
        %3698 = vmatpush1.bf16.msra.mxu0 %v2736
        %3699 = vmatprep.subr.bf16.mxu0 %v2741
        %3700 = vmatpush1.bf16.msra.mxu0 %v2740
        %3701 = vmatprep.subr.bf16.mxu0 %v2745
        %3702 = vmatpush1.bf16.msra.mxu0 %v2744
        %3703 = vmatprep.subr.bf16.mxu0 %v2749
        %3704 = vmatpush1.bf16.msra.mxu0 %v2748
        %3705 = vmatprep.mubr.bf16.mxu0 %v903
        %3706 = vmatmul.mubr.bf16.gmra.mrb[0].mxu0 %v902
        %v3707 = vpop.f32.mrb[0].mxu0
        %v3708 = vadd.f32 %v3657, %v3707
        %v3709 = vpop.f32.mrb[0].mxu0
        %v3710 = vadd.f32 %v3659, %v3709
        %v3711 = vpop.f32.mrb[0].mxu0
        %v3712 = vadd.f32 %v3661, %v3711
        %v3713 = vpop.f32.mrb[0].mxu0
        %v3714 = vadd.f32 %v3663, %v3713
        %3715 = vmatprep.mubr.bf16.mxu0 %v919
        %3716 = vmatmul.mubr.bf16.gmra.mrb[0].mxu0 %v918
        %v3717 = vpop.f32.mrb[0].mxu0
        %v3718 = vadd.f32 %v3667, %v3717
        %v3719 = vpop.f32.mrb[0].mxu0
        %v3720 = vadd.f32 %v3669, %v3719
        %v3721 = vpop.f32.mrb[0].mxu0
        %v3722 = vpop.f32.mrb[0].mxu0
        %3723 = vdwg.mxu0
        %3724 = vmatprep.subr.bf16.mxu0 %v2753
        %3725 = vmatpush1.bf16.msra.mxu0 %v2752
        %3726 = vmatprep.subr.bf16.mxu0 %v2757
        %3727 = vmatpush1.bf16.msra.mxu0 %v2756
        %3728 = vmatprep.subr.bf16.mxu0 %v2761
        %3729 = vmatpush1.bf16.msra.mxu0 %v2760
        %3730 = vmatprep.subr.bf16.mxu0 %v2765
        %3731 = vmatpush1.bf16.msra.mxu0 %v2764
        %3732 = vmatprep.subr.bf16.mxu0 %v2769
        %3733 = vmatpush1.bf16.msra.mxu0 %v2768
        %3734 = vmatprep.subr.bf16.mxu0 %v2773
        %3735 = vmatpush1.bf16.msra.mxu0 %v2772
        %3736 = vmatprep.subr.bf16.mxu0 %v2777
        %3737 = vmatpush1.bf16.msra.mxu0 %v2776
        %3738 = vmatprep.subr.bf16.mxu0 %v2781
        %3739 = vmatpush1.bf16.msra.mxu0 %v2780
        %3740 = vmatprep.subr.bf16.mxu0 %v2785
        %3741 = vmatpush1.bf16.msra.mxu0 %v2784
        %3742 = vmatprep.subr.bf16.mxu0 %v2789
        %3743 = vmatpush1.bf16.msra.mxu0 %v2788
        %3744 = vmatprep.subr.bf16.mxu0 %v2793
        %3745 = vmatpush1.bf16.msra.mxu0 %v2792
        %3746 = vmatprep.subr.bf16.mxu0 %v2797
        %3747 = vmatpush1.bf16.msra.mxu0 %v2796
        %3748 = vmatprep.subr.bf16.mxu0 %v2801
        %3749 = vmatpush1.bf16.msra.mxu0 %v2800
        %3750 = vmatprep.subr.bf16.mxu0 %v2805
        %3751 = vmatpush1.bf16.msra.mxu0 %v2804
        %3752 = vmatprep.subr.bf16.mxu0 %v2809
        %3753 = vmatpush1.bf16.msra.mxu0 %v2808
        %3754 = vmatprep.subr.bf16.mxu0 %v2813
        %3755 = vmatpush1.bf16.msra.mxu0 %v2812
        %3756 = vmatprep.mubr.bf16.mxu0 %v905
        %3757 = vmatmul.mubr.bf16.gmra.mrb[0].mxu0 %v904
        %v3758 = vpop.f32.mrb[0].mxu0
        %v3759 = vadd.f32 %v3708, %v3758
        %v3760 = vpop.f32.mrb[0].mxu0
        %v3761 = vadd.f32 %v3710, %v3760
        %v3762 = vpop.f32.mrb[0].mxu0
        %v3763 = vadd.f32 %v3712, %v3762
        %v3764 = vpop.f32.mrb[0].mxu0
        %v3765 = vadd.f32 %v3714, %v3764
        %3766 = vmatprep.mubr.bf16.mxu0 %v921
        %3767 = vmatmul.mubr.bf16.gmra.mrb[0].mxu0 %v920
        %v3768 = vpop.f32.mrb[0].mxu0
        %v3769 = vadd.f32 %v3718, %v3768
        %v3770 = vpop.f32.mrb[0].mxu0
        %v3771 = vadd.f32 %v3720, %v3770
        %v3772 = vpop.f32.mrb[0].mxu0
        %v3773 = vpop.f32.mrb[0].mxu0
        %3774 = vdwg.mxu0
        %3775 = vmatprep.subr.bf16.mxu0 %v2817
        %3776 = vmatpush1.bf16.msra.mxu0 %v2816
        %3777 = vmatprep.subr.bf16.mxu0 %v2821
        %3778 = vmatpush1.bf16.msra.mxu0 %v2820
        %3779 = vmatprep.subr.bf16.mxu0 %v2825
        %3780 = vmatpush1.bf16.msra.mxu0 %v2824
        %3781 = vmatprep.subr.bf16.mxu0 %v2829
        %3782 = vmatpush1.bf16.msra.mxu0 %v2828
        %3783 = vmatprep.subr.bf16.mxu0 %v2833
        %3784 = vmatpush1.bf16.msra.mxu0 %v2832
        %3785 = vmatprep.subr.bf16.mxu0 %v2837
        %3786 = vmatpush1.bf16.msra.mxu0 %v2836
        %3787 = vmatprep.subr.bf16.mxu0 %v2841
        %3788 = vmatpush1.bf16.msra.mxu0 %v2840
        %3789 = vmatprep.subr.bf16.mxu0 %v2845
        %3790 = vmatpush1.bf16.msra.mxu0 %v2844
        %3791 = vmatprep.subr.bf16.mxu0 %v2849
        %3792 = vmatpush1.bf16.msra.mxu0 %v2848
        %3793 = vmatprep.subr.bf16.mxu0 %v2853
        %3794 = vmatpush1.bf16.msra.mxu0 %v2852
        %3795 = vmatprep.subr.bf16.mxu0 %v2857
        %3796 = vmatpush1.bf16.msra.mxu0 %v2856
        %3797 = vmatprep.subr.bf16.mxu0 %v2861
        %3798 = vmatpush1.bf16.msra.mxu0 %v2860
        %3799 = vmatprep.subr.bf16.mxu0 %v2865
        %3800 = vmatpush1.bf16.msra.mxu0 %v2864
        %3801 = vmatprep.subr.bf16.mxu0 %v2869
        %3802 = vmatpush1.bf16.msra.mxu0 %v2868
        %3803 = vmatprep.subr.bf16.mxu0 %v2873
        %3804 = vmatpush1.bf16.msra.mxu0 %v2872
        %3805 = vmatprep.subr.bf16.mxu0 %v2877
        %3806 = vmatpush1.bf16.msra.mxu0 %v2876
        %3807 = vmatprep.mubr.bf16.mxu0 %v907
        %3808 = vmatmul.mubr.bf16.gmra.mrb[0].mxu0 %v906
        %v3809 = vpop.f32.mrb[0].mxu0
        %v3810 = vadd.f32 %v3759, %v3809
        %v3811 = vpop.f32.mrb[0].mxu0
        %v3812 = vadd.f32 %v3761, %v3811
        %v3813 = vpop.f32.mrb[0].mxu0
        %v3814 = vadd.f32 %v3763, %v3813
        %v3815 = vpop.f32.mrb[0].mxu0
        %v3816 = vadd.f32 %v3765, %v3815
        %3817 = vmatprep.mubr.bf16.mxu0 %v923
        %3818 = vmatmul.mubr.bf16.gmra.mrb[0].mxu0 %v922
        %v3819 = vpop.f32.mrb[0].mxu0
        %v3820 = vadd.f32 %v3769, %v3819
        %v3821 = vpop.f32.mrb[0].mxu0
        %v3822 = vadd.f32 %v3771, %v3821
        %v3823 = vpop.f32.mrb[0].mxu0
        %v3824 = vpop.f32.mrb[0].mxu0
        %3825 = vdwg.mxu0
        %3826 = vmatprep.subr.bf16.mxu0 %v2881
        %3827 = vmatpush1.bf16.msra.mxu0 %v2880
        %3828 = vmatprep.subr.bf16.mxu0 %v2885
        %3829 = vmatpush1.bf16.msra.mxu0 %v2884
        %3830 = vmatprep.subr.bf16.mxu0 %v2889
        %3831 = vmatpush1.bf16.msra.mxu0 %v2888
        %3832 = vmatprep.subr.bf16.mxu0 %v2893
        %3833 = vmatpush1.bf16.msra.mxu0 %v2892
        %3834 = vmatprep.subr.bf16.mxu0 %v2897
        %3835 = vmatpush1.bf16.msra.mxu0 %v2896
        %3836 = vmatprep.subr.bf16.mxu0 %v2901
        %3837 = vmatpush1.bf16.msra.mxu0 %v2900
        %3838 = vmatprep.subr.bf16.mxu0 %v2905
        %3839 = vmatpush1.bf16.msra.mxu0 %v2904
        %3840 = vmatprep.subr.bf16.mxu0 %v2909
        %3841 = vmatpush1.bf16.msra.mxu0 %v2908
        %3842 = vmatprep.subr.bf16.mxu0 %v2913
        %3843 = vmatpush1.bf16.msra.mxu0 %v2912
        %3844 = vmatprep.subr.bf16.mxu0 %v2917
        %3845 = vmatpush1.bf16.msra.mxu0 %v2916
        %3846 = vmatprep.subr.bf16.mxu0 %v2921
        %3847 = vmatpush1.bf16.msra.mxu0 %v2920
        %3848 = vmatprep.subr.bf16.mxu0 %v2925
        %3849 = vmatpush1.bf16.msra.mxu0 %v2924
        %3850 = vmatprep.subr.bf16.mxu0 %v2929
        %3851 = vmatpush1.bf16.msra.mxu0 %v2928
        %3852 = vmatprep.subr.bf16.mxu0 %v2933
        %3853 = vmatpush1.bf16.msra.mxu0 %v2932
        %3854 = vmatprep.subr.bf16.mxu0 %v2937
        %3855 = vmatpush1.bf16.msra.mxu0 %v2936
        %3856 = vmatprep.subr.bf16.mxu0 %v2941
        %3857 = vmatpush1.bf16.msra.mxu0 %v2940
        %3858 = vmatprep.mubr.bf16.mxu0 %v909
        %3859 = vmatmul.mubr.bf16.gmra.mrb[0].mxu0 %v908
        %v3860 = vpop.f32.mrb[0].mxu0
        %v3861 = vadd.f32 %v3810, %v3860
        %v3862 = vpop.f32.mrb[0].mxu0
        %v3863 = vadd.f32 %v3812, %v3862
        %v3864 = vpop.f32.mrb[0].mxu0
        %v3865 = vadd.f32 %v3814, %v3864
        %v3866 = vpop.f32.mrb[0].mxu0
        %v3867 = vadd.f32 %v3816, %v3866
        %3868 = vmatprep.mubr.bf16.mxu0 %v925
        %3869 = vmatmul.mubr.bf16.gmra.mrb[0].mxu0 %v924
        %v3870 = vpop.f32.mrb[0].mxu0
        %v3871 = vadd.f32 %v3820, %v3870
        %v3872 = vpop.f32.mrb[0].mxu0
        %v3873 = vadd.f32 %v3822, %v3872
        %v3874 = vpop.f32.mrb[0].mxu0
        %v3875 = vpop.f32.mrb[0].mxu0
        %3876 = vdwg.mxu0
        %3877 = vmatprep.subr.bf16.mxu0 %v2945
        %3878 = vmatpush1.bf16.msra.mxu0 %v2944
        %3879 = vmatprep.subr.bf16.mxu0 %v2949
        %3880 = vmatpush1.bf16.msra.mxu0 %v2948
        %3881 = vmatprep.subr.bf16.mxu0 %v2953
        %3882 = vmatpush1.bf16.msra.mxu0 %v2952
        %3883 = vmatprep.subr.bf16.mxu0 %v2957
        %3884 = vmatpush1.bf16.msra.mxu0 %v2956
        %3885 = vmatprep.subr.bf16.mxu0 %v2961
        %3886 = vmatpush1.bf16.msra.mxu0 %v2960
        %3887 = vmatprep.subr.bf16.mxu0 %v2965
        %3888 = vmatpush1.bf16.msra.mxu0 %v2964
        %3889 = vmatprep.subr.bf16.mxu0 %v2969
        %3890 = vmatpush1.bf16.msra.mxu0 %v2968
        %3891 = vmatprep.subr.bf16.mxu0 %v2973
        %3892 = vmatpush1.bf16.msra.mxu0 %v2972
        %3893 = vmatprep.subr.bf16.mxu0 %v2977
        %3894 = vmatpush1.bf16.msra.mxu0 %v2976
        %3895 = vmatprep.subr.bf16.mxu0 %v2981
        %3896 = vmatpush1.bf16.msra.mxu0 %v2980
        %3897 = vmatprep.subr.bf16.mxu0 %v2985
        %3898 = vmatpush1.bf16.msra.mxu0 %v2984
        %3899 = vmatprep.subr.bf16.mxu0 %v2989
        %3900 = vmatpush1.bf16.msra.mxu0 %v2988
        %3901 = vmatprep.subr.bf16.mxu0 %v2993
        %3902 = vmatpush1.bf16.msra.mxu0 %v2992
        %3903 = vmatprep.subr.bf16.mxu0 %v2997
        %3904 = vmatpush1.bf16.msra.mxu0 %v2996
        %3905 = vmatprep.subr.bf16.mxu0 %v3001
        %3906 = vmatpush1.bf16.msra.mxu0 %v3000
        %3907 = vmatprep.subr.bf16.mxu0 %v3005
        %3908 = vmatpush1.bf16.msra.mxu0 %v3004
        %3909 = vmatprep.mubr.bf16.mxu0 %v911
        %3910 = vmatmul.mubr.bf16.gmra.mrb[0].mxu0 %v910
        %v3911 = vpop.f32.mrb[0].mxu0
        %v3912 = vadd.f32 %v3861, %v3911
        %v3913 = vpop.f32.mrb[0].mxu0
        %v3914 = vadd.f32 %v3863, %v3913
        %v3915 = vpop.f32.mrb[0].mxu0
        %v3916 = vadd.f32 %v3865, %v3915
        %v3917 = vpop.f32.mrb[0].mxu0
        %v3918 = vadd.f32 %v3867, %v3917
        %3919 = vmatprep.mubr.bf16.mxu0 %v927
        %3920 = vmatmul.mubr.bf16.gmra.mrb[0].mxu0 %v926
        %v3921 = vpop.f32.mrb[0].mxu0
        %v3922 = vadd.f32 %v3871, %v3921
        %v3923 = vpop.f32.mrb[0].mxu0
        %v3924 = vadd.f32 %v3873, %v3923
        %v3925 = vpop.f32.mrb[0].mxu0
        %v3926 = vpop.f32.mrb[0].mxu0
        %3927 = vdwg.mxu0
        %3928 = vmatprep.subr.bf16.mxu0 %v2499
        %3929 = vmatpush1.bf16.msra.mxu0 %v2498
        %3930 = vmatprep.subr.bf16.mxu0 %v2503
        %3931 = vmatpush1.bf16.msra.mxu0 %v2502
        %3932 = vmatprep.subr.bf16.mxu0 %v2507
        %3933 = vmatpush1.bf16.msra.mxu0 %v2506
        %3934 = vmatprep.subr.bf16.mxu0 %v2511
        %3935 = vmatpush1.bf16.msra.mxu0 %v2510
        %3936 = vmatprep.subr.bf16.mxu0 %v2515
        %3937 = vmatpush1.bf16.msra.mxu0 %v2514
        %3938 = vmatprep.subr.bf16.mxu0 %v2519
        %3939 = vmatpush1.bf16.msra.mxu0 %v2518
        %3940 = vmatprep.subr.bf16.mxu0 %v2523
        %3941 = vmatpush1.bf16.msra.mxu0 %v2522
        %3942 = vmatprep.subr.bf16.mxu0 %v2527
        %3943 = vmatpush1.bf16.msra.mxu0 %v2526
        %3944 = vmatprep.subr.bf16.mxu0 %v2531
        %3945 = vmatpush1.bf16.msra.mxu0 %v2530
        %3946 = vmatprep.subr.bf16.mxu0 %v2535
        %3947 = vmatpush1.bf16.msra.mxu0 %v2534
        %3948 = vmatprep.subr.bf16.mxu0 %v2539
        %3949 = vmatpush1.bf16.msra.mxu0 %v2538
        %3950 = vmatprep.subr.bf16.mxu0 %v2543
        %3951 = vmatpush1.bf16.msra.mxu0 %v2542
        %3952 = vmatprep.subr.bf16.mxu0 %v2547
        %3953 = vmatpush1.bf16.msra.mxu0 %v2546
        %3954 = vmatprep.subr.bf16.mxu0 %v2551
        %3955 = vmatpush1.bf16.msra.mxu0 %v2550
        %3956 = vmatprep.subr.bf16.mxu0 %v2555
        %3957 = vmatpush1.bf16.msra.mxu0 %v2554
        %3958 = vmatprep.subr.bf16.mxu0 %v2559
        %3959 = vmatpush1.bf16.msra.mxu0 %v2558
        %3960 = vmatprep.mubr.bf16.mxu0 %v897
        %3961 = vmatmul.mubr.bf16.gmra.mrb[0].mxu0 %v896
        %v3962 = vpop.f32.mrb[0].mxu0
        %v3963 = vadd.f32 %v815, %v3962
        %v3964 = vpop.f32.mrb[0].mxu0
        %v3965 = vadd.f32 %v819, %v3964
        %v3966 = vpop.f32.mrb[0].mxu0
        %v3967 = vadd.f32 %v815, %v3966
        %v3968 = vpop.f32.mrb[0].mxu0
        %v3969 = vadd.f32 %v819, %v3968
        %3970 = vmatprep.mubr.bf16.mxu0 %v913
        %3971 = vmatmul.mubr.bf16.gmra.mrb[0].mxu0 %v912
        %v3972 = vpop.f32.mrb[0].mxu0
        %v3973 = vadd.f32 %v815, %v3972
        %v3974 = vpop.f32.mrb[0].mxu0
        %v3975 = vadd.f32 %v819, %v3974
        %v3976 = vpop.f32.mrb[0].mxu0
        %v3977 = vpop.f32.mrb[0].mxu0
        %3978 = vdwg.mxu0
        %3979 = vmatprep.subr.bf16.mxu0 %v2563
        %3980 = vmatpush1.bf16.msra.mxu0 %v2562
        %3981 = vmatprep.subr.bf16.mxu0 %v2567
        %3982 = vmatpush1.bf16.msra.mxu0 %v2566
        %3983 = vmatprep.subr.bf16.mxu0 %v2571
        %3984 = vmatpush1.bf16.msra.mxu0 %v2570
        %3985 = vmatprep.subr.bf16.mxu0 %v2575
        %3986 = vmatpush1.bf16.msra.mxu0 %v2574
        %3987 = vmatprep.subr.bf16.mxu0 %v2579
        %3988 = vmatpush1.bf16.msra.mxu0 %v2578
        %3989 = vmatprep.subr.bf16.mxu0 %v2583
        %3990 = vmatpush1.bf16.msra.mxu0 %v2582
        %3991 = vmatprep.subr.bf16.mxu0 %v2587
        %3992 = vmatpush1.bf16.msra.mxu0 %v2586
        %3993 = vmatprep.subr.bf16.mxu0 %v2591
        %3994 = vmatpush1.bf16.msra.mxu0 %v2590
        %3995 = vmatprep.subr.bf16.mxu0 %v2595
        %3996 = vmatpush1.bf16.msra.mxu0 %v2594
        %3997 = vmatprep.subr.bf16.mxu0 %v2599
        %3998 = vmatpush1.bf16.msra.mxu0 %v2598
        %3999 = vmatprep.subr.bf16.mxu0 %v2603
        %4000 = vmatpush1.bf16.msra.mxu0 %v2602
        %4001 = vmatprep.subr.bf16.mxu0 %v2607
        %4002 = vmatpush1.bf16.msra.mxu0 %v2606
        %4003 = vmatprep.subr.bf16.mxu0 %v2611
        %4004 = vmatpush1.bf16.msra.mxu0 %v2610
        %4005 = vmatprep.subr.bf16.mxu0 %v2615
        %4006 = vmatpush1.bf16.msra.mxu0 %v2614
        %4007 = vmatprep.subr.bf16.mxu0 %v2619
        %4008 = vmatpush1.bf16.msra.mxu0 %v2618
        %4009 = vmatprep.subr.bf16.mxu0 %v2623
        %4010 = vmatpush1.bf16.msra.mxu0 %v2622
        %4011 = vmatprep.mubr.bf16.mxu0 %v899
        %4012 = vmatmul.mubr.bf16.gmra.mrb[0].mxu0 %v898
        %v4013 = vpop.f32.mrb[0].mxu0
        %v4014 = vadd.f32 %v3963, %v4013
        %v4015 = vpop.f32.mrb[0].mxu0
        %v4016 = vadd.f32 %v3965, %v4015
        %v4017 = vpop.f32.mrb[0].mxu0
        %v4018 = vadd.f32 %v3967, %v4017
        %v4019 = vpop.f32.mrb[0].mxu0
        %v4020 = vadd.f32 %v3969, %v4019
        %4021 = vmatprep.mubr.bf16.mxu0 %v915
        %4022 = vmatmul.mubr.bf16.gmra.mrb[0].mxu0 %v914
        %v4023 = vpop.f32.mrb[0].mxu0
        %v4024 = vadd.f32 %v3973, %v4023
        %v4025 = vpop.f32.mrb[0].mxu0
        %v4026 = vadd.f32 %v3975, %v4025
        %v4027 = vpop.f32.mrb[0].mxu0
        %v4028 = vpop.f32.mrb[0].mxu0
        %4029 = vdwg.mxu0
        %4030 = vmatprep.subr.bf16.mxu0 %v2627
        %4031 = vmatpush1.bf16.msra.mxu0 %v2626
        %4032 = vmatprep.subr.bf16.mxu0 %v2631
        %4033 = vmatpush1.bf16.msra.mxu0 %v2630
        %4034 = vmatprep.subr.bf16.mxu0 %v2635
        %4035 = vmatpush1.bf16.msra.mxu0 %v2634
        %4036 = vmatprep.subr.bf16.mxu0 %v2639
        %4037 = vmatpush1.bf16.msra.mxu0 %v2638
        %4038 = vmatprep.subr.bf16.mxu0 %v2643
        %4039 = vmatpush1.bf16.msra.mxu0 %v2642
        %4040 = vmatprep.subr.bf16.mxu0 %v2647
        %4041 = vmatpush1.bf16.msra.mxu0 %v2646
        %4042 = vmatprep.subr.bf16.mxu0 %v2651
        %4043 = vmatpush1.bf16.msra.mxu0 %v2650
        %4044 = vmatprep.subr.bf16.mxu0 %v2655
        %4045 = vmatpush1.bf16.msra.mxu0 %v2654
        %4046 = vmatprep.subr.bf16.mxu0 %v2659
        %4047 = vmatpush1.bf16.msra.mxu0 %v2658
        %4048 = vmatprep.subr.bf16.mxu0 %v2663
        %4049 = vmatpush1.bf16.msra.mxu0 %v2662
        %4050 = vmatprep.subr.bf16.mxu0 %v2667
        %4051 = vmatpush1.bf16.msra.mxu0 %v2666
        %4052 = vmatprep.subr.bf16.mxu0 %v2671
        %4053 = vmatpush1.bf16.msra.mxu0 %v2670
        %4054 = vmatprep.subr.bf16.mxu0 %v2675
        %4055 = vmatpush1.bf16.msra.mxu0 %v2674
        %4056 = vmatprep.subr.bf16.mxu0 %v2679
        %4057 = vmatpush1.bf16.msra.mxu0 %v2678
        %4058 = vmatprep.subr.bf16.mxu0 %v2683
        %4059 = vmatpush1.bf16.msra.mxu0 %v2682
        %4060 = vmatprep.subr.bf16.mxu0 %v2687
        %4061 = vmatpush1.bf16.msra.mxu0 %v2686
        %4062 = vmatprep.mubr.bf16.mxu0 %v901
        %4063 = vmatmul.mubr.bf16.gmra.mrb[0].mxu0 %v900
        %v4064 = vpop.f32.mrb[0].mxu0
        %v4065 = vadd.f32 %v4014, %v4064
        %v4066 = vpop.f32.mrb[0].mxu0
        %v4067 = vadd.f32 %v4016, %v4066
        %v4068 = vpop.f32.mrb[0].mxu0
        %v4069 = vadd.f32 %v4018, %v4068
        %v4070 = vpop.f32.mrb[0].mxu0
        %v4071 = vadd.f32 %v4020, %v4070
        %4072 = vmatprep.mubr.bf16.mxu0 %v917
        %4073 = vmatmul.mubr.bf16.gmra.mrb[0].mxu0 %v916
        %v4074 = vpop.f32.mrb[0].mxu0
        %v4075 = vadd.f32 %v4024, %v4074
        %v4076 = vpop.f32.mrb[0].mxu0
        %v4077 = vadd.f32 %v4026, %v4076
        %v4078 = vpop.f32.mrb[0].mxu0
        %v4079 = vpop.f32.mrb[0].mxu0
        %4080 = vdwg.mxu0
        %4081 = vmatprep.subr.bf16.mxu0 %v2691
        %4082 = vmatpush1.bf16.msra.mxu0 %v2690
        %4083 = vmatprep.subr.bf16.mxu0 %v2695
        %4084 = vmatpush1.bf16.msra.mxu0 %v2694
        %4085 = vmatprep.subr.bf16.mxu0 %v2699
        %4086 = vmatpush1.bf16.msra.mxu0 %v2698
        %4087 = vmatprep.subr.bf16.mxu0 %v2703
        %4088 = vmatpush1.bf16.msra.mxu0 %v2702
        %4089 = vmatprep.subr.bf16.mxu0 %v2707
        %4090 = vmatpush1.bf16.msra.mxu0 %v2706
        %4091 = vmatprep.subr.bf16.mxu0 %v2711
        %4092 = vmatpush1.bf16.msra.mxu0 %v2710
        %4093 = vmatprep.subr.bf16.mxu0 %v2715
        %4094 = vmatpush1.bf16.msra.mxu0 %v2714
        %4095 = vmatprep.subr.bf16.mxu0 %v2719
        %4096 = vmatpush1.bf16.msra.mxu0 %v2718
        %4097 = vmatprep.subr.bf16.mxu0 %v2723
        %4098 = vmatpush1.bf16.msra.mxu0 %v2722
        %4099 = vmatprep.subr.bf16.mxu0 %v2727
        %4100 = vmatpush1.bf16.msra.mxu0 %v2726
        %4101 = vmatprep.subr.bf16.mxu0 %v2731
        %4102 = vmatpush1.bf16.msra.mxu0 %v2730
        %4103 = vmatprep.subr.bf16.mxu0 %v2735
        %4104 = vmatpush1.bf16.msra.mxu0 %v2734
        %4105 = vmatprep.subr.bf16.mxu0 %v2739
        %4106 = vmatpush1.bf16.msra.mxu0 %v2738
        %4107 = vmatprep.subr.bf16.mxu0 %v2743
        %4108 = vmatpush1.bf16.msra.mxu0 %v2742
        %4109 = vmatprep.subr.bf16.mxu0 %v2747
        %4110 = vmatpush1.bf16.msra.mxu0 %v2746
        %4111 = vmatprep.subr.bf16.mxu0 %v2751
        %4112 = vmatpush1.bf16.msra.mxu0 %v2750
        %4113 = vmatprep.mubr.bf16.mxu0 %v903
        %4114 = vmatmul.mubr.bf16.gmra.mrb[0].mxu0 %v902
        %v4115 = vpop.f32.mrb[0].mxu0
        %v4116 = vadd.f32 %v4065, %v4115
        %v4117 = vpop.f32.mrb[0].mxu0
        %v4118 = vadd.f32 %v4067, %v4117
        %v4119 = vpop.f32.mrb[0].mxu0
        %v4120 = vadd.f32 %v4069, %v4119
        %v4121 = vpop.f32.mrb[0].mxu0
        %v4122 = vadd.f32 %v4071, %v4121
        %4123 = vmatprep.mubr.bf16.mxu0 %v919
        %4124 = vmatmul.mubr.bf16.gmra.mrb[0].mxu0 %v918
        %v4125 = vpop.f32.mrb[0].mxu0
        %v4126 = vadd.f32 %v4075, %v4125
        %v4127 = vpop.f32.mrb[0].mxu0
        %v4128 = vadd.f32 %v4077, %v4127
        %v4129 = vpop.f32.mrb[0].mxu0
        %v4130 = vpop.f32.mrb[0].mxu0
        %4131 = vdwg.mxu0
        %4132 = vmatprep.subr.bf16.mxu0 %v2755
        %4133 = vmatpush1.bf16.msra.mxu0 %v2754
        %4134 = vmatprep.subr.bf16.mxu0 %v2759
        %4135 = vmatpush1.bf16.msra.mxu0 %v2758
        %4136 = vmatprep.subr.bf16.mxu0 %v2763
        %4137 = vmatpush1.bf16.msra.mxu0 %v2762
        %4138 = vmatprep.subr.bf16.mxu0 %v2767
        %4139 = vmatpush1.bf16.msra.mxu0 %v2766
        %4140 = vmatprep.subr.bf16.mxu0 %v2771
        %4141 = vmatpush1.bf16.msra.mxu0 %v2770
        %4142 = vmatprep.subr.bf16.mxu0 %v2775
        %4143 = vmatpush1.bf16.msra.mxu0 %v2774
        %4144 = vmatprep.subr.bf16.mxu0 %v2779
        %4145 = vmatpush1.bf16.msra.mxu0 %v2778
        %4146 = vmatprep.subr.bf16.mxu0 %v2783
        %4147 = vmatpush1.bf16.msra.mxu0 %v2782
        %4148 = vmatprep.subr.bf16.mxu0 %v2787
        %4149 = vmatpush1.bf16.msra.mxu0 %v2786
        %4150 = vmatprep.subr.bf16.mxu0 %v2791
        %4151 = vmatpush1.bf16.msra.mxu0 %v2790
        %4152 = vmatprep.subr.bf16.mxu0 %v2795
        %4153 = vmatpush1.bf16.msra.mxu0 %v2794
        %4154 = vmatprep.subr.bf16.mxu0 %v2799
        %4155 = vmatpush1.bf16.msra.mxu0 %v2798
        %4156 = vmatprep.subr.bf16.mxu0 %v2803
        %4157 = vmatpush1.bf16.msra.mxu0 %v2802
        %4158 = vmatprep.subr.bf16.mxu0 %v2807
        %4159 = vmatpush1.bf16.msra.mxu0 %v2806
        %4160 = vmatprep.subr.bf16.mxu0 %v2811
        %4161 = vmatpush1.bf16.msra.mxu0 %v2810
        %4162 = vmatprep.subr.bf16.mxu0 %v2815
        %4163 = vmatpush1.bf16.msra.mxu0 %v2814
        %4164 = vmatprep.mubr.bf16.mxu0 %v905
        %4165 = vmatmul.mubr.bf16.gmra.mrb[0].mxu0 %v904
        %v4166 = vpop.f32.mrb[0].mxu0
        %v4167 = vadd.f32 %v4116, %v4166
        %v4168 = vpop.f32.mrb[0].mxu0
        %v4169 = vadd.f32 %v4118, %v4168
        %v4170 = vpop.f32.mrb[0].mxu0
        %v4171 = vadd.f32 %v4120, %v4170
        %v4172 = vpop.f32.mrb[0].mxu0
        %v4173 = vadd.f32 %v4122, %v4172
        %4174 = vmatprep.mubr.bf16.mxu0 %v921
        %4175 = vmatmul.mubr.bf16.gmra.mrb[0].mxu0 %v920
        %v4176 = vpop.f32.mrb[0].mxu0
        %v4177 = vadd.f32 %v4126, %v4176
        %v4178 = vpop.f32.mrb[0].mxu0
        %v4179 = vadd.f32 %v4128, %v4178
        %v4180 = vpop.f32.mrb[0].mxu0
        %v4181 = vpop.f32.mrb[0].mxu0
        %4182 = vdwg.mxu0
        %4183 = vmatprep.subr.bf16.mxu0 %v2819
        %4184 = vmatpush1.bf16.msra.mxu0 %v2818
        %4185 = vmatprep.subr.bf16.mxu0 %v2823
        %4186 = vmatpush1.bf16.msra.mxu0 %v2822
        %4187 = vmatprep.subr.bf16.mxu0 %v2827
        %4188 = vmatpush1.bf16.msra.mxu0 %v2826
        %4189 = vmatprep.subr.bf16.mxu0 %v2831
        %4190 = vmatpush1.bf16.msra.mxu0 %v2830
        %4191 = vmatprep.subr.bf16.mxu0 %v2835
        %4192 = vmatpush1.bf16.msra.mxu0 %v2834
        %4193 = vmatprep.subr.bf16.mxu0 %v2839
        %4194 = vmatpush1.bf16.msra.mxu0 %v2838
        %4195 = vmatprep.subr.bf16.mxu0 %v2843
        %4196 = vmatpush1.bf16.msra.mxu0 %v2842
        %4197 = vmatprep.subr.bf16.mxu0 %v2847
        %4198 = vmatpush1.bf16.msra.mxu0 %v2846
        %4199 = vmatprep.subr.bf16.mxu0 %v2851
        %4200 = vmatpush1.bf16.msra.mxu0 %v2850
        %4201 = vmatprep.subr.bf16.mxu0 %v2855
        %4202 = vmatpush1.bf16.msra.mxu0 %v2854
        %4203 = vmatprep.subr.bf16.mxu0 %v2859
        %4204 = vmatpush1.bf16.msra.mxu0 %v2858
        %4205 = vmatprep.subr.bf16.mxu0 %v2863
        %4206 = vmatpush1.bf16.msra.mxu0 %v2862
        %4207 = vmatprep.subr.bf16.mxu0 %v2867
        %4208 = vmatpush1.bf16.msra.mxu0 %v2866
        %4209 = vmatprep.subr.bf16.mxu0 %v2871
        %4210 = vmatpush1.bf16.msra.mxu0 %v2870
        %4211 = vmatprep.subr.bf16.mxu0 %v2875
        %4212 = vmatpush1.bf16.msra.mxu0 %v2874
        %4213 = vmatprep.subr.bf16.mxu0 %v2879
        %4214 = vmatpush1.bf16.msra.mxu0 %v2878
        %4215 = vmatprep.mubr.bf16.mxu0 %v907
        %4216 = vmatmul.mubr.bf16.gmra.mrb[0].mxu0 %v906
        %v4217 = vpop.f32.mrb[0].mxu0
        %v4218 = vadd.f32 %v4167, %v4217
        %v4219 = vpop.f32.mrb[0].mxu0
        %v4220 = vadd.f32 %v4169, %v4219
        %v4221 = vpop.f32.mrb[0].mxu0
        %v4222 = vadd.f32 %v4171, %v4221
        %v4223 = vpop.f32.mrb[0].mxu0
        %v4224 = vadd.f32 %v4173, %v4223
        %4225 = vmatprep.mubr.bf16.mxu0 %v923
        %4226 = vmatmul.mubr.bf16.gmra.mrb[0].mxu0 %v922
        %v4227 = vpop.f32.mrb[0].mxu0
        %v4228 = vadd.f32 %v4177, %v4227
        %v4229 = vpop.f32.mrb[0].mxu0
        %v4230 = vadd.f32 %v4179, %v4229
        %v4231 = vpop.f32.mrb[0].mxu0
        %v4232 = vpop.f32.mrb[0].mxu0
        %4233 = vdwg.mxu0
        %4234 = vmatprep.subr.bf16.mxu0 %v2883
        %4235 = vmatpush1.bf16.msra.mxu0 %v2882
        %4236 = vmatprep.subr.bf16.mxu0 %v2887
        %4237 = vmatpush1.bf16.msra.mxu0 %v2886
        %4238 = vmatprep.subr.bf16.mxu0 %v2891
        %4239 = vmatpush1.bf16.msra.mxu0 %v2890
        %4240 = vmatprep.subr.bf16.mxu0 %v2895
        %4241 = vmatpush1.bf16.msra.mxu0 %v2894
        %4242 = vmatprep.subr.bf16.mxu0 %v2899
        %4243 = vmatpush1.bf16.msra.mxu0 %v2898
        %4244 = vmatprep.subr.bf16.mxu0 %v2903
        %4245 = vmatpush1.bf16.msra.mxu0 %v2902
        %4246 = vmatprep.subr.bf16.mxu0 %v2907
        %4247 = vmatpush1.bf16.msra.mxu0 %v2906
        %4248 = vmatprep.subr.bf16.mxu0 %v2911
        %4249 = vmatpush1.bf16.msra.mxu0 %v2910
        %4250 = vmatprep.subr.bf16.mxu0 %v2915
        %4251 = vmatpush1.bf16.msra.mxu0 %v2914
        %4252 = vmatprep.subr.bf16.mxu0 %v2919
        %4253 = vmatpush1.bf16.msra.mxu0 %v2918
        %4254 = vmatprep.subr.bf16.mxu0 %v2923
        %4255 = vmatpush1.bf16.msra.mxu0 %v2922
        %4256 = vmatprep.subr.bf16.mxu0 %v2927
        %4257 = vmatpush1.bf16.msra.mxu0 %v2926
        %4258 = vmatprep.subr.bf16.mxu0 %v2931
        %4259 = vmatpush1.bf16.msra.mxu0 %v2930
        %4260 = vmatprep.subr.bf16.mxu0 %v2935
        %4261 = vmatpush1.bf16.msra.mxu0 %v2934
        %4262 = vmatprep.subr.bf16.mxu0 %v2939
        %4263 = vmatpush1.bf16.msra.mxu0 %v2938
        %4264 = vmatprep.subr.bf16.mxu0 %v2943
        %4265 = vmatpush1.bf16.msra.mxu0 %v2942
        %4266 = vmatprep.mubr.bf16.mxu0 %v909
        %4267 = vmatmul.mubr.bf16.gmra.mrb[0].mxu0 %v908
        %v4268 = vpop.f32.mrb[0].mxu0
        %v4269 = vadd.f32 %v4218, %v4268
        %v4270 = vpop.f32.mrb[0].mxu0
        %v4271 = vadd.f32 %v4220, %v4270
        %v4272 = vpop.f32.mrb[0].mxu0
        %v4273 = vadd.f32 %v4222, %v4272
        %v4274 = vpop.f32.mrb[0].mxu0
        %v4275 = vadd.f32 %v4224, %v4274
        %4276 = vmatprep.mubr.bf16.mxu0 %v925
        %4277 = vmatmul.mubr.bf16.gmra.mrb[0].mxu0 %v924
        %v4278 = vpop.f32.mrb[0].mxu0
        %v4279 = vadd.f32 %v4228, %v4278
        %v4280 = vpop.f32.mrb[0].mxu0
        %v4281 = vadd.f32 %v4230, %v4280
        %v4282 = vpop.f32.mrb[0].mxu0
        %v4283 = vpop.f32.mrb[0].mxu0
        %4284 = vdwg.mxu0
        %4285 = vmatprep.subr.bf16.mxu0 %v2947
        %4286 = vmatpush1.bf16.msra.mxu0 %v2946
        %4287 = vmatprep.subr.bf16.mxu0 %v2951
        %4288 = vmatpush1.bf16.msra.mxu0 %v2950
        %4289 = vmatprep.subr.bf16.mxu0 %v2955
        %4290 = vmatpush1.bf16.msra.mxu0 %v2954
        %4291 = vmatprep.subr.bf16.mxu0 %v2959
        %4292 = vmatpush1.bf16.msra.mxu0 %v2958
        %4293 = vmatprep.subr.bf16.mxu0 %v2963
        %4294 = vmatpush1.bf16.msra.mxu0 %v2962
        %4295 = vmatprep.subr.bf16.mxu0 %v2967
        %4296 = vmatpush1.bf16.msra.mxu0 %v2966
        %4297 = vmatprep.subr.bf16.mxu0 %v2971
        %4298 = vmatpush1.bf16.msra.mxu0 %v2970
        %4299 = vmatprep.subr.bf16.mxu0 %v2975
        %4300 = vmatpush1.bf16.msra.mxu0 %v2974
        %4301 = vmatprep.subr.bf16.mxu0 %v2979
        %4302 = vmatpush1.bf16.msra.mxu0 %v2978
        %4303 = vmatprep.subr.bf16.mxu0 %v2983
        %4304 = vmatpush1.bf16.msra.mxu0 %v2982
        %4305 = vmatprep.subr.bf16.mxu0 %v2987
        %4306 = vmatpush1.bf16.msra.mxu0 %v2986
        %4307 = vmatprep.subr.bf16.mxu0 %v2991
        %4308 = vmatpush1.bf16.msra.mxu0 %v2990
        %4309 = vmatprep.subr.bf16.mxu0 %v2995
        %4310 = vmatpush1.bf16.msra.mxu0 %v2994
        %4311 = vmatprep.subr.bf16.mxu0 %v2999
        %4312 = vmatpush1.bf16.msra.mxu0 %v2998
        %4313 = vmatprep.subr.bf16.mxu0 %v3003
        %4314 = vmatpush1.bf16.msra.mxu0 %v3002
        %4315 = vmatprep.subr.bf16.mxu0 %v3007
        %4316 = vmatpush1.bf16.msra.mxu0 %v3006
        %4317 = vmatprep.mubr.bf16.mxu0 %v911
        %4318 = vmatmul.mubr.bf16.gmra.mrb[0].mxu0 %v910
        %v4319 = vpop.f32.mrb[0].mxu0
        %v4320 = vadd.f32 %v4269, %v4319
        %v4321 = vpop.f32.mrb[0].mxu0
        %v4322 = vadd.f32 %v4271, %v4321
        %v4323 = vpop.f32.mrb[0].mxu0
        %v4324 = vadd.f32 %v4273, %v4323
        %v4325 = vpop.f32.mrb[0].mxu0
        %v4326 = vadd.f32 %v4275, %v4325
        %4327 = vmatprep.mubr.bf16.mxu0 %v927
        %4328 = vmatmul.mubr.bf16.gmra.mrb[0].mxu0 %v926
        %v4329 = vpop.f32.mrb[0].mxu0
        %v4330 = vadd.f32 %v4279, %v4329
        %v4331 = vpop.f32.mrb[0].mxu0
        %v4332 = vadd.f32 %v4281, %v4331
        %v4333 = vpop.f32.mrb[0].mxu0
        %v4334 = vpop.f32.mrb[0].mxu0
        %4335 = vdwg.mxu0
        %4336 = vst [vmem:[%s254] sm:$0xff] %v3912
        %4337 = vst [vmem:[%s254 + $0x8] sm:$0xff] %v3914
        %4338 = vst [vmem:[%s254 + $0x10] sm:$0xff] %v4320
        %4339 = vst [vmem:[%s254 + $0x18] sm:$0xff] %v4322
        %4340 = vst [vmem:[%s254 + $0x20] sm:$0xff] %v3916
        %4341 = vst [vmem:[%s254 + $0x28] sm:$0xff] %v3918
        %4342 = vst [vmem:[%s254 + $0x30] sm:$0xff] %v4324
        %4343 = vst [vmem:[%s254 + $0x38] sm:$0xff] %v4326
        %4344 = vst [vmem:[%s254 + $0x40] sm:$0x3] %v3922
        %4345 = vst [vmem:[%s254 + $0x48] sm:$0x3] %v3924
        %4346 = vst [vmem:[%s254 + $0x50] sm:$0x3] %v4330
        %4347 = vst [vmem:[%s254 + $0x58] sm:$0x3] %v4332
        %s4348 = sand.u32 %s120, 1
        %s4349 = sand.u32 %s120, 1
        %s4350 = smul.addr %s4349, 96
        %s4351 = scalar_lea.vmem [#allocation6], %s4350
        // Predicated region
        $region41: #{generator_forward.12} parent=31 // pred_check
          %p4352 = pneg %p130
        $region42: #{generator_forward.12} parent=31 // pred_check_branch
          %4354 = sbr.rel (%p4352) target = $region44
        $region43: #{generator_forward.12} parent=31 // pred_region
          %s4355 = smul.u32 3, %s24
          %s4356 = smul.u32 4, %s25
          %s4357 = smul.addr %s4355, 8
          %s4358 = sadd.s32 %s4356, %s4357
          %s4359 = smul.addr %s4358, 8
          %s4360 = scalar_lea.vmem %s3, %s4359
          // Predicated region
          $region45: #{generator_forward.12} parent=43 // pred_check
            _
          $region46: #{generator_forward.12} parent=43 // pred_check_branch
            %4362 = sbr.rel (0) target = $region48
          $region47: #{generator_forward.12} parent=43 // pred_region
            // Predicated region
            $region49: #{generator_forward.12} parent=47 // pred_check
              _
            $region50: #{generator_forward.12} parent=47 // pred_check_branch
              %4364 = sbr.rel (0) target = $region52
            $region51: #{generator_forward.12} parent=47 // pred_region
              loop: start=0, step=1, limit=1
              $region53: #{generator_forward.12} parent=51 // loop_pre_header
                _
              $region54: #{generator_forward.12} parent=51 // loop_header
                %s4366 = sphi 0, %s4370
                %p4367 = scmp.ge.s32.totalorder %s4366, 1
                %s4371 = sphi %s4351, %s4351
                %s4372 = sphi %s4360, %s4360
              $region55: #{generator_forward.12} parent=51 // loop_header_branch
                %4369 = sbr.rel (%p4367) target = $region59
              $region56: #{generator_forward.12} parent=51 // loop_body
                %v4373 = vld [vmem:[%s4371] sm:$0xff]
                %4374 = vst [vmem:[%s4372] sm:$0xff] %v4373
                %v4375 = vld [vmem:[%s4371 + $0x8] sm:$0xff]
                %4376 = vst [vmem:[%s4372 + $0x8] sm:$0xff] %v4375
                %v4377 = vld [vmem:[%s4371 + $0x10] sm:$0xff]
                %4378 = vst [vmem:[%s4372 + $0x10] sm:$0xff] %v4377
                %v4379 = vld [vmem:[%s4371 + $0x18] sm:$0xff]
                %4380 = vst [vmem:[%s4372 + $0x18] sm:$0xff] %v4379
                %v4381 = vld [vmem:[%s4371 + $0x20] sm:$0xff]
                %4382 = vst [vmem:[%s4372 + $0x40] sm:$0xff] %v4381
                %v4383 = vld [vmem:[%s4371 + $0x28] sm:$0xff]
                %4384 = vst [vmem:[%s4372 + $0x48] sm:$0xff] %v4383
                %v4385 = vld [vmem:[%s4371 + $0x30] sm:$0xff]
                %4386 = vst [vmem:[%s4372 + $0x50] sm:$0xff] %v4385
                %v4387 = vld [vmem:[%s4371 + $0x38] sm:$0xff]
                %4388 = vst [vmem:[%s4372 + $0x58] sm:$0xff] %v4387
                %v4389 = vld [vmem:[%s4371 + $0x40] sm:$0xff]
                %4390 = vst [vmem:[%s4372 + $0x80] sm:$0xff] %v4389
                %v4391 = vld [vmem:[%s4371 + $0x48] sm:$0xff]
                %4392 = vst [vmem:[%s4372 + $0x88] sm:$0xff] %v4391
                %v4393 = vld [vmem:[%s4371 + $0x50] sm:$0xff]
                %4394 = vst [vmem:[%s4372 + $0x90] sm:$0xff] %v4393
                %v4395 = vld [vmem:[%s4371 + $0x58] sm:$0xff]
                %4396 = vst [vmem:[%s4372 + $0x98] sm:$0xff] %v4395
              $region57: #{generator_forward.12} parent=51 // loop_footer
                %s4370 = sadd.s32 1, %s4366
              $region58: #{generator_forward.12} parent=51 // loop_footer_branch
                %4365 = sbr.rel target = $region54
              $region59: #{generator_forward.12} parent=51 // loop_exit
                _
            $region52: #{generator_forward.12} parent=47 // pred_fallthru
              _
            // Predicated region
            $region60: #{generator_forward.12} parent=47 // pred_check
              _
            $region61: #{generator_forward.12} parent=47 // pred_check_branch
              %4398 = sbr.rel target = $region63
            $region62: #{generator_forward.12} parent=47 // pred_region
              _
            $region63: #{generator_forward.12} parent=47 // pred_fallthru
              _
          $region48: #{generator_forward.12} parent=43 // pred_fallthru
            _
          %4399 = vnop
        $region44: #{generator_forward.12} parent=31 // pred_fallthru
          _
      $region32: #{generator_forward.12} parent=5 // pred_fallthru
        _
      %p4400 = scmp.le.s32.totalorder 2, %s15
      // Predicated region
      $region64: #{generator_forward.12} parent=5 // pred_check
        %p4401 = pneg %p4400
      $region65: #{generator_forward.12} parent=5 // pred_check_branch
        %4403 = sbr.rel (%p4401) target = $region67
      $region66: #{generator_forward.12} parent=5 // pred_region
        %s4404 = ssub.s32 %s15, 2
        // Predicated region
        $region68: #{generator_forward.12} parent=66 // pred_check
          %p4405 = pneg %p136
        $region69: #{generator_forward.12} parent=66 // pred_check_branch
          %4407 = sbr.rel (%p4405) target = $region71
        $region70: #{generator_forward.12} parent=66 // pred_region
          %s4408 = sand.u32 %s121, 1
          %s4409 = sand.u32 %s121, 1
          %s4410 = smul.addr %s4409, 96
          %s4411 = scalar_lea.vmem [#allocation6], %s4410
        $region71: #{generator_forward.12} parent=66 // pred_fallthru
          _
      $region67: #{generator_forward.12} parent=5 // pred_fallthru
        _
    $region6: #{generator_forward.12} parent=1 // loop_footer
      %s19 = sadd.s32 1, %s15
    $region7: #{generator_forward.12} parent=1 // loop_footer_branch
      %14 = sbr.rel target = $region3
    $region8: #{generator_forward.12} parent=1 // loop_exit
      _
    %4412 = vsyncpa [#allocation3], 1
    %s4413 = scalar_lea.sflag [#allocation3], 1
    %4414 = vsyncpa %s4413, 1
    %4415 = vsyncpa [#allocation5], 1
    %s4416 = scalar_lea.sflag [#allocation5], 1
    %4417 = vsyncpa %s4416, 1

// kernel: generator_forward.16
$region0: #{generator_forward.16}
  #allocation0 [shape = 'u32[]', space=smem, size = 0x4, offset = 0x4, fixed_abs, tag = 'smem constant byte address 0x4 - core index']
  #allocation1 [shape = 'u32[144,128]{1,0:T(1,128)}', space=vmem, size = 0x12000, scoped, tag = 'internal scratch']
  %s0 = inlined_call_operand.vmem [shape: f32[128,128], index: 0, kind: input, shape index: {}]
  %s1 = inlined_call_operand.vmem [shape: f32[1,128], index: 1, kind: output, shape index: {0}]
  %s2 = inlined_call_operand.vmem [shape: f32[1,128], index: 2, kind: output, shape index: {1}]
  %3 = xla_tuple %s1, %s2
  %s4 = sld [smem:[#allocation0]]
  $region26: #{generator_forward.16} parent=0
    _
  %s6 = ssub.s32 1, %s4
  %s7 = scalar_select 0, %s6, %s4
  // Predicated region
  $region2: #{generator_forward.16} parent=0 // pred_check
    _
  $region3: #{generator_forward.16} parent=0 // pred_check_branch
    %9 = sbr.rel (0) target = $region5
  $region4: #{generator_forward.16} parent=0 // pred_region
    _
  $region5: #{generator_forward.16} parent=0 // pred_fallthru
    _
  %p10 = scmp.eq.s32.totalorder 0, 0
  // Predicated region
  $region6: #{generator_forward.16} parent=0 // pred_check
    %p11 = pneg %p10
  $region7: #{generator_forward.16} parent=0 // pred_check_branch
    %13 = sbr.rel (%p11) target = $region9
  $region8: #{generator_forward.16} parent=0 // pred_region
    %14 = vst [vmem:[%s1] sm:$0x1] 0.0
    %15 = vst [vmem:[%s2] sm:$0x1] 0.0
  $region9: #{generator_forward.16} parent=0 // pred_fallthru
    _
  %v16 = vld [vmem:[%s0] sm:$0xff]
  %v17 = vld [vmem:[%s0 + $0x8] sm:$0xff]
  %v18 = vld [vmem:[%s0 + $0x10] sm:$0xff]
  %v19 = vld [vmem:[%s0 + $0x18] sm:$0xff]
  %v20 = vld [vmem:[%s0 + $0x20] sm:$0xff]
  %v21 = vld [vmem:[%s0 + $0x28] sm:$0xff]
  %v22 = vld [vmem:[%s0 + $0x30] sm:$0xff]
  %v23 = vld [vmem:[%s0 + $0x38] sm:$0xff]
  %v24 = vld [vmem:[%s0 + $0x40] sm:$0xff]
  %v25 = vld [vmem:[%s0 + $0x48] sm:$0xff]
  %v26 = vld [vmem:[%s0 + $0x50] sm:$0xff]
  %v27 = vld [vmem:[%s0 + $0x58] sm:$0xff]
  %v28 = vld [vmem:[%s0 + $0x60] sm:$0xff]
  %v29 = vld [vmem:[%s0 + $0x68] sm:$0xff]
  %v30 = vld [vmem:[%s0 + $0x70] sm:$0xff]
  %v31 = vld [vmem:[%s0 + $0x78] sm:$0xff]
  %v32 = vld [vmem:[%s1] sm:$0x1]
  %v33 = vadd.f32 %v16, %v17
  %v34 = vadd.f32 %v33, %v18
  %v35 = vadd.f32 %v34, %v19
  %v36 = vadd.f32 %v35, %v20
  %v37 = vadd.f32 %v36, %v21
  %v38 = vadd.f32 %v37, %v22
  %v39 = vadd.f32 %v38, %v23
  %v40 = vadd.f32 %v39, %v24
  %v41 = vadd.f32 %v40, %v25
  %v42 = vadd.f32 %v41, %v26
  %v43 = vadd.f32 %v42, %v27
  %v44 = vadd.f32 %v43, %v28
  %v45 = vadd.f32 %v44, %v29
  %v46 = vadd.f32 %v45, %v30
  %v47 = vadd.f32 %v46, %v31
  %v48 = vrot.slane %v47, 4
  %v49 = vadd.f32 %v47, %v48
  %v50 = vrot.slane %v49, 2
  %v51 = vadd.f32 %v49, %v50
  %v52 = vrot.slane %v51, 1
  %v53 = vadd.f32 %v51, %v52
  %v54 = vadd.f32 %v32, %v53
  %55 = vst [vmem:[%s1] sm:$0x1] %v54
  %v56 = vld [vmem:[%s2] sm:$0x1]
  %v57 = vmul.f32 %v16, %v16
  %v58 = vmul.f32 %v17, %v17
  %v59 = vmul.f32 %v18, %v18
  %v60 = vmul.f32 %v19, %v19
  %v61 = vmul.f32 %v20, %v20
  %v62 = vmul.f32 %v21, %v21
  %v63 = vmul.f32 %v22, %v22
  %v64 = vmul.f32 %v23, %v23
  %v65 = vmul.f32 %v24, %v24
  %v66 = vmul.f32 %v25, %v25
  %v67 = vmul.f32 %v26, %v26
  %v68 = vmul.f32 %v27, %v27
  %v69 = vmul.f32 %v28, %v28
  %v70 = vmul.f32 %v29, %v29
  %v71 = vmul.f32 %v30, %v30
  %v72 = vmul.f32 %v31, %v31
  %v73 = vadd.f32 %v57, %v58
  %v74 = vadd.f32 %v73, %v59
  %v75 = vadd.f32 %v74, %v60
  %v76 = vadd.f32 %v75, %v61
  %v77 = vadd.f32 %v76, %v62
  %v78 = vadd.f32 %v77, %v63
  %v79 = vadd.f32 %v78, %v64
  %v80 = vadd.f32 %v79, %v65
  %v81 = vadd.f32 %v80, %v66
  %v82 = vadd.f32 %v81, %v67
  %v83 = vadd.f32 %v82, %v68
  %v84 = vadd.f32 %v83, %v69
  %v85 = vadd.f32 %v84, %v70
  %v86 = vadd.f32 %v85, %v71
  %v87 = vadd.f32 %v86, %v72
  %v88 = vrot.slane %v87, 4
  %v89 = vadd.f32 %v87, %v88
  %v90 = vrot.slane %v89, 2
  %v91 = vadd.f32 %v89, %v90
  %v92 = vrot.slane %v91, 1
  %v93 = vadd.f32 %v91, %v92
  %v94 = vadd.f32 %v56, %v93
  %95 = vst [vmem:[%s2] sm:$0x1] %v94
  // Predicated region
  $region10: #{generator_forward.16} parent=0 // pred_check
    _
  $region11: #{generator_forward.16} parent=0 // pred_check_branch
    %97 = sbr.rel (0) target = $region13
  $region12: #{generator_forward.16} parent=0 // pred_region
    _
  $region13: #{generator_forward.16} parent=0 // pred_fallthru
    _
  // Predicated region
  $region14: #{generator_forward.16} parent=0 // pred_check
    _
  $region15: #{generator_forward.16} parent=0 // pred_check_branch
    %99 = sbr.rel (0) target = $region17
  $region16: #{generator_forward.16} parent=0 // pred_region
    _
  $region17: #{generator_forward.16} parent=0 // pred_fallthru
    _
  // Predicated region
  $region18: #{generator_forward.16} parent=0 // pred_check
    _
  $region19: #{generator_forward.16} parent=0 // pred_check_branch
    %101 = sbr.rel (0) target = $region21
  $region20: #{generator_forward.16} parent=0 // pred_region
    _
  $region21: #{generator_forward.16} parent=0 // pred_fallthru
    _
  // Predicated region
  $region22: #{generator_forward.16} parent=0 // pred_check
    _
  $region23: #{generator_forward.16} parent=0 // pred_check_branch
    %103 = sbr.rel (0) target = $region25
  $region24: #{generator_forward.16} parent=0 // pred_region
    _
  $region25: #{generator_forward.16} parent=0 // pred_fallthru
    _

// kernel: generator_forward.17
$region0: #{generator_forward.17}
  #allocation0 [shape = 'u32[]', space=smem, size = 0x4, offset = 0x4, fixed_abs, tag = 'smem constant byte address 0x4 - core index']
  #allocation1 [shape = 'u32[144,128]{1,0:T(1,128)}', space=vmem, size = 0x12000, scoped, tag = 'internal scratch']
  %s0 = inlined_call_operand.vmem [shape: f32[128,128], index: 0, kind: input, shape index: {}]
  %s1 = inlined_call_operand.vmem [shape: f32[1,128], index: 1, kind: input, shape index: {}]
  %s2 = inlined_call_operand.vmem [shape: f32[1,128], index: 2, kind: input, shape index: {}]
  %s3 = inlined_call_operand.vmem [shape: bf16[128,128], index: 3, kind: output, shape index: {}]
  %s4 = sld [smem:[#allocation0]]
  $region22: #{generator_forward.17} parent=0
    _
  %s6 = ssub.s32 1, %s4
  %s7 = scalar_select 0, %s6, %s4
  // Predicated region
  $region2: #{generator_forward.17} parent=0 // pred_check
    _
  $region3: #{generator_forward.17} parent=0 // pred_check_branch
    %9 = sbr.rel (0) target = $region5
  $region4: #{generator_forward.17} parent=0 // pred_region
    _
  $region5: #{generator_forward.17} parent=0 // pred_fallthru
    _
  // Predicated region
  $region6: #{generator_forward.17} parent=0 // pred_check
    _
  $region7: #{generator_forward.17} parent=0 // pred_check_branch
    %11 = sbr.rel (0) target = $region9
  $region8: #{generator_forward.17} parent=0 // pred_region
    _
  $region9: #{generator_forward.17} parent=0 // pred_fallthru
    _
  // Predicated region
  $region10: #{generator_forward.17} parent=0 // pred_check
    _
  $region11: #{generator_forward.17} parent=0 // pred_check_branch
    %13 = sbr.rel (0) target = $region13
  $region12: #{generator_forward.17} parent=0 // pred_region
    _
  $region13: #{generator_forward.17} parent=0 // pred_fallthru
    _
  %v14 = vld [vmem:[%s0] sm:$0xff]
  %v15 = vld [vmem:[%s0 + $0x8] sm:$0xff]
  %v16 = vld [vmem:[%s0 + $0x10] sm:$0xff]
  %v17 = vld [vmem:[%s0 + $0x18] sm:$0xff]
  %v18 = vld [vmem:[%s0 + $0x20] sm:$0xff]
  %v19 = vld [vmem:[%s0 + $0x28] sm:$0xff]
  %v20 = vld [vmem:[%s0 + $0x30] sm:$0xff]
  %v21 = vld [vmem:[%s0 + $0x38] sm:$0xff]
  %v22 = vld [vmem:[%s0 + $0x40] sm:$0xff]
  %v23 = vld [vmem:[%s0 + $0x48] sm:$0xff]
  %v24 = vld [vmem:[%s0 + $0x50] sm:$0xff]
  %v25 = vld [vmem:[%s0 + $0x58] sm:$0xff]
  %v26 = vld [vmem:[%s0 + $0x60] sm:$0xff]
  %v27 = vld [vmem:[%s0 + $0x68] sm:$0xff]
  %v28 = vld [vmem:[%s0 + $0x70] sm:$0xff]
  %v29 = vld [vmem:[%s0 + $0x78] sm:$0xff]
  %v30 = vld [vmem:[%s1] sm:$0x1]
  %v32 = vlaneseq
  %v33 = vshrl.u32 %v32, 7
  %v34 = vsub.s32 0, %v33
  %v35 = vrot.slane %v30, %v34
  %v37 = vmul.f32 %v14, %v35
  %v38 = vmul.f32 %v15, %v35
  %v39 = vmul.f32 %v16, %v35
  %v40 = vmul.f32 %v17, %v35
  %v41 = vmul.f32 %v18, %v35
  %v42 = vmul.f32 %v19, %v35
  %v43 = vmul.f32 %v20, %v35
  %v44 = vmul.f32 %v21, %v35
  %v45 = vmul.f32 %v22, %v35
  %v46 = vmul.f32 %v23, %v35
  %v47 = vmul.f32 %v24, %v35
  %v48 = vmul.f32 %v25, %v35
  %v49 = vmul.f32 %v26, %v35
  %v50 = vmul.f32 %v27, %v35
  %v51 = vmul.f32 %v28, %v35
  %v52 = vmul.f32 %v29, %v35
  %v53 = vld [vmem:[%s2] sm:$0x1]
  %v55 = vlaneseq
  %v56 = vshrl.u32 %v55, 7
  %v57 = vsub.s32 0, %v56
  %v58 = vrot.slane %v53, %v57
  %v60 = vadd.f32 %v37, %v58
  %v61 = vadd.f32 %v38, %v58
  %v62 = vadd.f32 %v39, %v58
  %v63 = vadd.f32 %v40, %v58
  %v64 = vadd.f32 %v41, %v58
  %v65 = vadd.f32 %v42, %v58
  %v66 = vadd.f32 %v43, %v58
  %v67 = vadd.f32 %v44, %v58
  %v68 = vadd.f32 %v45, %v58
  %v69 = vadd.f32 %v46, %v58
  %v70 = vadd.f32 %v47, %v58
  %v71 = vadd.f32 %v48, %v58
  %v72 = vadd.f32 %v49, %v58
  %v73 = vadd.f32 %v50, %v58
  %v74 = vadd.f32 %v51, %v58
  %v75 = vadd.f32 %v52, %v58
  %v76 = vmax.f32 %v60, 0.0
  %v77 = vmax.f32 %v61, 0.0
  %v78 = vmax.f32 %v62, 0.0
  %v79 = vmax.f32 %v63, 0.0
  %v80 = vmax.f32 %v64, 0.0
  %v81 = vmax.f32 %v65, 0.0
  %v82 = vmax.f32 %v66, 0.0
  %v83 = vmax.f32 %v67, 0.0
  %v84 = vmax.f32 %v68, 0.0
  %v85 = vmax.f32 %v69, 0.0
  %v86 = vmax.f32 %v70, 0.0
  %v87 = vmax.f32 %v71, 0.0
  %v88 = vmax.f32 %v72, 0.0
  %v89 = vmax.f32 %v73, 0.0
  %v90 = vmax.f32 %v74, 0.0
  %v91 = vmax.f32 %v75, 0.0
  %v92 = vpack.c.bf16 %v77, %v76
  %v93 = vpack.c.bf16 %v79, %v78
  %v94 = vpack.c.bf16 %v81, %v80
  %v95 = vpack.c.bf16 %v83, %v82
  %v96 = vpack.c.bf16 %v85, %v84
  %v97 = vpack.c.bf16 %v87, %v86
  %v98 = vpack.c.bf16 %v89, %v88
  %v99 = vpack.c.bf16 %v91, %v90
  %v108 = vunpack.c.l.b16 %v92
  %v109 = vunpack.c.h.b16 %v92
  %v110 = vunpack.c.l.b16 %v93
  %v111 = vunpack.c.h.b16 %v93
  %v112 = vunpack.c.l.b16 %v94
  %v113 = vunpack.c.h.b16 %v94
  %v114 = vunpack.c.l.b16 %v95
  %v115 = vunpack.c.h.b16 %v95
  %v116 = vunpack.c.l.b16 %v96
  %v117 = vunpack.c.h.b16 %v96
  %v118 = vunpack.c.l.b16 %v97
  %v119 = vunpack.c.h.b16 %v97
  %v120 = vunpack.c.l.b16 %v98
  %v121 = vunpack.c.h.b16 %v98
  %v122 = vunpack.c.l.b16 %v99
  %v123 = vunpack.c.h.b16 %v99
  %v124 = vpack.c.b16 %v108, %v108
  %v125 = vpack.c.b16 %v109, %v109
  %v126 = vpack.c.b16 %v110, %v110
  %v127 = vpack.c.b16 %v111, %v111
  %v128 = vpack.c.b16 %v112, %v112
  %v129 = vpack.c.b16 %v113, %v113
  %v130 = vpack.c.b16 %v114, %v114
  %v131 = vpack.c.b16 %v115, %v115
  %v132 = vpack.c.b16 %v116, %v116
  %v133 = vpack.c.b16 %v117, %v117
  %v134 = vpack.c.b16 %v118, %v118
  %v135 = vpack.c.b16 %v119, %v119
  %v136 = vpack.c.b16 %v120, %v120
  %v137 = vpack.c.b16 %v121, %v121
  %v138 = vpack.c.b16 %v122, %v122
  %v139 = vpack.c.b16 %v123, %v123
  %156 = vst [vmem:[%s3] sm:$0xf] %v124
  %157 = vst [vmem:[%s3 + $0x4] sm:$0xf] %v125
  %158 = vst [vmem:[%s3 + $0x8] sm:$0xf] %v126
  %159 = vst [vmem:[%s3 + $0xc] sm:$0xf] %v127
  %160 = vst [vmem:[%s3 + $0x10] sm:$0xf] %v128
  %161 = vst [vmem:[%s3 + $0x14] sm:$0xf] %v129
  %162 = vst [vmem:[%s3 + $0x18] sm:$0xf] %v130
  %163 = vst [vmem:[%s3 + $0x1c] sm:$0xf] %v131
  %164 = vst [vmem:[%s3 + $0x20] sm:$0xf] %v132
  %165 = vst [vmem:[%s3 + $0x24] sm:$0xf] %v133
  %166 = vst [vmem:[%s3 + $0x28] sm:$0xf] %v134
  %167 = vst [vmem:[%s3 + $0x2c] sm:$0xf] %v135
  %168 = vst [vmem:[%s3 + $0x30] sm:$0xf] %v136
  %169 = vst [vmem:[%s3 + $0x34] sm:$0xf] %v137
  %170 = vst [vmem:[%s3 + $0x38] sm:$0xf] %v138
  %171 = vst [vmem:[%s3 + $0x3c] sm:$0xf] %v139
  // Predicated region
  $region14: #{generator_forward.17} parent=0 // pred_check
    _
  $region15: #{generator_forward.17} parent=0 // pred_check_branch
    %173 = sbr.rel (0) target = $region17
  $region16: #{generator_forward.17} parent=0 // pred_region
    _
  $region17: #{generator_forward.17} parent=0 // pred_fallthru
    _
  // Predicated region
  $region18: #{generator_forward.17} parent=0 // pred_check
    _
  $region19: #{generator_forward.17} parent=0 // pred_check_branch
    %175 = sbr.rel (0) target = $region21
  $region20: #{generator_forward.17} parent=0 // pred_region
    _
  $region21: #{generator_forward.17} parent=0 // pred_fallthru
    _

// kernel: generator_forward.15
$region0: #{generator_forward.15}
  #allocation0 [shape = 'u32[]', space=smem, size = 0x4, offset = 0x4, fixed_abs, tag = 'smem constant byte address 0x4 - core index']
  #allocation1 [shape = 'u32[144,128]{1,0:T(1,128)}', space=vmem, size = 0x12000, scoped, tag = 'internal scratch']
  %s0 = inlined_call_operand.vmem [shape: bf16[50,1024], index: 0, kind: input, shape index: {}]
  %s1 = inlined_call_operand.vmem [shape: bf16[1024,512], index: 1, kind: input, shape index: {}]
  %s2 = inlined_call_operand.vmem [shape: f32[1,512], index: 2, kind: input, shape index: {}]
  %s3 = inlined_call_operand.vmem [shape: f32[50,512], index: 3, kind: output, shape index: {}]
  %s4 = sld [smem:[#allocation0]]
  $region22: #{generator_forward.15} parent=0
    _
  %s6 = ssub.s32 1, %s4
  %s7 = scalar_select 0, %s6, %s4
  // Predicated region
  $region2: #{generator_forward.15} parent=0 // pred_check
    _
  $region3: #{generator_forward.15} parent=0 // pred_check_branch
    %9 = sbr.rel (0) target = $region5
  $region4: #{generator_forward.15} parent=0 // pred_region
    _
  $region5: #{generator_forward.15} parent=0 // pred_fallthru
    _
  // Predicated region
  $region6: #{generator_forward.15} parent=0 // pred_check
    _
  $region7: #{generator_forward.15} parent=0 // pred_check_branch
    %11 = sbr.rel (0) target = $region9
  $region8: #{generator_forward.15} parent=0 // pred_region
    _
  $region9: #{generator_forward.15} parent=0 // pred_fallthru
    _
  // Predicated region
  $region10: #{generator_forward.15} parent=0 // pred_check
    _
  $region11: #{generator_forward.15} parent=0 // pred_check_branch
    %13 = sbr.rel (0) target = $region13
  $region12: #{generator_forward.15} parent=0 // pred_region
    _
  $region13: #{generator_forward.15} parent=0 // pred_fallthru
    _
  %v14 = vld [vmem:[%s0] sm:$0xff]
  %v15 = vld [vmem:[%s0 + $0x8] sm:$0xff]
  %v16 = vld [vmem:[%s0 + $0x10] sm:$0xff]
  %v17 = vld [vmem:[%s0 + $0x18] sm:$0xff]
  %v18 = vld [vmem:[%s0 + $0x20] sm:$0xff]
  %v19 = vld [vmem:[%s0 + $0x28] sm:$0xff]
  %v20 = vld [vmem:[%s0 + $0x30] sm:$0xff]
  %v21 = vld [vmem:[%s0 + $0x38] sm:$0xff]
  %v22 = vld [vmem:[%s0 + $0x40] sm:$0xff]
  %v23 = vld [vmem:[%s0 + $0x48] sm:$0xff]
  %v24 = vld [vmem:[%s0 + $0x50] sm:$0xff]
  %v25 = vld [vmem:[%s0 + $0x58] sm:$0xff]
  %v26 = vld [vmem:[%s0 + $0x60] sm:$0xff]
  %v27 = vld [vmem:[%s0 + $0x68] sm:$0xff]
  %v28 = vld [vmem:[%s0 + $0x70] sm:$0xff]
  %v29 = vld [vmem:[%s0 + $0x78] sm:$0xff]
  %v30 = vld [vmem:[%s0 + $0x80] sm:$0xff]
  %v31 = vld [vmem:[%s0 + $0x88] sm:$0xff]
  %v32 = vld [vmem:[%s0 + $0x90] sm:$0xff]
  %v33 = vld [vmem:[%s0 + $0x98] sm:$0xff]
  %v34 = vld [vmem:[%s0 + $0xa0] sm:$0xff]
  %v35 = vld [vmem:[%s0 + $0xa8] sm:$0xff]
  %v36 = vld [vmem:[%s0 + $0xb0] sm:$0xff]
  %v37 = vld [vmem:[%s0 + $0xb8] sm:$0xff]
  %v38 = vld [vmem:[%s0 + $0xc0] sm:$0x11]
  %v39 = vld [vmem:[%s0 + $0xc8] sm:$0x11]
  %v40 = vld [vmem:[%s0 + $0xd0] sm:$0x11]
  %v41 = vld [vmem:[%s0 + $0xd8] sm:$0x11]
  %v42 = vld [vmem:[%s1] sm:$0xff]
  %v43 = vld [vmem:[%s1 + $0x8] sm:$0xff]
  %v44 = vld [vmem:[%s1 + $0x10] sm:$0xff]
  %v45 = vld [vmem:[%s1 + $0x18] sm:$0xff]
  %v46 = vld [vmem:[%s1 + $0x20] sm:$0xff]
  %v47 = vld [vmem:[%s1 + $0x28] sm:$0xff]
  %v48 = vld [vmem:[%s1 + $0x30] sm:$0xff]
  %v49 = vld [vmem:[%s1 + $0x38] sm:$0xff]
  %v50 = vld [vmem:[%s1 + $0x40] sm:$0xff]
  %v51 = vld [vmem:[%s1 + $0x48] sm:$0xff]
  %v52 = vld [vmem:[%s1 + $0x50] sm:$0xff]
  %v53 = vld [vmem:[%s1 + $0x58] sm:$0xff]
  %v54 = vld [vmem:[%s1 + $0x60] sm:$0xff]
  %v55 = vld [vmem:[%s1 + $0x68] sm:$0xff]
  %v56 = vld [vmem:[%s1 + $0x70] sm:$0xff]
  %v57 = vld [vmem:[%s1 + $0x78] sm:$0xff]
  %v58 = vld [vmem:[%s1 + $0x80] sm:$0xff]
  %v59 = vld [vmem:[%s1 + $0x88] sm:$0xff]
  %v60 = vld [vmem:[%s1 + $0x90] sm:$0xff]
  %v61 = vld [vmem:[%s1 + $0x98] sm:$0xff]
  %v62 = vld [vmem:[%s1 + $0xa0] sm:$0xff]
  %v63 = vld [vmem:[%s1 + $0xa8] sm:$0xff]
  %v64 = vld [vmem:[%s1 + $0xb0] sm:$0xff]
  %v65 = vld [vmem:[%s1 + $0xb8] sm:$0xff]
  %v66 = vld [vmem:[%s1 + $0xc0] sm:$0xff]
  %v67 = vld [vmem:[%s1 + $0xc8] sm:$0xff]
  %v68 = vld [vmem:[%s1 + $0xd0] sm:$0xff]
  %v69 = vld [vmem:[%s1 + $0xd8] sm:$0xff]
  %v70 = vld [vmem:[%s1 + $0xe0] sm:$0xff]
  %v71 = vld [vmem:[%s1 + $0xe8] sm:$0xff]
  %v72 = vld [vmem:[%s1 + $0xf0] sm:$0xff]
  %v73 = vld [vmem:[%s1 + $0xf8] sm:$0xff]
  %v74 = vld [vmem:[%s1 + $0x100] sm:$0xff]
  %v75 = vld [vmem:[%s1 + $0x108] sm:$0xff]
  %v76 = vld [vmem:[%s1 + $0x110] sm:$0xff]
  %v77 = vld [vmem:[%s1 + $0x118] sm:$0xff]
  %v78 = vld [vmem:[%s1 + $0x120] sm:$0xff]
  %v79 = vld [vmem:[%s1 + $0x128] sm:$0xff]
  %v80 = vld [vmem:[%s1 + $0x130] sm:$0xff]
  %v81 = vld [vmem:[%s1 + $0x138] sm:$0xff]
  %v82 = vld [vmem:[%s1 + $0x140] sm:$0xff]
  %v83 = vld [vmem:[%s1 + $0x148] sm:$0xff]
  %v84 = vld [vmem:[%s1 + $0x150] sm:$0xff]
  %v85 = vld [vmem:[%s1 + $0x158] sm:$0xff]
  %v86 = vld [vmem:[%s1 + $0x160] sm:$0xff]
  %v87 = vld [vmem:[%s1 + $0x168] sm:$0xff]
  %v88 = vld [vmem:[%s1 + $0x170] sm:$0xff]
  %v89 = vld [vmem:[%s1 + $0x178] sm:$0xff]
  %v90 = vld [vmem:[%s1 + $0x180] sm:$0xff]
  %v91 = vld [vmem:[%s1 + $0x188] sm:$0xff]
  %v92 = vld [vmem:[%s1 + $0x190] sm:$0xff]
  %v93 = vld [vmem:[%s1 + $0x198] sm:$0xff]
  %v94 = vld [vmem:[%s1 + $0x1a0] sm:$0xff]
  %v95 = vld [vmem:[%s1 + $0x1a8] sm:$0xff]
  %v96 = vld [vmem:[%s1 + $0x1b0] sm:$0xff]
  %v97 = vld [vmem:[%s1 + $0x1b8] sm:$0xff]
  %v98 = vld [vmem:[%s1 + $0x1c0] sm:$0xff]
  %v99 = vld [vmem:[%s1 + $0x1c8] sm:$0xff]
  %v100 = vld [vmem:[%s1 + $0x1d0] sm:$0xff]
  %v101 = vld [vmem:[%s1 + $0x1d8] sm:$0xff]
  %v102 = vld [vmem:[%s1 + $0x1e0] sm:$0xff]
  %v103 = vld [vmem:[%s1 + $0x1e8] sm:$0xff]
  %v104 = vld [vmem:[%s1 + $0x1f0] sm:$0xff]
  %v105 = vld [vmem:[%s1 + $0x1f8] sm:$0xff]
  %v106 = vld [vmem:[%s1 + $0x200] sm:$0xff]
  %v107 = vld [vmem:[%s1 + $0x208] sm:$0xff]
  %v108 = vld [vmem:[%s1 + $0x210] sm:$0xff]
  %v109 = vld [vmem:[%s1 + $0x218] sm:$0xff]
  %v110 = vld [vmem:[%s1 + $0x220] sm:$0xff]
  %v111 = vld [vmem:[%s1 + $0x228] sm:$0xff]
  %v112 = vld [vmem:[%s1 + $0x230] sm:$0xff]
  %v113 = vld [vmem:[%s1 + $0x238] sm:$0xff]
  %v114 = vld [vmem:[%s1 + $0x240] sm:$0xff]
  %v115 = vld [vmem:[%s1 + $0x248] sm:$0xff]
  %v116 = vld [vmem:[%s1 + $0x250] sm:$0xff]
  %v117 = vld [vmem:[%s1 + $0x258] sm:$0xff]
  %v118 = vld [vmem:[%s1 + $0x260] sm:$0xff]
  %v119 = vld [vmem:[%s1 + $0x268] sm:$0xff]
  %v120 = vld [vmem:[%s1 + $0x270] sm:$0xff]
  %v121 = vld [vmem:[%s1 + $0x278] sm:$0xff]
  %v122 = vld [vmem:[%s1 + $0x280] sm:$0xff]
  %v123 = vld [vmem:[%s1 + $0x288] sm:$0xff]
  %v124 = vld [vmem:[%s1 + $0x290] sm:$0xff]
  %v125 = vld [vmem:[%s1 + $0x298] sm:$0xff]
  %v126 = vld [vmem:[%s1 + $0x2a0] sm:$0xff]
  %v127 = vld [vmem:[%s1 + $0x2a8] sm:$0xff]
  %v128 = vld [vmem:[%s1 + $0x2b0] sm:$0xff]
  %v129 = vld [vmem:[%s1 + $0x2b8] sm:$0xff]
  %v130 = vld [vmem:[%s1 + $0x2c0] sm:$0xff]
  %v131 = vld [vmem:[%s1 + $0x2c8] sm:$0xff]
  %v132 = vld [vmem:[%s1 + $0x2d0] sm:$0xff]
  %v133 = vld [vmem:[%s1 + $0x2d8] sm:$0xff]
  %v134 = vld [vmem:[%s1 + $0x2e0] sm:$0xff]
  %v135 = vld [vmem:[%s1 + $0x2e8] sm:$0xff]
  %v136 = vld [vmem:[%s1 + $0x2f0] sm:$0xff]
  %v137 = vld [vmem:[%s1 + $0x2f8] sm:$0xff]
  %v138 = vld [vmem:[%s1 + $0x300] sm:$0xff]
  %v139 = vld [vmem:[%s1 + $0x308] sm:$0xff]
  %v140 = vld [vmem:[%s1 + $0x310] sm:$0xff]
  %v141 = vld [vmem:[%s1 + $0x318] sm:$0xff]
  %v142 = vld [vmem:[%s1 + $0x320] sm:$0xff]
  %v143 = vld [vmem:[%s1 + $0x328] sm:$0xff]
  %v144 = vld [vmem:[%s1 + $0x330] sm:$0xff]
  %v145 = vld [vmem:[%s1 + $0x338] sm:$0xff]
  %v146 = vld [vmem:[%s1 + $0x340] sm:$0xff]
  %v147 = vld [vmem:[%s1 + $0x348] sm:$0xff]
  %v148 = vld [vmem:[%s1 + $0x350] sm:$0xff]
  %v149 = vld [vmem:[%s1 + $0x358] sm:$0xff]
  %v150 = vld [vmem:[%s1 + $0x360] sm:$0xff]
  %v151 = vld [vmem:[%s1 + $0x368] sm:$0xff]
  %v152 = vld [vmem:[%s1 + $0x370] sm:$0xff]
  %v153 = vld [vmem:[%s1 + $0x378] sm:$0xff]
  %v154 = vld [vmem:[%s1 + $0x380] sm:$0xff]
  %v155 = vld [vmem:[%s1 + $0x388] sm:$0xff]
  %v156 = vld [vmem:[%s1 + $0x390] sm:$0xff]
  %v157 = vld [vmem:[%s1 + $0x398] sm:$0xff]
  %v158 = vld [vmem:[%s1 + $0x3a0] sm:$0xff]
  %v159 = vld [vmem:[%s1 + $0x3a8] sm:$0xff]
  %v160 = vld [vmem:[%s1 + $0x3b0] sm:$0xff]
  %v161 = vld [vmem:[%s1 + $0x3b8] sm:$0xff]
  %v162 = vld [vmem:[%s1 + $0x3c0] sm:$0xff]
  %v163 = vld [vmem:[%s1 + $0x3c8] sm:$0xff]
  %v164 = vld [vmem:[%s1 + $0x3d0] sm:$0xff]
  %v165 = vld [vmem:[%s1 + $0x3d8] sm:$0xff]
  %v166 = vld [vmem:[%s1 + $0x3e0] sm:$0xff]
  %v167 = vld [vmem:[%s1 + $0x3e8] sm:$0xff]
  %v168 = vld [vmem:[%s1 + $0x3f0] sm:$0xff]
  %v169 = vld [vmem:[%s1 + $0x3f8] sm:$0xff]
  %v170 = vld [vmem:[%s1 + $0x400] sm:$0xff]
  %v171 = vld [vmem:[%s1 + $0x408] sm:$0xff]
  %v172 = vld [vmem:[%s1 + $0x410] sm:$0xff]
  %v173 = vld [vmem:[%s1 + $0x418] sm:$0xff]
  %v174 = vld [vmem:[%s1 + $0x420] sm:$0xff]
  %v175 = vld [vmem:[%s1 + $0x428] sm:$0xff]
  %v176 = vld [vmem:[%s1 + $0x430] sm:$0xff]
  %v177 = vld [vmem:[%s1 + $0x438] sm:$0xff]
  %v178 = vld [vmem:[%s1 + $0x440] sm:$0xff]
  %v179 = vld [vmem:[%s1 + $0x448] sm:$0xff]
  %v180 = vld [vmem:[%s1 + $0x450] sm:$0xff]
  %v181 = vld [vmem:[%s1 + $0x458] sm:$0xff]
  %v182 = vld [vmem:[%s1 + $0x460] sm:$0xff]
  %v183 = vld [vmem:[%s1 + $0x468] sm:$0xff]
  %v184 = vld [vmem:[%s1 + $0x470] sm:$0xff]
  %v185 = vld [vmem:[%s1 + $0x478] sm:$0xff]
  %v186 = vld [vmem:[%s1 + $0x480] sm:$0xff]
  %v187 = vld [vmem:[%s1 + $0x488] sm:$0xff]
  %v188 = vld [vmem:[%s1 + $0x490] sm:$0xff]
  %v189 = vld [vmem:[%s1 + $0x498] sm:$0xff]
  %v190 = vld [vmem:[%s1 + $0x4a0] sm:$0xff]
  %v191 = vld [vmem:[%s1 + $0x4a8] sm:$0xff]
  %v192 = vld [vmem:[%s1 + $0x4b0] sm:$0xff]
  %v193 = vld [vmem:[%s1 + $0x4b8] sm:$0xff]
  %v194 = vld [vmem:[%s1 + $0x4c0] sm:$0xff]
  %v195 = vld [vmem:[%s1 + $0x4c8] sm:$0xff]
  %v196 = vld [vmem:[%s1 + $0x4d0] sm:$0xff]
  %v197 = vld [vmem:[%s1 + $0x4d8] sm:$0xff]
  %v198 = vld [vmem:[%s1 + $0x4e0] sm:$0xff]
  %v199 = vld [vmem:[%s1 + $0x4e8] sm:$0xff]
  %v200 = vld [vmem:[%s1 + $0x4f0] sm:$0xff]
  %v201 = vld [vmem:[%s1 + $0x4f8] sm:$0xff]
  %v202 = vld [vmem:[%s1 + $0x500] sm:$0xff]
  %v203 = vld [vmem:[%s1 + $0x508] sm:$0xff]
  %v204 = vld [vmem:[%s1 + $0x510] sm:$0xff]
  %v205 = vld [vmem:[%s1 + $0x518] sm:$0xff]
  %v206 = vld [vmem:[%s1 + $0x520] sm:$0xff]
  %v207 = vld [vmem:[%s1 + $0x528] sm:$0xff]
  %v208 = vld [vmem:[%s1 + $0x530] sm:$0xff]
  %v209 = vld [vmem:[%s1 + $0x538] sm:$0xff]
  %v210 = vld [vmem:[%s1 + $0x540] sm:$0xff]
  %v211 = vld [vmem:[%s1 + $0x548] sm:$0xff]
  %v212 = vld [vmem:[%s1 + $0x550] sm:$0xff]
  %v213 = vld [vmem:[%s1 + $0x558] sm:$0xff]
  %v214 = vld [vmem:[%s1 + $0x560] sm:$0xff]
  %v215 = vld [vmem:[%s1 + $0x568] sm:$0xff]
  %v216 = vld [vmem:[%s1 + $0x570] sm:$0xff]
  %v217 = vld [vmem:[%s1 + $0x578] sm:$0xff]
  %v218 = vld [vmem:[%s1 + $0x580] sm:$0xff]
  %v219 = vld [vmem:[%s1 + $0x588] sm:$0xff]
  %v220 = vld [vmem:[%s1 + $0x590] sm:$0xff]
  %v221 = vld [vmem:[%s1 + $0x598] sm:$0xff]
  %v222 = vld [vmem:[%s1 + $0x5a0] sm:$0xff]
  %v223 = vld [vmem:[%s1 + $0x5a8] sm:$0xff]
  %v224 = vld [vmem:[%s1 + $0x5b0] sm:$0xff]
  %v225 = vld [vmem:[%s1 + $0x5b8] sm:$0xff]
  %v226 = vld [vmem:[%s1 + $0x5c0] sm:$0xff]
  %v227 = vld [vmem:[%s1 + $0x5c8] sm:$0xff]
  %v228 = vld [vmem:[%s1 + $0x5d0] sm:$0xff]
  %v229 = vld [vmem:[%s1 + $0x5d8] sm:$0xff]
  %v230 = vld [vmem:[%s1 + $0x5e0] sm:$0xff]
  %v231 = vld [vmem:[%s1 + $0x5e8] sm:$0xff]
  %v232 = vld [vmem:[%s1 + $0x5f0] sm:$0xff]
  %v233 = vld [vmem:[%s1 + $0x5f8] sm:$0xff]
  %v234 = vld [vmem:[%s1 + $0x600] sm:$0xff]
  %v235 = vld [vmem:[%s1 + $0x608] sm:$0xff]
  %v236 = vld [vmem:[%s1 + $0x610] sm:$0xff]
  %v237 = vld [vmem:[%s1 + $0x618] sm:$0xff]
  %v238 = vld [vmem:[%s1 + $0x620] sm:$0xff]
  %v239 = vld [vmem:[%s1 + $0x628] sm:$0xff]
  %v240 = vld [vmem:[%s1 + $0x630] sm:$0xff]
  %v241 = vld [vmem:[%s1 + $0x638] sm:$0xff]
  %v242 = vld [vmem:[%s1 + $0x640] sm:$0xff]
  %v243 = vld [vmem:[%s1 + $0x648] sm:$0xff]
  %v244 = vld [vmem:[%s1 + $0x650] sm:$0xff]
  %v245 = vld [vmem:[%s1 + $0x658] sm:$0xff]
  %v246 = vld [vmem:[%s1 + $0x660] sm:$0xff]
  %v247 = vld [vmem:[%s1 + $0x668] sm:$0xff]
  %v248 = vld [vmem:[%s1 + $0x670] sm:$0xff]
  %v249 = vld [vmem:[%s1 + $0x678] sm:$0xff]
  %v250 = vld [vmem:[%s1 + $0x680] sm:$0xff]
  %v251 = vld [vmem:[%s1 + $0x688] sm:$0xff]
  %v252 = vld [vmem:[%s1 + $0x690] sm:$0xff]
  %v253 = vld [vmem:[%s1 + $0x698] sm:$0xff]
  %v254 = vld [vmem:[%s1 + $0x6a0] sm:$0xff]
  %v255 = vld [vmem:[%s1 + $0x6a8] sm:$0xff]
  %v256 = vld [vmem:[%s1 + $0x6b0] sm:$0xff]
  %v257 = vld [vmem:[%s1 + $0x6b8] sm:$0xff]
  %v258 = vld [vmem:[%s1 + $0x6c0] sm:$0xff]
  %v259 = vld [vmem:[%s1 + $0x6c8] sm:$0xff]
  %v260 = vld [vmem:[%s1 + $0x6d0] sm:$0xff]
  %v261 = vld [vmem:[%s1 + $0x6d8] sm:$0xff]
  %v262 = vld [vmem:[%s1 + $0x6e0] sm:$0xff]
  %v263 = vld [vmem:[%s1 + $0x6e8] sm:$0xff]
  %v264 = vld [vmem:[%s1 + $0x6f0] sm:$0xff]
  %v265 = vld [vmem:[%s1 + $0x6f8] sm:$0xff]
  %v266 = vld [vmem:[%s1 + $0x700] sm:$0xff]
  %v267 = vld [vmem:[%s1 + $0x708] sm:$0xff]
  %v268 = vld [vmem:[%s1 + $0x710] sm:$0xff]
  %v269 = vld [vmem:[%s1 + $0x718] sm:$0xff]
  %v270 = vld [vmem:[%s1 + $0x720] sm:$0xff]
  %v271 = vld [vmem:[%s1 + $0x728] sm:$0xff]
  %v272 = vld [vmem:[%s1 + $0x730] sm:$0xff]
  %v273 = vld [vmem:[%s1 + $0x738] sm:$0xff]
  %v274 = vld [vmem:[%s1 + $0x740] sm:$0xff]
  %v275 = vld [vmem:[%s1 + $0x748] sm:$0xff]
  %v276 = vld [vmem:[%s1 + $0x750] sm:$0xff]
  %v277 = vld [vmem:[%s1 + $0x758] sm:$0xff]
  %v278 = vld [vmem:[%s1 + $0x760] sm:$0xff]
  %v279 = vld [vmem:[%s1 + $0x768] sm:$0xff]
  %v280 = vld [vmem:[%s1 + $0x770] sm:$0xff]
  %v281 = vld [vmem:[%s1 + $0x778] sm:$0xff]
  %v282 = vld [vmem:[%s1 + $0x780] sm:$0xff]
  %v283 = vld [vmem:[%s1 + $0x788] sm:$0xff]
  %v284 = vld [vmem:[%s1 + $0x790] sm:$0xff]
  %v285 = vld [vmem:[%s1 + $0x798] sm:$0xff]
  %v286 = vld [vmem:[%s1 + $0x7a0] sm:$0xff]
  %v287 = vld [vmem:[%s1 + $0x7a8] sm:$0xff]
  %v288 = vld [vmem:[%s1 + $0x7b0] sm:$0xff]
  %v289 = vld [vmem:[%s1 + $0x7b8] sm:$0xff]
  %v290 = vld [vmem:[%s1 + $0x7c0] sm:$0xff]
  %v291 = vld [vmem:[%s1 + $0x7c8] sm:$0xff]
  %v292 = vld [vmem:[%s1 + $0x7d0] sm:$0xff]
  %v293 = vld [vmem:[%s1 + $0x7d8] sm:$0xff]
  %v294 = vld [vmem:[%s1 + $0x7e0] sm:$0xff]
  %v295 = vld [vmem:[%s1 + $0x7e8] sm:$0xff]
  %v296 = vld [vmem:[%s1 + $0x7f0] sm:$0xff]
  %v297 = vld [vmem:[%s1 + $0x7f8] sm:$0xff]
  %v298 = vld [vmem:[%s2] sm:$0xf]
  %v300 = vlaneseq
  %v301 = vshrl.u32 %v300, 7
  %v302 = vsub.s32 0, %v301
  %v303 = vrot.slane %v298, %v302
  %v304 = vlaneseq
  %v305 = vshrl.u32 %v304, 7
  %v306 = vsub.s32 1, %v305
  %v307 = vrot.slane %v298, %v306
  %v308 = vlaneseq
  %v309 = vshrl.u32 %v308, 7
  %v310 = vsub.s32 2, %v309
  %v311 = vrot.slane %v298, %v310
  %v312 = vlaneseq
  %v313 = vshrl.u32 %v312, 7
  %v314 = vsub.s32 3, %v313
  %v315 = vrot.slane %v298, %v314
  %v348 = vunpack.c.l.b16 %v14
  %v349 = vunpack.c.h.b16 %v14
  %v350 = vunpack.c.l.b16 %v15
  %v351 = vunpack.c.h.b16 %v15
  %v352 = vunpack.c.l.b16 %v16
  %v353 = vunpack.c.h.b16 %v16
  %v354 = vunpack.c.l.b16 %v17
  %v355 = vunpack.c.h.b16 %v17
  %v356 = vunpack.c.l.b16 %v18
  %v357 = vunpack.c.h.b16 %v18
  %v358 = vunpack.c.l.b16 %v19
  %v359 = vunpack.c.h.b16 %v19
  %v360 = vunpack.c.l.b16 %v20
  %v361 = vunpack.c.h.b16 %v20
  %v362 = vunpack.c.l.b16 %v21
  %v363 = vunpack.c.h.b16 %v21
  %v364 = vunpack.c.l.b16 %v22
  %v365 = vunpack.c.h.b16 %v22
  %v366 = vunpack.c.l.b16 %v23
  %v367 = vunpack.c.h.b16 %v23
  %v368 = vunpack.c.l.b16 %v24
  %v369 = vunpack.c.h.b16 %v24
  %v370 = vunpack.c.l.b16 %v25
  %v371 = vunpack.c.h.b16 %v25
  %v372 = vunpack.c.l.b16 %v26
  %v373 = vunpack.c.h.b16 %v26
  %v374 = vunpack.c.l.b16 %v27
  %v375 = vunpack.c.h.b16 %v27
  %v376 = vunpack.c.l.b16 %v28
  %v377 = vunpack.c.h.b16 %v28
  %v378 = vunpack.c.l.b16 %v29
  %v379 = vunpack.c.h.b16 %v29
  %v380 = vunpack.c.l.b16 %v30
  %v381 = vunpack.c.h.b16 %v30
  %v382 = vunpack.c.l.b16 %v31
  %v383 = vunpack.c.h.b16 %v31
  %v384 = vunpack.c.l.b16 %v32
  %v385 = vunpack.c.h.b16 %v32
  %v386 = vunpack.c.l.b16 %v33
  %v387 = vunpack.c.h.b16 %v33
  %v388 = vunpack.c.l.b16 %v34
  %v389 = vunpack.c.h.b16 %v34
  %v390 = vunpack.c.l.b16 %v35
  %v391 = vunpack.c.h.b16 %v35
  %v392 = vunpack.c.l.b16 %v36
  %v393 = vunpack.c.h.b16 %v36
  %v394 = vunpack.c.l.b16 %v37
  %v395 = vunpack.c.h.b16 %v37
  %v396 = vunpack.c.l.b16 %v38
  %v397 = vunpack.c.h.b16 %v38
  %v398 = vunpack.c.l.b16 %v39
  %v399 = vunpack.c.h.b16 %v39
  %v400 = vunpack.c.l.b16 %v40
  %v401 = vunpack.c.h.b16 %v40
  %v402 = vunpack.c.l.b16 %v41
  %v403 = vunpack.c.h.b16 %v41
  %v404 = vpack.c.b16 %v356, %v348
  %v405 = vpack.c.b16 %v357, %v349
  %v406 = vpack.c.b16 %v358, %v350
  %v407 = vpack.c.b16 %v359, %v351
  %v408 = vpack.c.b16 %v360, %v352
  %v409 = vpack.c.b16 %v361, %v353
  %v410 = vpack.c.b16 %v362, %v354
  %v411 = vpack.c.b16 %v363, %v355
  %v412 = vpack.c.b16 %v372, %v364
  %v413 = vpack.c.b16 %v373, %v365
  %v414 = vpack.c.b16 %v374, %v366
  %v415 = vpack.c.b16 %v375, %v367
  %v416 = vpack.c.b16 %v376, %v368
  %v417 = vpack.c.b16 %v377, %v369
  %v418 = vpack.c.b16 %v378, %v370
  %v419 = vpack.c.b16 %v379, %v371
  %v420 = vpack.c.b16 %v388, %v380
  %v421 = vpack.c.b16 %v389, %v381
  %v422 = vpack.c.b16 %v390, %v382
  %v423 = vpack.c.b16 %v391, %v383
  %v424 = vpack.c.b16 %v392, %v384
  %v425 = vpack.c.b16 %v393, %v385
  %v426 = vpack.c.b16 %v394, %v386
  %v427 = vpack.c.b16 %v395, %v387
  %v428 = vpack.c.b16 %v396, %v396
  %v429 = vpack.c.b16 %v397, %v397
  %v430 = vpack.c.b16 %v398, %v398
  %v431 = vpack.c.b16 %v399, %v399
  %v432 = vpack.c.b16 %v400, %v400
  %v433 = vpack.c.b16 %v401, %v401
  %v434 = vpack.c.b16 %v402, %v402
  %v435 = vpack.c.b16 %v403, %v403
  %v724 = vunpack.c.l.b16 %v42
  %v725 = vunpack.c.h.b16 %v42
  %v726 = vunpack.c.l.b16 %v43
  %v727 = vunpack.c.h.b16 %v43
  %v728 = vunpack.c.l.b16 %v44
  %v729 = vunpack.c.h.b16 %v44
  %v730 = vunpack.c.l.b16 %v45
  %v731 = vunpack.c.h.b16 %v45
  %v732 = vunpack.c.l.b16 %v46
  %v733 = vunpack.c.h.b16 %v46
  %v734 = vunpack.c.l.b16 %v47
  %v735 = vunpack.c.h.b16 %v47
  %v736 = vunpack.c.l.b16 %v48
  %v737 = vunpack.c.h.b16 %v48
  %v738 = vunpack.c.l.b16 %v49
  %v739 = vunpack.c.h.b16 %v49
  %v740 = vunpack.c.l.b16 %v50
  %v741 = vunpack.c.h.b16 %v50
  %v742 = vunpack.c.l.b16 %v51
  %v743 = vunpack.c.h.b16 %v51
  %v744 = vunpack.c.l.b16 %v52
  %v745 = vunpack.c.h.b16 %v52
  %v746 = vunpack.c.l.b16 %v53
  %v747 = vunpack.c.h.b16 %v53
  %v748 = vunpack.c.l.b16 %v54
  %v749 = vunpack.c.h.b16 %v54
  %v750 = vunpack.c.l.b16 %v55
  %v751 = vunpack.c.h.b16 %v55
  %v752 = vunpack.c.l.b16 %v56
  %v753 = vunpack.c.h.b16 %v56
  %v754 = vunpack.c.l.b16 %v57
  %v755 = vunpack.c.h.b16 %v57
  %v756 = vunpack.c.l.b16 %v58
  %v757 = vunpack.c.h.b16 %v58
  %v758 = vunpack.c.l.b16 %v59
  %v759 = vunpack.c.h.b16 %v59
  %v760 = vunpack.c.l.b16 %v60
  %v761 = vunpack.c.h.b16 %v60
  %v762 = vunpack.c.l.b16 %v61
  %v763 = vunpack.c.h.b16 %v61
  %v764 = vunpack.c.l.b16 %v62
  %v765 = vunpack.c.h.b16 %v62
  %v766 = vunpack.c.l.b16 %v63
  %v767 = vunpack.c.h.b16 %v63
  %v768 = vunpack.c.l.b16 %v64
  %v769 = vunpack.c.h.b16 %v64
  %v770 = vunpack.c.l.b16 %v65
  %v771 = vunpack.c.h.b16 %v65
  %v772 = vunpack.c.l.b16 %v66
  %v773 = vunpack.c.h.b16 %v66
  %v774 = vunpack.c.l.b16 %v67
  %v775 = vunpack.c.h.b16 %v67
  %v776 = vunpack.c.l.b16 %v68
  %v777 = vunpack.c.h.b16 %v68
  %v778 = vunpack.c.l.b16 %v69
  %v779 = vunpack.c.h.b16 %v69
  %v780 = vunpack.c.l.b16 %v70
  %v781 = vunpack.c.h.b16 %v70
  %v782 = vunpack.c.l.b16 %v71
  %v783 = vunpack.c.h.b16 %v71
  %v784 = vunpack.c.l.b16 %v72
  %v785 = vunpack.c.h.b16 %v72
  %v786 = vunpack.c.l.b16 %v73
  %v787 = vunpack.c.h.b16 %v73
  %v788 = vunpack.c.l.b16 %v74
  %v789 = vunpack.c.h.b16 %v74
  %v790 = vunpack.c.l.b16 %v75
  %v791 = vunpack.c.h.b16 %v75
  %v792 = vunpack.c.l.b16 %v76
  %v793 = vunpack.c.h.b16 %v76
  %v794 = vunpack.c.l.b16 %v77
  %v795 = vunpack.c.h.b16 %v77
  %v796 = vunpack.c.l.b16 %v78
  %v797 = vunpack.c.h.b16 %v78
  %v798 = vunpack.c.l.b16 %v79
  %v799 = vunpack.c.h.b16 %v79
  %v800 = vunpack.c.l.b16 %v80
  %v801 = vunpack.c.h.b16 %v80
  %v802 = vunpack.c.l.b16 %v81
  %v803 = vunpack.c.h.b16 %v81
  %v804 = vunpack.c.l.b16 %v82
  %v805 = vunpack.c.h.b16 %v82
  %v806 = vunpack.c.l.b16 %v83
  %v807 = vunpack.c.h.b16 %v83
  %v808 = vunpack.c.l.b16 %v84
  %v809 = vunpack.c.h.b16 %v84
  %v810 = vunpack.c.l.b16 %v85
  %v811 = vunpack.c.h.b16 %v85
  %v812 = vunpack.c.l.b16 %v86
  %v813 = vunpack.c.h.b16 %v86
  %v814 = vunpack.c.l.b16 %v87
  %v815 = vunpack.c.h.b16 %v87
  %v816 = vunpack.c.l.b16 %v88
  %v817 = vunpack.c.h.b16 %v88
  %v818 = vunpack.c.l.b16 %v89
  %v819 = vunpack.c.h.b16 %v89
  %v820 = vunpack.c.l.b16 %v90
  %v821 = vunpack.c.h.b16 %v90
  %v822 = vunpack.c.l.b16 %v91
  %v823 = vunpack.c.h.b16 %v91
  %v824 = vunpack.c.l.b16 %v92
  %v825 = vunpack.c.h.b16 %v92
  %v826 = vunpack.c.l.b16 %v93
  %v827 = vunpack.c.h.b16 %v93
  %v828 = vunpack.c.l.b16 %v94
  %v829 = vunpack.c.h.b16 %v94
  %v830 = vunpack.c.l.b16 %v95
  %v831 = vunpack.c.h.b16 %v95
  %v832 = vunpack.c.l.b16 %v96
  %v833 = vunpack.c.h.b16 %v96
  %v834 = vunpack.c.l.b16 %v97
  %v835 = vunpack.c.h.b16 %v97
  %v836 = vunpack.c.l.b16 %v98
  %v837 = vunpack.c.h.b16 %v98
  %v838 = vunpack.c.l.b16 %v99
  %v839 = vunpack.c.h.b16 %v99
  %v840 = vunpack.c.l.b16 %v100
  %v841 = vunpack.c.h.b16 %v100
  %v842 = vunpack.c.l.b16 %v101
  %v843 = vunpack.c.h.b16 %v101
  %v844 = vunpack.c.l.b16 %v102
  %v845 = vunpack.c.h.b16 %v102
  %v846 = vunpack.c.l.b16 %v103
  %v847 = vunpack.c.h.b16 %v103
  %v848 = vunpack.c.l.b16 %v104
  %v849 = vunpack.c.h.b16 %v104
  %v850 = vunpack.c.l.b16 %v105
  %v851 = vunpack.c.h.b16 %v105
  %v852 = vunpack.c.l.b16 %v106
  %v853 = vunpack.c.h.b16 %v106
  %v854 = vunpack.c.l.b16 %v107
  %v855 = vunpack.c.h.b16 %v107
  %v856 = vunpack.c.l.b16 %v108
  %v857 = vunpack.c.h.b16 %v108
  %v858 = vunpack.c.l.b16 %v109
  %v859 = vunpack.c.h.b16 %v109
  %v860 = vunpack.c.l.b16 %v110
  %v861 = vunpack.c.h.b16 %v110
  %v862 = vunpack.c.l.b16 %v111
  %v863 = vunpack.c.h.b16 %v111
  %v864 = vunpack.c.l.b16 %v112
  %v865 = vunpack.c.h.b16 %v112
  %v866 = vunpack.c.l.b16 %v113
  %v867 = vunpack.c.h.b16 %v113
  %v868 = vunpack.c.l.b16 %v114
  %v869 = vunpack.c.h.b16 %v114
  %v870 = vunpack.c.l.b16 %v115
  %v871 = vunpack.c.h.b16 %v115
  %v872 = vunpack.c.l.b16 %v116
  %v873 = vunpack.c.h.b16 %v116
  %v874 = vunpack.c.l.b16 %v117
  %v875 = vunpack.c.h.b16 %v117
  %v876 = vunpack.c.l.b16 %v118
  %v877 = vunpack.c.h.b16 %v118
  %v878 = vunpack.c.l.b16 %v119
  %v879 = vunpack.c.h.b16 %v119
  %v880 = vunpack.c.l.b16 %v120
  %v881 = vunpack.c.h.b16 %v120
  %v882 = vunpack.c.l.b16 %v121
  %v883 = vunpack.c.h.b16 %v121
  %v884 = vunpack.c.l.b16 %v122
  %v885 = vunpack.c.h.b16 %v122
  %v886 = vunpack.c.l.b16 %v123
  %v887 = vunpack.c.h.b16 %v123
  %v888 = vunpack.c.l.b16 %v124
  %v889 = vunpack.c.h.b16 %v124
  %v890 = vunpack.c.l.b16 %v125
  %v891 = vunpack.c.h.b16 %v125
  %v892 = vunpack.c.l.b16 %v126
  %v893 = vunpack.c.h.b16 %v126
  %v894 = vunpack.c.l.b16 %v127
  %v895 = vunpack.c.h.b16 %v127
  %v896 = vunpack.c.l.b16 %v128
  %v897 = vunpack.c.h.b16 %v128
  %v898 = vunpack.c.l.b16 %v129
  %v899 = vunpack.c.h.b16 %v129
  %v900 = vunpack.c.l.b16 %v130
  %v901 = vunpack.c.h.b16 %v130
  %v902 = vunpack.c.l.b16 %v131
  %v903 = vunpack.c.h.b16 %v131
  %v904 = vunpack.c.l.b16 %v132
  %v905 = vunpack.c.h.b16 %v132
  %v906 = vunpack.c.l.b16 %v133
  %v907 = vunpack.c.h.b16 %v133
  %v908 = vunpack.c.l.b16 %v134
  %v909 = vunpack.c.h.b16 %v134
  %v910 = vunpack.c.l.b16 %v135
  %v911 = vunpack.c.h.b16 %v135
  %v912 = vunpack.c.l.b16 %v136
  %v913 = vunpack.c.h.b16 %v136
  %v914 = vunpack.c.l.b16 %v137
  %v915 = vunpack.c.h.b16 %v137
  %v916 = vunpack.c.l.b16 %v138
  %v917 = vunpack.c.h.b16 %v138
  %v918 = vunpack.c.l.b16 %v139
  %v919 = vunpack.c.h.b16 %v139
  %v920 = vunpack.c.l.b16 %v140
  %v921 = vunpack.c.h.b16 %v140
  %v922 = vunpack.c.l.b16 %v141
  %v923 = vunpack.c.h.b16 %v141
  %v924 = vunpack.c.l.b16 %v142
  %v925 = vunpack.c.h.b16 %v142
  %v926 = vunpack.c.l.b16 %v143
  %v927 = vunpack.c.h.b16 %v143
  %v928 = vunpack.c.l.b16 %v144
  %v929 = vunpack.c.h.b16 %v144
  %v930 = vunpack.c.l.b16 %v145
  %v931 = vunpack.c.h.b16 %v145
  %v932 = vunpack.c.l.b16 %v146
  %v933 = vunpack.c.h.b16 %v146
  %v934 = vunpack.c.l.b16 %v147
  %v935 = vunpack.c.h.b16 %v147
  %v936 = vunpack.c.l.b16 %v148
  %v937 = vunpack.c.h.b16 %v148
  %v938 = vunpack.c.l.b16 %v149
  %v939 = vunpack.c.h.b16 %v149
  %v940 = vunpack.c.l.b16 %v150
  %v941 = vunpack.c.h.b16 %v150
  %v942 = vunpack.c.l.b16 %v151
  %v943 = vunpack.c.h.b16 %v151
  %v944 = vunpack.c.l.b16 %v152
  %v945 = vunpack.c.h.b16 %v152
  %v946 = vunpack.c.l.b16 %v153
  %v947 = vunpack.c.h.b16 %v153
  %v948 = vunpack.c.l.b16 %v154
  %v949 = vunpack.c.h.b16 %v154
  %v950 = vunpack.c.l.b16 %v155
  %v951 = vunpack.c.h.b16 %v155
  %v952 = vunpack.c.l.b16 %v156
  %v953 = vunpack.c.h.b16 %v156
  %v954 = vunpack.c.l.b16 %v157
  %v955 = vunpack.c.h.b16 %v157
  %v956 = vunpack.c.l.b16 %v158
  %v957 = vunpack.c.h.b16 %v158
  %v958 = vunpack.c.l.b16 %v159
  %v959 = vunpack.c.h.b16 %v159
  %v960 = vunpack.c.l.b16 %v160
  %v961 = vunpack.c.h.b16 %v160
  %v962 = vunpack.c.l.b16 %v161
  %v963 = vunpack.c.h.b16 %v161
  %v964 = vunpack.c.l.b16 %v162
  %v965 = vunpack.c.h.b16 %v162
  %v966 = vunpack.c.l.b16 %v163
  %v967 = vunpack.c.h.b16 %v163
  %v968 = vunpack.c.l.b16 %v164
  %v969 = vunpack.c.h.b16 %v164
  %v970 = vunpack.c.l.b16 %v165
  %v971 = vunpack.c.h.b16 %v165
  %v972 = vunpack.c.l.b16 %v166
  %v973 = vunpack.c.h.b16 %v166
  %v974 = vunpack.c.l.b16 %v167
  %v975 = vunpack.c.h.b16 %v167
  %v976 = vunpack.c.l.b16 %v168
  %v977 = vunpack.c.h.b16 %v168
  %v978 = vunpack.c.l.b16 %v169
  %v979 = vunpack.c.h.b16 %v169
  %v980 = vunpack.c.l.b16 %v170
  %v981 = vunpack.c.h.b16 %v170
  %v982 = vunpack.c.l.b16 %v171
  %v983 = vunpack.c.h.b16 %v171
  %v984 = vunpack.c.l.b16 %v172
  %v985 = vunpack.c.h.b16 %v172
  %v986 = vunpack.c.l.b16 %v173
  %v987 = vunpack.c.h.b16 %v173
  %v988 = vunpack.c.l.b16 %v174
  %v989 = vunpack.c.h.b16 %v174
  %v990 = vunpack.c.l.b16 %v175
  %v991 = vunpack.c.h.b16 %v175
  %v992 = vunpack.c.l.b16 %v176
  %v993 = vunpack.c.h.b16 %v176
  %v994 = vunpack.c.l.b16 %v177
  %v995 = vunpack.c.h.b16 %v177
  %v996 = vunpack.c.l.b16 %v178
  %v997 = vunpack.c.h.b16 %v178
  %v998 = vunpack.c.l.b16 %v179
  %v999 = vunpack.c.h.b16 %v179
  %v1000 = vunpack.c.l.b16 %v180
  %v1001 = vunpack.c.h.b16 %v180
  %v1002 = vunpack.c.l.b16 %v181
  %v1003 = vunpack.c.h.b16 %v181
  %v1004 = vunpack.c.l.b16 %v182
  %v1005 = vunpack.c.h.b16 %v182
  %v1006 = vunpack.c.l.b16 %v183
  %v1007 = vunpack.c.h.b16 %v183
  %v1008 = vunpack.c.l.b16 %v184
  %v1009 = vunpack.c.h.b16 %v184
  %v1010 = vunpack.c.l.b16 %v185
  %v1011 = vunpack.c.h.b16 %v185
  %v1012 = vunpack.c.l.b16 %v186
  %v1013 = vunpack.c.h.b16 %v186
  %v1014 = vunpack.c.l.b16 %v187
  %v1015 = vunpack.c.h.b16 %v187
  %v1016 = vunpack.c.l.b16 %v188
  %v1017 = vunpack.c.h.b16 %v188
  %v1018 = vunpack.c.l.b16 %v189
  %v1019 = vunpack.c.h.b16 %v189
  %v1020 = vunpack.c.l.b16 %v190
  %v1021 = vunpack.c.h.b16 %v190
  %v1022 = vunpack.c.l.b16 %v191
  %v1023 = vunpack.c.h.b16 %v191
  %v1024 = vunpack.c.l.b16 %v192
  %v1025 = vunpack.c.h.b16 %v192
  %v1026 = vunpack.c.l.b16 %v193
  %v1027 = vunpack.c.h.b16 %v193
  %v1028 = vunpack.c.l.b16 %v194
  %v1029 = vunpack.c.h.b16 %v194
  %v1030 = vunpack.c.l.b16 %v195
  %v1031 = vunpack.c.h.b16 %v195
  %v1032 = vunpack.c.l.b16 %v196
  %v1033 = vunpack.c.h.b16 %v196
  %v1034 = vunpack.c.l.b16 %v197
  %v1035 = vunpack.c.h.b16 %v197
  %v1036 = vunpack.c.l.b16 %v198
  %v1037 = vunpack.c.h.b16 %v198
  %v1038 = vunpack.c.l.b16 %v199
  %v1039 = vunpack.c.h.b16 %v199
  %v1040 = vunpack.c.l.b16 %v200
  %v1041 = vunpack.c.h.b16 %v200
  %v1042 = vunpack.c.l.b16 %v201
  %v1043 = vunpack.c.h.b16 %v201
  %v1044 = vunpack.c.l.b16 %v202
  %v1045 = vunpack.c.h.b16 %v202
  %v1046 = vunpack.c.l.b16 %v203
  %v1047 = vunpack.c.h.b16 %v203
  %v1048 = vunpack.c.l.b16 %v204
  %v1049 = vunpack.c.h.b16 %v204
  %v1050 = vunpack.c.l.b16 %v205
  %v1051 = vunpack.c.h.b16 %v205
  %v1052 = vunpack.c.l.b16 %v206
  %v1053 = vunpack.c.h.b16 %v206
  %v1054 = vunpack.c.l.b16 %v207
  %v1055 = vunpack.c.h.b16 %v207
  %v1056 = vunpack.c.l.b16 %v208
  %v1057 = vunpack.c.h.b16 %v208
  %v1058 = vunpack.c.l.b16 %v209
  %v1059 = vunpack.c.h.b16 %v209
  %v1060 = vunpack.c.l.b16 %v210
  %v1061 = vunpack.c.h.b16 %v210
  %v1062 = vunpack.c.l.b16 %v211
  %v1063 = vunpack.c.h.b16 %v211
  %v1064 = vunpack.c.l.b16 %v212
  %v1065 = vunpack.c.h.b16 %v212
  %v1066 = vunpack.c.l.b16 %v213
  %v1067 = vunpack.c.h.b16 %v213
  %v1068 = vunpack.c.l.b16 %v214
  %v1069 = vunpack.c.h.b16 %v214
  %v1070 = vunpack.c.l.b16 %v215
  %v1071 = vunpack.c.h.b16 %v215
  %v1072 = vunpack.c.l.b16 %v216
  %v1073 = vunpack.c.h.b16 %v216
  %v1074 = vunpack.c.l.b16 %v217
  %v1075 = vunpack.c.h.b16 %v217
  %v1076 = vunpack.c.l.b16 %v218
  %v1077 = vunpack.c.h.b16 %v218
  %v1078 = vunpack.c.l.b16 %v219
  %v1079 = vunpack.c.h.b16 %v219
  %v1080 = vunpack.c.l.b16 %v220
  %v1081 = vunpack.c.h.b16 %v220
  %v1082 = vunpack.c.l.b16 %v221
  %v1083 = vunpack.c.h.b16 %v221
  %v1084 = vunpack.c.l.b16 %v222
  %v1085 = vunpack.c.h.b16 %v222
  %v1086 = vunpack.c.l.b16 %v223
  %v1087 = vunpack.c.h.b16 %v223
  %v1088 = vunpack.c.l.b16 %v224
  %v1089 = vunpack.c.h.b16 %v224
  %v1090 = vunpack.c.l.b16 %v225
  %v1091 = vunpack.c.h.b16 %v225
  %v1092 = vunpack.c.l.b16 %v226
  %v1093 = vunpack.c.h.b16 %v226
  %v1094 = vunpack.c.l.b16 %v227
  %v1095 = vunpack.c.h.b16 %v227
  %v1096 = vunpack.c.l.b16 %v228
  %v1097 = vunpack.c.h.b16 %v228
  %v1098 = vunpack.c.l.b16 %v229
  %v1099 = vunpack.c.h.b16 %v229
  %v1100 = vunpack.c.l.b16 %v230
  %v1101 = vunpack.c.h.b16 %v230
  %v1102 = vunpack.c.l.b16 %v231
  %v1103 = vunpack.c.h.b16 %v231
  %v1104 = vunpack.c.l.b16 %v232
  %v1105 = vunpack.c.h.b16 %v232
  %v1106 = vunpack.c.l.b16 %v233
  %v1107 = vunpack.c.h.b16 %v233
  %v1108 = vunpack.c.l.b16 %v234
  %v1109 = vunpack.c.h.b16 %v234
  %v1110 = vunpack.c.l.b16 %v235
  %v1111 = vunpack.c.h.b16 %v235
  %v1112 = vunpack.c.l.b16 %v236
  %v1113 = vunpack.c.h.b16 %v236
  %v1114 = vunpack.c.l.b16 %v237
  %v1115 = vunpack.c.h.b16 %v237
  %v1116 = vunpack.c.l.b16 %v238
  %v1117 = vunpack.c.h.b16 %v238
  %v1118 = vunpack.c.l.b16 %v239
  %v1119 = vunpack.c.h.b16 %v239
  %v1120 = vunpack.c.l.b16 %v240
  %v1121 = vunpack.c.h.b16 %v240
  %v1122 = vunpack.c.l.b16 %v241
  %v1123 = vunpack.c.h.b16 %v241
  %v1124 = vunpack.c.l.b16 %v242
  %v1125 = vunpack.c.h.b16 %v242
  %v1126 = vunpack.c.l.b16 %v243
  %v1127 = vunpack.c.h.b16 %v243
  %v1128 = vunpack.c.l.b16 %v244
  %v1129 = vunpack.c.h.b16 %v244
  %v1130 = vunpack.c.l.b16 %v245
  %v1131 = vunpack.c.h.b16 %v245
  %v1132 = vunpack.c.l.b16 %v246
  %v1133 = vunpack.c.h.b16 %v246
  %v1134 = vunpack.c.l.b16 %v247
  %v1135 = vunpack.c.h.b16 %v247
  %v1136 = vunpack.c.l.b16 %v248
  %v1137 = vunpack.c.h.b16 %v248
  %v1138 = vunpack.c.l.b16 %v249
  %v1139 = vunpack.c.h.b16 %v249
  %v1140 = vunpack.c.l.b16 %v250
  %v1141 = vunpack.c.h.b16 %v250
  %v1142 = vunpack.c.l.b16 %v251
  %v1143 = vunpack.c.h.b16 %v251
  %v1144 = vunpack.c.l.b16 %v252
  %v1145 = vunpack.c.h.b16 %v252
  %v1146 = vunpack.c.l.b16 %v253
  %v1147 = vunpack.c.h.b16 %v253
  %v1148 = vunpack.c.l.b16 %v254
  %v1149 = vunpack.c.h.b16 %v254
  %v1150 = vunpack.c.l.b16 %v255
  %v1151 = vunpack.c.h.b16 %v255
  %v1152 = vunpack.c.l.b16 %v256
  %v1153 = vunpack.c.h.b16 %v256
  %v1154 = vunpack.c.l.b16 %v257
  %v1155 = vunpack.c.h.b16 %v257
  %v1156 = vunpack.c.l.b16 %v258
  %v1157 = vunpack.c.h.b16 %v258
  %v1158 = vunpack.c.l.b16 %v259
  %v1159 = vunpack.c.h.b16 %v259
  %v1160 = vunpack.c.l.b16 %v260
  %v1161 = vunpack.c.h.b16 %v260
  %v1162 = vunpack.c.l.b16 %v261
  %v1163 = vunpack.c.h.b16 %v261
  %v1164 = vunpack.c.l.b16 %v262
  %v1165 = vunpack.c.h.b16 %v262
  %v1166 = vunpack.c.l.b16 %v263
  %v1167 = vunpack.c.h.b16 %v263
  %v1168 = vunpack.c.l.b16 %v264
  %v1169 = vunpack.c.h.b16 %v264
  %v1170 = vunpack.c.l.b16 %v265
  %v1171 = vunpack.c.h.b16 %v265
  %v1172 = vunpack.c.l.b16 %v266
  %v1173 = vunpack.c.h.b16 %v266
  %v1174 = vunpack.c.l.b16 %v267
  %v1175 = vunpack.c.h.b16 %v267
  %v1176 = vunpack.c.l.b16 %v268
  %v1177 = vunpack.c.h.b16 %v268
  %v1178 = vunpack.c.l.b16 %v269
  %v1179 = vunpack.c.h.b16 %v269
  %v1180 = vunpack.c.l.b16 %v270
  %v1181 = vunpack.c.h.b16 %v270
  %v1182 = vunpack.c.l.b16 %v271
  %v1183 = vunpack.c.h.b16 %v271
  %v1184 = vunpack.c.l.b16 %v272
  %v1185 = vunpack.c.h.b16 %v272
  %v1186 = vunpack.c.l.b16 %v273
  %v1187 = vunpack.c.h.b16 %v273
  %v1188 = vunpack.c.l.b16 %v274
  %v1189 = vunpack.c.h.b16 %v274
  %v1190 = vunpack.c.l.b16 %v275
  %v1191 = vunpack.c.h.b16 %v275
  %v1192 = vunpack.c.l.b16 %v276
  %v1193 = vunpack.c.h.b16 %v276
  %v1194 = vunpack.c.l.b16 %v277
  %v1195 = vunpack.c.h.b16 %v277
  %v1196 = vunpack.c.l.b16 %v278
  %v1197 = vunpack.c.h.b16 %v278
  %v1198 = vunpack.c.l.b16 %v279
  %v1199 = vunpack.c.h.b16 %v279
  %v1200 = vunpack.c.l.b16 %v280
  %v1201 = vunpack.c.h.b16 %v280
  %v1202 = vunpack.c.l.b16 %v281
  %v1203 = vunpack.c.h.b16 %v281
  %v1204 = vunpack.c.l.b16 %v282
  %v1205 = vunpack.c.h.b16 %v282
  %v1206 = vunpack.c.l.b16 %v283
  %v1207 = vunpack.c.h.b16 %v283
  %v1208 = vunpack.c.l.b16 %v284
  %v1209 = vunpack.c.h.b16 %v284
  %v1210 = vunpack.c.l.b16 %v285
  %v1211 = vunpack.c.h.b16 %v285
  %v1212 = vunpack.c.l.b16 %v286
  %v1213 = vunpack.c.h.b16 %v286
  %v1214 = vunpack.c.l.b16 %v287
  %v1215 = vunpack.c.h.b16 %v287
  %v1216 = vunpack.c.l.b16 %v288
  %v1217 = vunpack.c.h.b16 %v288
  %v1218 = vunpack.c.l.b16 %v289
  %v1219 = vunpack.c.h.b16 %v289
  %v1220 = vunpack.c.l.b16 %v290
  %v1221 = vunpack.c.h.b16 %v290
  %v1222 = vunpack.c.l.b16 %v291
  %v1223 = vunpack.c.h.b16 %v291
  %v1224 = vunpack.c.l.b16 %v292
  %v1225 = vunpack.c.h.b16 %v292
  %v1226 = vunpack.c.l.b16 %v293
  %v1227 = vunpack.c.h.b16 %v293
  %v1228 = vunpack.c.l.b16 %v294
  %v1229 = vunpack.c.h.b16 %v294
  %v1230 = vunpack.c.l.b16 %v295
  %v1231 = vunpack.c.h.b16 %v295
  %v1232 = vunpack.c.l.b16 %v296
  %v1233 = vunpack.c.h.b16 %v296
  %v1234 = vunpack.c.l.b16 %v297
  %v1235 = vunpack.c.h.b16 %v297
  %v1236 = vpack.c.b16 %v728, %v724
  %v1237 = vpack.c.b16 %v729, %v725
  %v1238 = vpack.c.b16 %v730, %v726
  %v1239 = vpack.c.b16 %v731, %v727
  %v1240 = vpack.c.b16 %v736, %v732
  %v1241 = vpack.c.b16 %v737, %v733
  %v1242 = vpack.c.b16 %v738, %v734
  %v1243 = vpack.c.b16 %v739, %v735
  %v1244 = vpack.c.b16 %v744, %v740
  %v1245 = vpack.c.b16 %v745, %v741
  %v1246 = vpack.c.b16 %v746, %v742
  %v1247 = vpack.c.b16 %v747, %v743
  %v1248 = vpack.c.b16 %v752, %v748
  %v1249 = vpack.c.b16 %v753, %v749
  %v1250 = vpack.c.b16 %v754, %v750
  %v1251 = vpack.c.b16 %v755, %v751
  %v1252 = vpack.c.b16 %v760, %v756
  %v1253 = vpack.c.b16 %v761, %v757
  %v1254 = vpack.c.b16 %v762, %v758
  %v1255 = vpack.c.b16 %v763, %v759
  %v1256 = vpack.c.b16 %v768, %v764
  %v1257 = vpack.c.b16 %v769, %v765
  %v1258 = vpack.c.b16 %v770, %v766
  %v1259 = vpack.c.b16 %v771, %v767
  %v1260 = vpack.c.b16 %v776, %v772
  %v1261 = vpack.c.b16 %v777, %v773
  %v1262 = vpack.c.b16 %v778, %v774
  %v1263 = vpack.c.b16 %v779, %v775
  %v1264 = vpack.c.b16 %v784, %v780
  %v1265 = vpack.c.b16 %v785, %v781
  %v1266 = vpack.c.b16 %v786, %v782
  %v1267 = vpack.c.b16 %v787, %v783
  %v1268 = vpack.c.b16 %v792, %v788
  %v1269 = vpack.c.b16 %v793, %v789
  %v1270 = vpack.c.b16 %v794, %v790
  %v1271 = vpack.c.b16 %v795, %v791
  %v1272 = vpack.c.b16 %v800, %v796
  %v1273 = vpack.c.b16 %v801, %v797
  %v1274 = vpack.c.b16 %v802, %v798
  %v1275 = vpack.c.b16 %v803, %v799
  %v1276 = vpack.c.b16 %v808, %v804
  %v1277 = vpack.c.b16 %v809, %v805
  %v1278 = vpack.c.b16 %v810, %v806
  %v1279 = vpack.c.b16 %v811, %v807
  %v1280 = vpack.c.b16 %v816, %v812
  %v1281 = vpack.c.b16 %v817, %v813
  %v1282 = vpack.c.b16 %v818, %v814
  %v1283 = vpack.c.b16 %v819, %v815
  %v1284 = vpack.c.b16 %v824, %v820
  %v1285 = vpack.c.b16 %v825, %v821
  %v1286 = vpack.c.b16 %v826, %v822
  %v1287 = vpack.c.b16 %v827, %v823
  %v1288 = vpack.c.b16 %v832, %v828
  %v1289 = vpack.c.b16 %v833, %v829
  %v1290 = vpack.c.b16 %v834, %v830
  %v1291 = vpack.c.b16 %v835, %v831
  %v1292 = vpack.c.b16 %v840, %v836
  %v1293 = vpack.c.b16 %v841, %v837
  %v1294 = vpack.c.b16 %v842, %v838
  %v1295 = vpack.c.b16 %v843, %v839
  %v1296 = vpack.c.b16 %v848, %v844
  %v1297 = vpack.c.b16 %v849, %v845
  %v1298 = vpack.c.b16 %v850, %v846
  %v1299 = vpack.c.b16 %v851, %v847
  %v1300 = vpack.c.b16 %v856, %v852
  %v1301 = vpack.c.b16 %v857, %v853
  %v1302 = vpack.c.b16 %v858, %v854
  %v1303 = vpack.c.b16 %v859, %v855
  %v1304 = vpack.c.b16 %v864, %v860
  %v1305 = vpack.c.b16 %v865, %v861
  %v1306 = vpack.c.b16 %v866, %v862
  %v1307 = vpack.c.b16 %v867, %v863
  %v1308 = vpack.c.b16 %v872, %v868
  %v1309 = vpack.c.b16 %v873, %v869
  %v1310 = vpack.c.b16 %v874, %v870
  %v1311 = vpack.c.b16 %v875, %v871
  %v1312 = vpack.c.b16 %v880, %v876
  %v1313 = vpack.c.b16 %v881, %v877
  %v1314 = vpack.c.b16 %v882, %v878
  %v1315 = vpack.c.b16 %v883, %v879
  %v1316 = vpack.c.b16 %v888, %v884
  %v1317 = vpack.c.b16 %v889, %v885
  %v1318 = vpack.c.b16 %v890, %v886
  %v1319 = vpack.c.b16 %v891, %v887
  %v1320 = vpack.c.b16 %v896, %v892
  %v1321 = vpack.c.b16 %v897, %v893
  %v1322 = vpack.c.b16 %v898, %v894
  %v1323 = vpack.c.b16 %v899, %v895
  %v1324 = vpack.c.b16 %v904, %v900
  %v1325 = vpack.c.b16 %v905, %v901
  %v1326 = vpack.c.b16 %v906, %v902
  %v1327 = vpack.c.b16 %v907, %v903
  %v1328 = vpack.c.b16 %v912, %v908
  %v1329 = vpack.c.b16 %v913, %v909
  %v1330 = vpack.c.b16 %v914, %v910
  %v1331 = vpack.c.b16 %v915, %v911
  %v1332 = vpack.c.b16 %v920, %v916
  %v1333 = vpack.c.b16 %v921, %v917
  %v1334 = vpack.c.b16 %v922, %v918
  %v1335 = vpack.c.b16 %v923, %v919
  %v1336 = vpack.c.b16 %v928, %v924
  %v1337 = vpack.c.b16 %v929, %v925
  %v1338 = vpack.c.b16 %v930, %v926
  %v1339 = vpack.c.b16 %v931, %v927
  %v1340 = vpack.c.b16 %v936, %v932
  %v1341 = vpack.c.b16 %v937, %v933
  %v1342 = vpack.c.b16 %v938, %v934
  %v1343 = vpack.c.b16 %v939, %v935
  %v1344 = vpack.c.b16 %v944, %v940
  %v1345 = vpack.c.b16 %v945, %v941
  %v1346 = vpack.c.b16 %v946, %v942
  %v1347 = vpack.c.b16 %v947, %v943
  %v1348 = vpack.c.b16 %v952, %v948
  %v1349 = vpack.c.b16 %v953, %v949
  %v1350 = vpack.c.b16 %v954, %v950
  %v1351 = vpack.c.b16 %v955, %v951
  %v1352 = vpack.c.b16 %v960, %v956
  %v1353 = vpack.c.b16 %v961, %v957
  %v1354 = vpack.c.b16 %v962, %v958
  %v1355 = vpack.c.b16 %v963, %v959
  %v1356 = vpack.c.b16 %v968, %v964
  %v1357 = vpack.c.b16 %v969, %v965
  %v1358 = vpack.c.b16 %v970, %v966
  %v1359 = vpack.c.b16 %v971, %v967
  %v1360 = vpack.c.b16 %v976, %v972
  %v1361 = vpack.c.b16 %v977, %v973
  %v1362 = vpack.c.b16 %v978, %v974
  %v1363 = vpack.c.b16 %v979, %v975
  %v1364 = vpack.c.b16 %v984, %v980
  %v1365 = vpack.c.b16 %v985, %v981
  %v1366 = vpack.c.b16 %v986, %v982
  %v1367 = vpack.c.b16 %v987, %v983
  %v1368 = vpack.c.b16 %v992, %v988
  %v1369 = vpack.c.b16 %v993, %v989
  %v1370 = vpack.c.b16 %v994, %v990
  %v1371 = vpack.c.b16 %v995, %v991
  %v1372 = vpack.c.b16 %v1000, %v996
  %v1373 = vpack.c.b16 %v1001, %v997
  %v1374 = vpack.c.b16 %v1002, %v998
  %v1375 = vpack.c.b16 %v1003, %v999
  %v1376 = vpack.c.b16 %v1008, %v1004
  %v1377 = vpack.c.b16 %v1009, %v1005
  %v1378 = vpack.c.b16 %v1010, %v1006
  %v1379 = vpack.c.b16 %v1011, %v1007
  %v1380 = vpack.c.b16 %v1016, %v1012
  %v1381 = vpack.c.b16 %v1017, %v1013
  %v1382 = vpack.c.b16 %v1018, %v1014
  %v1383 = vpack.c.b16 %v1019, %v1015
  %v1384 = vpack.c.b16 %v1024, %v1020
  %v1385 = vpack.c.b16 %v1025, %v1021
  %v1386 = vpack.c.b16 %v1026, %v1022
  %v1387 = vpack.c.b16 %v1027, %v1023
  %v1388 = vpack.c.b16 %v1032, %v1028
  %v1389 = vpack.c.b16 %v1033, %v1029
  %v1390 = vpack.c.b16 %v1034, %v1030
  %v1391 = vpack.c.b16 %v1035, %v1031
  %v1392 = vpack.c.b16 %v1040, %v1036
  %v1393 = vpack.c.b16 %v1041, %v1037
  %v1394 = vpack.c.b16 %v1042, %v1038
  %v1395 = vpack.c.b16 %v1043, %v1039
  %v1396 = vpack.c.b16 %v1048, %v1044
  %v1397 = vpack.c.b16 %v1049, %v1045
  %v1398 = vpack.c.b16 %v1050, %v1046
  %v1399 = vpack.c.b16 %v1051, %v1047
  %v1400 = vpack.c.b16 %v1056, %v1052
  %v1401 = vpack.c.b16 %v1057, %v1053
  %v1402 = vpack.c.b16 %v1058, %v1054
  %v1403 = vpack.c.b16 %v1059, %v1055
  %v1404 = vpack.c.b16 %v1064, %v1060
  %v1405 = vpack.c.b16 %v1065, %v1061
  %v1406 = vpack.c.b16 %v1066, %v1062
  %v1407 = vpack.c.b16 %v1067, %v1063
  %v1408 = vpack.c.b16 %v1072, %v1068
  %v1409 = vpack.c.b16 %v1073, %v1069
  %v1410 = vpack.c.b16 %v1074, %v1070
  %v1411 = vpack.c.b16 %v1075, %v1071
  %v1412 = vpack.c.b16 %v1080, %v1076
  %v1413 = vpack.c.b16 %v1081, %v1077
  %v1414 = vpack.c.b16 %v1082, %v1078
  %v1415 = vpack.c.b16 %v1083, %v1079
  %v1416 = vpack.c.b16 %v1088, %v1084
  %v1417 = vpack.c.b16 %v1089, %v1085
  %v1418 = vpack.c.b16 %v1090, %v1086
  %v1419 = vpack.c.b16 %v1091, %v1087
  %v1420 = vpack.c.b16 %v1096, %v1092
  %v1421 = vpack.c.b16 %v1097, %v1093
  %v1422 = vpack.c.b16 %v1098, %v1094
  %v1423 = vpack.c.b16 %v1099, %v1095
  %v1424 = vpack.c.b16 %v1104, %v1100
  %v1425 = vpack.c.b16 %v1105, %v1101
  %v1426 = vpack.c.b16 %v1106, %v1102
  %v1427 = vpack.c.b16 %v1107, %v1103
  %v1428 = vpack.c.b16 %v1112, %v1108
  %v1429 = vpack.c.b16 %v1113, %v1109
  %v1430 = vpack.c.b16 %v1114, %v1110
  %v1431 = vpack.c.b16 %v1115, %v1111
  %v1432 = vpack.c.b16 %v1120, %v1116
  %v1433 = vpack.c.b16 %v1121, %v1117
  %v1434 = vpack.c.b16 %v1122, %v1118
  %v1435 = vpack.c.b16 %v1123, %v1119
  %v1436 = vpack.c.b16 %v1128, %v1124
  %v1437 = vpack.c.b16 %v1129, %v1125
  %v1438 = vpack.c.b16 %v1130, %v1126
  %v1439 = vpack.c.b16 %v1131, %v1127
  %v1440 = vpack.c.b16 %v1136, %v1132
  %v1441 = vpack.c.b16 %v1137, %v1133
  %v1442 = vpack.c.b16 %v1138, %v1134
  %v1443 = vpack.c.b16 %v1139, %v1135
  %v1444 = vpack.c.b16 %v1144, %v1140
  %v1445 = vpack.c.b16 %v1145, %v1141
  %v1446 = vpack.c.b16 %v1146, %v1142
  %v1447 = vpack.c.b16 %v1147, %v1143
  %v1448 = vpack.c.b16 %v1152, %v1148
  %v1449 = vpack.c.b16 %v1153, %v1149
  %v1450 = vpack.c.b16 %v1154, %v1150
  %v1451 = vpack.c.b16 %v1155, %v1151
  %v1452 = vpack.c.b16 %v1160, %v1156
  %v1453 = vpack.c.b16 %v1161, %v1157
  %v1454 = vpack.c.b16 %v1162, %v1158
  %v1455 = vpack.c.b16 %v1163, %v1159
  %v1456 = vpack.c.b16 %v1168, %v1164
  %v1457 = vpack.c.b16 %v1169, %v1165
  %v1458 = vpack.c.b16 %v1170, %v1166
  %v1459 = vpack.c.b16 %v1171, %v1167
  %v1460 = vpack.c.b16 %v1176, %v1172
  %v1461 = vpack.c.b16 %v1177, %v1173
  %v1462 = vpack.c.b16 %v1178, %v1174
  %v1463 = vpack.c.b16 %v1179, %v1175
  %v1464 = vpack.c.b16 %v1184, %v1180
  %v1465 = vpack.c.b16 %v1185, %v1181
  %v1466 = vpack.c.b16 %v1186, %v1182
  %v1467 = vpack.c.b16 %v1187, %v1183
  %v1468 = vpack.c.b16 %v1192, %v1188
  %v1469 = vpack.c.b16 %v1193, %v1189
  %v1470 = vpack.c.b16 %v1194, %v1190
  %v1471 = vpack.c.b16 %v1195, %v1191
  %v1472 = vpack.c.b16 %v1200, %v1196
  %v1473 = vpack.c.b16 %v1201, %v1197
  %v1474 = vpack.c.b16 %v1202, %v1198
  %v1475 = vpack.c.b16 %v1203, %v1199
  %v1476 = vpack.c.b16 %v1208, %v1204
  %v1477 = vpack.c.b16 %v1209, %v1205
  %v1478 = vpack.c.b16 %v1210, %v1206
  %v1479 = vpack.c.b16 %v1211, %v1207
  %v1480 = vpack.c.b16 %v1216, %v1212
  %v1481 = vpack.c.b16 %v1217, %v1213
  %v1482 = vpack.c.b16 %v1218, %v1214
  %v1483 = vpack.c.b16 %v1219, %v1215
  %v1484 = vpack.c.b16 %v1224, %v1220
  %v1485 = vpack.c.b16 %v1225, %v1221
  %v1486 = vpack.c.b16 %v1226, %v1222
  %v1487 = vpack.c.b16 %v1227, %v1223
  %v1488 = vpack.c.b16 %v1232, %v1228
  %v1489 = vpack.c.b16 %v1233, %v1229
  %v1490 = vpack.c.b16 %v1234, %v1230
  %v1491 = vpack.c.b16 %v1235, %v1231
  %1748 = vmatprep.subr.bf16.mxu0 %v1237
  %1749 = vmatpush1.bf16.msra.mxu0 %v1236
  %1750 = vmatprep.subr.bf16.mxu0 %v1241
  %1751 = vmatpush1.bf16.msra.mxu0 %v1240
  %1752 = vmatprep.subr.bf16.mxu0 %v1245
  %1753 = vmatpush1.bf16.msra.mxu0 %v1244
  %1754 = vmatprep.subr.bf16.mxu0 %v1249
  %1755 = vmatpush1.bf16.msra.mxu0 %v1248
  %1756 = vmatprep.subr.bf16.mxu0 %v1253
  %1757 = vmatpush1.bf16.msra.mxu0 %v1252
  %1758 = vmatprep.subr.bf16.mxu0 %v1257
  %1759 = vmatpush1.bf16.msra.mxu0 %v1256
  %1760 = vmatprep.subr.bf16.mxu0 %v1261
  %1761 = vmatpush1.bf16.msra.mxu0 %v1260
  %1762 = vmatprep.subr.bf16.mxu0 %v1265
  %1763 = vmatpush1.bf16.msra.mxu0 %v1264
  %1764 = vmatprep.subr.bf16.mxu0 %v1269
  %1765 = vmatpush1.bf16.msra.mxu0 %v1268
  %1766 = vmatprep.subr.bf16.mxu0 %v1273
  %1767 = vmatpush1.bf16.msra.mxu0 %v1272
  %1768 = vmatprep.subr.bf16.mxu0 %v1277
  %1769 = vmatpush1.bf16.msra.mxu0 %v1276
  %1770 = vmatprep.subr.bf16.mxu0 %v1281
  %1771 = vmatpush1.bf16.msra.mxu0 %v1280
  %1772 = vmatprep.subr.bf16.mxu0 %v1285
  %1773 = vmatpush1.bf16.msra.mxu0 %v1284
  %1774 = vmatprep.subr.bf16.mxu0 %v1289
  %1775 = vmatpush1.bf16.msra.mxu0 %v1288
  %1776 = vmatprep.subr.bf16.mxu0 %v1293
  %1777 = vmatpush1.bf16.msra.mxu0 %v1292
  %1778 = vmatprep.subr.bf16.mxu0 %v1297
  %1779 = vmatpush1.bf16.msra.mxu0 %v1296
  %1780 = vmatprep.mubr.bf16.mxu0 %v405
  %1781 = vmatmul.mubr.bf16.gmra.mrb[0].mxu0 %v404
  %v1782 = vpop.f32.mrb[0].mxu0
  %v1783 = vadd.f32 %v303, %v1782
  %v1784 = vpop.f32.mrb[0].mxu0
  %v1785 = vadd.f32 %v307, %v1784
  %v1786 = vpop.f32.mrb[0].mxu0
  %v1787 = vadd.f32 %v303, %v1786
  %v1788 = vpop.f32.mrb[0].mxu0
  %v1789 = vadd.f32 %v307, %v1788
  %1790 = vmatprep.mubr.bf16.mxu0 %v413
  %1791 = vmatmul.mubr.bf16.gmra.mrb[0].mxu0 %v412
  %v1792 = vpop.f32.mrb[0].mxu0
  %v1793 = vadd.f32 %v303, %v1792
  %v1794 = vpop.f32.mrb[0].mxu0
  %v1795 = vadd.f32 %v307, %v1794
  %v1796 = vpop.f32.mrb[0].mxu0
  %v1797 = vadd.f32 %v303, %v1796
  %v1798 = vpop.f32.mrb[0].mxu0
  %v1799 = vadd.f32 %v307, %v1798
  %1800 = vmatprep.mubr.bf16.mxu0 %v421
  %1801 = vmatmul.mubr.bf16.gmra.mrb[0].mxu0 %v420
  %v1802 = vpop.f32.mrb[0].mxu0
  %v1803 = vadd.f32 %v303, %v1802
  %v1804 = vpop.f32.mrb[0].mxu0
  %v1805 = vadd.f32 %v307, %v1804
  %v1806 = vpop.f32.mrb[0].mxu0
  %v1807 = vadd.f32 %v303, %v1806
  %v1808 = vpop.f32.mrb[0].mxu0
  %v1809 = vadd.f32 %v307, %v1808
  %1810 = vmatprep.mubr.bf16.mxu0 %v429
  %1811 = vmatmul.mubr.bf16.gmra.mrb[0].mxu0 %v428
  %v1812 = vpop.f32.mrb[0].mxu0
  %v1813 = vadd.f32 %v303, %v1812
  %v1814 = vpop.f32.mrb[0].mxu0
  %v1815 = vadd.f32 %v307, %v1814
  %v1816 = vpop.f32.mrb[0].mxu0
  %v1817 = vpop.f32.mrb[0].mxu0
  %1818 = vdwg.mxu0
  %1819 = vmatprep.subr.bf16.mxu0 %v1301
  %1820 = vmatpush1.bf16.msra.mxu0 %v1300
  %1821 = vmatprep.subr.bf16.mxu0 %v1305
  %1822 = vmatpush1.bf16.msra.mxu0 %v1304
  %1823 = vmatprep.subr.bf16.mxu0 %v1309
  %1824 = vmatpush1.bf16.msra.mxu0 %v1308
  %1825 = vmatprep.subr.bf16.mxu0 %v1313
  %1826 = vmatpush1.bf16.msra.mxu0 %v1312
  %1827 = vmatprep.subr.bf16.mxu0 %v1317
  %1828 = vmatpush1.bf16.msra.mxu0 %v1316
  %1829 = vmatprep.subr.bf16.mxu0 %v1321
  %1830 = vmatpush1.bf16.msra.mxu0 %v1320
  %1831 = vmatprep.subr.bf16.mxu0 %v1325
  %1832 = vmatpush1.bf16.msra.mxu0 %v1324
  %1833 = vmatprep.subr.bf16.mxu0 %v1329
  %1834 = vmatpush1.bf16.msra.mxu0 %v1328
  %1835 = vmatprep.subr.bf16.mxu0 %v1333
  %1836 = vmatpush1.bf16.msra.mxu0 %v1332
  %1837 = vmatprep.subr.bf16.mxu0 %v1337
  %1838 = vmatpush1.bf16.msra.mxu0 %v1336
  %1839 = vmatprep.subr.bf16.mxu0 %v1341
  %1840 = vmatpush1.bf16.msra.mxu0 %v1340
  %1841 = vmatprep.subr.bf16.mxu0 %v1345
  %1842 = vmatpush1.bf16.msra.mxu0 %v1344
  %1843 = vmatprep.subr.bf16.mxu0 %v1349
  %1844 = vmatpush1.bf16.msra.mxu0 %v1348
  %1845 = vmatprep.subr.bf16.mxu0 %v1353
  %1846 = vmatpush1.bf16.msra.mxu0 %v1352
  %1847 = vmatprep.subr.bf16.mxu0 %v1357
  %1848 = vmatpush1.bf16.msra.mxu0 %v1356
  %1849 = vmatprep.subr.bf16.mxu0 %v1361
  %1850 = vmatpush1.bf16.msra.mxu0 %v1360
  %1851 = vmatprep.mubr.bf16.mxu0 %v407
  %1852 = vmatmul.mubr.bf16.gmra.mrb[0].mxu0 %v406
  %v1853 = vpop.f32.mrb[0].mxu0
  %v1854 = vadd.f32 %v1783, %v1853
  %v1855 = vpop.f32.mrb[0].mxu0
  %v1856 = vadd.f32 %v1785, %v1855
  %v1857 = vpop.f32.mrb[0].mxu0
  %v1858 = vadd.f32 %v1787, %v1857
  %v1859 = vpop.f32.mrb[0].mxu0
  %v1860 = vadd.f32 %v1789, %v1859
  %1861 = vmatprep.mubr.bf16.mxu0 %v415
  %1862 = vmatmul.mubr.bf16.gmra.mrb[0].mxu0 %v414
  %v1863 = vpop.f32.mrb[0].mxu0
  %v1864 = vadd.f32 %v1793, %v1863
  %v1865 = vpop.f32.mrb[0].mxu0
  %v1866 = vadd.f32 %v1795, %v1865
  %v1867 = vpop.f32.mrb[0].mxu0
  %v1868 = vadd.f32 %v1797, %v1867
  %v1869 = vpop.f32.mrb[0].mxu0
  %v1870 = vadd.f32 %v1799, %v1869
  %1871 = vmatprep.mubr.bf16.mxu0 %v423
  %1872 = vmatmul.mubr.bf16.gmra.mrb[0].mxu0 %v422
  %v1873 = vpop.f32.mrb[0].mxu0
  %v1874 = vadd.f32 %v1803, %v1873
  %v1875 = vpop.f32.mrb[0].mxu0
  %v1876 = vadd.f32 %v1805, %v1875
  %v1877 = vpop.f32.mrb[0].mxu0
  %v1878 = vadd.f32 %v1807, %v1877
  %v1879 = vpop.f32.mrb[0].mxu0
  %v1880 = vadd.f32 %v1809, %v1879
  %1881 = vmatprep.mubr.bf16.mxu0 %v431
  %1882 = vmatmul.mubr.bf16.gmra.mrb[0].mxu0 %v430
  %v1883 = vpop.f32.mrb[0].mxu0
  %v1884 = vadd.f32 %v1813, %v1883
  %v1885 = vpop.f32.mrb[0].mxu0
  %v1886 = vadd.f32 %v1815, %v1885
  %v1887 = vpop.f32.mrb[0].mxu0
  %v1888 = vpop.f32.mrb[0].mxu0
  %1889 = vdwg.mxu0
  %1890 = vmatprep.subr.bf16.mxu0 %v1365
  %1891 = vmatpush1.bf16.msra.mxu0 %v1364
  %1892 = vmatprep.subr.bf16.mxu0 %v1369
  %1893 = vmatpush1.bf16.msra.mxu0 %v1368
  %1894 = vmatprep.subr.bf16.mxu0 %v1373
  %1895 = vmatpush1.bf16.msra.mxu0 %v1372
  %1896 = vmatprep.subr.bf16.mxu0 %v1377
  %1897 = vmatpush1.bf16.msra.mxu0 %v1376
  %1898 = vmatprep.subr.bf16.mxu0 %v1381
  %1899 = vmatpush1.bf16.msra.mxu0 %v1380
  %1900 = vmatprep.subr.bf16.mxu0 %v1385
  %1901 = vmatpush1.bf16.msra.mxu0 %v1384
  %1902 = vmatprep.subr.bf16.mxu0 %v1389
  %1903 = vmatpush1.bf16.msra.mxu0 %v1388
  %1904 = vmatprep.subr.bf16.mxu0 %v1393
  %1905 = vmatpush1.bf16.msra.mxu0 %v1392
  %1906 = vmatprep.subr.bf16.mxu0 %v1397
  %1907 = vmatpush1.bf16.msra.mxu0 %v1396
  %1908 = vmatprep.subr.bf16.mxu0 %v1401
  %1909 = vmatpush1.bf16.msra.mxu0 %v1400
  %1910 = vmatprep.subr.bf16.mxu0 %v1405
  %1911 = vmatpush1.bf16.msra.mxu0 %v1404
  %1912 = vmatprep.subr.bf16.mxu0 %v1409
  %1913 = vmatpush1.bf16.msra.mxu0 %v1408
  %1914 = vmatprep.subr.bf16.mxu0 %v1413
  %1915 = vmatpush1.bf16.msra.mxu0 %v1412
  %1916 = vmatprep.subr.bf16.mxu0 %v1417
  %1917 = vmatpush1.bf16.msra.mxu0 %v1416
  %1918 = vmatprep.subr.bf16.mxu0 %v1421
  %1919 = vmatpush1.bf16.msra.mxu0 %v1420
  %1920 = vmatprep.subr.bf16.mxu0 %v1425
  %1921 = vmatpush1.bf16.msra.mxu0 %v1424
  %1922 = vmatprep.mubr.bf16.mxu0 %v409
  %1923 = vmatmul.mubr.bf16.gmra.mrb[0].mxu0 %v408
  %v1924 = vpop.f32.mrb[0].mxu0
  %v1925 = vadd.f32 %v1854, %v1924
  %v1926 = vpop.f32.mrb[0].mxu0
  %v1927 = vadd.f32 %v1856, %v1926
  %v1928 = vpop.f32.mrb[0].mxu0
  %v1929 = vadd.f32 %v1858, %v1928
  %v1930 = vpop.f32.mrb[0].mxu0
  %v1931 = vadd.f32 %v1860, %v1930
  %1932 = vmatprep.mubr.bf16.mxu0 %v417
  %1933 = vmatmul.mubr.bf16.gmra.mrb[0].mxu0 %v416
  %v1934 = vpop.f32.mrb[0].mxu0
  %v1935 = vadd.f32 %v1864, %v1934
  %v1936 = vpop.f32.mrb[0].mxu0
  %v1937 = vadd.f32 %v1866, %v1936
  %v1938 = vpop.f32.mrb[0].mxu0
  %v1939 = vadd.f32 %v1868, %v1938
  %v1940 = vpop.f32.mrb[0].mxu0
  %v1941 = vadd.f32 %v1870, %v1940
  %1942 = vmatprep.mubr.bf16.mxu0 %v425
  %1943 = vmatmul.mubr.bf16.gmra.mrb[0].mxu0 %v424
  %v1944 = vpop.f32.mrb[0].mxu0
  %v1945 = vadd.f32 %v1874, %v1944
  %v1946 = vpop.f32.mrb[0].mxu0
  %v1947 = vadd.f32 %v1876, %v1946
  %v1948 = vpop.f32.mrb[0].mxu0
  %v1949 = vadd.f32 %v1878, %v1948
  %v1950 = vpop.f32.mrb[0].mxu0
  %v1951 = vadd.f32 %v1880, %v1950
  %1952 = vmatprep.mubr.bf16.mxu0 %v433
  %1953 = vmatmul.mubr.bf16.gmra.mrb[0].mxu0 %v432
  %v1954 = vpop.f32.mrb[0].mxu0
  %v1955 = vadd.f32 %v1884, %v1954
  %v1956 = vpop.f32.mrb[0].mxu0
  %v1957 = vadd.f32 %v1886, %v1956
  %v1958 = vpop.f32.mrb[0].mxu0
  %v1959 = vpop.f32.mrb[0].mxu0
  %1960 = vdwg.mxu0
  %1961 = vmatprep.subr.bf16.mxu0 %v1429
  %1962 = vmatpush1.bf16.msra.mxu0 %v1428
  %1963 = vmatprep.subr.bf16.mxu0 %v1433
  %1964 = vmatpush1.bf16.msra.mxu0 %v1432
  %1965 = vmatprep.subr.bf16.mxu0 %v1437
  %1966 = vmatpush1.bf16.msra.mxu0 %v1436
  %1967 = vmatprep.subr.bf16.mxu0 %v1441
  %1968 = vmatpush1.bf16.msra.mxu0 %v1440
  %1969 = vmatprep.subr.bf16.mxu0 %v1445
  %1970 = vmatpush1.bf16.msra.mxu0 %v1444
  %1971 = vmatprep.subr.bf16.mxu0 %v1449
  %1972 = vmatpush1.bf16.msra.mxu0 %v1448
  %1973 = vmatprep.subr.bf16.mxu0 %v1453
  %1974 = vmatpush1.bf16.msra.mxu0 %v1452
  %1975 = vmatprep.subr.bf16.mxu0 %v1457
  %1976 = vmatpush1.bf16.msra.mxu0 %v1456
  %1977 = vmatprep.subr.bf16.mxu0 %v1461
  %1978 = vmatpush1.bf16.msra.mxu0 %v1460
  %1979 = vmatprep.subr.bf16.mxu0 %v1465
  %1980 = vmatpush1.bf16.msra.mxu0 %v1464
  %1981 = vmatprep.subr.bf16.mxu0 %v1469
  %1982 = vmatpush1.bf16.msra.mxu0 %v1468
  %1983 = vmatprep.subr.bf16.mxu0 %v1473
  %1984 = vmatpush1.bf16.msra.mxu0 %v1472
  %1985 = vmatprep.subr.bf16.mxu0 %v1477
  %1986 = vmatpush1.bf16.msra.mxu0 %v1476
  %1987 = vmatprep.subr.bf16.mxu0 %v1481
  %1988 = vmatpush1.bf16.msra.mxu0 %v1480
  %1989 = vmatprep.subr.bf16.mxu0 %v1485
  %1990 = vmatpush1.bf16.msra.mxu0 %v1484
  %1991 = vmatprep.subr.bf16.mxu0 %v1489
  %1992 = vmatpush1.bf16.msra.mxu0 %v1488
  %1993 = vmatprep.mubr.bf16.mxu0 %v411
  %1994 = vmatmul.mubr.bf16.gmra.mrb[0].mxu0 %v410
  %v1995 = vpop.f32.mrb[0].mxu0
  %v1996 = vadd.f32 %v1925, %v1995
  %v1997 = vpop.f32.mrb[0].mxu0
  %v1998 = vadd.f32 %v1927, %v1997
  %v1999 = vpop.f32.mrb[0].mxu0
  %v2000 = vadd.f32 %v1929, %v1999
  %v2001 = vpop.f32.mrb[0].mxu0
  %v2002 = vadd.f32 %v1931, %v2001
  %2003 = vmatprep.mubr.bf16.mxu0 %v419
  %2004 = vmatmul.mubr.bf16.gmra.mrb[0].mxu0 %v418
  %v2005 = vpop.f32.mrb[0].mxu0
  %v2006 = vadd.f32 %v1935, %v2005
  %v2007 = vpop.f32.mrb[0].mxu0
  %v2008 = vadd.f32 %v1937, %v2007
  %v2009 = vpop.f32.mrb[0].mxu0
  %v2010 = vadd.f32 %v1939, %v2009
  %v2011 = vpop.f32.mrb[0].mxu0
  %v2012 = vadd.f32 %v1941, %v2011
  %2013 = vmatprep.mubr.bf16.mxu0 %v427
  %2014 = vmatmul.mubr.bf16.gmra.mrb[0].mxu0 %v426
  %v2015 = vpop.f32.mrb[0].mxu0
  %v2016 = vadd.f32 %v1945, %v2015
  %v2017 = vpop.f32.mrb[0].mxu0
  %v2018 = vadd.f32 %v1947, %v2017
  %v2019 = vpop.f32.mrb[0].mxu0
  %v2020 = vadd.f32 %v1949, %v2019
  %v2021 = vpop.f32.mrb[0].mxu0
  %v2022 = vadd.f32 %v1951, %v2021
  %2023 = vmatprep.mubr.bf16.mxu0 %v435
  %2024 = vmatmul.mubr.bf16.gmra.mrb[0].mxu0 %v434
  %v2025 = vpop.f32.mrb[0].mxu0
  %v2026 = vadd.f32 %v1955, %v2025
  %v2027 = vpop.f32.mrb[0].mxu0
  %v2028 = vadd.f32 %v1957, %v2027
  %v2029 = vpop.f32.mrb[0].mxu0
  %v2030 = vpop.f32.mrb[0].mxu0
  %2031 = vdwg.mxu0
  %2032 = vmatprep.subr.bf16.mxu0 %v1239
  %2033 = vmatpush1.bf16.msra.mxu0 %v1238
  %2034 = vmatprep.subr.bf16.mxu0 %v1243
  %2035 = vmatpush1.bf16.msra.mxu0 %v1242
  %2036 = vmatprep.subr.bf16.mxu0 %v1247
  %2037 = vmatpush1.bf16.msra.mxu0 %v1246
  %2038 = vmatprep.subr.bf16.mxu0 %v1251
  %2039 = vmatpush1.bf16.msra.mxu0 %v1250
  %2040 = vmatprep.subr.bf16.mxu0 %v1255
  %2041 = vmatpush1.bf16.msra.mxu0 %v1254
  %2042 = vmatprep.subr.bf16.mxu0 %v1259
  %2043 = vmatpush1.bf16.msra.mxu0 %v1258
  %2044 = vmatprep.subr.bf16.mxu0 %v1263
  %2045 = vmatpush1.bf16.msra.mxu0 %v1262
  %2046 = vmatprep.subr.bf16.mxu0 %v1267
  %2047 = vmatpush1.bf16.msra.mxu0 %v1266
  %2048 = vmatprep.subr.bf16.mxu0 %v1271
  %2049 = vmatpush1.bf16.msra.mxu0 %v1270
  %2050 = vmatprep.subr.bf16.mxu0 %v1275
  %2051 = vmatpush1.bf16.msra.mxu0 %v1274
  %2052 = vmatprep.subr.bf16.mxu0 %v1279
  %2053 = vmatpush1.bf16.msra.mxu0 %v1278
  %2054 = vmatprep.subr.bf16.mxu0 %v1283
  %2055 = vmatpush1.bf16.msra.mxu0 %v1282
  %2056 = vmatprep.subr.bf16.mxu0 %v1287
  %2057 = vmatpush1.bf16.msra.mxu0 %v1286
  %2058 = vmatprep.subr.bf16.mxu0 %v1291
  %2059 = vmatpush1.bf16.msra.mxu0 %v1290
  %2060 = vmatprep.subr.bf16.mxu0 %v1295
  %2061 = vmatpush1.bf16.msra.mxu0 %v1294
  %2062 = vmatprep.subr.bf16.mxu0 %v1299
  %2063 = vmatpush1.bf16.msra.mxu0 %v1298
  %2064 = vmatprep.mubr.bf16.mxu0 %v405
  %2065 = vmatmul.mubr.bf16.gmra.mrb[0].mxu0 %v404
  %v2066 = vpop.f32.mrb[0].mxu0
  %v2067 = vadd.f32 %v311, %v2066
  %v2068 = vpop.f32.mrb[0].mxu0
  %v2069 = vadd.f32 %v315, %v2068
  %v2070 = vpop.f32.mrb[0].mxu0
  %v2071 = vadd.f32 %v311, %v2070
  %v2072 = vpop.f32.mrb[0].mxu0
  %v2073 = vadd.f32 %v315, %v2072
  %2074 = vmatprep.mubr.bf16.mxu0 %v413
  %2075 = vmatmul.mubr.bf16.gmra.mrb[0].mxu0 %v412
  %v2076 = vpop.f32.mrb[0].mxu0
  %v2077 = vadd.f32 %v311, %v2076
  %v2078 = vpop.f32.mrb[0].mxu0
  %v2079 = vadd.f32 %v315, %v2078
  %v2080 = vpop.f32.mrb[0].mxu0
  %v2081 = vadd.f32 %v311, %v2080
  %v2082 = vpop.f32.mrb[0].mxu0
  %v2083 = vadd.f32 %v315, %v2082
  %2084 = vmatprep.mubr.bf16.mxu0 %v421
  %2085 = vmatmul.mubr.bf16.gmra.mrb[0].mxu0 %v420
  %v2086 = vpop.f32.mrb[0].mxu0
  %v2087 = vadd.f32 %v311, %v2086
  %v2088 = vpop.f32.mrb[0].mxu0
  %v2089 = vadd.f32 %v315, %v2088
  %v2090 = vpop.f32.mrb[0].mxu0
  %v2091 = vadd.f32 %v311, %v2090
  %v2092 = vpop.f32.mrb[0].mxu0
  %v2093 = vadd.f32 %v315, %v2092
  %2094 = vmatprep.mubr.bf16.mxu0 %v429
  %2095 = vmatmul.mubr.bf16.gmra.mrb[0].mxu0 %v428
  %v2096 = vpop.f32.mrb[0].mxu0
  %v2097 = vadd.f32 %v311, %v2096
  %v2098 = vpop.f32.mrb[0].mxu0
  %v2099 = vadd.f32 %v315, %v2098
  %v2100 = vpop.f32.mrb[0].mxu0
  %v2101 = vpop.f32.mrb[0].mxu0
  %2102 = vdwg.mxu0
  %2103 = vmatprep.subr.bf16.mxu0 %v1303
  %2104 = vmatpush1.bf16.msra.mxu0 %v1302
  %2105 = vmatprep.subr.bf16.mxu0 %v1307
  %2106 = vmatpush1.bf16.msra.mxu0 %v1306
  %2107 = vmatprep.subr.bf16.mxu0 %v1311
  %2108 = vmatpush1.bf16.msra.mxu0 %v1310
  %2109 = vmatprep.subr.bf16.mxu0 %v1315
  %2110 = vmatpush1.bf16.msra.mxu0 %v1314
  %2111 = vmatprep.subr.bf16.mxu0 %v1319
  %2112 = vmatpush1.bf16.msra.mxu0 %v1318
  %2113 = vmatprep.subr.bf16.mxu0 %v1323
  %2114 = vmatpush1.bf16.msra.mxu0 %v1322
  %2115 = vmatprep.subr.bf16.mxu0 %v1327
  %2116 = vmatpush1.bf16.msra.mxu0 %v1326
  %2117 = vmatprep.subr.bf16.mxu0 %v1331
  %2118 = vmatpush1.bf16.msra.mxu0 %v1330
  %2119 = vmatprep.subr.bf16.mxu0 %v1335
  %2120 = vmatpush1.bf16.msra.mxu0 %v1334
  %2121 = vmatprep.subr.bf16.mxu0 %v1339
  %2122 = vmatpush1.bf16.msra.mxu0 %v1338
  %2123 = vmatprep.subr.bf16.mxu0 %v1343
  %2124 = vmatpush1.bf16.msra.mxu0 %v1342
  %2125 = vmatprep.subr.bf16.mxu0 %v1347
  %2126 = vmatpush1.bf16.msra.mxu0 %v1346
  %2127 = vmatprep.subr.bf16.mxu0 %v1351
  %2128 = vmatpush1.bf16.msra.mxu0 %v1350
  %2129 = vmatprep.subr.bf16.mxu0 %v1355
  %2130 = vmatpush1.bf16.msra.mxu0 %v1354
  %2131 = vmatprep.subr.bf16.mxu0 %v1359
  %2132 = vmatpush1.bf16.msra.mxu0 %v1358
  %2133 = vmatprep.subr.bf16.mxu0 %v1363
  %2134 = vmatpush1.bf16.msra.mxu0 %v1362
  %2135 = vmatprep.mubr.bf16.mxu0 %v407
  %2136 = vmatmul.mubr.bf16.gmra.mrb[0].mxu0 %v406
  %v2137 = vpop.f32.mrb[0].mxu0
  %v2138 = vadd.f32 %v2067, %v2137
  %v2139 = vpop.f32.mrb[0].mxu0
  %v2140 = vadd.f32 %v2069, %v2139
  %v2141 = vpop.f32.mrb[0].mxu0
  %v2142 = vadd.f32 %v2071, %v2141
  %v2143 = vpop.f32.mrb[0].mxu0
  %v2144 = vadd.f32 %v2073, %v2143
  %2145 = vmatprep.mubr.bf16.mxu0 %v415
  %2146 = vmatmul.mubr.bf16.gmra.mrb[0].mxu0 %v414
  %v2147 = vpop.f32.mrb[0].mxu0
  %v2148 = vadd.f32 %v2077, %v2147
  %v2149 = vpop.f32.mrb[0].mxu0
  %v2150 = vadd.f32 %v2079, %v2149
  %v2151 = vpop.f32.mrb[0].mxu0
  %v2152 = vadd.f32 %v2081, %v2151
  %v2153 = vpop.f32.mrb[0].mxu0
  %v2154 = vadd.f32 %v2083, %v2153
  %2155 = vmatprep.mubr.bf16.mxu0 %v423
  %2156 = vmatmul.mubr.bf16.gmra.mrb[0].mxu0 %v422
  %v2157 = vpop.f32.mrb[0].mxu0
  %v2158 = vadd.f32 %v2087, %v2157
  %v2159 = vpop.f32.mrb[0].mxu0
  %v2160 = vadd.f32 %v2089, %v2159
  %v2161 = vpop.f32.mrb[0].mxu0
  %v2162 = vadd.f32 %v2091, %v2161
  %v2163 = vpop.f32.mrb[0].mxu0
  %v2164 = vadd.f32 %v2093, %v2163
  %2165 = vmatprep.mubr.bf16.mxu0 %v431
  %2166 = vmatmul.mubr.bf16.gmra.mrb[0].mxu0 %v430
  %v2167 = vpop.f32.mrb[0].mxu0
  %v2168 = vadd.f32 %v2097, %v2167
  %v2169 = vpop.f32.mrb[0].mxu0
  %v2170 = vadd.f32 %v2099, %v2169
  %v2171 = vpop.f32.mrb[0].mxu0
  %v2172 = vpop.f32.mrb[0].mxu0
  %2173 = vdwg.mxu0
  %2174 = vmatprep.subr.bf16.mxu0 %v1367
  %2175 = vmatpush1.bf16.msra.mxu0 %v1366
  %2176 = vmatprep.subr.bf16.mxu0 %v1371
  %2177 = vmatpush1.bf16.msra.mxu0 %v1370
  %2178 = vmatprep.subr.bf16.mxu0 %v1375
  %2179 = vmatpush1.bf16.msra.mxu0 %v1374
  %2180 = vmatprep.subr.bf16.mxu0 %v1379
  %2181 = vmatpush1.bf16.msra.mxu0 %v1378
  %2182 = vmatprep.subr.bf16.mxu0 %v1383
  %2183 = vmatpush1.bf16.msra.mxu0 %v1382
  %2184 = vmatprep.subr.bf16.mxu0 %v1387
  %2185 = vmatpush1.bf16.msra.mxu0 %v1386
  %2186 = vmatprep.subr.bf16.mxu0 %v1391
  %2187 = vmatpush1.bf16.msra.mxu0 %v1390
  %2188 = vmatprep.subr.bf16.mxu0 %v1395
  %2189 = vmatpush1.bf16.msra.mxu0 %v1394
  %2190 = vmatprep.subr.bf16.mxu0 %v1399
  %2191 = vmatpush1.bf16.msra.mxu0 %v1398
  %2192 = vmatprep.subr.bf16.mxu0 %v1403
  %2193 = vmatpush1.bf16.msra.mxu0 %v1402
  %2194 = vmatprep.subr.bf16.mxu0 %v1407
  %2195 = vmatpush1.bf16.msra.mxu0 %v1406
  %2196 = vmatprep.subr.bf16.mxu0 %v1411
  %2197 = vmatpush1.bf16.msra.mxu0 %v1410
  %2198 = vmatprep.subr.bf16.mxu0 %v1415
  %2199 = vmatpush1.bf16.msra.mxu0 %v1414
  %2200 = vmatprep.subr.bf16.mxu0 %v1419
  %2201 = vmatpush1.bf16.msra.mxu0 %v1418
  %2202 = vmatprep.subr.bf16.mxu0 %v1423
  %2203 = vmatpush1.bf16.msra.mxu0 %v1422
  %2204 = vmatprep.subr.bf16.mxu0 %v1427
  %2205 = vmatpush1.bf16.msra.mxu0 %v1426
  %2206 = vmatprep.mubr.bf16.mxu0 %v409
  %2207 = vmatmul.mubr.bf16.gmra.mrb[0].mxu0 %v408
  %v2208 = vpop.f32.mrb[0].mxu0
  %v2209 = vadd.f32 %v2138, %v2208
  %v2210 = vpop.f32.mrb[0].mxu0
  %v2211 = vadd.f32 %v2140, %v2210
  %v2212 = vpop.f32.mrb[0].mxu0
  %v2213 = vadd.f32 %v2142, %v2212
  %v2214 = vpop.f32.mrb[0].mxu0
  %v2215 = vadd.f32 %v2144, %v2214
  %2216 = vmatprep.mubr.bf16.mxu0 %v417
  %2217 = vmatmul.mubr.bf16.gmra.mrb[0].mxu0 %v416
  %v2218 = vpop.f32.mrb[0].mxu0
  %v2219 = vadd.f32 %v2148, %v2218
  %v2220 = vpop.f32.mrb[0].mxu0
  %v2221 = vadd.f32 %v2150, %v2220
  %v2222 = vpop.f32.mrb[0].mxu0
  %v2223 = vadd.f32 %v2152, %v2222
  %v2224 = vpop.f32.mrb[0].mxu0
  %v2225 = vadd.f32 %v2154, %v2224
  %2226 = vmatprep.mubr.bf16.mxu0 %v425
  %2227 = vmatmul.mubr.bf16.gmra.mrb[0].mxu0 %v424
  %v2228 = vpop.f32.mrb[0].mxu0
  %v2229 = vadd.f32 %v2158, %v2228
  %v2230 = vpop.f32.mrb[0].mxu0
  %v2231 = vadd.f32 %v2160, %v2230
  %v2232 = vpop.f32.mrb[0].mxu0
  %v2233 = vadd.f32 %v2162, %v2232
  %v2234 = vpop.f32.mrb[0].mxu0
  %v2235 = vadd.f32 %v2164, %v2234
  %2236 = vmatprep.mubr.bf16.mxu0 %v433
  %2237 = vmatmul.mubr.bf16.gmra.mrb[0].mxu0 %v432
  %v2238 = vpop.f32.mrb[0].mxu0
  %v2239 = vadd.f32 %v2168, %v2238
  %v2240 = vpop.f32.mrb[0].mxu0
  %v2241 = vadd.f32 %v2170, %v2240
  %v2242 = vpop.f32.mrb[0].mxu0
  %v2243 = vpop.f32.mrb[0].mxu0
  %2244 = vdwg.mxu0
  %2245 = vmatprep.subr.bf16.mxu0 %v1431
  %2246 = vmatpush1.bf16.msra.mxu0 %v1430
  %2247 = vmatprep.subr.bf16.mxu0 %v1435
  %2248 = vmatpush1.bf16.msra.mxu0 %v1434
  %2249 = vmatprep.subr.bf16.mxu0 %v1439
  %2250 = vmatpush1.bf16.msra.mxu0 %v1438
  %2251 = vmatprep.subr.bf16.mxu0 %v1443
  %2252 = vmatpush1.bf16.msra.mxu0 %v1442
  %2253 = vmatprep.subr.bf16.mxu0 %v1447
  %2254 = vmatpush1.bf16.msra.mxu0 %v1446
  %2255 = vmatprep.subr.bf16.mxu0 %v1451
  %2256 = vmatpush1.bf16.msra.mxu0 %v1450
  %2257 = vmatprep.subr.bf16.mxu0 %v1455
  %2258 = vmatpush1.bf16.msra.mxu0 %v1454
  %2259 = vmatprep.subr.bf16.mxu0 %v1459
  %2260 = vmatpush1.bf16.msra.mxu0 %v1458
  %2261 = vmatprep.subr.bf16.mxu0 %v1463
  %2262 = vmatpush1.bf16.msra.mxu0 %v1462
  %2263 = vmatprep.subr.bf16.mxu0 %v1467
  %2264 = vmatpush1.bf16.msra.mxu0 %v1466
  %2265 = vmatprep.subr.bf16.mxu0 %v1471
  %2266 = vmatpush1.bf16.msra.mxu0 %v1470
  %2267 = vmatprep.subr.bf16.mxu0 %v1475
  %2268 = vmatpush1.bf16.msra.mxu0 %v1474
  %2269 = vmatprep.subr.bf16.mxu0 %v1479
  %2270 = vmatpush1.bf16.msra.mxu0 %v1478
  %2271 = vmatprep.subr.bf16.mxu0 %v1483
  %2272 = vmatpush1.bf16.msra.mxu0 %v1482
  %2273 = vmatprep.subr.bf16.mxu0 %v1487
  %2274 = vmatpush1.bf16.msra.mxu0 %v1486
  %2275 = vmatprep.subr.bf16.mxu0 %v1491
  %2276 = vmatpush1.bf16.msra.mxu0 %v1490
  %2277 = vmatprep.mubr.bf16.mxu0 %v411
  %2278 = vmatmul.mubr.bf16.gmra.mrb[0].mxu0 %v410
  %v2279 = vpop.f32.mrb[0].mxu0
  %v2280 = vadd.f32 %v2209, %v2279
  %v2281 = vpop.f32.mrb[0].mxu0
  %v2282 = vadd.f32 %v2211, %v2281
  %v2283 = vpop.f32.mrb[0].mxu0
  %v2284 = vadd.f32 %v2213, %v2283
  %v2285 = vpop.f32.mrb[0].mxu0
  %v2286 = vadd.f32 %v2215, %v2285
  %2287 = vmatprep.mubr.bf16.mxu0 %v419
  %2288 = vmatmul.mubr.bf16.gmra.mrb[0].mxu0 %v418
  %v2289 = vpop.f32.mrb[0].mxu0
  %v2290 = vadd.f32 %v2219, %v2289
  %v2291 = vpop.f32.mrb[0].mxu0
  %v2292 = vadd.f32 %v2221, %v2291
  %v2293 = vpop.f32.mrb[0].mxu0
  %v2294 = vadd.f32 %v2223, %v2293
  %v2295 = vpop.f32.mrb[0].mxu0
  %v2296 = vadd.f32 %v2225, %v2295
  %2297 = vmatprep.mubr.bf16.mxu0 %v427
  %2298 = vmatmul.mubr.bf16.gmra.mrb[0].mxu0 %v426
  %v2299 = vpop.f32.mrb[0].mxu0
  %v2300 = vadd.f32 %v2229, %v2299
  %v2301 = vpop.f32.mrb[0].mxu0
  %v2302 = vadd.f32 %v2231, %v2301
  %v2303 = vpop.f32.mrb[0].mxu0
  %v2304 = vadd.f32 %v2233, %v2303
  %v2305 = vpop.f32.mrb[0].mxu0
  %v2306 = vadd.f32 %v2235, %v2305
  %2307 = vmatprep.mubr.bf16.mxu0 %v435
  %2308 = vmatmul.mubr.bf16.gmra.mrb[0].mxu0 %v434
  %v2309 = vpop.f32.mrb[0].mxu0
  %v2310 = vadd.f32 %v2239, %v2309
  %v2311 = vpop.f32.mrb[0].mxu0
  %v2312 = vadd.f32 %v2241, %v2311
  %v2313 = vpop.f32.mrb[0].mxu0
  %v2314 = vpop.f32.mrb[0].mxu0
  %2315 = vdwg.mxu0
  %2316 = vst [vmem:[%s3] sm:$0xff] %v1996
  %2317 = vst [vmem:[%s3 + $0x8] sm:$0xff] %v1998
  %2318 = vst [vmem:[%s3 + $0x10] sm:$0xff] %v2280
  %2319 = vst [vmem:[%s3 + $0x18] sm:$0xff] %v2282
  %2320 = vst [vmem:[%s3 + $0x20] sm:$0xff] %v2000
  %2321 = vst [vmem:[%s3 + $0x28] sm:$0xff] %v2002
  %2322 = vst [vmem:[%s3 + $0x30] sm:$0xff] %v2284
  %2323 = vst [vmem:[%s3 + $0x38] sm:$0xff] %v2286
  %2324 = vst [vmem:[%s3 + $0x40] sm:$0xff] %v2006
  %2325 = vst [vmem:[%s3 + $0x48] sm:$0xff] %v2008
  %2326 = vst [vmem:[%s3 + $0x50] sm:$0xff] %v2290
  %2327 = vst [vmem:[%s3 + $0x58] sm:$0xff] %v2292
  %2328 = vst [vmem:[%s3 + $0x60] sm:$0xff] %v2010
  %2329 = vst [vmem:[%s3 + $0x68] sm:$0xff] %v2012
  %2330 = vst [vmem:[%s3 + $0x70] sm:$0xff] %v2294
  %2331 = vst [vmem:[%s3 + $0x78] sm:$0xff] %v2296
  %2332 = vst [vmem:[%s3 + $0x80] sm:$0xff] %v2016
  %2333 = vst [vmem:[%s3 + $0x88] sm:$0xff] %v2018
  %2334 = vst [vmem:[%s3 + $0x90] sm:$0xff] %v2300
  %2335 = vst [vmem:[%s3 + $0x98] sm:$0xff] %v2302
  %2336 = vst [vmem:[%s3 + $0xa0] sm:$0xff] %v2020
  %2337 = vst [vmem:[%s3 + $0xa8] sm:$0xff] %v2022
  %2338 = vst [vmem:[%s3 + $0xb0] sm:$0xff] %v2304
  %2339 = vst [vmem:[%s3 + $0xb8] sm:$0xff] %v2306
  %2340 = vst [vmem:[%s3 + $0xc0] sm:$0x3] %v2026
  %2341 = vst [vmem:[%s3 + $0xc8] sm:$0x3] %v2028
  %2342 = vst [vmem:[%s3 + $0xd0] sm:$0x3] %v2310
  %2343 = vst [vmem:[%s3 + $0xd8] sm:$0x3] %v2312
  // Predicated region
  $region14: #{generator_forward.15} parent=0 // pred_check
    _
  $region15: #{generator_forward.15} parent=0 // pred_check_branch
    %2345 = sbr.rel (0) target = $region17
  $region16: #{generator_forward.15} parent=0 // pred_region
    _
  $region17: #{generator_forward.15} parent=0 // pred_fallthru
    _
  // Predicated region
  $region18: #{generator_forward.15} parent=0 // pred_check
    _
  $region19: #{generator_forward.15} parent=0 // pred_check_branch
    %2347 = sbr.rel (0) target = $region21
  $region20: #{generator_forward.15} parent=0 // pred_region
    _
  $region21: #{generator_forward.15} parent=0 // pred_fallthru
    _

// kernel: generator_forward.18
$region0: #{generator_forward.18}
  #allocation0 [shape = 'u32[]', space=smem, size = 0x4, offset = 0x4, fixed_abs, tag = 'smem constant byte address 0x4 - core index']
  #allocation1 [shape = 'u32[144,128]{1,0:T(1,128)}', space=vmem, size = 0x12000, scoped, tag = 'internal scratch']
  %s0 = inlined_call_operand.vmem [shape: bf16[162,512], index: 0, kind: input, shape index: {}]
  %s1 = inlined_call_operand.vmem [shape: bf16[512,256], index: 1, kind: input, shape index: {}]
  %s2 = inlined_call_operand.vmem [shape: f32[1,256], index: 2, kind: input, shape index: {}]
  %s3 = inlined_call_operand.vmem [shape: f32[162,256], index: 3, kind: output, shape index: {}]
  %s4 = sld [smem:[#allocation0]]
  $region22: #{generator_forward.18} parent=0
    _
  %s6 = ssub.s32 1, %s4
  %s7 = scalar_select 0, %s6, %s4
  // Predicated region
  $region2: #{generator_forward.18} parent=0 // pred_check
    _
  $region3: #{generator_forward.18} parent=0 // pred_check_branch
    %9 = sbr.rel (0) target = $region5
  $region4: #{generator_forward.18} parent=0 // pred_region
    _
  $region5: #{generator_forward.18} parent=0 // pred_fallthru
    _
  // Predicated region
  $region6: #{generator_forward.18} parent=0 // pred_check
    _
  $region7: #{generator_forward.18} parent=0 // pred_check_branch
    %11 = sbr.rel (0) target = $region9
  $region8: #{generator_forward.18} parent=0 // pred_region
    _
  $region9: #{generator_forward.18} parent=0 // pred_fallthru
    _
  // Predicated region
  $region10: #{generator_forward.18} parent=0 // pred_check
    _
  $region11: #{generator_forward.18} parent=0 // pred_check_branch
    %13 = sbr.rel (0) target = $region13
  $region12: #{generator_forward.18} parent=0 // pred_region
    _
  $region13: #{generator_forward.18} parent=0 // pred_fallthru
    _
  %v14 = vld [vmem:[%s0] sm:$0xff]
  %v15 = vld [vmem:[%s0 + $0x8] sm:$0xff]
  %v16 = vld [vmem:[%s0 + $0x10] sm:$0xff]
  %v17 = vld [vmem:[%s0 + $0x18] sm:$0xff]
  %v18 = vld [vmem:[%s0 + $0x20] sm:$0xff]
  %v19 = vld [vmem:[%s0 + $0x28] sm:$0xff]
  %v20 = vld [vmem:[%s0 + $0x30] sm:$0xff]
  %v21 = vld [vmem:[%s0 + $0x38] sm:$0xff]
  %v22 = vld [vmem:[%s0 + $0x40] sm:$0xff]
  %v23 = vld [vmem:[%s0 + $0x48] sm:$0xff]
  %v24 = vld [vmem:[%s0 + $0x50] sm:$0xff]
  %v25 = vld [vmem:[%s0 + $0x58] sm:$0xff]
  %v26 = vld [vmem:[%s0 + $0x60] sm:$0xff]
  %v27 = vld [vmem:[%s0 + $0x68] sm:$0xff]
  %v28 = vld [vmem:[%s0 + $0x70] sm:$0xff]
  %v29 = vld [vmem:[%s0 + $0x78] sm:$0xff]
  %v30 = vld [vmem:[%s0 + $0x80] sm:$0xff]
  %v31 = vld [vmem:[%s0 + $0x88] sm:$0xff]
  %v32 = vld [vmem:[%s0 + $0x90] sm:$0xff]
  %v33 = vld [vmem:[%s0 + $0x98] sm:$0xff]
  %v34 = vld [vmem:[%s0 + $0xa0] sm:$0xff]
  %v35 = vld [vmem:[%s0 + $0xa8] sm:$0xff]
  %v36 = vld [vmem:[%s0 + $0xb0] sm:$0xff]
  %v37 = vld [vmem:[%s0 + $0xb8] sm:$0xff]
  %v38 = vld [vmem:[%s0 + $0xc0] sm:$0xff]
  %v39 = vld [vmem:[%s0 + $0xc8] sm:$0xff]
  %v40 = vld [vmem:[%s0 + $0xd0] sm:$0xff]
  %v41 = vld [vmem:[%s0 + $0xd8] sm:$0xff]
  %v42 = vld [vmem:[%s0 + $0xe0] sm:$0xff]
  %v43 = vld [vmem:[%s0 + $0xe8] sm:$0xff]
  %v44 = vld [vmem:[%s0 + $0xf0] sm:$0xff]
  %v45 = vld [vmem:[%s0 + $0xf8] sm:$0xff]
  %v46 = vld [vmem:[%s0 + $0x100] sm:$0xff]
  %v47 = vld [vmem:[%s0 + $0x108] sm:$0xff]
  %v48 = vld [vmem:[%s0 + $0x110] sm:$0xff]
  %v49 = vld [vmem:[%s0 + $0x118] sm:$0xff]
  %v50 = vld [vmem:[%s0 + $0x120] sm:$0xff]
  %v51 = vld [vmem:[%s0 + $0x128] sm:$0xff]
  %v52 = vld [vmem:[%s0 + $0x130] sm:$0xff]
  %v53 = vld [vmem:[%s0 + $0x138] sm:$0xff]
  %v54 = vld [vmem:[%s0 + $0x140] sm:$0x11]
  %v55 = vld [vmem:[%s0 + $0x148] sm:$0x11]
  %v56 = vld [vmem:[%s1] sm:$0xff]
  %v57 = vld [vmem:[%s1 + $0x8] sm:$0xff]
  %v58 = vld [vmem:[%s1 + $0x10] sm:$0xff]
  %v59 = vld [vmem:[%s1 + $0x18] sm:$0xff]
  %v60 = vld [vmem:[%s1 + $0x20] sm:$0xff]
  %v61 = vld [vmem:[%s1 + $0x28] sm:$0xff]
  %v62 = vld [vmem:[%s1 + $0x30] sm:$0xff]
  %v63 = vld [vmem:[%s1 + $0x38] sm:$0xff]
  %v64 = vld [vmem:[%s1 + $0x40] sm:$0xff]
  %v65 = vld [vmem:[%s1 + $0x48] sm:$0xff]
  %v66 = vld [vmem:[%s1 + $0x50] sm:$0xff]
  %v67 = vld [vmem:[%s1 + $0x58] sm:$0xff]
  %v68 = vld [vmem:[%s1 + $0x60] sm:$0xff]
  %v69 = vld [vmem:[%s1 + $0x68] sm:$0xff]
  %v70 = vld [vmem:[%s1 + $0x70] sm:$0xff]
  %v71 = vld [vmem:[%s1 + $0x78] sm:$0xff]
  %v72 = vld [vmem:[%s1 + $0x80] sm:$0xff]
  %v73 = vld [vmem:[%s1 + $0x88] sm:$0xff]
  %v74 = vld [vmem:[%s1 + $0x90] sm:$0xff]
  %v75 = vld [vmem:[%s1 + $0x98] sm:$0xff]
  %v76 = vld [vmem:[%s1 + $0xa0] sm:$0xff]
  %v77 = vld [vmem:[%s1 + $0xa8] sm:$0xff]
  %v78 = vld [vmem:[%s1 + $0xb0] sm:$0xff]
  %v79 = vld [vmem:[%s1 + $0xb8] sm:$0xff]
  %v80 = vld [vmem:[%s1 + $0xc0] sm:$0xff]
  %v81 = vld [vmem:[%s1 + $0xc8] sm:$0xff]
  %v82 = vld [vmem:[%s1 + $0xd0] sm:$0xff]
  %v83 = vld [vmem:[%s1 + $0xd8] sm:$0xff]
  %v84 = vld [vmem:[%s1 + $0xe0] sm:$0xff]
  %v85 = vld [vmem:[%s1 + $0xe8] sm:$0xff]
  %v86 = vld [vmem:[%s1 + $0xf0] sm:$0xff]
  %v87 = vld [vmem:[%s1 + $0xf8] sm:$0xff]
  %v88 = vld [vmem:[%s1 + $0x100] sm:$0xff]
  %v89 = vld [vmem:[%s1 + $0x108] sm:$0xff]
  %v90 = vld [vmem:[%s1 + $0x110] sm:$0xff]
  %v91 = vld [vmem:[%s1 + $0x118] sm:$0xff]
  %v92 = vld [vmem:[%s1 + $0x120] sm:$0xff]
  %v93 = vld [vmem:[%s1 + $0x128] sm:$0xff]
  %v94 = vld [vmem:[%s1 + $0x130] sm:$0xff]
  %v95 = vld [vmem:[%s1 + $0x138] sm:$0xff]
  %v96 = vld [vmem:[%s1 + $0x140] sm:$0xff]
  %v97 = vld [vmem:[%s1 + $0x148] sm:$0xff]
  %v98 = vld [vmem:[%s1 + $0x150] sm:$0xff]
  %v99 = vld [vmem:[%s1 + $0x158] sm:$0xff]
  %v100 = vld [vmem:[%s1 + $0x160] sm:$0xff]
  %v101 = vld [vmem:[%s1 + $0x168] sm:$0xff]
  %v102 = vld [vmem:[%s1 + $0x170] sm:$0xff]
  %v103 = vld [vmem:[%s1 + $0x178] sm:$0xff]
  %v104 = vld [vmem:[%s1 + $0x180] sm:$0xff]
  %v105 = vld [vmem:[%s1 + $0x188] sm:$0xff]
  %v106 = vld [vmem:[%s1 + $0x190] sm:$0xff]
  %v107 = vld [vmem:[%s1 + $0x198] sm:$0xff]
  %v108 = vld [vmem:[%s1 + $0x1a0] sm:$0xff]
  %v109 = vld [vmem:[%s1 + $0x1a8] sm:$0xff]
  %v110 = vld [vmem:[%s1 + $0x1b0] sm:$0xff]
  %v111 = vld [vmem:[%s1 + $0x1b8] sm:$0xff]
  %v112 = vld [vmem:[%s1 + $0x1c0] sm:$0xff]
  %v113 = vld [vmem:[%s1 + $0x1c8] sm:$0xff]
  %v114 = vld [vmem:[%s1 + $0x1d0] sm:$0xff]
  %v115 = vld [vmem:[%s1 + $0x1d8] sm:$0xff]
  %v116 = vld [vmem:[%s1 + $0x1e0] sm:$0xff]
  %v117 = vld [vmem:[%s1 + $0x1e8] sm:$0xff]
  %v118 = vld [vmem:[%s1 + $0x1f0] sm:$0xff]
  %v119 = vld [vmem:[%s1 + $0x1f8] sm:$0xff]
  %v120 = vld [vmem:[%s2] sm:$0x3]
  %v122 = vlaneseq
  %v123 = vshrl.u32 %v122, 7
  %v124 = vsub.s32 0, %v123
  %v125 = vrot.slane %v120, %v124
  %v126 = vlaneseq
  %v127 = vshrl.u32 %v126, 7
  %v128 = vsub.s32 1, %v127
  %v129 = vrot.slane %v120, %v128
  %v174 = vunpack.c.l.b16 %v14
  %v175 = vunpack.c.h.b16 %v14
  %v176 = vunpack.c.l.b16 %v15
  %v177 = vunpack.c.h.b16 %v15
  %v178 = vunpack.c.l.b16 %v16
  %v179 = vunpack.c.h.b16 %v16
  %v180 = vunpack.c.l.b16 %v17
  %v181 = vunpack.c.h.b16 %v17
  %v182 = vunpack.c.l.b16 %v18
  %v183 = vunpack.c.h.b16 %v18
  %v184 = vunpack.c.l.b16 %v19
  %v185 = vunpack.c.h.b16 %v19
  %v186 = vunpack.c.l.b16 %v20
  %v187 = vunpack.c.h.b16 %v20
  %v188 = vunpack.c.l.b16 %v21
  %v189 = vunpack.c.h.b16 %v21
  %v190 = vunpack.c.l.b16 %v22
  %v191 = vunpack.c.h.b16 %v22
  %v192 = vunpack.c.l.b16 %v23
  %v193 = vunpack.c.h.b16 %v23
  %v194 = vunpack.c.l.b16 %v24
  %v195 = vunpack.c.h.b16 %v24
  %v196 = vunpack.c.l.b16 %v25
  %v197 = vunpack.c.h.b16 %v25
  %v198 = vunpack.c.l.b16 %v26
  %v199 = vunpack.c.h.b16 %v26
  %v200 = vunpack.c.l.b16 %v27
  %v201 = vunpack.c.h.b16 %v27
  %v202 = vunpack.c.l.b16 %v28
  %v203 = vunpack.c.h.b16 %v28
  %v204 = vunpack.c.l.b16 %v29
  %v205 = vunpack.c.h.b16 %v29
  %v206 = vunpack.c.l.b16 %v30
  %v207 = vunpack.c.h.b16 %v30
  %v208 = vunpack.c.l.b16 %v31
  %v209 = vunpack.c.h.b16 %v31
  %v210 = vunpack.c.l.b16 %v32
  %v211 = vunpack.c.h.b16 %v32
  %v212 = vunpack.c.l.b16 %v33
  %v213 = vunpack.c.h.b16 %v33
  %v214 = vunpack.c.l.b16 %v34
  %v215 = vunpack.c.h.b16 %v34
  %v216 = vunpack.c.l.b16 %v35
  %v217 = vunpack.c.h.b16 %v35
  %v218 = vunpack.c.l.b16 %v36
  %v219 = vunpack.c.h.b16 %v36
  %v220 = vunpack.c.l.b16 %v37
  %v221 = vunpack.c.h.b16 %v37
  %v222 = vunpack.c.l.b16 %v38
  %v223 = vunpack.c.h.b16 %v38
  %v224 = vunpack.c.l.b16 %v39
  %v225 = vunpack.c.h.b16 %v39
  %v226 = vunpack.c.l.b16 %v40
  %v227 = vunpack.c.h.b16 %v40
  %v228 = vunpack.c.l.b16 %v41
  %v229 = vunpack.c.h.b16 %v41
  %v230 = vunpack.c.l.b16 %v42
  %v231 = vunpack.c.h.b16 %v42
  %v232 = vunpack.c.l.b16 %v43
  %v233 = vunpack.c.h.b16 %v43
  %v234 = vunpack.c.l.b16 %v44
  %v235 = vunpack.c.h.b16 %v44
  %v236 = vunpack.c.l.b16 %v45
  %v237 = vunpack.c.h.b16 %v45
  %v238 = vunpack.c.l.b16 %v46
  %v239 = vunpack.c.h.b16 %v46
  %v240 = vunpack.c.l.b16 %v47
  %v241 = vunpack.c.h.b16 %v47
  %v242 = vunpack.c.l.b16 %v48
  %v243 = vunpack.c.h.b16 %v48
  %v244 = vunpack.c.l.b16 %v49
  %v245 = vunpack.c.h.b16 %v49
  %v246 = vunpack.c.l.b16 %v50
  %v247 = vunpack.c.h.b16 %v50
  %v248 = vunpack.c.l.b16 %v51
  %v249 = vunpack.c.h.b16 %v51
  %v250 = vunpack.c.l.b16 %v52
  %v251 = vunpack.c.h.b16 %v52
  %v252 = vunpack.c.l.b16 %v53
  %v253 = vunpack.c.h.b16 %v53
  %v254 = vunpack.c.l.b16 %v54
  %v255 = vunpack.c.h.b16 %v54
  %v256 = vunpack.c.l.b16 %v55
  %v257 = vunpack.c.h.b16 %v55
  %v258 = vpack.c.b16 %v178, %v174
  %v259 = vpack.c.b16 %v179, %v175
  %v260 = vpack.c.b16 %v180, %v176
  %v261 = vpack.c.b16 %v181, %v177
  %v262 = vpack.c.b16 %v186, %v182
  %v263 = vpack.c.b16 %v187, %v183
  %v264 = vpack.c.b16 %v188, %v184
  %v265 = vpack.c.b16 %v189, %v185
  %v266 = vpack.c.b16 %v194, %v190
  %v267 = vpack.c.b16 %v195, %v191
  %v268 = vpack.c.b16 %v196, %v192
  %v269 = vpack.c.b16 %v197, %v193
  %v270 = vpack.c.b16 %v202, %v198
  %v271 = vpack.c.b16 %v203, %v199
  %v272 = vpack.c.b16 %v204, %v200
  %v273 = vpack.c.b16 %v205, %v201
  %v274 = vpack.c.b16 %v210, %v206
  %v275 = vpack.c.b16 %v211, %v207
  %v276 = vpack.c.b16 %v212, %v208
  %v277 = vpack.c.b16 %v213, %v209
  %v278 = vpack.c.b16 %v218, %v214
  %v279 = vpack.c.b16 %v219, %v215
  %v280 = vpack.c.b16 %v220, %v216
  %v281 = vpack.c.b16 %v221, %v217
  %v282 = vpack.c.b16 %v226, %v222
  %v283 = vpack.c.b16 %v227, %v223
  %v284 = vpack.c.b16 %v228, %v224
  %v285 = vpack.c.b16 %v229, %v225
  %v286 = vpack.c.b16 %v234, %v230
  %v287 = vpack.c.b16 %v235, %v231
  %v288 = vpack.c.b16 %v236, %v232
  %v289 = vpack.c.b16 %v237, %v233
  %v290 = vpack.c.b16 %v242, %v238
  %v291 = vpack.c.b16 %v243, %v239
  %v292 = vpack.c.b16 %v244, %v240
  %v293 = vpack.c.b16 %v245, %v241
  %v294 = vpack.c.b16 %v250, %v246
  %v295 = vpack.c.b16 %v251, %v247
  %v296 = vpack.c.b16 %v252, %v248
  %v297 = vpack.c.b16 %v253, %v249
  %v298 = vpack.c.b16 %v254, %v254
  %v299 = vpack.c.b16 %v255, %v255
  %v300 = vpack.c.b16 %v256, %v256
  %v301 = vpack.c.b16 %v257, %v257
  %v410 = vunpack.c.l.b16 %v56
  %v411 = vunpack.c.h.b16 %v56
  %v412 = vunpack.c.l.b16 %v57
  %v413 = vunpack.c.h.b16 %v57
  %v414 = vunpack.c.l.b16 %v58
  %v415 = vunpack.c.h.b16 %v58
  %v416 = vunpack.c.l.b16 %v59
  %v417 = vunpack.c.h.b16 %v59
  %v418 = vunpack.c.l.b16 %v60
  %v419 = vunpack.c.h.b16 %v60
  %v420 = vunpack.c.l.b16 %v61
  %v421 = vunpack.c.h.b16 %v61
  %v422 = vunpack.c.l.b16 %v62
  %v423 = vunpack.c.h.b16 %v62
  %v424 = vunpack.c.l.b16 %v63
  %v425 = vunpack.c.h.b16 %v63
  %v426 = vunpack.c.l.b16 %v64
  %v427 = vunpack.c.h.b16 %v64
  %v428 = vunpack.c.l.b16 %v65
  %v429 = vunpack.c.h.b16 %v65
  %v430 = vunpack.c.l.b16 %v66
  %v431 = vunpack.c.h.b16 %v66
  %v432 = vunpack.c.l.b16 %v67
  %v433 = vunpack.c.h.b16 %v67
  %v434 = vunpack.c.l.b16 %v68
  %v435 = vunpack.c.h.b16 %v68
  %v436 = vunpack.c.l.b16 %v69
  %v437 = vunpack.c.h.b16 %v69
  %v438 = vunpack.c.l.b16 %v70
  %v439 = vunpack.c.h.b16 %v70
  %v440 = vunpack.c.l.b16 %v71
  %v441 = vunpack.c.h.b16 %v71
  %v442 = vunpack.c.l.b16 %v72
  %v443 = vunpack.c.h.b16 %v72
  %v444 = vunpack.c.l.b16 %v73
  %v445 = vunpack.c.h.b16 %v73
  %v446 = vunpack.c.l.b16 %v74
  %v447 = vunpack.c.h.b16 %v74
  %v448 = vunpack.c.l.b16 %v75
  %v449 = vunpack.c.h.b16 %v75
  %v450 = vunpack.c.l.b16 %v76
  %v451 = vunpack.c.h.b16 %v76
  %v452 = vunpack.c.l.b16 %v77
  %v453 = vunpack.c.h.b16 %v77
  %v454 = vunpack.c.l.b16 %v78
  %v455 = vunpack.c.h.b16 %v78
  %v456 = vunpack.c.l.b16 %v79
  %v457 = vunpack.c.h.b16 %v79
  %v458 = vunpack.c.l.b16 %v80
  %v459 = vunpack.c.h.b16 %v80
  %v460 = vunpack.c.l.b16 %v81
  %v461 = vunpack.c.h.b16 %v81
  %v462 = vunpack.c.l.b16 %v82
  %v463 = vunpack.c.h.b16 %v82
  %v464 = vunpack.c.l.b16 %v83
  %v465 = vunpack.c.h.b16 %v83
  %v466 = vunpack.c.l.b16 %v84
  %v467 = vunpack.c.h.b16 %v84
  %v468 = vunpack.c.l.b16 %v85
  %v469 = vunpack.c.h.b16 %v85
  %v470 = vunpack.c.l.b16 %v86
  %v471 = vunpack.c.h.b16 %v86
  %v472 = vunpack.c.l.b16 %v87
  %v473 = vunpack.c.h.b16 %v87
  %v474 = vunpack.c.l.b16 %v88
  %v475 = vunpack.c.h.b16 %v88
  %v476 = vunpack.c.l.b16 %v89
  %v477 = vunpack.c.h.b16 %v89
  %v478 = vunpack.c.l.b16 %v90
  %v479 = vunpack.c.h.b16 %v90
  %v480 = vunpack.c.l.b16 %v91
  %v481 = vunpack.c.h.b16 %v91
  %v482 = vunpack.c.l.b16 %v92
  %v483 = vunpack.c.h.b16 %v92
  %v484 = vunpack.c.l.b16 %v93
  %v485 = vunpack.c.h.b16 %v93
  %v486 = vunpack.c.l.b16 %v94
  %v487 = vunpack.c.h.b16 %v94
  %v488 = vunpack.c.l.b16 %v95
  %v489 = vunpack.c.h.b16 %v95
  %v490 = vunpack.c.l.b16 %v96
  %v491 = vunpack.c.h.b16 %v96
  %v492 = vunpack.c.l.b16 %v97
  %v493 = vunpack.c.h.b16 %v97
  %v494 = vunpack.c.l.b16 %v98
  %v495 = vunpack.c.h.b16 %v98
  %v496 = vunpack.c.l.b16 %v99
  %v497 = vunpack.c.h.b16 %v99
  %v498 = vunpack.c.l.b16 %v100
  %v499 = vunpack.c.h.b16 %v100
  %v500 = vunpack.c.l.b16 %v101
  %v501 = vunpack.c.h.b16 %v101
  %v502 = vunpack.c.l.b16 %v102
  %v503 = vunpack.c.h.b16 %v102
  %v504 = vunpack.c.l.b16 %v103
  %v505 = vunpack.c.h.b16 %v103
  %v506 = vunpack.c.l.b16 %v104
  %v507 = vunpack.c.h.b16 %v104
  %v508 = vunpack.c.l.b16 %v105
  %v509 = vunpack.c.h.b16 %v105
  %v510 = vunpack.c.l.b16 %v106
  %v511 = vunpack.c.h.b16 %v106
  %v512 = vunpack.c.l.b16 %v107
  %v513 = vunpack.c.h.b16 %v107
  %v514 = vunpack.c.l.b16 %v108
  %v515 = vunpack.c.h.b16 %v108
  %v516 = vunpack.c.l.b16 %v109
  %v517 = vunpack.c.h.b16 %v109
  %v518 = vunpack.c.l.b16 %v110
  %v519 = vunpack.c.h.b16 %v110
  %v520 = vunpack.c.l.b16 %v111
  %v521 = vunpack.c.h.b16 %v111
  %v522 = vunpack.c.l.b16 %v112
  %v523 = vunpack.c.h.b16 %v112
  %v524 = vunpack.c.l.b16 %v113
  %v525 = vunpack.c.h.b16 %v113
  %v526 = vunpack.c.l.b16 %v114
  %v527 = vunpack.c.h.b16 %v114
  %v528 = vunpack.c.l.b16 %v115
  %v529 = vunpack.c.h.b16 %v115
  %v530 = vunpack.c.l.b16 %v116
  %v531 = vunpack.c.h.b16 %v116
  %v532 = vunpack.c.l.b16 %v117
  %v533 = vunpack.c.h.b16 %v117
  %v534 = vunpack.c.l.b16 %v118
  %v535 = vunpack.c.h.b16 %v118
  %v536 = vunpack.c.l.b16 %v119
  %v537 = vunpack.c.h.b16 %v119
  %v538 = vpack.c.b16 %v412, %v410
  %v539 = vpack.c.b16 %v413, %v411
  %v540 = vpack.c.b16 %v416, %v414
  %v541 = vpack.c.b16 %v417, %v415
  %v542 = vpack.c.b16 %v420, %v418
  %v543 = vpack.c.b16 %v421, %v419
  %v544 = vpack.c.b16 %v424, %v422
  %v545 = vpack.c.b16 %v425, %v423
  %v546 = vpack.c.b16 %v428, %v426
  %v547 = vpack.c.b16 %v429, %v427
  %v548 = vpack.c.b16 %v432, %v430
  %v549 = vpack.c.b16 %v433, %v431
  %v550 = vpack.c.b16 %v436, %v434
  %v551 = vpack.c.b16 %v437, %v435
  %v552 = vpack.c.b16 %v440, %v438
  %v553 = vpack.c.b16 %v441, %v439
  %v554 = vpack.c.b16 %v444, %v442
  %v555 = vpack.c.b16 %v445, %v443
  %v556 = vpack.c.b16 %v448, %v446
  %v557 = vpack.c.b16 %v449, %v447
  %v558 = vpack.c.b16 %v452, %v450
  %v559 = vpack.c.b16 %v453, %v451
  %v560 = vpack.c.b16 %v456, %v454
  %v561 = vpack.c.b16 %v457, %v455
  %v562 = vpack.c.b16 %v460, %v458
  %v563 = vpack.c.b16 %v461, %v459
  %v564 = vpack.c.b16 %v464, %v462
  %v565 = vpack.c.b16 %v465, %v463
  %v566 = vpack.c.b16 %v468, %v466
  %v567 = vpack.c.b16 %v469, %v467
  %v568 = vpack.c.b16 %v472, %v470
  %v569 = vpack.c.b16 %v473, %v471
  %v570 = vpack.c.b16 %v476, %v474
  %v571 = vpack.c.b16 %v477, %v475
  %v572 = vpack.c.b16 %v480, %v478
  %v573 = vpack.c.b16 %v481, %v479
  %v574 = vpack.c.b16 %v484, %v482
  %v575 = vpack.c.b16 %v485, %v483
  %v576 = vpack.c.b16 %v488, %v486
  %v577 = vpack.c.b16 %v489, %v487
  %v578 = vpack.c.b16 %v492, %v490
  %v579 = vpack.c.b16 %v493, %v491
  %v580 = vpack.c.b16 %v496, %v494
  %v581 = vpack.c.b16 %v497, %v495
  %v582 = vpack.c.b16 %v500, %v498
  %v583 = vpack.c.b16 %v501, %v499
  %v584 = vpack.c.b16 %v504, %v502
  %v585 = vpack.c.b16 %v505, %v503
  %v586 = vpack.c.b16 %v508, %v506
  %v587 = vpack.c.b16 %v509, %v507
  %v588 = vpack.c.b16 %v512, %v510
  %v589 = vpack.c.b16 %v513, %v511
  %v590 = vpack.c.b16 %v516, %v514
  %v591 = vpack.c.b16 %v517, %v515
  %v592 = vpack.c.b16 %v520, %v518
  %v593 = vpack.c.b16 %v521, %v519
  %v594 = vpack.c.b16 %v524, %v522
  %v595 = vpack.c.b16 %v525, %v523
  %v596 = vpack.c.b16 %v528, %v526
  %v597 = vpack.c.b16 %v529, %v527
  %v598 = vpack.c.b16 %v532, %v530
  %v599 = vpack.c.b16 %v533, %v531
  %v600 = vpack.c.b16 %v536, %v534
  %v601 = vpack.c.b16 %v537, %v535
  %666 = vmatprep.subr.bf16.mxu0 %v539
  %667 = vmatpush1.bf16.msra.mxu0 %v538
  %668 = vmatprep.subr.bf16.mxu0 %v541
  %669 = vmatpush1.bf16.msra.mxu0 %v540
  %670 = vmatprep.subr.bf16.mxu0 %v543
  %671 = vmatpush1.bf16.msra.mxu0 %v542
  %672 = vmatprep.subr.bf16.mxu0 %v545
  %673 = vmatpush1.bf16.msra.mxu0 %v544
  %674 = vmatprep.subr.bf16.mxu0 %v547
  %675 = vmatpush1.bf16.msra.mxu0 %v546
  %676 = vmatprep.subr.bf16.mxu0 %v549
  %677 = vmatpush1.bf16.msra.mxu0 %v548
  %678 = vmatprep.subr.bf16.mxu0 %v551
  %679 = vmatpush1.bf16.msra.mxu0 %v550
  %680 = vmatprep.subr.bf16.mxu0 %v553
  %681 = vmatpush1.bf16.msra.mxu0 %v552
  %682 = vmatprep.subr.bf16.mxu0 %v555
  %683 = vmatpush1.bf16.msra.mxu0 %v554
  %684 = vmatprep.subr.bf16.mxu0 %v557
  %685 = vmatpush1.bf16.msra.mxu0 %v556
  %686 = vmatprep.subr.bf16.mxu0 %v559
  %687 = vmatpush1.bf16.msra.mxu0 %v558
  %688 = vmatprep.subr.bf16.mxu0 %v561
  %689 = vmatpush1.bf16.msra.mxu0 %v560
  %690 = vmatprep.subr.bf16.mxu0 %v563
  %691 = vmatpush1.bf16.msra.mxu0 %v562
  %692 = vmatprep.subr.bf16.mxu0 %v565
  %693 = vmatpush1.bf16.msra.mxu0 %v564
  %694 = vmatprep.subr.bf16.mxu0 %v567
  %695 = vmatpush1.bf16.msra.mxu0 %v566
  %696 = vmatprep.subr.bf16.mxu0 %v569
  %697 = vmatpush1.bf16.msra.mxu0 %v568
  %698 = vmatprep.mubr.bf16.mxu0 %v259
  %699 = vmatmul.mubr.bf16.gmra.mrb[0].mxu0 %v258
  %v700 = vpop.f32.mrb[0].mxu0
  %v701 = vadd.f32 %v125, %v700
  %v702 = vpop.f32.mrb[0].mxu0
  %v703 = vadd.f32 %v129, %v702
  %v704 = vpop.f32.mrb[0].mxu0
  %v705 = vadd.f32 %v125, %v704
  %v706 = vpop.f32.mrb[0].mxu0
  %v707 = vadd.f32 %v129, %v706
  %708 = vmatprep.mubr.bf16.mxu0 %v263
  %709 = vmatmul.mubr.bf16.gmra.mrb[0].mxu0 %v262
  %v710 = vpop.f32.mrb[0].mxu0
  %v711 = vadd.f32 %v125, %v710
  %v712 = vpop.f32.mrb[0].mxu0
  %v713 = vadd.f32 %v129, %v712
  %v714 = vpop.f32.mrb[0].mxu0
  %v715 = vadd.f32 %v125, %v714
  %v716 = vpop.f32.mrb[0].mxu0
  %v717 = vadd.f32 %v129, %v716
  %718 = vmatprep.mubr.bf16.mxu0 %v267
  %719 = vmatmul.mubr.bf16.gmra.mrb[0].mxu0 %v266
  %v720 = vpop.f32.mrb[0].mxu0
  %v721 = vadd.f32 %v125, %v720
  %v722 = vpop.f32.mrb[0].mxu0
  %v723 = vadd.f32 %v129, %v722
  %v724 = vpop.f32.mrb[0].mxu0
  %v725 = vadd.f32 %v125, %v724
  %v726 = vpop.f32.mrb[0].mxu0
  %v727 = vadd.f32 %v129, %v726
  %728 = vmatprep.mubr.bf16.mxu0 %v271
  %729 = vmatmul.mubr.bf16.gmra.mrb[0].mxu0 %v270
  %v730 = vpop.f32.mrb[0].mxu0
  %v731 = vadd.f32 %v125, %v730
  %v732 = vpop.f32.mrb[0].mxu0
  %v733 = vadd.f32 %v129, %v732
  %v734 = vpop.f32.mrb[0].mxu0
  %v735 = vadd.f32 %v125, %v734
  %v736 = vpop.f32.mrb[0].mxu0
  %v737 = vadd.f32 %v129, %v736
  %738 = vmatprep.mubr.bf16.mxu0 %v275
  %739 = vmatmul.mubr.bf16.gmra.mrb[0].mxu0 %v274
  %v740 = vpop.f32.mrb[0].mxu0
  %v741 = vadd.f32 %v125, %v740
  %v742 = vpop.f32.mrb[0].mxu0
  %v743 = vadd.f32 %v129, %v742
  %v744 = vpop.f32.mrb[0].mxu0
  %v745 = vadd.f32 %v125, %v744
  %v746 = vpop.f32.mrb[0].mxu0
  %v747 = vadd.f32 %v129, %v746
  %748 = vmatprep.mubr.bf16.mxu0 %v279
  %749 = vmatmul.mubr.bf16.gmra.mrb[0].mxu0 %v278
  %v750 = vpop.f32.mrb[0].mxu0
  %v751 = vadd.f32 %v125, %v750
  %v752 = vpop.f32.mrb[0].mxu0
  %v753 = vadd.f32 %v129, %v752
  %v754 = vpop.f32.mrb[0].mxu0
  %v755 = vadd.f32 %v125, %v754
  %v756 = vpop.f32.mrb[0].mxu0
  %v757 = vadd.f32 %v129, %v756
  %758 = vmatprep.mubr.bf16.mxu0 %v283
  %759 = vmatmul.mubr.bf16.gmra.mrb[0].mxu0 %v282
  %v760 = vpop.f32.mrb[0].mxu0
  %v761 = vadd.f32 %v125, %v760
  %v762 = vpop.f32.mrb[0].mxu0
  %v763 = vadd.f32 %v129, %v762
  %v764 = vpop.f32.mrb[0].mxu0
  %v765 = vadd.f32 %v125, %v764
  %v766 = vpop.f32.mrb[0].mxu0
  %v767 = vadd.f32 %v129, %v766
  %768 = vmatprep.mubr.bf16.mxu0 %v287
  %769 = vmatmul.mubr.bf16.gmra.mrb[0].mxu0 %v286
  %v770 = vpop.f32.mrb[0].mxu0
  %v771 = vadd.f32 %v125, %v770
  %v772 = vpop.f32.mrb[0].mxu0
  %v773 = vadd.f32 %v129, %v772
  %v774 = vpop.f32.mrb[0].mxu0
  %v775 = vadd.f32 %v125, %v774
  %v776 = vpop.f32.mrb[0].mxu0
  %v777 = vadd.f32 %v129, %v776
  %778 = vmatprep.mubr.bf16.mxu0 %v291
  %779 = vmatmul.mubr.bf16.gmra.mrb[0].mxu0 %v290
  %v780 = vpop.f32.mrb[0].mxu0
  %v781 = vadd.f32 %v125, %v780
  %v782 = vpop.f32.mrb[0].mxu0
  %v783 = vadd.f32 %v129, %v782
  %v784 = vpop.f32.mrb[0].mxu0
  %v785 = vadd.f32 %v125, %v784
  %v786 = vpop.f32.mrb[0].mxu0
  %v787 = vadd.f32 %v129, %v786
  %788 = vmatprep.mubr.bf16.mxu0 %v295
  %789 = vmatmul.mubr.bf16.gmra.mrb[0].mxu0 %v294
  %v790 = vpop.f32.mrb[0].mxu0
  %v791 = vadd.f32 %v125, %v790
  %v792 = vpop.f32.mrb[0].mxu0
  %v793 = vadd.f32 %v129, %v792
  %v794 = vpop.f32.mrb[0].mxu0
  %v795 = vadd.f32 %v125, %v794
  %v796 = vpop.f32.mrb[0].mxu0
  %v797 = vadd.f32 %v129, %v796
  %798 = vmatprep.mubr.bf16.mxu0 %v299
  %799 = vmatmul.mubr.bf16.gmra.mrb[0].mxu0 %v298
  %v800 = vpop.f32.mrb[0].mxu0
  %v801 = vadd.f32 %v125, %v800
  %v802 = vpop.f32.mrb[0].mxu0
  %v803 = vadd.f32 %v129, %v802
  %v804 = vpop.f32.mrb[0].mxu0
  %v805 = vpop.f32.mrb[0].mxu0
  %806 = vdwg.mxu0
  %807 = vmatprep.subr.bf16.mxu0 %v571
  %808 = vmatpush1.bf16.msra.mxu0 %v570
  %809 = vmatprep.subr.bf16.mxu0 %v573
  %810 = vmatpush1.bf16.msra.mxu0 %v572
  %811 = vmatprep.subr.bf16.mxu0 %v575
  %812 = vmatpush1.bf16.msra.mxu0 %v574
  %813 = vmatprep.subr.bf16.mxu0 %v577
  %814 = vmatpush1.bf16.msra.mxu0 %v576
  %815 = vmatprep.subr.bf16.mxu0 %v579
  %816 = vmatpush1.bf16.msra.mxu0 %v578
  %817 = vmatprep.subr.bf16.mxu0 %v581
  %818 = vmatpush1.bf16.msra.mxu0 %v580
  %819 = vmatprep.subr.bf16.mxu0 %v583
  %820 = vmatpush1.bf16.msra.mxu0 %v582
  %821 = vmatprep.subr.bf16.mxu0 %v585
  %822 = vmatpush1.bf16.msra.mxu0 %v584
  %823 = vmatprep.subr.bf16.mxu0 %v587
  %824 = vmatpush1.bf16.msra.mxu0 %v586
  %825 = vmatprep.subr.bf16.mxu0 %v589
  %826 = vmatpush1.bf16.msra.mxu0 %v588
  %827 = vmatprep.subr.bf16.mxu0 %v591
  %828 = vmatpush1.bf16.msra.mxu0 %v590
  %829 = vmatprep.subr.bf16.mxu0 %v593
  %830 = vmatpush1.bf16.msra.mxu0 %v592
  %831 = vmatprep.subr.bf16.mxu0 %v595
  %832 = vmatpush1.bf16.msra.mxu0 %v594
  %833 = vmatprep.subr.bf16.mxu0 %v597
  %834 = vmatpush1.bf16.msra.mxu0 %v596
  %835 = vmatprep.subr.bf16.mxu0 %v599
  %836 = vmatpush1.bf16.msra.mxu0 %v598
  %837 = vmatprep.subr.bf16.mxu0 %v601
  %838 = vmatpush1.bf16.msra.mxu0 %v600
  %839 = vmatprep.mubr.bf16.mxu0 %v261
  %840 = vmatmul.mubr.bf16.gmra.mrb[0].mxu0 %v260
  %v841 = vpop.f32.mrb[0].mxu0
  %v842 = vadd.f32 %v701, %v841
  %v843 = vpop.f32.mrb[0].mxu0
  %v844 = vadd.f32 %v703, %v843
  %v845 = vpop.f32.mrb[0].mxu0
  %v846 = vadd.f32 %v705, %v845
  %v847 = vpop.f32.mrb[0].mxu0
  %v848 = vadd.f32 %v707, %v847
  %849 = vmatprep.mubr.bf16.mxu0 %v265
  %850 = vmatmul.mubr.bf16.gmra.mrb[0].mxu0 %v264
  %v851 = vpop.f32.mrb[0].mxu0
  %v852 = vadd.f32 %v711, %v851
  %v853 = vpop.f32.mrb[0].mxu0
  %v854 = vadd.f32 %v713, %v853
  %v855 = vpop.f32.mrb[0].mxu0
  %v856 = vadd.f32 %v715, %v855
  %v857 = vpop.f32.mrb[0].mxu0
  %v858 = vadd.f32 %v717, %v857
  %859 = vmatprep.mubr.bf16.mxu0 %v269
  %860 = vmatmul.mubr.bf16.gmra.mrb[0].mxu0 %v268
  %v861 = vpop.f32.mrb[0].mxu0
  %v862 = vadd.f32 %v721, %v861
  %v863 = vpop.f32.mrb[0].mxu0
  %v864 = vadd.f32 %v723, %v863
  %v865 = vpop.f32.mrb[0].mxu0
  %v866 = vadd.f32 %v725, %v865
  %v867 = vpop.f32.mrb[0].mxu0
  %v868 = vadd.f32 %v727, %v867
  %869 = vmatprep.mubr.bf16.mxu0 %v273
  %870 = vmatmul.mubr.bf16.gmra.mrb[0].mxu0 %v272
  %v871 = vpop.f32.mrb[0].mxu0
  %v872 = vadd.f32 %v731, %v871
  %v873 = vpop.f32.mrb[0].mxu0
  %v874 = vadd.f32 %v733, %v873
  %v875 = vpop.f32.mrb[0].mxu0
  %v876 = vadd.f32 %v735, %v875
  %v877 = vpop.f32.mrb[0].mxu0
  %v878 = vadd.f32 %v737, %v877
  %879 = vmatprep.mubr.bf16.mxu0 %v277
  %880 = vmatmul.mubr.bf16.gmra.mrb[0].mxu0 %v276
  %v881 = vpop.f32.mrb[0].mxu0
  %v882 = vadd.f32 %v741, %v881
  %v883 = vpop.f32.mrb[0].mxu0
  %v884 = vadd.f32 %v743, %v883
  %v885 = vpop.f32.mrb[0].mxu0
  %v886 = vadd.f32 %v745, %v885
  %v887 = vpop.f32.mrb[0].mxu0
  %v888 = vadd.f32 %v747, %v887
  %889 = vmatprep.mubr.bf16.mxu0 %v281
  %890 = vmatmul.mubr.bf16.gmra.mrb[0].mxu0 %v280
  %v891 = vpop.f32.mrb[0].mxu0
  %v892 = vadd.f32 %v751, %v891
  %v893 = vpop.f32.mrb[0].mxu0
  %v894 = vadd.f32 %v753, %v893
  %v895 = vpop.f32.mrb[0].mxu0
  %v896 = vadd.f32 %v755, %v895
  %v897 = vpop.f32.mrb[0].mxu0
  %v898 = vadd.f32 %v757, %v897
  %899 = vmatprep.mubr.bf16.mxu0 %v285
  %900 = vmatmul.mubr.bf16.gmra.mrb[0].mxu0 %v284
  %v901 = vpop.f32.mrb[0].mxu0
  %v902 = vadd.f32 %v761, %v901
  %v903 = vpop.f32.mrb[0].mxu0
  %v904 = vadd.f32 %v763, %v903
  %v905 = vpop.f32.mrb[0].mxu0
  %v906 = vadd.f32 %v765, %v905
  %v907 = vpop.f32.mrb[0].mxu0
  %v908 = vadd.f32 %v767, %v907
  %909 = vmatprep.mubr.bf16.mxu0 %v289
  %910 = vmatmul.mubr.bf16.gmra.mrb[0].mxu0 %v288
  %v911 = vpop.f32.mrb[0].mxu0
  %v912 = vadd.f32 %v771, %v911
  %v913 = vpop.f32.mrb[0].mxu0
  %v914 = vadd.f32 %v773, %v913
  %v915 = vpop.f32.mrb[0].mxu0
  %v916 = vadd.f32 %v775, %v915
  %v917 = vpop.f32.mrb[0].mxu0
  %v918 = vadd.f32 %v777, %v917
  %919 = vmatprep.mubr.bf16.mxu0 %v293
  %920 = vmatmul.mubr.bf16.gmra.mrb[0].mxu0 %v292
  %v921 = vpop.f32.mrb[0].mxu0
  %v922 = vadd.f32 %v781, %v921
  %v923 = vpop.f32.mrb[0].mxu0
  %v924 = vadd.f32 %v783, %v923
  %v925 = vpop.f32.mrb[0].mxu0
  %v926 = vadd.f32 %v785, %v925
  %v927 = vpop.f32.mrb[0].mxu0
  %v928 = vadd.f32 %v787, %v927
  %929 = vmatprep.mubr.bf16.mxu0 %v297
  %930 = vmatmul.mubr.bf16.gmra.mrb[0].mxu0 %v296
  %v931 = vpop.f32.mrb[0].mxu0
  %v932 = vadd.f32 %v791, %v931
  %v933 = vpop.f32.mrb[0].mxu0
  %v934 = vadd.f32 %v793, %v933
  %v935 = vpop.f32.mrb[0].mxu0
  %v936 = vadd.f32 %v795, %v935
  %v937 = vpop.f32.mrb[0].mxu0
  %v938 = vadd.f32 %v797, %v937
  %939 = vmatprep.mubr.bf16.mxu0 %v301
  %940 = vmatmul.mubr.bf16.gmra.mrb[0].mxu0 %v300
  %v941 = vpop.f32.mrb[0].mxu0
  %v942 = vadd.f32 %v801, %v941
  %v943 = vpop.f32.mrb[0].mxu0
  %v944 = vadd.f32 %v803, %v943
  %v945 = vpop.f32.mrb[0].mxu0
  %v946 = vpop.f32.mrb[0].mxu0
  %947 = vdwg.mxu0
  %948 = vst [vmem:[%s3] sm:$0xff] %v842
  %949 = vst [vmem:[%s3 + $0x8] sm:$0xff] %v844
  %950 = vst [vmem:[%s3 + $0x10] sm:$0xff] %v846
  %951 = vst [vmem:[%s3 + $0x18] sm:$0xff] %v848
  %952 = vst [vmem:[%s3 + $0x20] sm:$0xff] %v852
  %953 = vst [vmem:[%s3 + $0x28] sm:$0xff] %v854
  %954 = vst [vmem:[%s3 + $0x30] sm:$0xff] %v856
  %955 = vst [vmem:[%s3 + $0x38] sm:$0xff] %v858
  %956 = vst [vmem:[%s3 + $0x40] sm:$0xff] %v862
  %957 = vst [vmem:[%s3 + $0x48] sm:$0xff] %v864
  %958 = vst [vmem:[%s3 + $0x50] sm:$0xff] %v866
  %959 = vst [vmem:[%s3 + $0x58] sm:$0xff] %v868
  %960 = vst [vmem:[%s3 + $0x60] sm:$0xff] %v872
  %961 = vst [vmem:[%s3 + $0x68] sm:$0xff] %v874
  %962 = vst [vmem:[%s3 + $0x70] sm:$0xff] %v876
  %963 = vst [vmem:[%s3 + $0x78] sm:$0xff] %v878
  %964 = vst [vmem:[%s3 + $0x80] sm:$0xff] %v882
  %965 = vst [vmem:[%s3 + $0x88] sm:$0xff] %v884
  %966 = vst [vmem:[%s3 + $0x90] sm:$0xff] %v886
  %967 = vst [vmem:[%s3 + $0x98] sm:$0xff] %v888
  %968 = vst [vmem:[%s3 + $0xa0] sm:$0xff] %v892
  %969 = vst [vmem:[%s3 + $0xa8] sm:$0xff] %v894
  %970 = vst [vmem:[%s3 + $0xb0] sm:$0xff] %v896
  %971 = vst [vmem:[%s3 + $0xb8] sm:$0xff] %v898
  %972 = vst [vmem:[%s3 + $0xc0] sm:$0xff] %v902
  %973 = vst [vmem:[%s3 + $0xc8] sm:$0xff] %v904
  %974 = vst [vmem:[%s3 + $0xd0] sm:$0xff] %v906
  %975 = vst [vmem:[%s3 + $0xd8] sm:$0xff] %v908
  %976 = vst [vmem:[%s3 + $0xe0] sm:$0xff] %v912
  %977 = vst [vmem:[%s3 + $0xe8] sm:$0xff] %v914
  %978 = vst [vmem:[%s3 + $0xf0] sm:$0xff] %v916
  %979 = vst [vmem:[%s3 + $0xf8] sm:$0xff] %v918
  %980 = vst [vmem:[%s3 + $0x100] sm:$0xff] %v922
  %981 = vst [vmem:[%s3 + $0x108] sm:$0xff] %v924
  %982 = vst [vmem:[%s3 + $0x110] sm:$0xff] %v926
  %983 = vst [vmem:[%s3 + $0x118] sm:$0xff] %v928
  %984 = vst [vmem:[%s3 + $0x120] sm:$0xff] %v932
  %985 = vst [vmem:[%s3 + $0x128] sm:$0xff] %v934
  %986 = vst [vmem:[%s3 + $0x130] sm:$0xff] %v936
  %987 = vst [vmem:[%s3 + $0x138] sm:$0xff] %v938
  %988 = vst [vmem:[%s3 + $0x140] sm:$0x3] %v942
  %989 = vst [vmem:[%s3 + $0x148] sm:$0x3] %v944
  // Predicated region
  $region14: #{generator_forward.18} parent=0 // pred_check
    _
  $region15: #{generator_forward.18} parent=0 // pred_check_branch
    %991 = sbr.rel (0) target = $region17
  $region16: #{generator_forward.18} parent=0 // pred_region
    _
  $region17: #{generator_forward.18} parent=0 // pred_fallthru
    _
  // Predicated region
  $region18: #{generator_forward.18} parent=0 // pred_check
    _
  $region19: #{generator_forward.18} parent=0 // pred_check_branch
    %993 = sbr.rel (0) target = $region21
  $region20: #{generator_forward.18} parent=0 // pred_region
    _
  $region21: #{generator_forward.18} parent=0 // pred_fallthru
    _

// kernel: generator_forward.19
$region0: #{generator_forward.19}
  #allocation0 [shape = 'u32[]', space=smem, size = 0x4, offset = 0x4, fixed_abs, tag = 'smem constant byte address 0x4 - core index']
  #allocation1 [shape = 'u32[144,128]{1,0:T(1,128)}', space=vmem, size = 0x12000, scoped, tag = 'internal scratch']
  %s0 = inlined_call_operand.vmem [shape: f32[512,64], index: 0, kind: input, shape index: {}]
  %s1 = inlined_call_operand.vmem [shape: f32[1,64], index: 1, kind: output, shape index: {0}]
  %s2 = inlined_call_operand.vmem [shape: f32[1,64], index: 2, kind: output, shape index: {1}]
  %3 = xla_tuple %s1, %s2
  %s4 = sld [smem:[#allocation0]]
  $region26: #{generator_forward.19} parent=0
    _
  %s6 = ssub.s32 1, %s4
  %s7 = scalar_select 0, %s6, %s4
  // Predicated region
  $region2: #{generator_forward.19} parent=0 // pred_check
    _
  $region3: #{generator_forward.19} parent=0 // pred_check_branch
    %9 = sbr.rel (0) target = $region5
  $region4: #{generator_forward.19} parent=0 // pred_region
    _
  $region5: #{generator_forward.19} parent=0 // pred_fallthru
    _
  %p10 = scmp.eq.s32.totalorder 0, 0
  // Predicated region
  $region6: #{generator_forward.19} parent=0 // pred_check
    %p11 = pneg %p10
  $region7: #{generator_forward.19} parent=0 // pred_check_branch
    %13 = sbr.rel (%p11) target = $region9
  $region8: #{generator_forward.19} parent=0 // pred_region
    %vm14 = vcmask 516096
    %15 = vst.msk [vmem:[%s1] sm:$0x1] %vm14, 0.0
    %16 = vst.msk [vmem:[%s2] sm:$0x1] %vm14, 0.0
  $region9: #{generator_forward.19} parent=0 // pred_fallthru
    _
  %v17 = vld [vmem:[%s0] sm:$0xff]
  %v18 = vld [vmem:[%s0 + $0x8] sm:$0xff]
  %v19 = vld [vmem:[%s0 + $0x10] sm:$0xff]
  %v20 = vld [vmem:[%s0 + $0x18] sm:$0xff]
  %v21 = vld [vmem:[%s0 + $0x20] sm:$0xff]
  %v22 = vld [vmem:[%s0 + $0x28] sm:$0xff]
  %v23 = vld [vmem:[%s0 + $0x30] sm:$0xff]
  %v24 = vld [vmem:[%s0 + $0x38] sm:$0xff]
  %v25 = vld [vmem:[%s0 + $0x40] sm:$0xff]
  %v26 = vld [vmem:[%s0 + $0x48] sm:$0xff]
  %v27 = vld [vmem:[%s0 + $0x50] sm:$0xff]
  %v28 = vld [vmem:[%s0 + $0x58] sm:$0xff]
  %v29 = vld [vmem:[%s0 + $0x60] sm:$0xff]
  %v30 = vld [vmem:[%s0 + $0x68] sm:$0xff]
  %v31 = vld [vmem:[%s0 + $0x70] sm:$0xff]
  %v32 = vld [vmem:[%s0 + $0x78] sm:$0xff]
  %v33 = vld [vmem:[%s0 + $0x80] sm:$0xff]
  %v34 = vld [vmem:[%s0 + $0x88] sm:$0xff]
  %v35 = vld [vmem:[%s0 + $0x90] sm:$0xff]
  %v36 = vld [vmem:[%s0 + $0x98] sm:$0xff]
  %v37 = vld [vmem:[%s0 + $0xa0] sm:$0xff]
  %v38 = vld [vmem:[%s0 + $0xa8] sm:$0xff]
  %v39 = vld [vmem:[%s0 + $0xb0] sm:$0xff]
  %v40 = vld [vmem:[%s0 + $0xb8] sm:$0xff]
  %v41 = vld [vmem:[%s0 + $0xc0] sm:$0xff]
  %v42 = vld [vmem:[%s0 + $0xc8] sm:$0xff]
  %v43 = vld [vmem:[%s0 + $0xd0] sm:$0xff]
  %v44 = vld [vmem:[%s0 + $0xd8] sm:$0xff]
  %v45 = vld [vmem:[%s0 + $0xe0] sm:$0xff]
  %v46 = vld [vmem:[%s0 + $0xe8] sm:$0xff]
  %v47 = vld [vmem:[%s0 + $0xf0] sm:$0xff]
  %v48 = vld [vmem:[%s0 + $0xf8] sm:$0xff]
  %v49 = vld [vmem:[%s0 + $0x100] sm:$0xff]
  %v50 = vld [vmem:[%s0 + $0x108] sm:$0xff]
  %v51 = vld [vmem:[%s0 + $0x110] sm:$0xff]
  %v52 = vld [vmem:[%s0 + $0x118] sm:$0xff]
  %v53 = vld [vmem:[%s0 + $0x120] sm:$0xff]
  %v54 = vld [vmem:[%s0 + $0x128] sm:$0xff]
  %v55 = vld [vmem:[%s0 + $0x130] sm:$0xff]
  %v56 = vld [vmem:[%s0 + $0x138] sm:$0xff]
  %v57 = vld [vmem:[%s0 + $0x140] sm:$0xff]
  %v58 = vld [vmem:[%s0 + $0x148] sm:$0xff]
  %v59 = vld [vmem:[%s0 + $0x150] sm:$0xff]
  %v60 = vld [vmem:[%s0 + $0x158] sm:$0xff]
  %v61 = vld [vmem:[%s0 + $0x160] sm:$0xff]
  %v62 = vld [vmem:[%s0 + $0x168] sm:$0xff]
  %v63 = vld [vmem:[%s0 + $0x170] sm:$0xff]
  %v64 = vld [vmem:[%s0 + $0x178] sm:$0xff]
  %v65 = vld [vmem:[%s0 + $0x180] sm:$0xff]
  %v66 = vld [vmem:[%s0 + $0x188] sm:$0xff]
  %v67 = vld [vmem:[%s0 + $0x190] sm:$0xff]
  %v68 = vld [vmem:[%s0 + $0x198] sm:$0xff]
  %v69 = vld [vmem:[%s0 + $0x1a0] sm:$0xff]
  %v70 = vld [vmem:[%s0 + $0x1a8] sm:$0xff]
  %v71 = vld [vmem:[%s0 + $0x1b0] sm:$0xff]
  %v72 = vld [vmem:[%s0 + $0x1b8] sm:$0xff]
  %v73 = vld [vmem:[%s0 + $0x1c0] sm:$0xff]
  %v74 = vld [vmem:[%s0 + $0x1c8] sm:$0xff]
  %v75 = vld [vmem:[%s0 + $0x1d0] sm:$0xff]
  %v76 = vld [vmem:[%s0 + $0x1d8] sm:$0xff]
  %v77 = vld [vmem:[%s0 + $0x1e0] sm:$0xff]
  %v78 = vld [vmem:[%s0 + $0x1e8] sm:$0xff]
  %v79 = vld [vmem:[%s0 + $0x1f0] sm:$0xff]
  %v80 = vld [vmem:[%s0 + $0x1f8] sm:$0xff]
  %v81 = vld [vmem:[%s1] sm:$0x1]
  %vm82 = vcmask 523264
  %v83 = vsel %vm82, %v17, 0.0
  %v84 = vsel %vm82, %v18, 0.0
  %v85 = vadd.f32 %v83, %v84
  %v86 = vsel %vm82, %v19, 0.0
  %v87 = vadd.f32 %v85, %v86
  %v88 = vsel %vm82, %v20, 0.0
  %v89 = vadd.f32 %v87, %v88
  %v90 = vsel %vm82, %v21, 0.0
  %v91 = vadd.f32 %v89, %v90
  %v92 = vsel %vm82, %v22, 0.0
  %v93 = vadd.f32 %v91, %v92
  %v94 = vsel %vm82, %v23, 0.0
  %v95 = vadd.f32 %v93, %v94
  %v96 = vsel %vm82, %v24, 0.0
  %v97 = vadd.f32 %v95, %v96
  %v98 = vsel %vm82, %v25, 0.0
  %v99 = vadd.f32 %v97, %v98
  %v100 = vsel %vm82, %v26, 0.0
  %v101 = vadd.f32 %v99, %v100
  %v102 = vsel %vm82, %v27, 0.0
  %v103 = vadd.f32 %v101, %v102
  %v104 = vsel %vm82, %v28, 0.0
  %v105 = vadd.f32 %v103, %v104
  %v106 = vsel %vm82, %v29, 0.0
  %v107 = vadd.f32 %v105, %v106
  %v108 = vsel %vm82, %v30, 0.0
  %v109 = vadd.f32 %v107, %v108
  %v110 = vsel %vm82, %v31, 0.0
  %v111 = vadd.f32 %v109, %v110
  %v112 = vsel %vm82, %v32, 0.0
  %v113 = vadd.f32 %v111, %v112
  %v114 = vsel %vm82, %v33, 0.0
  %v115 = vadd.f32 %v113, %v114
  %v116 = vsel %vm82, %v34, 0.0
  %v117 = vadd.f32 %v115, %v116
  %v118 = vsel %vm82, %v35, 0.0
  %v119 = vadd.f32 %v117, %v118
  %v120 = vsel %vm82, %v36, 0.0
  %v121 = vadd.f32 %v119, %v120
  %v122 = vsel %vm82, %v37, 0.0
  %v123 = vadd.f32 %v121, %v122
  %v124 = vsel %vm82, %v38, 0.0
  %v125 = vadd.f32 %v123, %v124
  %v126 = vsel %vm82, %v39, 0.0
  %v127 = vadd.f32 %v125, %v126
  %v128 = vsel %vm82, %v40, 0.0
  %v129 = vadd.f32 %v127, %v128
  %v130 = vsel %vm82, %v41, 0.0
  %v131 = vadd.f32 %v129, %v130
  %v132 = vsel %vm82, %v42, 0.0
  %v133 = vadd.f32 %v131, %v132
  %v134 = vsel %vm82, %v43, 0.0
  %v135 = vadd.f32 %v133, %v134
  %v136 = vsel %vm82, %v44, 0.0
  %v137 = vadd.f32 %v135, %v136
  %v138 = vsel %vm82, %v45, 0.0
  %v139 = vadd.f32 %v137, %v138
  %v140 = vsel %vm82, %v46, 0.0
  %v141 = vadd.f32 %v139, %v140
  %v142 = vsel %vm82, %v47, 0.0
  %v143 = vadd.f32 %v141, %v142
  %v144 = vsel %vm82, %v48, 0.0
  %v145 = vadd.f32 %v143, %v144
  %v146 = vsel %vm82, %v49, 0.0
  %v147 = vadd.f32 %v145, %v146
  %v148 = vsel %vm82, %v50, 0.0
  %v149 = vadd.f32 %v147, %v148
  %v150 = vsel %vm82, %v51, 0.0
  %v151 = vadd.f32 %v149, %v150
  %v152 = vsel %vm82, %v52, 0.0
  %v153 = vadd.f32 %v151, %v152
  %v154 = vsel %vm82, %v53, 0.0
  %v155 = vadd.f32 %v153, %v154
  %v156 = vsel %vm82, %v54, 0.0
  %v157 = vadd.f32 %v155, %v156
  %v158 = vsel %vm82, %v55, 0.0
  %v159 = vadd.f32 %v157, %v158
  %v160 = vsel %vm82, %v56, 0.0
  %v161 = vadd.f32 %v159, %v160
  %v162 = vsel %vm82, %v57, 0.0
  %v163 = vadd.f32 %v161, %v162
  %v164 = vsel %vm82, %v58, 0.0
  %v165 = vadd.f32 %v163, %v164
  %v166 = vsel %vm82, %v59, 0.0
  %v167 = vadd.f32 %v165, %v166
  %v168 = vsel %vm82, %v60, 0.0
  %v169 = vadd.f32 %v167, %v168
  %v170 = vsel %vm82, %v61, 0.0
  %v171 = vadd.f32 %v169, %v170
  %v172 = vsel %vm82, %v62, 0.0
  %v173 = vadd.f32 %v171, %v172
  %v174 = vsel %vm82, %v63, 0.0
  %v175 = vadd.f32 %v173, %v174
  %v176 = vsel %vm82, %v64, 0.0
  %v177 = vadd.f32 %v175, %v176
  %v178 = vsel %vm82, %v65, 0.0
  %v179 = vadd.f32 %v177, %v178
  %v180 = vsel %vm82, %v66, 0.0
  %v181 = vadd.f32 %v179, %v180
  %v182 = vsel %vm82, %v67, 0.0
  %v183 = vadd.f32 %v181, %v182
  %v184 = vsel %vm82, %v68, 0.0
  %v185 = vadd.f32 %v183, %v184
  %v186 = vsel %vm82, %v69, 0.0
  %v187 = vadd.f32 %v185, %v186
  %v188 = vsel %vm82, %v70, 0.0
  %v189 = vadd.f32 %v187, %v188
  %v190 = vsel %vm82, %v71, 0.0
  %v191 = vadd.f32 %v189, %v190
  %v192 = vsel %vm82, %v72, 0.0
  %v193 = vadd.f32 %v191, %v192
  %v194 = vsel %vm82, %v73, 0.0
  %v195 = vadd.f32 %v193, %v194
  %v196 = vsel %vm82, %v74, 0.0
  %v197 = vadd.f32 %v195, %v196
  %v198 = vsel %vm82, %v75, 0.0
  %v199 = vadd.f32 %v197, %v198
  %v200 = vsel %vm82, %v76, 0.0
  %v201 = vadd.f32 %v199, %v200
  %v202 = vsel %vm82, %v77, 0.0
  %v203 = vadd.f32 %v201, %v202
  %v204 = vsel %vm82, %v78, 0.0
  %v205 = vadd.f32 %v203, %v204
  %v206 = vsel %vm82, %v79, 0.0
  %v207 = vadd.f32 %v205, %v206
  %v208 = vsel %vm82, %v80, 0.0
  %v209 = vadd.f32 %v207, %v208
  %v210 = vrot.slane %v209, 4
  %v211 = vadd.f32 %v209, %v210
  %v212 = vrot.slane %v211, 2
  %v213 = vadd.f32 %v211, %v212
  %v214 = vrot.slane %v213, 1
  %v215 = vadd.f32 %v213, %v214
  %v216 = vadd.f32 %v81, %v215
  %vm217 = vcmask 516096
  %218 = vst.msk [vmem:[%s1] sm:$0x1] %vm217, %v216
  %v219 = vld [vmem:[%s2] sm:$0x1]
  %v220 = vmul.f32 %v17, %v17
  %v221 = vmul.f32 %v18, %v18
  %v222 = vmul.f32 %v19, %v19
  %v223 = vmul.f32 %v20, %v20
  %v224 = vmul.f32 %v21, %v21
  %v225 = vmul.f32 %v22, %v22
  %v226 = vmul.f32 %v23, %v23
  %v227 = vmul.f32 %v24, %v24
  %v228 = vmul.f32 %v25, %v25
  %v229 = vmul.f32 %v26, %v26
  %v230 = vmul.f32 %v27, %v27
  %v231 = vmul.f32 %v28, %v28
  %v232 = vmul.f32 %v29, %v29
  %v233 = vmul.f32 %v30, %v30
  %v234 = vmul.f32 %v31, %v31
  %v235 = vmul.f32 %v32, %v32
  %v236 = vmul.f32 %v33, %v33
  %v237 = vmul.f32 %v34, %v34
  %v238 = vmul.f32 %v35, %v35
  %v239 = vmul.f32 %v36, %v36
  %v240 = vmul.f32 %v37, %v37
  %v241 = vmul.f32 %v38, %v38
  %v242 = vmul.f32 %v39, %v39
  %v243 = vmul.f32 %v40, %v40
  %v244 = vmul.f32 %v41, %v41
  %v245 = vmul.f32 %v42, %v42
  %v246 = vmul.f32 %v43, %v43
  %v247 = vmul.f32 %v44, %v44
  %v248 = vmul.f32 %v45, %v45
  %v249 = vmul.f32 %v46, %v46
  %v250 = vmul.f32 %v47, %v47
  %v251 = vmul.f32 %v48, %v48
  %v252 = vmul.f32 %v49, %v49
  %v253 = vmul.f32 %v50, %v50
  %v254 = vmul.f32 %v51, %v51
  %v255 = vmul.f32 %v52, %v52
  %v256 = vmul.f32 %v53, %v53
  %v257 = vmul.f32 %v54, %v54
  %v258 = vmul.f32 %v55, %v55
  %v259 = vmul.f32 %v56, %v56
  %v260 = vmul.f32 %v57, %v57
  %v261 = vmul.f32 %v58, %v58
  %v262 = vmul.f32 %v59, %v59
  %v263 = vmul.f32 %v60, %v60
  %v264 = vmul.f32 %v61, %v61
  %v265 = vmul.f32 %v62, %v62
  %v266 = vmul.f32 %v63, %v63
  %v267 = vmul.f32 %v64, %v64
  %v268 = vmul.f32 %v65, %v65
  %v269 = vmul.f32 %v66, %v66
  %v270 = vmul.f32 %v67, %v67
  %v271 = vmul.f32 %v68, %v68
  %v272 = vmul.f32 %v69, %v69
  %v273 = vmul.f32 %v70, %v70
  %v274 = vmul.f32 %v71, %v71
  %v275 = vmul.f32 %v72, %v72
  %v276 = vmul.f32 %v73, %v73
  %v277 = vmul.f32 %v74, %v74
  %v278 = vmul.f32 %v75, %v75
  %v279 = vmul.f32 %v76, %v76
  %v280 = vmul.f32 %v77, %v77
  %v281 = vmul.f32 %v78, %v78
  %v282 = vmul.f32 %v79, %v79
  %v283 = vmul.f32 %v80, %v80
  %v284 = vsel %vm82, %v220, 0.0
  %v285 = vsel %vm82, %v221, 0.0
  %v286 = vadd.f32 %v284, %v285
  %v287 = vsel %vm82, %v222, 0.0
  %v288 = vadd.f32 %v286, %v287
  %v289 = vsel %vm82, %v223, 0.0
  %v290 = vadd.f32 %v288, %v289
  %v291 = vsel %vm82, %v224, 0.0
  %v292 = vadd.f32 %v290, %v291
  %v293 = vsel %vm82, %v225, 0.0
  %v294 = vadd.f32 %v292, %v293
  %v295 = vsel %vm82, %v226, 0.0
  %v296 = vadd.f32 %v294, %v295
  %v297 = vsel %vm82, %v227, 0.0
  %v298 = vadd.f32 %v296, %v297
  %v299 = vsel %vm82, %v228, 0.0
  %v300 = vadd.f32 %v298, %v299
  %v301 = vsel %vm82, %v229, 0.0
  %v302 = vadd.f32 %v300, %v301
  %v303 = vsel %vm82, %v230, 0.0
  %v304 = vadd.f32 %v302, %v303
  %v305 = vsel %vm82, %v231, 0.0
  %v306 = vadd.f32 %v304, %v305
  %v307 = vsel %vm82, %v232, 0.0
  %v308 = vadd.f32 %v306, %v307
  %v309 = vsel %vm82, %v233, 0.0
  %v310 = vadd.f32 %v308, %v309
  %v311 = vsel %vm82, %v234, 0.0
  %v312 = vadd.f32 %v310, %v311
  %v313 = vsel %vm82, %v235, 0.0
  %v314 = vadd.f32 %v312, %v313
  %v315 = vsel %vm82, %v236, 0.0
  %v316 = vadd.f32 %v314, %v315
  %v317 = vsel %vm82, %v237, 0.0
  %v318 = vadd.f32 %v316, %v317
  %v319 = vsel %vm82, %v238, 0.0
  %v320 = vadd.f32 %v318, %v319
  %v321 = vsel %vm82, %v239, 0.0
  %v322 = vadd.f32 %v320, %v321
  %v323 = vsel %vm82, %v240, 0.0
  %v324 = vadd.f32 %v322, %v323
  %v325 = vsel %vm82, %v241, 0.0
  %v326 = vadd.f32 %v324, %v325
  %v327 = vsel %vm82, %v242, 0.0
  %v328 = vadd.f32 %v326, %v327
  %v329 = vsel %vm82, %v243, 0.0
  %v330 = vadd.f32 %v328, %v329
  %v331 = vsel %vm82, %v244, 0.0
  %v332 = vadd.f32 %v330, %v331
  %v333 = vsel %vm82, %v245, 0.0
  %v334 = vadd.f32 %v332, %v333
  %v335 = vsel %vm82, %v246, 0.0
  %v336 = vadd.f32 %v334, %v335
  %v337 = vsel %vm82, %v247, 0.0
  %v338 = vadd.f32 %v336, %v337
  %v339 = vsel %vm82, %v248, 0.0
  %v340 = vadd.f32 %v338, %v339
  %v341 = vsel %vm82, %v249, 0.0
  %v342 = vadd.f32 %v340, %v341
  %v343 = vsel %vm82, %v250, 0.0
  %v344 = vadd.f32 %v342, %v343
  %v345 = vsel %vm82, %v251, 0.0
  %v346 = vadd.f32 %v344, %v345
  %v347 = vsel %vm82, %v252, 0.0
  %v348 = vadd.f32 %v346, %v347
  %v349 = vsel %vm82, %v253, 0.0
  %v350 = vadd.f32 %v348, %v349
  %v351 = vsel %vm82, %v254, 0.0
  %v352 = vadd.f32 %v350, %v351
  %v353 = vsel %vm82, %v255, 0.0
  %v354 = vadd.f32 %v352, %v353
  %v355 = vsel %vm82, %v256, 0.0
  %v356 = vadd.f32 %v354, %v355
  %v357 = vsel %vm82, %v257, 0.0
  %v358 = vadd.f32 %v356, %v357
  %v359 = vsel %vm82, %v258, 0.0
  %v360 = vadd.f32 %v358, %v359
  %v361 = vsel %vm82, %v259, 0.0
  %v362 = vadd.f32 %v360, %v361
  %v363 = vsel %vm82, %v260, 0.0
  %v364 = vadd.f32 %v362, %v363
  %v365 = vsel %vm82, %v261, 0.0
  %v366 = vadd.f32 %v364, %v365
  %v367 = vsel %vm82, %v262, 0.0
  %v368 = vadd.f32 %v366, %v367
  %v369 = vsel %vm82, %v263, 0.0
  %v370 = vadd.f32 %v368, %v369
  %v371 = vsel %vm82, %v264, 0.0
  %v372 = vadd.f32 %v370, %v371
  %v373 = vsel %vm82, %v265, 0.0
  %v374 = vadd.f32 %v372, %v373
  %v375 = vsel %vm82, %v266, 0.0
  %v376 = vadd.f32 %v374, %v375
  %v377 = vsel %vm82, %v267, 0.0
  %v378 = vadd.f32 %v376, %v377
  %v379 = vsel %vm82, %v268, 0.0
  %v380 = vadd.f32 %v378, %v379
  %v381 = vsel %vm82, %v269, 0.0
  %v382 = vadd.f32 %v380, %v381
  %v383 = vsel %vm82, %v270, 0.0
  %v384 = vadd.f32 %v382, %v383
  %v385 = vsel %vm82, %v271, 0.0
  %v386 = vadd.f32 %v384, %v385
  %v387 = vsel %vm82, %v272, 0.0
  %v388 = vadd.f32 %v386, %v387
  %v389 = vsel %vm82, %v273, 0.0
  %v390 = vadd.f32 %v388, %v389
  %v391 = vsel %vm82, %v274, 0.0
  %v392 = vadd.f32 %v390, %v391
  %v393 = vsel %vm82, %v275, 0.0
  %v394 = vadd.f32 %v392, %v393
  %v395 = vsel %vm82, %v276, 0.0
  %v396 = vadd.f32 %v394, %v395
  %v397 = vsel %vm82, %v277, 0.0
  %v398 = vadd.f32 %v396, %v397
  %v399 = vsel %vm82, %v278, 0.0
  %v400 = vadd.f32 %v398, %v399
  %v401 = vsel %vm82, %v279, 0.0
  %v402 = vadd.f32 %v400, %v401
  %v403 = vsel %vm82, %v280, 0.0
  %v404 = vadd.f32 %v402, %v403
  %v405 = vsel %vm82, %v281, 0.0
  %v406 = vadd.f32 %v404, %v405
  %v407 = vsel %vm82, %v282, 0.0
  %v408 = vadd.f32 %v406, %v407
  %v409 = vsel %vm82, %v283, 0.0
  %v410 = vadd.f32 %v408, %v409
  %v411 = vrot.slane %v410, 4
  %v412 = vadd.f32 %v410, %v411
  %v413 = vrot.slane %v412, 2
  %v414 = vadd.f32 %v412, %v413
  %v415 = vrot.slane %v414, 1
  %v416 = vadd.f32 %v414, %v415
  %v417 = vadd.f32 %v219, %v416
  %418 = vst.msk [vmem:[%s2] sm:$0x1] %vm217, %v417
  // Predicated region
  $region10: #{generator_forward.19} parent=0 // pred_check
    _
  $region11: #{generator_forward.19} parent=0 // pred_check_branch
    %420 = sbr.rel (0) target = $region13
  $region12: #{generator_forward.19} parent=0 // pred_region
    _
  $region13: #{generator_forward.19} parent=0 // pred_fallthru
    _
  // Predicated region
  $region14: #{generator_forward.19} parent=0 // pred_check
    _
  $region15: #{generator_forward.19} parent=0 // pred_check_branch
    %422 = sbr.rel (0) target = $region17
  $region16: #{generator_forward.19} parent=0 // pred_region
    _
  $region17: #{generator_forward.19} parent=0 // pred_fallthru
    _
  // Predicated region
  $region18: #{generator_forward.19} parent=0 // pred_check
    _
  $region19: #{generator_forward.19} parent=0 // pred_check_branch
    %424 = sbr.rel (0) target = $region21
  $region20: #{generator_forward.19} parent=0 // pred_region
    _
  $region21: #{generator_forward.19} parent=0 // pred_fallthru
    _
  // Predicated region
  $region22: #{generator_forward.19} parent=0 // pred_check
    _
  $region23: #{generator_forward.19} parent=0 // pred_check_branch
    %426 = sbr.rel (0) target = $region25
  $region24: #{generator_forward.19} parent=0 // pred_region
    _
  $region25: #{generator_forward.19} parent=0 // pred_fallthru
    _

// kernel: generator_forward.20
$region0: #{generator_forward.20}
  #allocation0 [shape = 'u32[]', space=smem, size = 0x4, offset = 0x4, fixed_abs, tag = 'smem constant byte address 0x4 - core index']
  #allocation1 [shape = 'u32[144,128]{1,0:T(1,128)}', space=vmem, size = 0x12000, scoped, tag = 'internal scratch']
  %s0 = inlined_call_operand.vmem [shape: f32[512,64], index: 0, kind: input, shape index: {}]
  %s1 = inlined_call_operand.vmem [shape: f32[1,64], index: 1, kind: input, shape index: {}]
  %s2 = inlined_call_operand.vmem [shape: f32[1,64], index: 2, kind: input, shape index: {}]
  %s3 = inlined_call_operand.vmem [shape: bf16[512,64], index: 3, kind: output, shape index: {}]
  %s4 = sld [smem:[#allocation0]]
  $region22: #{generator_forward.20} parent=0
    _
  %s6 = ssub.s32 1, %s4
  %s7 = scalar_select 0, %s6, %s4
  // Predicated region
  $region2: #{generator_forward.20} parent=0 // pred_check
    _
  $region3: #{generator_forward.20} parent=0 // pred_check_branch
    %9 = sbr.rel (0) target = $region5
  $region4: #{generator_forward.20} parent=0 // pred_region
    _
  $region5: #{generator_forward.20} parent=0 // pred_fallthru
    _
  // Predicated region
  $region6: #{generator_forward.20} parent=0 // pred_check
    _
  $region7: #{generator_forward.20} parent=0 // pred_check_branch
    %11 = sbr.rel (0) target = $region9
  $region8: #{generator_forward.20} parent=0 // pred_region
    _
  $region9: #{generator_forward.20} parent=0 // pred_fallthru
    _
  // Predicated region
  $region10: #{generator_forward.20} parent=0 // pred_check
    _
  $region11: #{generator_forward.20} parent=0 // pred_check_branch
    %13 = sbr.rel (0) target = $region13
  $region12: #{generator_forward.20} parent=0 // pred_region
    _
  $region13: #{generator_forward.20} parent=0 // pred_fallthru
    _
  %v14 = vld [vmem:[%s0] sm:$0xff]
  %v15 = vld [vmem:[%s0 + $0x8] sm:$0xff]
  %v16 = vld [vmem:[%s0 + $0x10] sm:$0xff]
  %v17 = vld [vmem:[%s0 + $0x18] sm:$0xff]
  %v18 = vld [vmem:[%s0 + $0x20] sm:$0xff]
  %v19 = vld [vmem:[%s0 + $0x28] sm:$0xff]
  %v20 = vld [vmem:[%s0 + $0x30] sm:$0xff]
  %v21 = vld [vmem:[%s0 + $0x38] sm:$0xff]
  %v22 = vld [vmem:[%s0 + $0x40] sm:$0xff]
  %v23 = vld [vmem:[%s0 + $0x48] sm:$0xff]
  %v24 = vld [vmem:[%s0 + $0x50] sm:$0xff]
  %v25 = vld [vmem:[%s0 + $0x58] sm:$0xff]
  %v26 = vld [vmem:[%s0 + $0x60] sm:$0xff]
  %v27 = vld [vmem:[%s0 + $0x68] sm:$0xff]
  %v28 = vld [vmem:[%s0 + $0x70] sm:$0xff]
  %v29 = vld [vmem:[%s0 + $0x78] sm:$0xff]
  %v30 = vld [vmem:[%s0 + $0x80] sm:$0xff]
  %v31 = vld [vmem:[%s0 + $0x88] sm:$0xff]
  %v32 = vld [vmem:[%s0 + $0x90] sm:$0xff]
  %v33 = vld [vmem:[%s0 + $0x98] sm:$0xff]
  %v34 = vld [vmem:[%s0 + $0xa0] sm:$0xff]
  %v35 = vld [vmem:[%s0 + $0xa8] sm:$0xff]
  %v36 = vld [vmem:[%s0 + $0xb0] sm:$0xff]
  %v37 = vld [vmem:[%s0 + $0xb8] sm:$0xff]
  %v38 = vld [vmem:[%s0 + $0xc0] sm:$0xff]
  %v39 = vld [vmem:[%s0 + $0xc8] sm:$0xff]
  %v40 = vld [vmem:[%s0 + $0xd0] sm:$0xff]
  %v41 = vld [vmem:[%s0 + $0xd8] sm:$0xff]
  %v42 = vld [vmem:[%s0 + $0xe0] sm:$0xff]
  %v43 = vld [vmem:[%s0 + $0xe8] sm:$0xff]
  %v44 = vld [vmem:[%s0 + $0xf0] sm:$0xff]
  %v45 = vld [vmem:[%s0 + $0xf8] sm:$0xff]
  %v46 = vld [vmem:[%s0 + $0x100] sm:$0xff]
  %v47 = vld [vmem:[%s0 + $0x108] sm:$0xff]
  %v48 = vld [vmem:[%s0 + $0x110] sm:$0xff]
  %v49 = vld [vmem:[%s0 + $0x118] sm:$0xff]
  %v50 = vld [vmem:[%s0 + $0x120] sm:$0xff]
  %v51 = vld [vmem:[%s0 + $0x128] sm:$0xff]
  %v52 = vld [vmem:[%s0 + $0x130] sm:$0xff]
  %v53 = vld [vmem:[%s0 + $0x138] sm:$0xff]
  %v54 = vld [vmem:[%s0 + $0x140] sm:$0xff]
  %v55 = vld [vmem:[%s0 + $0x148] sm:$0xff]
  %v56 = vld [vmem:[%s0 + $0x150] sm:$0xff]
  %v57 = vld [vmem:[%s0 + $0x158] sm:$0xff]
  %v58 = vld [vmem:[%s0 + $0x160] sm:$0xff]
  %v59 = vld [vmem:[%s0 + $0x168] sm:$0xff]
  %v60 = vld [vmem:[%s0 + $0x170] sm:$0xff]
  %v61 = vld [vmem:[%s0 + $0x178] sm:$0xff]
  %v62 = vld [vmem:[%s0 + $0x180] sm:$0xff]
  %v63 = vld [vmem:[%s0 + $0x188] sm:$0xff]
  %v64 = vld [vmem:[%s0 + $0x190] sm:$0xff]
  %v65 = vld [vmem:[%s0 + $0x198] sm:$0xff]
  %v66 = vld [vmem:[%s0 + $0x1a0] sm:$0xff]
  %v67 = vld [vmem:[%s0 + $0x1a8] sm:$0xff]
  %v68 = vld [vmem:[%s0 + $0x1b0] sm:$0xff]
  %v69 = vld [vmem:[%s0 + $0x1b8] sm:$0xff]
  %v70 = vld [vmem:[%s0 + $0x1c0] sm:$0xff]
  %v71 = vld [vmem:[%s0 + $0x1c8] sm:$0xff]
  %v72 = vld [vmem:[%s0 + $0x1d0] sm:$0xff]
  %v73 = vld [vmem:[%s0 + $0x1d8] sm:$0xff]
  %v74 = vld [vmem:[%s0 + $0x1e0] sm:$0xff]
  %v75 = vld [vmem:[%s0 + $0x1e8] sm:$0xff]
  %v76 = vld [vmem:[%s0 + $0x1f0] sm:$0xff]
  %v77 = vld [vmem:[%s0 + $0x1f8] sm:$0xff]
  %v78 = vld [vmem:[%s1] sm:$0x1]
  %v80 = vlaneseq
  %v81 = vshrl.u32 %v80, 7
  %v82 = vsub.s32 0, %v81
  %v83 = vrot.slane %v78, %v82
  %v85 = vmul.f32 %v14, %v83
  %v86 = vmul.f32 %v15, %v83
  %v87 = vmul.f32 %v16, %v83
  %v88 = vmul.f32 %v17, %v83
  %v89 = vmul.f32 %v18, %v83
  %v90 = vmul.f32 %v19, %v83
  %v91 = vmul.f32 %v20, %v83
  %v92 = vmul.f32 %v21, %v83
  %v93 = vmul.f32 %v22, %v83
  %v94 = vmul.f32 %v23, %v83
  %v95 = vmul.f32 %v24, %v83
  %v96 = vmul.f32 %v25, %v83
  %v97 = vmul.f32 %v26, %v83
  %v98 = vmul.f32 %v27, %v83
  %v99 = vmul.f32 %v28, %v83
  %v100 = vmul.f32 %v29, %v83
  %v101 = vmul.f32 %v30, %v83
  %v102 = vmul.f32 %v31, %v83
  %v103 = vmul.f32 %v32, %v83
  %v104 = vmul.f32 %v33, %v83
  %v105 = vmul.f32 %v34, %v83
  %v106 = vmul.f32 %v35, %v83
  %v107 = vmul.f32 %v36, %v83
  %v108 = vmul.f32 %v37, %v83
  %v109 = vmul.f32 %v38, %v83
  %v110 = vmul.f32 %v39, %v83
  %v111 = vmul.f32 %v40, %v83
  %v112 = vmul.f32 %v41, %v83
  %v113 = vmul.f32 %v42, %v83
  %v114 = vmul.f32 %v43, %v83
  %v115 = vmul.f32 %v44, %v83
  %v116 = vmul.f32 %v45, %v83
  %v117 = vmul.f32 %v46, %v83
  %v118 = vmul.f32 %v47, %v83
  %v119 = vmul.f32 %v48, %v83
  %v120 = vmul.f32 %v49, %v83
  %v121 = vmul.f32 %v50, %v83
  %v122 = vmul.f32 %v51, %v83
  %v123 = vmul.f32 %v52, %v83
  %v124 = vmul.f32 %v53, %v83
  %v125 = vmul.f32 %v54, %v83
  %v126 = vmul.f32 %v55, %v83
  %v127 = vmul.f32 %v56, %v83
  %v128 = vmul.f32 %v57, %v83
  %v129 = vmul.f32 %v58, %v83
  %v130 = vmul.f32 %v59, %v83
  %v131 = vmul.f32 %v60, %v83
  %v132 = vmul.f32 %v61, %v83
  %v133 = vmul.f32 %v62, %v83
  %v134 = vmul.f32 %v63, %v83
  %v135 = vmul.f32 %v64, %v83
  %v136 = vmul.f32 %v65, %v83
  %v137 = vmul.f32 %v66, %v83
  %v138 = vmul.f32 %v67, %v83
  %v139 = vmul.f32 %v68, %v83
  %v140 = vmul.f32 %v69, %v83
  %v141 = vmul.f32 %v70, %v83
  %v142 = vmul.f32 %v71, %v83
  %v143 = vmul.f32 %v72, %v83
  %v144 = vmul.f32 %v73, %v83
  %v145 = vmul.f32 %v74, %v83
  %v146 = vmul.f32 %v75, %v83
  %v147 = vmul.f32 %v76, %v83
  %v148 = vmul.f32 %v77, %v83
  %v149 = vld [vmem:[%s2] sm:$0x1]
  %v151 = vlaneseq
  %v152 = vshrl.u32 %v151, 7
  %v153 = vsub.s32 0, %v152
  %v154 = vrot.slane %v149, %v153
  %v156 = vadd.f32 %v85, %v154
  %v157 = vadd.f32 %v86, %v154
  %v158 = vadd.f32 %v87, %v154
  %v159 = vadd.f32 %v88, %v154
  %v160 = vadd.f32 %v89, %v154
  %v161 = vadd.f32 %v90, %v154
  %v162 = vadd.f32 %v91, %v154
  %v163 = vadd.f32 %v92, %v154
  %v164 = vadd.f32 %v93, %v154
  %v165 = vadd.f32 %v94, %v154
  %v166 = vadd.f32 %v95, %v154
  %v167 = vadd.f32 %v96, %v154
  %v168 = vadd.f32 %v97, %v154
  %v169 = vadd.f32 %v98, %v154
  %v170 = vadd.f32 %v99, %v154
  %v171 = vadd.f32 %v100, %v154
  %v172 = vadd.f32 %v101, %v154
  %v173 = vadd.f32 %v102, %v154
  %v174 = vadd.f32 %v103, %v154
  %v175 = vadd.f32 %v104, %v154
  %v176 = vadd.f32 %v105, %v154
  %v177 = vadd.f32 %v106, %v154
  %v178 = vadd.f32 %v107, %v154
  %v179 = vadd.f32 %v108, %v154
  %v180 = vadd.f32 %v109, %v154
  %v181 = vadd.f32 %v110, %v154
  %v182 = vadd.f32 %v111, %v154
  %v183 = vadd.f32 %v112, %v154
  %v184 = vadd.f32 %v113, %v154
  %v185 = vadd.f32 %v114, %v154
  %v186 = vadd.f32 %v115, %v154
  %v187 = vadd.f32 %v116, %v154
  %v188 = vadd.f32 %v117, %v154
  %v189 = vadd.f32 %v118, %v154
  %v190 = vadd.f32 %v119, %v154
  %v191 = vadd.f32 %v120, %v154
  %v192 = vadd.f32 %v121, %v154
  %v193 = vadd.f32 %v122, %v154
  %v194 = vadd.f32 %v123, %v154
  %v195 = vadd.f32 %v124, %v154
  %v196 = vadd.f32 %v125, %v154
  %v197 = vadd.f32 %v126, %v154
  %v198 = vadd.f32 %v127, %v154
  %v199 = vadd.f32 %v128, %v154
  %v200 = vadd.f32 %v129, %v154
  %v201 = vadd.f32 %v130, %v154
  %v202 = vadd.f32 %v131, %v154
  %v203 = vadd.f32 %v132, %v154
  %v204 = vadd.f32 %v133, %v154
  %v205 = vadd.f32 %v134, %v154
  %v206 = vadd.f32 %v135, %v154
  %v207 = vadd.f32 %v136, %v154
  %v208 = vadd.f32 %v137, %v154
  %v209 = vadd.f32 %v138, %v154
  %v210 = vadd.f32 %v139, %v154
  %v211 = vadd.f32 %v140, %v154
  %v212 = vadd.f32 %v141, %v154
  %v213 = vadd.f32 %v142, %v154
  %v214 = vadd.f32 %v143, %v154
  %v215 = vadd.f32 %v144, %v154
  %v216 = vadd.f32 %v145, %v154
  %v217 = vadd.f32 %v146, %v154
  %v218 = vadd.f32 %v147, %v154
  %v219 = vadd.f32 %v148, %v154
  %v220 = vmax.f32 %v156, 0.0
  %v221 = vmax.f32 %v157, 0.0
  %v222 = vmax.f32 %v158, 0.0
  %v223 = vmax.f32 %v159, 0.0
  %v224 = vmax.f32 %v160, 0.0
  %v225 = vmax.f32 %v161, 0.0
  %v226 = vmax.f32 %v162, 0.0
  %v227 = vmax.f32 %v163, 0.0
  %v228 = vmax.f32 %v164, 0.0
  %v229 = vmax.f32 %v165, 0.0
  %v230 = vmax.f32 %v166, 0.0
  %v231 = vmax.f32 %v167, 0.0
  %v232 = vmax.f32 %v168, 0.0
  %v233 = vmax.f32 %v169, 0.0
  %v234 = vmax.f32 %v170, 0.0
  %v235 = vmax.f32 %v171, 0.0
  %v236 = vmax.f32 %v172, 0.0
  %v237 = vmax.f32 %v173, 0.0
  %v238 = vmax.f32 %v174, 0.0
  %v239 = vmax.f32 %v175, 0.0
  %v240 = vmax.f32 %v176, 0.0
  %v241 = vmax.f32 %v177, 0.0
  %v242 = vmax.f32 %v178, 0.0
  %v243 = vmax.f32 %v179, 0.0
  %v244 = vmax.f32 %v180, 0.0
  %v245 = vmax.f32 %v181, 0.0
  %v246 = vmax.f32 %v182, 0.0
  %v247 = vmax.f32 %v183, 0.0
  %v248 = vmax.f32 %v184, 0.0
  %v249 = vmax.f32 %v185, 0.0
  %v250 = vmax.f32 %v186, 0.0
  %v251 = vmax.f32 %v187, 0.0
  %v252 = vmax.f32 %v188, 0.0
  %v253 = vmax.f32 %v189, 0.0
  %v254 = vmax.f32 %v190, 0.0
  %v255 = vmax.f32 %v191, 0.0
  %v256 = vmax.f32 %v192, 0.0
  %v257 = vmax.f32 %v193, 0.0
  %v258 = vmax.f32 %v194, 0.0
  %v259 = vmax.f32 %v195, 0.0
  %v260 = vmax.f32 %v196, 0.0
  %v261 = vmax.f32 %v197, 0.0
  %v262 = vmax.f32 %v198, 0.0
  %v263 = vmax.f32 %v199, 0.0
  %v264 = vmax.f32 %v200, 0.0
  %v265 = vmax.f32 %v201, 0.0
  %v266 = vmax.f32 %v202, 0.0
  %v267 = vmax.f32 %v203, 0.0
  %v268 = vmax.f32 %v204, 0.0
  %v269 = vmax.f32 %v205, 0.0
  %v270 = vmax.f32 %v206, 0.0
  %v271 = vmax.f32 %v207, 0.0
  %v272 = vmax.f32 %v208, 0.0
  %v273 = vmax.f32 %v209, 0.0
  %v274 = vmax.f32 %v210, 0.0
  %v275 = vmax.f32 %v211, 0.0
  %v276 = vmax.f32 %v212, 0.0
  %v277 = vmax.f32 %v213, 0.0
  %v278 = vmax.f32 %v214, 0.0
  %v279 = vmax.f32 %v215, 0.0
  %v280 = vmax.f32 %v216, 0.0
  %v281 = vmax.f32 %v217, 0.0
  %v282 = vmax.f32 %v218, 0.0
  %v283 = vmax.f32 %v219, 0.0
  %v284 = vpack.c.bf16 %v221, %v220
  %v285 = vpack.c.bf16 %v223, %v222
  %v286 = vpack.c.bf16 %v225, %v224
  %v287 = vpack.c.bf16 %v227, %v226
  %v288 = vpack.c.bf16 %v229, %v228
  %v289 = vpack.c.bf16 %v231, %v230
  %v290 = vpack.c.bf16 %v233, %v232
  %v291 = vpack.c.bf16 %v235, %v234
  %v292 = vpack.c.bf16 %v237, %v236
  %v293 = vpack.c.bf16 %v239, %v238
  %v294 = vpack.c.bf16 %v241, %v240
  %v295 = vpack.c.bf16 %v243, %v242
  %v296 = vpack.c.bf16 %v245, %v244
  %v297 = vpack.c.bf16 %v247, %v246
  %v298 = vpack.c.bf16 %v249, %v248
  %v299 = vpack.c.bf16 %v251, %v250
  %v300 = vpack.c.bf16 %v253, %v252
  %v301 = vpack.c.bf16 %v255, %v254
  %v302 = vpack.c.bf16 %v257, %v256
  %v303 = vpack.c.bf16 %v259, %v258
  %v304 = vpack.c.bf16 %v261, %v260
  %v305 = vpack.c.bf16 %v263, %v262
  %v306 = vpack.c.bf16 %v265, %v264
  %v307 = vpack.c.bf16 %v267, %v266
  %v308 = vpack.c.bf16 %v269, %v268
  %v309 = vpack.c.bf16 %v271, %v270
  %v310 = vpack.c.bf16 %v273, %v272
  %v311 = vpack.c.bf16 %v275, %v274
  %v312 = vpack.c.bf16 %v277, %v276
  %v313 = vpack.c.bf16 %v279, %v278
  %v314 = vpack.c.bf16 %v281, %v280
  %v315 = vpack.c.bf16 %v283, %v282
  %v348 = vunpack.c.l.b16 %v284
  %v349 = vunpack.c.h.b16 %v284
  %v350 = vunpack.c.l.b16 %v285
  %v351 = vunpack.c.h.b16 %v285
  %v352 = vunpack.c.l.b16 %v286
  %v353 = vunpack.c.h.b16 %v286
  %v354 = vunpack.c.l.b16 %v287
  %v355 = vunpack.c.h.b16 %v287
  %v356 = vunpack.c.l.b16 %v288
  %v357 = vunpack.c.h.b16 %v288
  %v358 = vunpack.c.l.b16 %v289
  %v359 = vunpack.c.h.b16 %v289
  %v360 = vunpack.c.l.b16 %v290
  %v361 = vunpack.c.h.b16 %v290
  %v362 = vunpack.c.l.b16 %v291
  %v363 = vunpack.c.h.b16 %v291
  %v364 = vunpack.c.l.b16 %v292
  %v365 = vunpack.c.h.b16 %v292
  %v366 = vunpack.c.l.b16 %v293
  %v367 = vunpack.c.h.b16 %v293
  %v368 = vunpack.c.l.b16 %v294
  %v369 = vunpack.c.h.b16 %v294
  %v370 = vunpack.c.l.b16 %v295
  %v371 = vunpack.c.h.b16 %v295
  %v372 = vunpack.c.l.b16 %v296
  %v373 = vunpack.c.h.b16 %v296
  %v374 = vunpack.c.l.b16 %v297
  %v375 = vunpack.c.h.b16 %v297
  %v376 = vunpack.c.l.b16 %v298
  %v377 = vunpack.c.h.b16 %v298
  %v378 = vunpack.c.l.b16 %v299
  %v379 = vunpack.c.h.b16 %v299
  %v380 = vunpack.c.l.b16 %v300
  %v381 = vunpack.c.h.b16 %v300
  %v382 = vunpack.c.l.b16 %v301
  %v383 = vunpack.c.h.b16 %v301
  %v384 = vunpack.c.l.b16 %v302
  %v385 = vunpack.c.h.b16 %v302
  %v386 = vunpack.c.l.b16 %v303
  %v387 = vunpack.c.h.b16 %v303
  %v388 = vunpack.c.l.b16 %v304
  %v389 = vunpack.c.h.b16 %v304
  %v390 = vunpack.c.l.b16 %v305
  %v391 = vunpack.c.h.b16 %v305
  %v392 = vunpack.c.l.b16 %v306
  %v393 = vunpack.c.h.b16 %v306
  %v394 = vunpack.c.l.b16 %v307
  %v395 = vunpack.c.h.b16 %v307
  %v396 = vunpack.c.l.b16 %v308
  %v397 = vunpack.c.h.b16 %v308
  %v398 = vunpack.c.l.b16 %v309
  %v399 = vunpack.c.h.b16 %v309
  %v400 = vunpack.c.l.b16 %v310
  %v401 = vunpack.c.h.b16 %v310
  %v402 = vunpack.c.l.b16 %v311
  %v403 = vunpack.c.h.b16 %v311
  %v404 = vunpack.c.l.b16 %v312
  %v405 = vunpack.c.h.b16 %v312
  %v406 = vunpack.c.l.b16 %v313
  %v407 = vunpack.c.h.b16 %v313
  %v408 = vunpack.c.l.b16 %v314
  %v409 = vunpack.c.h.b16 %v314
  %v410 = vunpack.c.l.b16 %v315
  %v411 = vunpack.c.h.b16 %v315
  %v412 = vpack.c.b16 %v348, %v348
  %v413 = vpack.c.b16 %v349, %v349
  %v414 = vpack.c.b16 %v350, %v350
  %v415 = vpack.c.b16 %v351, %v351
  %v416 = vpack.c.b16 %v352, %v352
  %v417 = vpack.c.b16 %v353, %v353
  %v418 = vpack.c.b16 %v354, %v354
  %v419 = vpack.c.b16 %v355, %v355
  %v420 = vpack.c.b16 %v356, %v356
  %v421 = vpack.c.b16 %v357, %v357
  %v422 = vpack.c.b16 %v358, %v358
  %v423 = vpack.c.b16 %v359, %v359
  %v424 = vpack.c.b16 %v360, %v360
  %v425 = vpack.c.b16 %v361, %v361
  %v426 = vpack.c.b16 %v362, %v362
  %v427 = vpack.c.b16 %v363, %v363
  %v428 = vpack.c.b16 %v364, %v364
  %v429 = vpack.c.b16 %v365, %v365
  %v430 = vpack.c.b16 %v366, %v366
  %v431 = vpack.c.b16 %v367, %v367
  %v432 = vpack.c.b16 %v368, %v368
  %v433 = vpack.c.b16 %v369, %v369
  %v434 = vpack.c.b16 %v370, %v370
  %v435 = vpack.c.b16 %v371, %v371
  %v436 = vpack.c.b16 %v372, %v372
  %v437 = vpack.c.b16 %v373, %v373
  %v438 = vpack.c.b16 %v374, %v374
  %v439 = vpack.c.b16 %v375, %v375
  %v440 = vpack.c.b16 %v376, %v376
  %v441 = vpack.c.b16 %v377, %v377
  %v442 = vpack.c.b16 %v378, %v378
  %v443 = vpack.c.b16 %v379, %v379
  %v444 = vpack.c.b16 %v380, %v380
  %v445 = vpack.c.b16 %v381, %v381
  %v446 = vpack.c.b16 %v382, %v382
  %v447 = vpack.c.b16 %v383, %v383
  %v448 = vpack.c.b16 %v384, %v384
  %v449 = vpack.c.b16 %v385, %v385
  %v450 = vpack.c.b16 %v386, %v386
  %v451 = vpack.c.b16 %v387, %v387
  %v452 = vpack.c.b16 %v388, %v388
  %v453 = vpack.c.b16 %v389, %v389
  %v454 = vpack.c.b16 %v390, %v390
  %v455 = vpack.c.b16 %v391, %v391
  %v456 = vpack.c.b16 %v392, %v392
  %v457 = vpack.c.b16 %v393, %v393
  %v458 = vpack.c.b16 %v394, %v394
  %v459 = vpack.c.b16 %v395, %v395
  %v460 = vpack.c.b16 %v396, %v396
  %v461 = vpack.c.b16 %v397, %v397
  %v462 = vpack.c.b16 %v398, %v398
  %v463 = vpack.c.b16 %v399, %v399
  %v464 = vpack.c.b16 %v400, %v400
  %v465 = vpack.c.b16 %v401, %v401
  %v466 = vpack.c.b16 %v402, %v402
  %v467 = vpack.c.b16 %v403, %v403
  %v468 = vpack.c.b16 %v404, %v404
  %v469 = vpack.c.b16 %v405, %v405
  %v470 = vpack.c.b16 %v406, %v406
  %v471 = vpack.c.b16 %v407, %v407
  %v472 = vpack.c.b16 %v408, %v408
  %v473 = vpack.c.b16 %v409, %v409
  %v474 = vpack.c.b16 %v410, %v410
  %v475 = vpack.c.b16 %v411, %v411
  %vm540 = vcmask 519168
  %541 = vst.msk [vmem:[%s3] sm:$0xf] %vm540, %v412
  %542 = vst.msk [vmem:[%s3 + $0x4] sm:$0xf] %vm540, %v413
  %543 = vst.msk [vmem:[%s3 + $0x8] sm:$0xf] %vm540, %v414
  %544 = vst.msk [vmem:[%s3 + $0xc] sm:$0xf] %vm540, %v415
  %545 = vst.msk [vmem:[%s3 + $0x10] sm:$0xf] %vm540, %v416
  %546 = vst.msk [vmem:[%s3 + $0x14] sm:$0xf] %vm540, %v417
  %547 = vst.msk [vmem:[%s3 + $0x18] sm:$0xf] %vm540, %v418
  %548 = vst.msk [vmem:[%s3 + $0x1c] sm:$0xf] %vm540, %v419
  %549 = vst.msk [vmem:[%s3 + $0x20] sm:$0xf] %vm540, %v420
  %550 = vst.msk [vmem:[%s3 + $0x24] sm:$0xf] %vm540, %v421
  %551 = vst.msk [vmem:[%s3 + $0x28] sm:$0xf] %vm540, %v422
  %552 = vst.msk [vmem:[%s3 + $0x2c] sm:$0xf] %vm540, %v423
  %553 = vst.msk [vmem:[%s3 + $0x30] sm:$0xf] %vm540, %v424
  %554 = vst.msk [vmem:[%s3 + $0x34] sm:$0xf] %vm540, %v425
  %555 = vst.msk [vmem:[%s3 + $0x38] sm:$0xf] %vm540, %v426
  %556 = vst.msk [vmem:[%s3 + $0x3c] sm:$0xf] %vm540, %v427
  %557 = vst.msk [vmem:[%s3 + $0x40] sm:$0xf] %vm540, %v428
  %558 = vst.msk [vmem:[%s3 + $0x44] sm:$0xf] %vm540, %v429
  %559 = vst.msk [vmem:[%s3 + $0x48] sm:$0xf] %vm540, %v430
  %560 = vst.msk [vmem:[%s3 + $0x4c] sm:$0xf] %vm540, %v431
  %561 = vst.msk [vmem:[%s3 + $0x50] sm:$0xf] %vm540, %v432
  %562 = vst.msk [vmem:[%s3 + $0x54] sm:$0xf] %vm540, %v433
  %563 = vst.msk [vmem:[%s3 + $0x58] sm:$0xf] %vm540, %v434
  %564 = vst.msk [vmem:[%s3 + $0x5c] sm:$0xf] %vm540, %v435
  %565 = vst.msk [vmem:[%s3 + $0x60] sm:$0xf] %vm540, %v436
  %566 = vst.msk [vmem:[%s3 + $0x64] sm:$0xf] %vm540, %v437
  %567 = vst.msk [vmem:[%s3 + $0x68] sm:$0xf] %vm540, %v438
  %568 = vst.msk [vmem:[%s3 + $0x6c] sm:$0xf] %vm540, %v439
  %569 = vst.msk [vmem:[%s3 + $0x70] sm:$0xf] %vm540, %v440
  %570 = vst.msk [vmem:[%s3 + $0x74] sm:$0xf] %vm540, %v441
  %571 = vst.msk [vmem:[%s3 + $0x78] sm:$0xf] %vm540, %v442
  %572 = vst.msk [vmem:[%s3 + $0x7c] sm:$0xf] %vm540, %v443
  %573 = vst.msk [vmem:[%s3 + $0x80] sm:$0xf] %vm540, %v444
  %574 = vst.msk [vmem:[%s3 + $0x84] sm:$0xf] %vm540, %v445
  %575 = vst.msk [vmem:[%s3 + $0x88] sm:$0xf] %vm540, %v446
  %576 = vst.msk [vmem:[%s3 + $0x8c] sm:$0xf] %vm540, %v447
  %577 = vst.msk [vmem:[%s3 + $0x90] sm:$0xf] %vm540, %v448
  %578 = vst.msk [vmem:[%s3 + $0x94] sm:$0xf] %vm540, %v449
  %579 = vst.msk [vmem:[%s3 + $0x98] sm:$0xf] %vm540, %v450
  %580 = vst.msk [vmem:[%s3 + $0x9c] sm:$0xf] %vm540, %v451
  %581 = vst.msk [vmem:[%s3 + $0xa0] sm:$0xf] %vm540, %v452
  %582 = vst.msk [vmem:[%s3 + $0xa4] sm:$0xf] %vm540, %v453
  %583 = vst.msk [vmem:[%s3 + $0xa8] sm:$0xf] %vm540, %v454
  %584 = vst.msk [vmem:[%s3 + $0xac] sm:$0xf] %vm540, %v455
  %585 = vst.msk [vmem:[%s3 + $0xb0] sm:$0xf] %vm540, %v456
  %586 = vst.msk [vmem:[%s3 + $0xb4] sm:$0xf] %vm540, %v457
  %587 = vst.msk [vmem:[%s3 + $0xb8] sm:$0xf] %vm540, %v458
  %588 = vst.msk [vmem:[%s3 + $0xbc] sm:$0xf] %vm540, %v459
  %589 = vst.msk [vmem:[%s3 + $0xc0] sm:$0xf] %vm540, %v460
  %590 = vst.msk [vmem:[%s3 + $0xc4] sm:$0xf] %vm540, %v461
  %591 = vst.msk [vmem:[%s3 + $0xc8] sm:$0xf] %vm540, %v462
  %592 = vst.msk [vmem:[%s3 + $0xcc] sm:$0xf] %vm540, %v463
  %593 = vst.msk [vmem:[%s3 + $0xd0] sm:$0xf] %vm540, %v464
  %594 = vst.msk [vmem:[%s3 + $0xd4] sm:$0xf] %vm540, %v465
  %595 = vst.msk [vmem:[%s3 + $0xd8] sm:$0xf] %vm540, %v466
  %596 = vst.msk [vmem:[%s3 + $0xdc] sm:$0xf] %vm540, %v467
  %597 = vst.msk [vmem:[%s3 + $0xe0] sm:$0xf] %vm540, %v468
  %598 = vst.msk [vmem:[%s3 + $0xe4] sm:$0xf] %vm540, %v469
  %599 = vst.msk [vmem:[%s3 + $0xe8] sm:$0xf] %vm540, %v470
  %600 = vst.msk [vmem:[%s3 + $0xec] sm:$0xf] %vm540, %v471
  %601 = vst.msk [vmem:[%s3 + $0xf0] sm:$0xf] %vm540, %v472
  %602 = vst.msk [vmem:[%s3 + $0xf4] sm:$0xf] %vm540, %v473
  %603 = vst.msk [vmem:[%s3 + $0xf8] sm:$0xf] %vm540, %v474
  %604 = vst.msk [vmem:[%s3 + $0xfc] sm:$0xf] %vm540, %v475
  // Predicated region
  $region14: #{generator_forward.20} parent=0 // pred_check
    _
  $region15: #{generator_forward.20} parent=0 // pred_check_branch
    %606 = sbr.rel (0) target = $region17
  $region16: #{generator_forward.20} parent=0 // pred_region
    _
  $region17: #{generator_forward.20} parent=0 // pred_fallthru
    _
  // Predicated region
  $region18: #{generator_forward.20} parent=0 // pred_check
    _
  $region19: #{generator_forward.20} parent=0 // pred_check_branch
    %608 = sbr.rel (0) target = $region21
  $region20: #{generator_forward.20} parent=0 // pred_region
    _
  $region21: #{generator_forward.20} parent=0 // pred_fallthru
    _

// kernel: generator_forward.21
$region0: #{generator_forward.21}
  #allocation0 [shape = 'u32[]', space=smem, size = 0x4, offset = 0x4, fixed_abs, tag = 'smem constant byte address 0x4 - core index']
  #allocation1 [shape = 'u32[144,128]{1,0:T(1,128)}', space=vmem, size = 0x12000, scoped, tag = 'internal scratch']
  %s0 = inlined_call_operand.vmem [shape: bf16[578,256], index: 0, kind: input, shape index: {}]
  %s1 = inlined_call_operand.vmem [shape: bf16[256,12], index: 1, kind: input, shape index: {}]
  %s2 = inlined_call_operand.vmem [shape: f32[1,12], index: 2, kind: input, shape index: {}]
  %s3 = inlined_call_operand.vmem [shape: f32[578,12], index: 3, kind: output, shape index: {}]
  %s4 = sld [smem:[#allocation0]]
  $region22: #{generator_forward.21} parent=0
    _
  %s6 = ssub.s32 1, %s4
  %s7 = scalar_select 0, %s6, %s4
  // Predicated region
  $region2: #{generator_forward.21} parent=0 // pred_check
    _
  $region3: #{generator_forward.21} parent=0 // pred_check_branch
    %9 = sbr.rel (0) target = $region5
  $region4: #{generator_forward.21} parent=0 // pred_region
    _
  $region5: #{generator_forward.21} parent=0 // pred_fallthru
    _
  // Predicated region
  $region6: #{generator_forward.21} parent=0 // pred_check
    _
  $region7: #{generator_forward.21} parent=0 // pred_check_branch
    %11 = sbr.rel (0) target = $region9
  $region8: #{generator_forward.21} parent=0 // pred_region
    _
  $region9: #{generator_forward.21} parent=0 // pred_fallthru
    _
  // Predicated region
  $region10: #{generator_forward.21} parent=0 // pred_check
    _
  $region11: #{generator_forward.21} parent=0 // pred_check_branch
    %13 = sbr.rel (0) target = $region13
  $region12: #{generator_forward.21} parent=0 // pred_region
    _
  $region13: #{generator_forward.21} parent=0 // pred_fallthru
    _
  %v15 = vld [vmem:[%s0] sm:$0xff]
  %v16 = vld [vmem:[%s0 + $0x8] sm:$0xff]
  %v17 = vld [vmem:[%s0 + $0x10] sm:$0xff]
  %v18 = vld [vmem:[%s0 + $0x18] sm:$0xff]
  %v19 = vld [vmem:[%s0 + $0x20] sm:$0xff]
  %v20 = vld [vmem:[%s0 + $0x28] sm:$0xff]
  %v21 = vld [vmem:[%s0 + $0x30] sm:$0xff]
  %v22 = vld [vmem:[%s0 + $0x38] sm:$0xff]
  %v23 = vld [vmem:[%s0 + $0x40] sm:$0xff]
  %v24 = vld [vmem:[%s0 + $0x48] sm:$0xff]
  %v25 = vld [vmem:[%s0 + $0x50] sm:$0xff]
  %v26 = vld [vmem:[%s0 + $0x58] sm:$0xff]
  %v27 = vld [vmem:[%s0 + $0x60] sm:$0xff]
  %v28 = vld [vmem:[%s0 + $0x68] sm:$0xff]
  %v29 = vld [vmem:[%s0 + $0x70] sm:$0xff]
  %v30 = vld [vmem:[%s0 + $0x78] sm:$0xff]
  %v31 = vld [vmem:[%s0 + $0x80] sm:$0xff]
  %v32 = vld [vmem:[%s0 + $0x88] sm:$0xff]
  %v33 = vld [vmem:[%s0 + $0x90] sm:$0xff]
  %v34 = vld [vmem:[%s0 + $0x98] sm:$0xff]
  %v35 = vld [vmem:[%s0 + $0xa0] sm:$0xff]
  %v36 = vld [vmem:[%s0 + $0xa8] sm:$0xff]
  %v37 = vld [vmem:[%s0 + $0xb0] sm:$0xff]
  %v38 = vld [vmem:[%s0 + $0xb8] sm:$0xff]
  %v39 = vld [vmem:[%s0 + $0xc0] sm:$0xff]
  %v40 = vld [vmem:[%s0 + $0xc8] sm:$0xff]
  %v41 = vld [vmem:[%s0 + $0xd0] sm:$0xff]
  %v42 = vld [vmem:[%s0 + $0xd8] sm:$0xff]
  %v43 = vld [vmem:[%s0 + $0xe0] sm:$0xff]
  %v44 = vld [vmem:[%s0 + $0xe8] sm:$0xff]
  %v45 = vld [vmem:[%s0 + $0xf0] sm:$0xff]
  %v46 = vld [vmem:[%s0 + $0xf8] sm:$0xff]
  %v47 = vld [vmem:[%s0 + $0x100] sm:$0xff]
  %v48 = vld [vmem:[%s0 + $0x108] sm:$0xff]
  %v49 = vld [vmem:[%s0 + $0x110] sm:$0xff]
  %v50 = vld [vmem:[%s0 + $0x118] sm:$0xff]
  %v51 = vld [vmem:[%s0 + $0x120] sm:$0xff]
  %v52 = vld [vmem:[%s0 + $0x128] sm:$0xff]
  %v53 = vld [vmem:[%s0 + $0x130] sm:$0xff]
  %v54 = vld [vmem:[%s0 + $0x138] sm:$0xff]
  %v55 = vld [vmem:[%s0 + $0x140] sm:$0xff]
  %v56 = vld [vmem:[%s0 + $0x148] sm:$0xff]
  %v57 = vld [vmem:[%s0 + $0x150] sm:$0xff]
  %v58 = vld [vmem:[%s0 + $0x158] sm:$0xff]
  %v59 = vld [vmem:[%s0 + $0x160] sm:$0xff]
  %v60 = vld [vmem:[%s0 + $0x168] sm:$0xff]
  %v61 = vld [vmem:[%s0 + $0x170] sm:$0xff]
  %v62 = vld [vmem:[%s0 + $0x178] sm:$0xff]
  %v63 = vld [vmem:[%s0 + $0x180] sm:$0xff]
  %v64 = vld [vmem:[%s0 + $0x188] sm:$0xff]
  %v65 = vld [vmem:[%s0 + $0x190] sm:$0xff]
  %v66 = vld [vmem:[%s0 + $0x198] sm:$0xff]
  %v67 = vld [vmem:[%s0 + $0x1a0] sm:$0xff]
  %v68 = vld [vmem:[%s0 + $0x1a8] sm:$0xff]
  %v69 = vld [vmem:[%s0 + $0x1b0] sm:$0xff]
  %v70 = vld [vmem:[%s0 + $0x1b8] sm:$0xff]
  %v71 = vld [vmem:[%s0 + $0x1c0] sm:$0xff]
  %v72 = vld [vmem:[%s0 + $0x1c8] sm:$0xff]
  %v73 = vld [vmem:[%s0 + $0x1d0] sm:$0xff]
  %v74 = vld [vmem:[%s0 + $0x1d8] sm:$0xff]
  %v75 = vld [vmem:[%s0 + $0x1e0] sm:$0xff]
  %v76 = vld [vmem:[%s0 + $0x1e8] sm:$0xff]
  %v77 = vld [vmem:[%s0 + $0x1f0] sm:$0xff]
  %v78 = vld [vmem:[%s0 + $0x1f8] sm:$0xff]
  %v79 = vld [vmem:[%s0 + $0x200] sm:$0xff]
  %v80 = vld [vmem:[%s0 + $0x208] sm:$0xff]
  %v81 = vld [vmem:[%s0 + $0x210] sm:$0xff]
  %v82 = vld [vmem:[%s0 + $0x218] sm:$0xff]
  %v83 = vld [vmem:[%s0 + $0x220] sm:$0xff]
  %v84 = vld [vmem:[%s0 + $0x228] sm:$0xff]
  %v85 = vld [vmem:[%s0 + $0x230] sm:$0xff]
  %v86 = vld [vmem:[%s0 + $0x238] sm:$0xff]
  %v87 = vld [vmem:[%s0 + $0x240] sm:$0x11]
  %v88 = vld [vmem:[%s1] sm:$0xf]
  %v89 = vld [vmem:[%s1 + $0x4] sm:$0xf]
  %v90 = vld [vmem:[%s1 + $0x8] sm:$0xf]
  %v91 = vld [vmem:[%s1 + $0xc] sm:$0xf]
  %v92 = vld [vmem:[%s1 + $0x10] sm:$0xf]
  %v93 = vld [vmem:[%s1 + $0x14] sm:$0xf]
  %v94 = vld [vmem:[%s1 + $0x18] sm:$0xf]
  %v95 = vld [vmem:[%s1 + $0x1c] sm:$0xf]
  %v96 = vld [vmem:[%s1 + $0x20] sm:$0xf]
  %v97 = vld [vmem:[%s1 + $0x24] sm:$0xf]
  %v98 = vld [vmem:[%s1 + $0x28] sm:$0xf]
  %v99 = vld [vmem:[%s1 + $0x2c] sm:$0xf]
  %v100 = vld [vmem:[%s1 + $0x30] sm:$0xf]
  %v101 = vld [vmem:[%s1 + $0x34] sm:$0xf]
  %v102 = vld [vmem:[%s1 + $0x38] sm:$0xf]
  %v103 = vld [vmem:[%s1 + $0x3c] sm:$0xf]
  %v104 = vld [vmem:[%s1 + $0x40] sm:$0xf]
  %v105 = vld [vmem:[%s1 + $0x44] sm:$0xf]
  %v106 = vld [vmem:[%s1 + $0x48] sm:$0xf]
  %v107 = vld [vmem:[%s1 + $0x4c] sm:$0xf]
  %v108 = vld [vmem:[%s1 + $0x50] sm:$0xf]
  %v109 = vld [vmem:[%s1 + $0x54] sm:$0xf]
  %v110 = vld [vmem:[%s1 + $0x58] sm:$0xf]
  %v111 = vld [vmem:[%s1 + $0x5c] sm:$0xf]
  %v112 = vld [vmem:[%s1 + $0x60] sm:$0xf]
  %v113 = vld [vmem:[%s1 + $0x64] sm:$0xf]
  %v114 = vld [vmem:[%s1 + $0x68] sm:$0xf]
  %v115 = vld [vmem:[%s1 + $0x6c] sm:$0xf]
  %v116 = vld [vmem:[%s1 + $0x70] sm:$0xf]
  %v117 = vld [vmem:[%s1 + $0x74] sm:$0xf]
  %v118 = vld [vmem:[%s1 + $0x78] sm:$0xf]
  %v119 = vld [vmem:[%s1 + $0x7c] sm:$0xf]
  %v120 = vld [vmem:[%s2] sm:$0x1]
  %v122 = vlaneseq
  %v123 = vshrl.u32 %v122, 7
  %v124 = vsub.s32 0, %v123
  %v125 = vrot.slane %v120, %v124
  %v200 = vunpack.c.l.b16 %v15
  %v201 = vunpack.c.h.b16 %v15
  %v202 = vunpack.c.l.b16 %v16
  %v203 = vunpack.c.h.b16 %v16
  %v204 = vunpack.c.l.b16 %v17
  %v205 = vunpack.c.h.b16 %v17
  %v206 = vunpack.c.l.b16 %v18
  %v207 = vunpack.c.h.b16 %v18
  %v208 = vunpack.c.l.b16 %v19
  %v209 = vunpack.c.h.b16 %v19
  %v210 = vunpack.c.l.b16 %v20
  %v211 = vunpack.c.h.b16 %v20
  %v212 = vunpack.c.l.b16 %v21
  %v213 = vunpack.c.h.b16 %v21
  %v214 = vunpack.c.l.b16 %v22
  %v215 = vunpack.c.h.b16 %v22
  %v216 = vunpack.c.l.b16 %v23
  %v217 = vunpack.c.h.b16 %v23
  %v218 = vunpack.c.l.b16 %v24
  %v219 = vunpack.c.h.b16 %v24
  %v220 = vunpack.c.l.b16 %v25
  %v221 = vunpack.c.h.b16 %v25
  %v222 = vunpack.c.l.b16 %v26
  %v223 = vunpack.c.h.b16 %v26
  %v224 = vunpack.c.l.b16 %v27
  %v225 = vunpack.c.h.b16 %v27
  %v226 = vunpack.c.l.b16 %v28
  %v227 = vunpack.c.h.b16 %v28
  %v228 = vunpack.c.l.b16 %v29
  %v229 = vunpack.c.h.b16 %v29
  %v230 = vunpack.c.l.b16 %v30
  %v231 = vunpack.c.h.b16 %v30
  %v232 = vunpack.c.l.b16 %v31
  %v233 = vunpack.c.h.b16 %v31
  %v234 = vunpack.c.l.b16 %v32
  %v235 = vunpack.c.h.b16 %v32
  %v236 = vunpack.c.l.b16 %v33
  %v237 = vunpack.c.h.b16 %v33
  %v238 = vunpack.c.l.b16 %v34
  %v239 = vunpack.c.h.b16 %v34
  %v240 = vunpack.c.l.b16 %v35
  %v241 = vunpack.c.h.b16 %v35
  %v242 = vunpack.c.l.b16 %v36
  %v243 = vunpack.c.h.b16 %v36
  %v244 = vunpack.c.l.b16 %v37
  %v245 = vunpack.c.h.b16 %v37
  %v246 = vunpack.c.l.b16 %v38
  %v247 = vunpack.c.h.b16 %v38
  %v248 = vunpack.c.l.b16 %v39
  %v249 = vunpack.c.h.b16 %v39
  %v250 = vunpack.c.l.b16 %v40
  %v251 = vunpack.c.h.b16 %v40
  %v252 = vunpack.c.l.b16 %v41
  %v253 = vunpack.c.h.b16 %v41
  %v254 = vunpack.c.l.b16 %v42
  %v255 = vunpack.c.h.b16 %v42
  %v256 = vunpack.c.l.b16 %v43
  %v257 = vunpack.c.h.b16 %v43
  %v258 = vunpack.c.l.b16 %v44
  %v259 = vunpack.c.h.b16 %v44
  %v260 = vunpack.c.l.b16 %v45
  %v261 = vunpack.c.h.b16 %v45
  %v262 = vunpack.c.l.b16 %v46
  %v263 = vunpack.c.h.b16 %v46
  %v264 = vunpack.c.l.b16 %v47
  %v265 = vunpack.c.h.b16 %v47
  %v266 = vunpack.c.l.b16 %v48
  %v267 = vunpack.c.h.b16 %v48
  %v268 = vunpack.c.l.b16 %v49
  %v269 = vunpack.c.h.b16 %v49
  %v270 = vunpack.c.l.b16 %v50
  %v271 = vunpack.c.h.b16 %v50
  %v272 = vunpack.c.l.b16 %v51
  %v273 = vunpack.c.h.b16 %v51
  %v274 = vunpack.c.l.b16 %v52
  %v275 = vunpack.c.h.b16 %v52
  %v276 = vunpack.c.l.b16 %v53
  %v277 = vunpack.c.h.b16 %v53
  %v278 = vunpack.c.l.b16 %v54
  %v279 = vunpack.c.h.b16 %v54
  %v280 = vunpack.c.l.b16 %v55
  %v281 = vunpack.c.h.b16 %v55
  %v282 = vunpack.c.l.b16 %v56
  %v283 = vunpack.c.h.b16 %v56
  %v284 = vunpack.c.l.b16 %v57
  %v285 = vunpack.c.h.b16 %v57
  %v286 = vunpack.c.l.b16 %v58
  %v287 = vunpack.c.h.b16 %v58
  %v288 = vunpack.c.l.b16 %v59
  %v289 = vunpack.c.h.b16 %v59
  %v290 = vunpack.c.l.b16 %v60
  %v291 = vunpack.c.h.b16 %v60
  %v292 = vunpack.c.l.b16 %v61
  %v293 = vunpack.c.h.b16 %v61
  %v294 = vunpack.c.l.b16 %v62
  %v295 = vunpack.c.h.b16 %v62
  %v296 = vunpack.c.l.b16 %v63
  %v297 = vunpack.c.h.b16 %v63
  %v298 = vunpack.c.l.b16 %v64
  %v299 = vunpack.c.h.b16 %v64
  %v300 = vunpack.c.l.b16 %v65
  %v301 = vunpack.c.h.b16 %v65
  %v302 = vunpack.c.l.b16 %v66
  %v303 = vunpack.c.h.b16 %v66
  %v304 = vunpack.c.l.b16 %v67
  %v305 = vunpack.c.h.b16 %v67
  %v306 = vunpack.c.l.b16 %v68
  %v307 = vunpack.c.h.b16 %v68
  %v308 = vunpack.c.l.b16 %v69
  %v309 = vunpack.c.h.b16 %v69
  %v310 = vunpack.c.l.b16 %v70
  %v311 = vunpack.c.h.b16 %v70
  %v312 = vunpack.c.l.b16 %v71
  %v313 = vunpack.c.h.b16 %v71
  %v314 = vunpack.c.l.b16 %v72
  %v315 = vunpack.c.h.b16 %v72
  %v316 = vunpack.c.l.b16 %v73
  %v317 = vunpack.c.h.b16 %v73
  %v318 = vunpack.c.l.b16 %v74
  %v319 = vunpack.c.h.b16 %v74
  %v320 = vunpack.c.l.b16 %v75
  %v321 = vunpack.c.h.b16 %v75
  %v322 = vunpack.c.l.b16 %v76
  %v323 = vunpack.c.h.b16 %v76
  %v324 = vunpack.c.l.b16 %v77
  %v325 = vunpack.c.h.b16 %v77
  %v326 = vunpack.c.l.b16 %v78
  %v327 = vunpack.c.h.b16 %v78
  %v328 = vunpack.c.l.b16 %v79
  %v329 = vunpack.c.h.b16 %v79
  %v330 = vunpack.c.l.b16 %v80
  %v331 = vunpack.c.h.b16 %v80
  %v332 = vunpack.c.l.b16 %v81
  %v333 = vunpack.c.h.b16 %v81
  %v334 = vunpack.c.l.b16 %v82
  %v335 = vunpack.c.h.b16 %v82
  %v336 = vunpack.c.l.b16 %v83
  %v337 = vunpack.c.h.b16 %v83
  %v338 = vunpack.c.l.b16 %v84
  %v339 = vunpack.c.h.b16 %v84
  %v340 = vunpack.c.l.b16 %v85
  %v341 = vunpack.c.h.b16 %v85
  %v342 = vunpack.c.l.b16 %v86
  %v343 = vunpack.c.h.b16 %v86
  %v344 = vunpack.c.l.b16 %v87
  %v345 = vunpack.c.h.b16 %v87
  %v346 = vpack.c.b16 %v202, %v200
  %v347 = vpack.c.b16 %v203, %v201
  %v348 = vpack.c.b16 %v206, %v204
  %v349 = vpack.c.b16 %v207, %v205
  %v350 = vpack.c.b16 %v210, %v208
  %v351 = vpack.c.b16 %v211, %v209
  %v352 = vpack.c.b16 %v214, %v212
  %v353 = vpack.c.b16 %v215, %v213
  %v354 = vpack.c.b16 %v218, %v216
  %v355 = vpack.c.b16 %v219, %v217
  %v356 = vpack.c.b16 %v222, %v220
  %v357 = vpack.c.b16 %v223, %v221
  %v358 = vpack.c.b16 %v226, %v224
  %v359 = vpack.c.b16 %v227, %v225
  %v360 = vpack.c.b16 %v230, %v228
  %v361 = vpack.c.b16 %v231, %v229
  %v362 = vpack.c.b16 %v234, %v232
  %v363 = vpack.c.b16 %v235, %v233
  %v364 = vpack.c.b16 %v238, %v236
  %v365 = vpack.c.b16 %v239, %v237
  %v366 = vpack.c.b16 %v242, %v240
  %v367 = vpack.c.b16 %v243, %v241
  %v368 = vpack.c.b16 %v246, %v244
  %v369 = vpack.c.b16 %v247, %v245
  %v370 = vpack.c.b16 %v250, %v248
  %v371 = vpack.c.b16 %v251, %v249
  %v372 = vpack.c.b16 %v254, %v252
  %v373 = vpack.c.b16 %v255, %v253
  %v374 = vpack.c.b16 %v258, %v256
  %v375 = vpack.c.b16 %v259, %v257
  %v376 = vpack.c.b16 %v262, %v260
  %v377 = vpack.c.b16 %v263, %v261
  %v378 = vpack.c.b16 %v266, %v264
  %v379 = vpack.c.b16 %v267, %v265
  %v380 = vpack.c.b16 %v270, %v268
  %v381 = vpack.c.b16 %v271, %v269
  %v382 = vpack.c.b16 %v274, %v272
  %v383 = vpack.c.b16 %v275, %v273
  %v384 = vpack.c.b16 %v278, %v276
  %v385 = vpack.c.b16 %v279, %v277
  %v386 = vpack.c.b16 %v282, %v280
  %v387 = vpack.c.b16 %v283, %v281
  %v388 = vpack.c.b16 %v286, %v284
  %v389 = vpack.c.b16 %v287, %v285
  %v390 = vpack.c.b16 %v290, %v288
  %v391 = vpack.c.b16 %v291, %v289
  %v392 = vpack.c.b16 %v294, %v292
  %v393 = vpack.c.b16 %v295, %v293
  %v394 = vpack.c.b16 %v298, %v296
  %v395 = vpack.c.b16 %v299, %v297
  %v396 = vpack.c.b16 %v302, %v300
  %v397 = vpack.c.b16 %v303, %v301
  %v398 = vpack.c.b16 %v306, %v304
  %v399 = vpack.c.b16 %v307, %v305
  %v400 = vpack.c.b16 %v310, %v308
  %v401 = vpack.c.b16 %v311, %v309
  %v402 = vpack.c.b16 %v314, %v312
  %v403 = vpack.c.b16 %v315, %v313
  %v404 = vpack.c.b16 %v318, %v316
  %v405 = vpack.c.b16 %v319, %v317
  %v406 = vpack.c.b16 %v322, %v320
  %v407 = vpack.c.b16 %v323, %v321
  %v408 = vpack.c.b16 %v326, %v324
  %v409 = vpack.c.b16 %v327, %v325
  %v410 = vpack.c.b16 %v330, %v328
  %v411 = vpack.c.b16 %v331, %v329
  %v412 = vpack.c.b16 %v334, %v332
  %v413 = vpack.c.b16 %v335, %v333
  %v414 = vpack.c.b16 %v338, %v336
  %v415 = vpack.c.b16 %v339, %v337
  %v416 = vpack.c.b16 %v342, %v340
  %v417 = vpack.c.b16 %v343, %v341
  %v418 = vpack.c.b16 %v344, %v344
  %v419 = vpack.c.b16 %v345, %v345
  %v526 = vunpack.c.l.b16 %v88
  %v527 = vunpack.c.l.b16 %v89
  %v528 = vunpack.c.l.b16 %v90
  %v529 = vunpack.c.l.b16 %v91
  %v530 = vunpack.c.l.b16 %v92
  %v531 = vunpack.c.l.b16 %v93
  %v532 = vunpack.c.l.b16 %v94
  %v533 = vunpack.c.l.b16 %v95
  %v534 = vunpack.c.l.b16 %v96
  %v535 = vunpack.c.l.b16 %v97
  %v536 = vunpack.c.l.b16 %v98
  %v537 = vunpack.c.l.b16 %v99
  %v538 = vunpack.c.l.b16 %v100
  %v539 = vunpack.c.l.b16 %v101
  %v540 = vunpack.c.l.b16 %v102
  %v541 = vunpack.c.l.b16 %v103
  %v542 = vunpack.c.l.b16 %v104
  %v543 = vunpack.c.l.b16 %v105
  %v544 = vunpack.c.l.b16 %v106
  %v545 = vunpack.c.l.b16 %v107
  %v546 = vunpack.c.l.b16 %v108
  %v547 = vunpack.c.l.b16 %v109
  %v548 = vunpack.c.l.b16 %v110
  %v549 = vunpack.c.l.b16 %v111
  %v550 = vunpack.c.l.b16 %v112
  %v551 = vunpack.c.l.b16 %v113
  %v552 = vunpack.c.l.b16 %v114
  %v553 = vunpack.c.l.b16 %v115
  %v554 = vunpack.c.l.b16 %v116
  %v555 = vunpack.c.l.b16 %v117
  %v556 = vunpack.c.l.b16 %v118
  %v557 = vunpack.c.l.b16 %v119
  %v558 = vpack.c.b16 %v527, %v526
  %v559 = vpack.c.b16 %v529, %v528
  %v560 = vpack.c.b16 %v531, %v530
  %v561 = vpack.c.b16 %v533, %v532
  %v562 = vpack.c.b16 %v535, %v534
  %v563 = vpack.c.b16 %v537, %v536
  %v564 = vpack.c.b16 %v539, %v538
  %v565 = vpack.c.b16 %v541, %v540
  %v566 = vpack.c.b16 %v543, %v542
  %v567 = vpack.c.b16 %v545, %v544
  %v568 = vpack.c.b16 %v547, %v546
  %v569 = vpack.c.b16 %v549, %v548
  %v570 = vpack.c.b16 %v551, %v550
  %v571 = vpack.c.b16 %v553, %v552
  %v572 = vpack.c.b16 %v555, %v554
  %v573 = vpack.c.b16 %v557, %v556
  %590 = vmatprep.subr.bf16.mxu0 0
  %591 = vmatpush1.bf16.msra.mxu0 %v558
  %592 = vmatprep.subr.bf16.mxu0 0
  %593 = vmatpush1.bf16.msra.mxu0 %v559
  %594 = vmatprep.subr.bf16.mxu0 0
  %595 = vmatpush1.bf16.msra.mxu0 %v560
  %596 = vmatprep.subr.bf16.mxu0 0
  %597 = vmatpush1.bf16.msra.mxu0 %v561
  %598 = vmatprep.subr.bf16.mxu0 0
  %599 = vmatpush1.bf16.msra.mxu0 %v562
  %600 = vmatprep.subr.bf16.mxu0 0
  %601 = vmatpush1.bf16.msra.mxu0 %v563
  %602 = vmatprep.subr.bf16.mxu0 0
  %603 = vmatpush1.bf16.msra.mxu0 %v564
  %604 = vmatprep.subr.bf16.mxu0 0
  %605 = vmatpush1.bf16.msra.mxu0 %v565
  %606 = vmatprep.subr.bf16.mxu0 0
  %607 = vmatpush1.bf16.msra.mxu0 %v566
  %608 = vmatprep.subr.bf16.mxu0 0
  %609 = vmatpush1.bf16.msra.mxu0 %v567
  %610 = vmatprep.subr.bf16.mxu0 0
  %611 = vmatpush1.bf16.msra.mxu0 %v568
  %612 = vmatprep.subr.bf16.mxu0 0
  %613 = vmatpush1.bf16.msra.mxu0 %v569
  %614 = vmatprep.subr.bf16.mxu0 0
  %615 = vmatpush1.bf16.msra.mxu0 %v570
  %616 = vmatprep.subr.bf16.mxu0 0
  %617 = vmatpush1.bf16.msra.mxu0 %v571
  %618 = vmatprep.subr.bf16.mxu0 0
  %619 = vmatpush1.bf16.msra.mxu0 %v572
  %620 = vmatprep.subr.bf16.mxu0 0
  %621 = vmatpush1.bf16.msra.mxu0 %v573
  %622 = vmatprep.mubr.bf16.mxu0 %v347
  %623 = vmatmul.mubr.bf16.gmra.mrb[0].mxu0 %v346
  %v624 = vpop.f32.mrb[0].mxu0
  %v625 = vadd.f32 %v125, %v624
  %v626 = vpop.f32.mrb[0].mxu0
  %v627 = vpop.f32.mrb[0].mxu0
  %v628 = vadd.f32 %v125, %v627
  %v629 = vpop.f32.mrb[0].mxu0
  %630 = vmatprep.mubr.bf16.mxu0 %v349
  %631 = vmatmul.mubr.bf16.gmra.mrb[0].mxu0 %v348
  %v632 = vpop.f32.mrb[0].mxu0
  %v633 = vadd.f32 %v125, %v632
  %v634 = vpop.f32.mrb[0].mxu0
  %v635 = vpop.f32.mrb[0].mxu0
  %v636 = vadd.f32 %v125, %v635
  %v637 = vpop.f32.mrb[0].mxu0
  %638 = vmatprep.mubr.bf16.mxu0 %v351
  %639 = vmatmul.mubr.bf16.gmra.mrb[0].mxu0 %v350
  %v640 = vpop.f32.mrb[0].mxu0
  %v641 = vadd.f32 %v125, %v640
  %v642 = vpop.f32.mrb[0].mxu0
  %v643 = vpop.f32.mrb[0].mxu0
  %v644 = vadd.f32 %v125, %v643
  %v645 = vpop.f32.mrb[0].mxu0
  %646 = vmatprep.mubr.bf16.mxu0 %v353
  %647 = vmatmul.mubr.bf16.gmra.mrb[0].mxu0 %v352
  %v648 = vpop.f32.mrb[0].mxu0
  %v649 = vadd.f32 %v125, %v648
  %v650 = vpop.f32.mrb[0].mxu0
  %v651 = vpop.f32.mrb[0].mxu0
  %v652 = vadd.f32 %v125, %v651
  %v653 = vpop.f32.mrb[0].mxu0
  %654 = vmatprep.mubr.bf16.mxu0 %v355
  %655 = vmatmul.mubr.bf16.gmra.mrb[0].mxu0 %v354
  %v656 = vpop.f32.mrb[0].mxu0
  %v657 = vadd.f32 %v125, %v656
  %v658 = vpop.f32.mrb[0].mxu0
  %v659 = vpop.f32.mrb[0].mxu0
  %v660 = vadd.f32 %v125, %v659
  %v661 = vpop.f32.mrb[0].mxu0
  %662 = vmatprep.mubr.bf16.mxu0 %v357
  %663 = vmatmul.mubr.bf16.gmra.mrb[0].mxu0 %v356
  %v664 = vpop.f32.mrb[0].mxu0
  %v665 = vadd.f32 %v125, %v664
  %v666 = vpop.f32.mrb[0].mxu0
  %v667 = vpop.f32.mrb[0].mxu0
  %v668 = vadd.f32 %v125, %v667
  %v669 = vpop.f32.mrb[0].mxu0
  %670 = vmatprep.mubr.bf16.mxu0 %v359
  %671 = vmatmul.mubr.bf16.gmra.mrb[0].mxu0 %v358
  %v672 = vpop.f32.mrb[0].mxu0
  %v673 = vadd.f32 %v125, %v672
  %v674 = vpop.f32.mrb[0].mxu0
  %v675 = vpop.f32.mrb[0].mxu0
  %v676 = vadd.f32 %v125, %v675
  %v677 = vpop.f32.mrb[0].mxu0
  %678 = vmatprep.mubr.bf16.mxu0 %v361
  %679 = vmatmul.mubr.bf16.gmra.mrb[0].mxu0 %v360
  %v680 = vpop.f32.mrb[0].mxu0
  %v681 = vadd.f32 %v125, %v680
  %v682 = vpop.f32.mrb[0].mxu0
  %v683 = vpop.f32.mrb[0].mxu0
  %v684 = vadd.f32 %v125, %v683
  %v685 = vpop.f32.mrb[0].mxu0
  %686 = vmatprep.mubr.bf16.mxu0 %v363
  %687 = vmatmul.mubr.bf16.gmra.mrb[0].mxu0 %v362
  %v688 = vpop.f32.mrb[0].mxu0
  %v689 = vadd.f32 %v125, %v688
  %v690 = vpop.f32.mrb[0].mxu0
  %v691 = vpop.f32.mrb[0].mxu0
  %v692 = vadd.f32 %v125, %v691
  %v693 = vpop.f32.mrb[0].mxu0
  %694 = vmatprep.mubr.bf16.mxu0 %v365
  %695 = vmatmul.mubr.bf16.gmra.mrb[0].mxu0 %v364
  %v696 = vpop.f32.mrb[0].mxu0
  %v697 = vadd.f32 %v125, %v696
  %v698 = vpop.f32.mrb[0].mxu0
  %v699 = vpop.f32.mrb[0].mxu0
  %v700 = vadd.f32 %v125, %v699
  %v701 = vpop.f32.mrb[0].mxu0
  %702 = vmatprep.mubr.bf16.mxu0 %v367
  %703 = vmatmul.mubr.bf16.gmra.mrb[0].mxu0 %v366
  %v704 = vpop.f32.mrb[0].mxu0
  %v705 = vadd.f32 %v125, %v704
  %v706 = vpop.f32.mrb[0].mxu0
  %v707 = vpop.f32.mrb[0].mxu0
  %v708 = vadd.f32 %v125, %v707
  %v709 = vpop.f32.mrb[0].mxu0
  %710 = vmatprep.mubr.bf16.mxu0 %v369
  %711 = vmatmul.mubr.bf16.gmra.mrb[0].mxu0 %v368
  %v712 = vpop.f32.mrb[0].mxu0
  %v713 = vadd.f32 %v125, %v712
  %v714 = vpop.f32.mrb[0].mxu0
  %v715 = vpop.f32.mrb[0].mxu0
  %v716 = vadd.f32 %v125, %v715
  %v717 = vpop.f32.mrb[0].mxu0
  %718 = vmatprep.mubr.bf16.mxu0 %v371
  %719 = vmatmul.mubr.bf16.gmra.mrb[0].mxu0 %v370
  %v720 = vpop.f32.mrb[0].mxu0
  %v721 = vadd.f32 %v125, %v720
  %v722 = vpop.f32.mrb[0].mxu0
  %v723 = vpop.f32.mrb[0].mxu0
  %v724 = vadd.f32 %v125, %v723
  %v725 = vpop.f32.mrb[0].mxu0
  %726 = vmatprep.mubr.bf16.mxu0 %v373
  %727 = vmatmul.mubr.bf16.gmra.mrb[0].mxu0 %v372
  %v728 = vpop.f32.mrb[0].mxu0
  %v729 = vadd.f32 %v125, %v728
  %v730 = vpop.f32.mrb[0].mxu0
  %v731 = vpop.f32.mrb[0].mxu0
  %v732 = vadd.f32 %v125, %v731
  %v733 = vpop.f32.mrb[0].mxu0
  %734 = vmatprep.mubr.bf16.mxu0 %v375
  %735 = vmatmul.mubr.bf16.gmra.mrb[0].mxu0 %v374
  %v736 = vpop.f32.mrb[0].mxu0
  %v737 = vadd.f32 %v125, %v736
  %v738 = vpop.f32.mrb[0].mxu0
  %v739 = vpop.f32.mrb[0].mxu0
  %v740 = vadd.f32 %v125, %v739
  %v741 = vpop.f32.mrb[0].mxu0
  %742 = vmatprep.mubr.bf16.mxu0 %v377
  %743 = vmatmul.mubr.bf16.gmra.mrb[0].mxu0 %v376
  %v744 = vpop.f32.mrb[0].mxu0
  %v745 = vadd.f32 %v125, %v744
  %v746 = vpop.f32.mrb[0].mxu0
  %v747 = vpop.f32.mrb[0].mxu0
  %v748 = vadd.f32 %v125, %v747
  %v749 = vpop.f32.mrb[0].mxu0
  %750 = vmatprep.mubr.bf16.mxu0 %v379
  %751 = vmatmul.mubr.bf16.gmra.mrb[0].mxu0 %v378
  %v752 = vpop.f32.mrb[0].mxu0
  %v753 = vadd.f32 %v125, %v752
  %v754 = vpop.f32.mrb[0].mxu0
  %v755 = vpop.f32.mrb[0].mxu0
  %v756 = vadd.f32 %v125, %v755
  %v757 = vpop.f32.mrb[0].mxu0
  %758 = vmatprep.mubr.bf16.mxu0 %v381
  %759 = vmatmul.mubr.bf16.gmra.mrb[0].mxu0 %v380
  %v760 = vpop.f32.mrb[0].mxu0
  %v761 = vadd.f32 %v125, %v760
  %v762 = vpop.f32.mrb[0].mxu0
  %v763 = vpop.f32.mrb[0].mxu0
  %v764 = vadd.f32 %v125, %v763
  %v765 = vpop.f32.mrb[0].mxu0
  %766 = vmatprep.mubr.bf16.mxu0 %v383
  %767 = vmatmul.mubr.bf16.gmra.mrb[0].mxu0 %v382
  %v768 = vpop.f32.mrb[0].mxu0
  %v769 = vadd.f32 %v125, %v768
  %v770 = vpop.f32.mrb[0].mxu0
  %v771 = vpop.f32.mrb[0].mxu0
  %v772 = vadd.f32 %v125, %v771
  %v773 = vpop.f32.mrb[0].mxu0
  %774 = vmatprep.mubr.bf16.mxu0 %v385
  %775 = vmatmul.mubr.bf16.gmra.mrb[0].mxu0 %v384
  %v776 = vpop.f32.mrb[0].mxu0
  %v777 = vadd.f32 %v125, %v776
  %v778 = vpop.f32.mrb[0].mxu0
  %v779 = vpop.f32.mrb[0].mxu0
  %v780 = vadd.f32 %v125, %v779
  %v781 = vpop.f32.mrb[0].mxu0
  %782 = vmatprep.mubr.bf16.mxu0 %v387
  %783 = vmatmul.mubr.bf16.gmra.mrb[0].mxu0 %v386
  %v784 = vpop.f32.mrb[0].mxu0
  %v785 = vadd.f32 %v125, %v784
  %v786 = vpop.f32.mrb[0].mxu0
  %v787 = vpop.f32.mrb[0].mxu0
  %v788 = vadd.f32 %v125, %v787
  %v789 = vpop.f32.mrb[0].mxu0
  %790 = vmatprep.mubr.bf16.mxu0 %v389
  %791 = vmatmul.mubr.bf16.gmra.mrb[0].mxu0 %v388
  %v792 = vpop.f32.mrb[0].mxu0
  %v793 = vadd.f32 %v125, %v792
  %v794 = vpop.f32.mrb[0].mxu0
  %v795 = vpop.f32.mrb[0].mxu0
  %v796 = vadd.f32 %v125, %v795
  %v797 = vpop.f32.mrb[0].mxu0
  %798 = vmatprep.mubr.bf16.mxu0 %v391
  %799 = vmatmul.mubr.bf16.gmra.mrb[0].mxu0 %v390
  %v800 = vpop.f32.mrb[0].mxu0
  %v801 = vadd.f32 %v125, %v800
  %v802 = vpop.f32.mrb[0].mxu0
  %v803 = vpop.f32.mrb[0].mxu0
  %v804 = vadd.f32 %v125, %v803
  %v805 = vpop.f32.mrb[0].mxu0
  %806 = vmatprep.mubr.bf16.mxu0 %v393
  %807 = vmatmul.mubr.bf16.gmra.mrb[0].mxu0 %v392
  %v808 = vpop.f32.mrb[0].mxu0
  %v809 = vadd.f32 %v125, %v808
  %v810 = vpop.f32.mrb[0].mxu0
  %v811 = vpop.f32.mrb[0].mxu0
  %v812 = vadd.f32 %v125, %v811
  %v813 = vpop.f32.mrb[0].mxu0
  %814 = vmatprep.mubr.bf16.mxu0 %v395
  %815 = vmatmul.mubr.bf16.gmra.mrb[0].mxu0 %v394
  %v816 = vpop.f32.mrb[0].mxu0
  %v817 = vadd.f32 %v125, %v816
  %v818 = vpop.f32.mrb[0].mxu0
  %v819 = vpop.f32.mrb[0].mxu0
  %v820 = vadd.f32 %v125, %v819
  %v821 = vpop.f32.mrb[0].mxu0
  %822 = vmatprep.mubr.bf16.mxu0 %v397
  %823 = vmatmul.mubr.bf16.gmra.mrb[0].mxu0 %v396
  %v824 = vpop.f32.mrb[0].mxu0
  %v825 = vadd.f32 %v125, %v824
  %v826 = vpop.f32.mrb[0].mxu0
  %v827 = vpop.f32.mrb[0].mxu0
  %v828 = vadd.f32 %v125, %v827
  %v829 = vpop.f32.mrb[0].mxu0
  %830 = vmatprep.mubr.bf16.mxu0 %v399
  %831 = vmatmul.mubr.bf16.gmra.mrb[0].mxu0 %v398
  %v832 = vpop.f32.mrb[0].mxu0
  %v833 = vadd.f32 %v125, %v832
  %v834 = vpop.f32.mrb[0].mxu0
  %v835 = vpop.f32.mrb[0].mxu0
  %v836 = vadd.f32 %v125, %v835
  %v837 = vpop.f32.mrb[0].mxu0
  %838 = vmatprep.mubr.bf16.mxu0 %v401
  %839 = vmatmul.mubr.bf16.gmra.mrb[0].mxu0 %v400
  %v840 = vpop.f32.mrb[0].mxu0
  %v841 = vadd.f32 %v125, %v840
  %v842 = vpop.f32.mrb[0].mxu0
  %v843 = vpop.f32.mrb[0].mxu0
  %v844 = vadd.f32 %v125, %v843
  %v845 = vpop.f32.mrb[0].mxu0
  %846 = vmatprep.mubr.bf16.mxu0 %v403
  %847 = vmatmul.mubr.bf16.gmra.mrb[0].mxu0 %v402
  %v848 = vpop.f32.mrb[0].mxu0
  %v849 = vadd.f32 %v125, %v848
  %v850 = vpop.f32.mrb[0].mxu0
  %v851 = vpop.f32.mrb[0].mxu0
  %v852 = vadd.f32 %v125, %v851
  %v853 = vpop.f32.mrb[0].mxu0
  %854 = vmatprep.mubr.bf16.mxu0 %v405
  %855 = vmatmul.mubr.bf16.gmra.mrb[0].mxu0 %v404
  %v856 = vpop.f32.mrb[0].mxu0
  %v857 = vadd.f32 %v125, %v856
  %v858 = vpop.f32.mrb[0].mxu0
  %v859 = vpop.f32.mrb[0].mxu0
  %v860 = vadd.f32 %v125, %v859
  %v861 = vpop.f32.mrb[0].mxu0
  %862 = vmatprep.mubr.bf16.mxu0 %v407
  %863 = vmatmul.mubr.bf16.gmra.mrb[0].mxu0 %v406
  %v864 = vpop.f32.mrb[0].mxu0
  %v865 = vadd.f32 %v125, %v864
  %v866 = vpop.f32.mrb[0].mxu0
  %v867 = vpop.f32.mrb[0].mxu0
  %v868 = vadd.f32 %v125, %v867
  %v869 = vpop.f32.mrb[0].mxu0
  %870 = vmatprep.mubr.bf16.mxu0 %v409
  %871 = vmatmul.mubr.bf16.gmra.mrb[0].mxu0 %v408
  %v872 = vpop.f32.mrb[0].mxu0
  %v873 = vadd.f32 %v125, %v872
  %v874 = vpop.f32.mrb[0].mxu0
  %v875 = vpop.f32.mrb[0].mxu0
  %v876 = vadd.f32 %v125, %v875
  %v877 = vpop.f32.mrb[0].mxu0
  %878 = vmatprep.mubr.bf16.mxu0 %v411
  %879 = vmatmul.mubr.bf16.gmra.mrb[0].mxu0 %v410
  %v880 = vpop.f32.mrb[0].mxu0
  %v881 = vadd.f32 %v125, %v880
  %v882 = vpop.f32.mrb[0].mxu0
  %v883 = vpop.f32.mrb[0].mxu0
  %v884 = vadd.f32 %v125, %v883
  %v885 = vpop.f32.mrb[0].mxu0
  %886 = vmatprep.mubr.bf16.mxu0 %v413
  %887 = vmatmul.mubr.bf16.gmra.mrb[0].mxu0 %v412
  %v888 = vpop.f32.mrb[0].mxu0
  %v889 = vadd.f32 %v125, %v888
  %v890 = vpop.f32.mrb[0].mxu0
  %v891 = vpop.f32.mrb[0].mxu0
  %v892 = vadd.f32 %v125, %v891
  %v893 = vpop.f32.mrb[0].mxu0
  %894 = vmatprep.mubr.bf16.mxu0 %v415
  %895 = vmatmul.mubr.bf16.gmra.mrb[0].mxu0 %v414
  %v896 = vpop.f32.mrb[0].mxu0
  %v897 = vadd.f32 %v125, %v896
  %v898 = vpop.f32.mrb[0].mxu0
  %v899 = vpop.f32.mrb[0].mxu0
  %v900 = vadd.f32 %v125, %v899
  %v901 = vpop.f32.mrb[0].mxu0
  %902 = vmatprep.mubr.bf16.mxu0 %v417
  %903 = vmatmul.mubr.bf16.gmra.mrb[0].mxu0 %v416
  %v904 = vpop.f32.mrb[0].mxu0
  %v905 = vadd.f32 %v125, %v904
  %v906 = vpop.f32.mrb[0].mxu0
  %v907 = vpop.f32.mrb[0].mxu0
  %v908 = vadd.f32 %v125, %v907
  %v909 = vpop.f32.mrb[0].mxu0
  %910 = vmatprep.mubr.bf16.mxu0 %v419
  %911 = vmatmul.mubr.bf16.gmra.mrb[0].mxu0 %v418
  %v912 = vpop.f32.mrb[0].mxu0
  %v913 = vadd.f32 %v125, %v912
  %v914 = vpop.f32.mrb[0].mxu0
  %v915 = vpop.f32.mrb[0].mxu0
  %v916 = vpop.f32.mrb[0].mxu0
  %917 = vdwg.mxu0
  %v918 = vtanh.pop %v625
  %v919 = vtanh.pop %v628
  %v920 = vtanh.pop %v633
  %v921 = vtanh.pop %v636
  %v922 = vtanh.pop %v641
  %v923 = vtanh.pop %v644
  %v924 = vtanh.pop %v649
  %v925 = vtanh.pop %v652
  %v926 = vtanh.pop %v657
  %v927 = vtanh.pop %v660
  %v928 = vtanh.pop %v665
  %v929 = vtanh.pop %v668
  %v930 = vtanh.pop %v673
  %v931 = vtanh.pop %v676
  %v932 = vtanh.pop %v681
  %v933 = vtanh.pop %v684
  %v934 = vtanh.pop %v689
  %v935 = vtanh.pop %v692
  %v936 = vtanh.pop %v697
  %v937 = vtanh.pop %v700
  %v938 = vtanh.pop %v705
  %v939 = vtanh.pop %v708
  %v940 = vtanh.pop %v713
  %v941 = vtanh.pop %v716
  %v942 = vtanh.pop %v721
  %v943 = vtanh.pop %v724
  %v944 = vtanh.pop %v729
  %v945 = vtanh.pop %v732
  %v946 = vtanh.pop %v737
  %v947 = vtanh.pop %v740
  %v948 = vtanh.pop %v745
  %v949 = vtanh.pop %v748
  %v950 = vtanh.pop %v753
  %v951 = vtanh.pop %v756
  %v952 = vtanh.pop %v761
  %v953 = vtanh.pop %v764
  %v954 = vtanh.pop %v769
  %v955 = vtanh.pop %v772
  %v956 = vtanh.pop %v777
  %v957 = vtanh.pop %v780
  %v958 = vtanh.pop %v785
  %v959 = vtanh.pop %v788
  %v960 = vtanh.pop %v793
  %v961 = vtanh.pop %v796
  %v962 = vtanh.pop %v801
  %v963 = vtanh.pop %v804
  %v964 = vtanh.pop %v809
  %v965 = vtanh.pop %v812
  %v966 = vtanh.pop %v817
  %v967 = vtanh.pop %v820
  %v968 = vtanh.pop %v825
  %v969 = vtanh.pop %v828
  %v970 = vtanh.pop %v833
  %v971 = vtanh.pop %v836
  %v972 = vtanh.pop %v841
  %v973 = vtanh.pop %v844
  %v974 = vtanh.pop %v849
  %v975 = vtanh.pop %v852
  %v976 = vtanh.pop %v857
  %v977 = vtanh.pop %v860
  %v978 = vtanh.pop %v865
  %v979 = vtanh.pop %v868
  %v980 = vtanh.pop %v873
  %v981 = vtanh.pop %v876
  %v982 = vtanh.pop %v881
  %v983 = vtanh.pop %v884
  %v984 = vtanh.pop %v889
  %v985 = vtanh.pop %v892
  %v986 = vtanh.pop %v897
  %v987 = vtanh.pop %v900
  %v988 = vtanh.pop %v905
  %v989 = vtanh.pop %v908
  %v990 = vtanh.pop %v913
  %vm991 = vcmask 97280
  %992 = vst.msk [vmem:[%s3] sm:$0xff] %vm991, %v918
  %993 = vst.msk [vmem:[%s3 + $0x8] sm:$0xff] %vm991, %v919
  %994 = vst.msk [vmem:[%s3 + $0x10] sm:$0xff] %vm991, %v920
  %995 = vst.msk [vmem:[%s3 + $0x18] sm:$0xff] %vm991, %v921
  %996 = vst.msk [vmem:[%s3 + $0x20] sm:$0xff] %vm991, %v922
  %997 = vst.msk [vmem:[%s3 + $0x28] sm:$0xff] %vm991, %v923
  %998 = vst.msk [vmem:[%s3 + $0x30] sm:$0xff] %vm991, %v924
  %999 = vst.msk [vmem:[%s3 + $0x38] sm:$0xff] %vm991, %v925
  %1000 = vst.msk [vmem:[%s3 + $0x40] sm:$0xff] %vm991, %v926
  %1001 = vst.msk [vmem:[%s3 + $0x48] sm:$0xff] %vm991, %v927
  %1002 = vst.msk [vmem:[%s3 + $0x50] sm:$0xff] %vm991, %v928
  %1003 = vst.msk [vmem:[%s3 + $0x58] sm:$0xff] %vm991, %v929
  %1004 = vst.msk [vmem:[%s3 + $0x60] sm:$0xff] %vm991, %v930
  %1005 = vst.msk [vmem:[%s3 + $0x68] sm:$0xff] %vm991, %v931
  %1006 = vst.msk [vmem:[%s3 + $0x70] sm:$0xff] %vm991, %v932
  %1007 = vst.msk [vmem:[%s3 + $0x78] sm:$0xff] %vm991, %v933
  %1008 = vst.msk [vmem:[%s3 + $0x80] sm:$0xff] %vm991, %v934
  %1009 = vst.msk [vmem:[%s3 + $0x88] sm:$0xff] %vm991, %v935
  %1010 = vst.msk [vmem:[%s3 + $0x90] sm:$0xff] %vm991, %v936
  %1011 = vst.msk [vmem:[%s3 + $0x98] sm:$0xff] %vm991, %v937
  %1012 = vst.msk [vmem:[%s3 + $0xa0] sm:$0xff] %vm991, %v938
  %1013 = vst.msk [vmem:[%s3 + $0xa8] sm:$0xff] %vm991, %v939
  %1014 = vst.msk [vmem:[%s3 + $0xb0] sm:$0xff] %vm991, %v940
  %1015 = vst.msk [vmem:[%s3 + $0xb8] sm:$0xff] %vm991, %v941
  %1016 = vst.msk [vmem:[%s3 + $0xc0] sm:$0xff] %vm991, %v942
  %1017 = vst.msk [vmem:[%s3 + $0xc8] sm:$0xff] %vm991, %v943
  %1018 = vst.msk [vmem:[%s3 + $0xd0] sm:$0xff] %vm991, %v944
  %1019 = vst.msk [vmem:[%s3 + $0xd8] sm:$0xff] %vm991, %v945
  %1020 = vst.msk [vmem:[%s3 + $0xe0] sm:$0xff] %vm991, %v946
  %1021 = vst.msk [vmem:[%s3 + $0xe8] sm:$0xff] %vm991, %v947
  %1022 = vst.msk [vmem:[%s3 + $0xf0] sm:$0xff] %vm991, %v948
  %1023 = vst.msk [vmem:[%s3 + $0xf8] sm:$0xff] %vm991, %v949
  %1024 = vst.msk [vmem:[%s3 + $0x100] sm:$0xff] %vm991, %v950
  %1025 = vst.msk [vmem:[%s3 + $0x108] sm:$0xff] %vm991, %v951
  %1026 = vst.msk [vmem:[%s3 + $0x110] sm:$0xff] %vm991, %v952
  %1027 = vst.msk [vmem:[%s3 + $0x118] sm:$0xff] %vm991, %v953
  %1028 = vst.msk [vmem:[%s3 + $0x120] sm:$0xff] %vm991, %v954
  %1029 = vst.msk [vmem:[%s3 + $0x128] sm:$0xff] %vm991, %v955
  %1030 = vst.msk [vmem:[%s3 + $0x130] sm:$0xff] %vm991, %v956
  %1031 = vst.msk [vmem:[%s3 + $0x138] sm:$0xff] %vm991, %v957
  %1032 = vst.msk [vmem:[%s3 + $0x140] sm:$0xff] %vm991, %v958
  %1033 = vst.msk [vmem:[%s3 + $0x148] sm:$0xff] %vm991, %v959
  %1034 = vst.msk [vmem:[%s3 + $0x150] sm:$0xff] %vm991, %v960
  %1035 = vst.msk [vmem:[%s3 + $0x158] sm:$0xff] %vm991, %v961
  %1036 = vst.msk [vmem:[%s3 + $0x160] sm:$0xff] %vm991, %v962
  %1037 = vst.msk [vmem:[%s3 + $0x168] sm:$0xff] %vm991, %v963
  %1038 = vst.msk [vmem:[%s3 + $0x170] sm:$0xff] %vm991, %v964
  %1039 = vst.msk [vmem:[%s3 + $0x178] sm:$0xff] %vm991, %v965
  %1040 = vst.msk [vmem:[%s3 + $0x180] sm:$0xff] %vm991, %v966
  %1041 = vst.msk [vmem:[%s3 + $0x188] sm:$0xff] %vm991, %v967
  %1042 = vst.msk [vmem:[%s3 + $0x190] sm:$0xff] %vm991, %v968
  %1043 = vst.msk [vmem:[%s3 + $0x198] sm:$0xff] %vm991, %v969
  %1044 = vst.msk [vmem:[%s3 + $0x1a0] sm:$0xff] %vm991, %v970
  %1045 = vst.msk [vmem:[%s3 + $0x1a8] sm:$0xff] %vm991, %v971
  %1046 = vst.msk [vmem:[%s3 + $0x1b0] sm:$0xff] %vm991, %v972
  %1047 = vst.msk [vmem:[%s3 + $0x1b8] sm:$0xff] %vm991, %v973
  %1048 = vst.msk [vmem:[%s3 + $0x1c0] sm:$0xff] %vm991, %v974
  %1049 = vst.msk [vmem:[%s3 + $0x1c8] sm:$0xff] %vm991, %v975
  %1050 = vst.msk [vmem:[%s3 + $0x1d0] sm:$0xff] %vm991, %v976
  %1051 = vst.msk [vmem:[%s3 + $0x1d8] sm:$0xff] %vm991, %v977
  %1052 = vst.msk [vmem:[%s3 + $0x1e0] sm:$0xff] %vm991, %v978
  %1053 = vst.msk [vmem:[%s3 + $0x1e8] sm:$0xff] %vm991, %v979
  %1054 = vst.msk [vmem:[%s3 + $0x1f0] sm:$0xff] %vm991, %v980
  %1055 = vst.msk [vmem:[%s3 + $0x1f8] sm:$0xff] %vm991, %v981
  %1056 = vst.msk [vmem:[%s3 + $0x200] sm:$0xff] %vm991, %v982
  %1057 = vst.msk [vmem:[%s3 + $0x208] sm:$0xff] %vm991, %v983
  %1058 = vst.msk [vmem:[%s3 + $0x210] sm:$0xff] %vm991, %v984
  %1059 = vst.msk [vmem:[%s3 + $0x218] sm:$0xff] %vm991, %v985
  %1060 = vst.msk [vmem:[%s3 + $0x220] sm:$0xff] %vm991, %v986
  %1061 = vst.msk [vmem:[%s3 + $0x228] sm:$0xff] %vm991, %v987
  %1062 = vst.msk [vmem:[%s3 + $0x230] sm:$0xff] %vm991, %v988
  %1063 = vst.msk [vmem:[%s3 + $0x238] sm:$0xff] %vm991, %v989
  %vm1064 = vcmask 91136
  %1065 = vst.msk [vmem:[%s3 + $0x240] sm:$0x3] %vm1064, %v990
  // Predicated region
  $region14: #{generator_forward.21} parent=0 // pred_check
    _
  $region15: #{generator_forward.21} parent=0 // pred_check_branch
    %1067 = sbr.rel (0) target = $region17
  $region16: #{generator_forward.21} parent=0 // pred_region
    _
  $region17: #{generator_forward.21} parent=0 // pred_fallthru
    _
  // Predicated region
  $region18: #{generator_forward.21} parent=0 // pred_check
    _
  $region19: #{generator_forward.21} parent=0 // pred_check_branch
    %1069 = sbr.rel (0) target = $region21
  $region20: #{generator_forward.21} parent=0 // pred_region
    _
  $region21: #{generator_forward.21} parent=0 // pred_fallthru
    _

</llo_original>
